<compile_context>
chip_gen: v7x
topology: tpu7x:2x2x1
jax: 0.10.0
libtpu: 0.0.40
codegen_flags: <defaults>
</compile_context>

<pallas_src>
import functools

import jax
import jax.numpy as jnp
from jax.experimental import pallas as pl
from jax.experimental.pallas import tpu as pltpu


# Placement of the real image inside the zero-padded staging buffer.
#   _R0   : first interior row.   8  -> interior stores are sublane aligned.
#   _C0   : first interior pixel. 8  -> lane offset 8*C = 128, lane aligned.
#   _PMAX : halo needed below/right of the interior (largest conv 7x7 -> 3).
_R0, _C0, _PMAX = 8, 8, 3


def _layer_schedule(res_num):
    """[(kernel_size, activation)] for conv_first, res_num x MB, conv_last and
    each layer's first band index inside the concatenated Toeplitz weights."""
    layers = [(7, "relu")]
    for _ in range(res_num):
        layers += [(7, "relu"), (3, "relu")]
    layers += [(3, "sigmoid")]
    offs, o = [], 0
    for k, _ in layers:
        offs.append(o)
        o += k
    return layers, offs, o


def _toeplitz_bands(w, C, W):
    """HWIO conv weight (K,K,Cin,Cout) -> (K, Wpad*C, W*C) block-Toeplitz bands.

    bands[kh, (C0 - P + kw + wc)*C + ci, wc*C + co] = w[kh, kw, ci, co]
    so that     out_row = sum_kh  xpad[row + kh - P, :] @ bands[kh]
    reproduces the 'same'-padded cross-correlation (PyTorch Conv2d, bias-free)
    with the output already in lane-dense (H, W*C) layout.
    """
    K = w.shape[0]
    assert w.shape[0] == w.shape[1] and K % 2 == 1, "odd square kernels only"
    P = K // 2
    cin, cout = w.shape[2], w.shape[3]
    Wpad = _C0 + W + _PMAX
    wp = jnp.pad(w.astype(jnp.float32),
                 ((0, 0), (0, 0), (0, C - cin), (0, C - cout)))
    # indicator[kw, wc, src] = 1.0  iff  src == C0 - P + kw + wc
    tgt = (_C0 - P) + jnp.arange(K)[:, None] + jnp.arange(W)[None, :]
    ind = (tgt[:, :, None] == jnp.arange(Wpad)[None, None, :]).astype(jnp.float32)
    bands = jnp.einsum("hkio,kws->hsiwo", wp, ind)      # (K, Wpad, C, W, C)
    return bands.reshape(K, Wpad * C, W * C)


def fold_mnet_params(params, img_w):
    """One-time weight prep (model-load time, not per forward): fold every conv
    to block-Toeplitz band form and concatenate all bands into a single
    (num_bands, Wpad*C, W*C) operand (one DMA stream)."""
    C = params["conv_first"].shape[-1]
    ch_out = params["conv_last"].shape[-1]
    res_num = len(params["mbs"])
    bands = [_toeplitz_bands(params["conv_first"], C, img_w)]
    for (w1, w2) in params["mbs"]:
        bands.append(_toeplitz_bands(w1, C, img_w))
        bands.append(_toeplitz_bands(w2, C, img_w))
    bands.append(_toeplitz_bands(params["conv_last"], C, img_w))
    wcat = jnp.concatenate(bands, axis=0)
    return wcat, C, ch_out, res_num


def _make_mnet_kernel(H, W, C, res_num):
    """Whole network: conv_first -> res_num x (7x7+ReLU, 3x3+ReLU) -> conv_last."""
    WC = W * C
    LANE0 = _C0 * C
    layers, offs, _ = _layer_schedule(res_num)

    def kernel(x_ref, w_ref, o_ref, xpad):
        # Zero the staging buffer every grid step: its borders ARE the convs'
        # zero padding.  Deliberately NOT gated on program_id==0 -- with
        # dimension_semantics=("parallel",) each v7x TensorCore owns its own
        # scratch and only runs a subset of grid steps.
        xpad[...] = jnp.zeros(xpad.shape, jnp.float32)

        # Lane-dense, channel-padded input block -> staging interior.
        # (_R0, LANE0) = (8, 128): fully vreg-aligned store.
        xpad[_R0:_R0 + H, LANE0:LANE0 + WC] = x_ref[0]

        def conv_layer(layer_idx, dst_ref, to_staging):
            K, act = layers[layer_idx]
            P = K // 2
            off = offs[layer_idx]
            acc = jnp.zeros((H, WC), jnp.float32)
            for kh in range(K):                       # unrolled (K = 7 or 3)
                r = _R0 - P + kh
                acc = acc + jnp.dot(xpad[r:r + H, :], w_ref[off + kh],
                                    preferred_element_type=jnp.float32)
            y = jnp.maximum(acc, 0.0) if act == "relu" else jax.nn.sigmoid(acc)
            # Activation fused with the store: result goes straight to the next
            # layer's staging interior / the lane-dense output block.
            if to_staging:
                dst_ref[_R0:_R0 + H, LANE0:LANE0 + WC] = y
            else:
                dst_ref[0] = y.astype(dst_ref.dtype)

        n_layers = len(layers)
        for li in range(n_layers - 1):
            conv_layer(li, xpad, True)
        conv_layer(n_layers - 1, o_ref, False)

    return kernel


@functools.partial(jax.jit, static_argnames=("ch_out",))
def mnet_forward(x, wcat, *, ch_out):
    """x: (N, H, W, ch_in) NHWC float32; wcat from fold_mnet_params.
    Mirrors MNet.forward: conv_first -> MBs -> conv_last."""
    N, H, W, cin = x.shape
    WC = wcat.shape[2]
    C = WC // W
    Wpad = _C0 + W + _PMAX
    Hpad = _R0 + H + _PMAX
    assert wcat.shape[1] == Wpad * C
    res_num = (wcat.shape[0] - 10) // 10          # bands = 7 + 10*res_num + 3

    # Lane-dense, channel-padded input: (N, H, W*C) with the cin..C-1 tail zero.
    x_ld = jnp.pad(x.astype(jnp.float32),
                   ((0, 0), (0, 0), (0, 0), (0, C - cin))).reshape(N, H, WC)

    kernel = _make_mnet_kernel(H, W, C, res_num)

    out = pl.pallas_call(
        kernel,
        out_shape=jax.ShapeDtypeStruct((N, H, WC), jnp.float32),
        grid_spec=pltpu.PrefetchScalarGridSpec(
            num_scalar_prefetch=0,
            grid=(N,),                                # one batch element / step
            in_specs=[
                pl.BlockSpec((1, H, WC), lambda n: (n, 0, 0)),
                # all block-Toeplitz bands: one operand, constant index_map
                pl.BlockSpec(wcat.shape, lambda n: (0, 0, 0)),
            ],
            out_specs=pl.BlockSpec((1, H, WC), lambda n: (n, 0, 0)),
            scratch_shapes=[pltpu.VMEM((Hpad, Wpad * C), jnp.float32)],
        ),
        compiler_params=pltpu.CompilerParams(
            dimension_semantics=("parallel",),        # v7x: one batch elem / TC
            vmem_limit_bytes=48 * 1024 * 1024),
    )(x_ld, wcat)

    # (N, H, W*C) -> NHWC; drop the zero-padded output channels.
    return out.reshape(N, H, W, C)[..., :ch_out]


def init_mnet_params(key, channels=16, ch_in=9, ch_out=3, res_num=2):
    """Deterministic synthetic weights, HWIO layout, matching MNet's shapes."""
    def w(k, kh, kw, cin, cout):
        return 0.1 * jax.random.normal(k, (kh, kw, cin, cout), jnp.float32)

    keys = jax.random.split(key, 2 + 2 * res_num)
    return {
        "conv_first": w(keys[0], 7, 7, ch_in, channels),
        "mbs": [(w(keys[2 + 2 * i], 7, 7, channels, channels),
                 w(keys[3 + 2 * i], 3, 3, channels, channels))
                for i in range(res_num)],
        "conv_last": w(keys[1], 3, 3, channels, ch_out),
    }


# ----------------------------- reference (XLA) ------------------------------

def _reference_conv_act(x, w, activation, precision):
    y = jax.lax.conv_general_dilated(
        x, w, window_strides=(1, 1), padding="SAME",
        dimension_numbers=("NHWC", "HWIO", "NHWC"), precision=precision)
    if activation == "relu":
        return jnp.maximum(y, 0.0)
    return jax.nn.sigmoid(y)


def _reference_forward(x, params, precision=None):
    y = _reference_conv_act(x, params["conv_first"], "relu", precision)
    for (w1, w2) in params["mbs"]:
        y = _reference_conv_act(y, w1, "relu", precision)
        y = _reference_conv_act(y, w2, "relu", precision)
    return _reference_conv_act(y, params["conv_last"], "sigmoid", precision)


if __name__ == "__main__":
    # Small shapes consistent with MNet: N=2, ch_in=9, channels=16, ch_out=3,
    # spatial 16x16, res_num=2 MB blocks.
    key = jax.random.PRNGKey(0)
    k_x, k_p = jax.random.split(key)

    N, H, W, CH_IN = 2, 16, 16, 9
    x = jax.random.normal(k_x, (N, H, W, CH_IN), jnp.float32)   # NHWC

    params = init_mnet_params(k_p, channels=16, ch_in=CH_IN, ch_out=3, res_num=2)

    # One-time weight fold (block-Toeplitz bands for this image width).
    wcat, _, ch_out, _ = fold_mnet_params(params, W)

    out = jax.block_until_ready(mnet_forward(x, wcat, ch_out=ch_out))

    # High-precision XLA reference, plus a bf16-operand reference that
    # calibrates the tolerance to whatever operand rounding the MXU applies
    # (keeps the check meaningful but not flaky across TPU generations).
    ref = jax.block_until_ready(_reference_forward(x, params, precision="highest"))
    _bf = lambda t: t.astype(jnp.bfloat16).astype(jnp.float32)
    ref_bf = _reference_forward(_bf(x), jax.tree_util.tree_map(_bf, params),
                                precision="highest")
    tol = 1e-4 + 3.0 * float(jnp.max(jnp.abs(ref - ref_bf)))
    err = float(jnp.max(jnp.abs(out - ref)))

    assert out.shape == (N, H, W, ch_out), out.shape
    assert err <= tol, (err, tol)

    print("KERNEL_OK")
</pallas_src>

<mosaic_0001>
module attributes {stable_mosaic.version = 11 : i64} {
  func.func @kernel(%arg0: i32, %arg1: memref<1x16x256xf32, #tpu.memory_space<vmem>>, %arg2: memref<30x432x256xf32, #tpu.memory_space<vmem>>, %arg3: memref<1x16x256xf32, #tpu.memory_space<vmem>>, %arg4: memref<27x432xf32, #tpu.memory_space<vmem>>) attributes {dimension_semantics = [#tpu.dimension_semantics<parallel>], iteration_bounds = array<i64: 2>, scalar_prefetch = 0 : i64, scratch_operands = 1 : i64, tpu.core_type = #tpu.core_type<tc>, window_params = [{transform_indices = @transform_0, window_bounds = array<i64: 1, 16, 256>}, {pipeline_mode = #tpu.pipeline_mode<synchronous>, transform_indices = @transform_1, window_bounds = array<i64: 30, 432, 256>}, {transform_indices = @transform_2, window_bounds = array<i64: 1, 16, 256>}]} {
    %cst = arith.constant 0.000000e+00 : f32
    %0 = vector.broadcast %cst : f32 to vector<27x432xf32>
    %c0 = arith.constant 0 : index
    %c0_0 = arith.constant 0 : index
    %1 = vector.load %arg4[%c0, %c0_0] : memref<27x432xf32, #tpu.memory_space<vmem>>, vector<27x432xf32>
    tpu.vector_store %arg4[%c0, %c0_0], %0 {strides = array<i32>} : memref<27x432xf32, #tpu.memory_space<vmem>>, vector<27x432xf32>,
    %c0_1 = arith.constant 0 : index
    %c0_2 = arith.constant 0 : index
    %c0_3 = arith.constant 0 : index
    %2 = vector.load %arg1[%c0_1, %c0_2, %c0_3] : memref<1x16x256xf32, #tpu.memory_space<vmem>>, vector<1x16x256xf32>
    %3 = vector.shape_cast %2 : vector<1x16x256xf32> to vector<16x256xf32>
    %c8 = arith.constant 8 : index
    %c128 = arith.constant 128 : index
    %4 = vector.load %arg4[%c8, %c128] : memref<27x432xf32, #tpu.memory_space<vmem>>, vector<16x256xf32>
    tpu.vector_store %arg4[%c8, %c128], %3 {strides = array<i32>} : memref<27x432xf32, #tpu.memory_space<vmem>>, vector<16x256xf32>,
    %cst_4 = arith.constant 0.000000e+00 : f32
    %5 = vector.broadcast %cst_4 : f32 to vector<16x256xf32>
    %c5 = arith.constant 5 : index
    %c0_5 = arith.constant 0 : index
    %6 = vector.load %arg4[%c5, %c0_5] : memref<27x432xf32, #tpu.memory_space<vmem>>, vector<16x432xf32>
    %c0_6 = arith.constant 0 : index
    %c0_7 = arith.constant 0 : index
    %c0_8 = arith.constant 0 : index
    %7 = vector.load %arg2[%c0_6, %c0_7, %c0_8] : memref<30x432x256xf32, #tpu.memory_space<vmem>>, vector<1x432x256xf32>
    %8 = vector.shape_cast %7 : vector<1x432x256xf32> to vector<432x256xf32>
    %cst_9 = arith.constant dense<0.000000e+00> : vector<16x256xf32>
    %9 = tpu.matmul %6, %8, %cst_9 {dimension_numbers = #tpu.dot_dimension_numbers<[1], [0], [0], [1], [0, 0, 1, 1], [], []>} : vector<16x432xf32>, vector<432x256xf32>, vector<16x256xf32> -> vector<16x256xf32>
    %10 = arith.addf %5, %9 : vector<16x256xf32>
    %c6 = arith.constant 6 : index
    %c0_10 = arith.constant 0 : index
    %11 = vector.load %arg4[%c6, %c0_10] : memref<27x432xf32, #tpu.memory_space<vmem>>, vector<16x432xf32>
    %c1 = arith.constant 1 : index
    %c0_11 = arith.constant 0 : index
    %c0_12 = arith.constant 0 : index
    %12 = vector.load %arg2[%c1, %c0_11, %c0_12] : memref<30x432x256xf32, #tpu.memory_space<vmem>>, vector<1x432x256xf32>
    %13 = vector.shape_cast %12 : vector<1x432x256xf32> to vector<432x256xf32>
    %cst_13 = arith.constant dense<0.000000e+00> : vector<16x256xf32>
    %14 = tpu.matmul %11, %13, %cst_13 {dimension_numbers = #tpu.dot_dimension_numbers<[1], [0], [0], [1], [0, 0, 1, 1], [], []>} : vector<16x432xf32>, vector<432x256xf32>, vector<16x256xf32> -> vector<16x256xf32>
    %15 = arith.addf %10, %14 : vector<16x256xf32>
    %c7 = arith.constant 7 : index
    %c0_14 = arith.constant 0 : index
    %16 = vector.load %arg4[%c7, %c0_14] : memref<27x432xf32, #tpu.memory_space<vmem>>, vector<16x432xf32>
    %c2 = arith.constant 2 : index
    %c0_15 = arith.constant 0 : index
    %c0_16 = arith.constant 0 : index
    %17 = vector.load %arg2[%c2, %c0_15, %c0_16] : memref<30x432x256xf32, #tpu.memory_space<vmem>>, vector<1x432x256xf32>
    %18 = vector.shape_cast %17 : vector<1x432x256xf32> to vector<432x256xf32>
    %cst_17 = arith.constant dense<0.000000e+00> : vector<16x256xf32>
    %19 = tpu.matmul %16, %18, %cst_17 {dimension_numbers = #tpu.dot_dimension_numbers<[1], [0], [0], [1], [0, 0, 1, 1], [], []>} : vector<16x432xf32>, vector<432x256xf32>, vector<16x256xf32> -> vector<16x256xf32>
    %20 = arith.addf %15, %19 : vector<16x256xf32>
    %c8_18 = arith.constant 8 : index
    %c0_19 = arith.constant 0 : index
    %21 = vector.load %arg4[%c8_18, %c0_19] : memref<27x432xf32, #tpu.memory_space<vmem>>, vector<16x432xf32>
    %c3 = arith.constant 3 : index
    %c0_20 = arith.constant 0 : index
    %c0_21 = arith.constant 0 : index
    %22 = vector.load %arg2[%c3, %c0_20, %c0_21] : memref<30x432x256xf32, #tpu.memory_space<vmem>>, vector<1x432x256xf32>
    %23 = vector.shape_cast %22 : vector<1x432x256xf32> to vector<432x256xf32>
    %cst_22 = arith.constant dense<0.000000e+00> : vector<16x256xf32>
    %24 = tpu.matmul %21, %23, %cst_22 {dimension_numbers = #tpu.dot_dimension_numbers<[1], [0], [0], [1], [0, 0, 1, 1], [], []>} : vector<16x432xf32>, vector<432x256xf32>, vector<16x256xf32> -> vector<16x256xf32>
    %25 = arith.addf %20, %24 : vector<16x256xf32>
    %c9 = arith.constant 9 : index
    %c0_23 = arith.constant 0 : index
    %26 = vector.load %arg4[%c9, %c0_23] : memref<27x432xf32, #tpu.memory_space<vmem>>, vector<16x432xf32>
    %c4 = arith.constant 4 : index
    %c0_24 = arith.constant 0 : index
    %c0_25 = arith.constant 0 : index
    %27 = vector.load %arg2[%c4, %c0_24, %c0_25] : memref<30x432x256xf32, #tpu.memory_space<vmem>>, vector<1x432x256xf32>
    %28 = vector.shape_cast %27 : vector<1x432x256xf32> to vector<432x256xf32>
    %cst_26 = arith.constant dense<0.000000e+00> : vector<16x256xf32>
    %29 = tpu.matmul %26, %28, %cst_26 {dimension_numbers = #tpu.dot_dimension_numbers<[1], [0], [0], [1], [0, 0, 1, 1], [], []>} : vector<16x432xf32>, vector<432x256xf32>, vector<16x256xf32> -> vector<16x256xf32>
    %30 = arith.addf %25, %29 : vector<16x256xf32>
    %c10 = arith.constant 10 : index
    %c0_27 = arith.constant 0 : index
    %31 = vector.load %arg4[%c10, %c0_27] : memref<27x432xf32, #tpu.memory_space<vmem>>, vector<16x432xf32>
    %c5_28 = arith.constant 5 : index
    %c0_29 = arith.constant 0 : index
    %c0_30 = arith.constant 0 : index
    %32 = vector.load %arg2[%c5_28, %c0_29, %c0_30] : memref<30x432x256xf32, #tpu.memory_space<vmem>>, vector<1x432x256xf32>
    %33 = vector.shape_cast %32 : vector<1x432x256xf32> to vector<432x256xf32>
    %cst_31 = arith.constant dense<0.000000e+00> : vector<16x256xf32>
    %34 = tpu.matmul %31, %33, %cst_31 {dimension_numbers = #tpu.dot_dimension_numbers<[1], [0], [0], [1], [0, 0, 1, 1], [], []>} : vector<16x432xf32>, vector<432x256xf32>, vector<16x256xf32> -> vector<16x256xf32>
    %35 = arith.addf %30, %34 : vector<16x256xf32>
    %c11 = arith.constant 11 : index
    %c0_32 = arith.constant 0 : index
    %36 = vector.load %arg4[%c11, %c0_32] : memref<27x432xf32, #tpu.memory_space<vmem>>, vector<16x432xf32>
    %c6_33 = arith.constant 6 : index
    %c0_34 = arith.constant 0 : index
    %c0_35 = arith.constant 0 : index
    %37 = vector.load %arg2[%c6_33, %c0_34, %c0_35] : memref<30x432x256xf32, #tpu.memory_space<vmem>>, vector<1x432x256xf32>
    %38 = vector.shape_cast %37 : vector<1x432x256xf32> to vector<432x256xf32>
    %cst_36 = arith.constant dense<0.000000e+00> : vector<16x256xf32>
    %39 = tpu.matmul %36, %38, %cst_36 {dimension_numbers = #tpu.dot_dimension_numbers<[1], [0], [0], [1], [0, 0, 1, 1], [], []>} : vector<16x432xf32>, vector<432x256xf32>, vector<16x256xf32> -> vector<16x256xf32>
    %40 = arith.addf %35, %39 : vector<16x256xf32>
    %cst_37 = arith.constant 0.000000e+00 : f32
    %41 = vector.broadcast %cst_37 : f32 to vector<16x256xf32>
    %42 = arith.maximumf %40, %41 : vector<16x256xf32>
    %c8_38 = arith.constant 8 : index
    %c128_39 = arith.constant 128 : index
    %43 = vector.load %arg4[%c8_38, %c128_39] : memref<27x432xf32, #tpu.memory_space<vmem>>, vector<16x256xf32>
    tpu.vector_store %arg4[%c8_38, %c128_39], %42 {strides = array<i32>} : memref<27x432xf32, #tpu.memory_space<vmem>>, vector<16x256xf32>,
    %cst_40 = arith.constant 0.000000e+00 : f32
    %44 = vector.broadcast %cst_40 : f32 to vector<16x256xf32>
    %c5_41 = arith.constant 5 : index
    %c0_42 = arith.constant 0 : index
    %45 = vector.load %arg4[%c5_41, %c0_42] : memref<27x432xf32, #tpu.memory_space<vmem>>, vector<16x432xf32>
    %c7_43 = arith.constant 7 : index
    %c0_44 = arith.constant 0 : index
    %c0_45 = arith.constant 0 : index
    %46 = vector.load %arg2[%c7_43, %c0_44, %c0_45] : memref<30x432x256xf32, #tpu.memory_space<vmem>>, vector<1x432x256xf32>
    %47 = vector.shape_cast %46 : vector<1x432x256xf32> to vector<432x256xf32>
    %cst_46 = arith.constant dense<0.000000e+00> : vector<16x256xf32>
    %48 = tpu.matmul %45, %47, %cst_46 {dimension_numbers = #tpu.dot_dimension_numbers<[1], [0], [0], [1], [0, 0, 1, 1], [], []>} : vector<16x432xf32>, vector<432x256xf32>, vector<16x256xf32> -> vector<16x256xf32>
    %49 = arith.addf %44, %48 : vector<16x256xf32>
    %c6_47 = arith.constant 6 : index
    %c0_48 = arith.constant 0 : index
    %50 = vector.load %arg4[%c6_47, %c0_48] : memref<27x432xf32, #tpu.memory_space<vmem>>, vector<16x432xf32>
    %c8_49 = arith.constant 8 : index
    %c0_50 = arith.constant 0 : index
    %c0_51 = arith.constant 0 : index
    %51 = vector.load %arg2[%c8_49, %c0_50, %c0_51] : memref<30x432x256xf32, #tpu.memory_space<vmem>>, vector<1x432x256xf32>
    %52 = vector.shape_cast %51 : vector<1x432x256xf32> to vector<432x256xf32>
    %cst_52 = arith.constant dense<0.000000e+00> : vector<16x256xf32>
    %53 = tpu.matmul %50, %52, %cst_52 {dimension_numbers = #tpu.dot_dimension_numbers<[1], [0], [0], [1], [0, 0, 1, 1], [], []>} : vector<16x432xf32>, vector<432x256xf32>, vector<16x256xf32> -> vector<16x256xf32>
    %54 = arith.addf %49, %53 : vector<16x256xf32>
    %c7_53 = arith.constant 7 : index
    %c0_54 = arith.constant 0 : index
    %55 = vector.load %arg4[%c7_53, %c0_54] : memref<27x432xf32, #tpu.memory_space<vmem>>, vector<16x432xf32>
    %c9_55 = arith.constant 9 : index
    %c0_56 = arith.constant 0 : index
    %c0_57 = arith.constant 0 : index
    %56 = vector.load %arg2[%c9_55, %c0_56, %c0_57] : memref<30x432x256xf32, #tpu.memory_space<vmem>>, vector<1x432x256xf32>
    %57 = vector.shape_cast %56 : vector<1x432x256xf32> to vector<432x256xf32>
    %cst_58 = arith.constant dense<0.000000e+00> : vector<16x256xf32>
    %58 = tpu.matmul %55, %57, %cst_58 {dimension_numbers = #tpu.dot_dimension_numbers<[1], [0], [0], [1], [0, 0, 1, 1], [], []>} : vector<16x432xf32>, vector<432x256xf32>, vector<16x256xf32> -> vector<16x256xf32>
    %59 = arith.addf %54, %58 : vector<16x256xf32>
    %c8_59 = arith.constant 8 : index
    %c0_60 = arith.constant 0 : index
    %60 = vector.load %arg4[%c8_59, %c0_60] : memref<27x432xf32, #tpu.memory_space<vmem>>, vector<16x432xf32>
    %c10_61 = arith.constant 10 : index
    %c0_62 = arith.constant 0 : index
    %c0_63 = arith.constant 0 : index
    %61 = vector.load %arg2[%c10_61, %c0_62, %c0_63] : memref<30x432x256xf32, #tpu.memory_space<vmem>>, vector<1x432x256xf32>
    %62 = vector.shape_cast %61 : vector<1x432x256xf32> to vector<432x256xf32>
    %cst_64 = arith.constant dense<0.000000e+00> : vector<16x256xf32>
    %63 = tpu.matmul %60, %62, %cst_64 {dimension_numbers = #tpu.dot_dimension_numbers<[1], [0], [0], [1], [0, 0, 1, 1], [], []>} : vector<16x432xf32>, vector<432x256xf32>, vector<16x256xf32> -> vector<16x256xf32>
    %64 = arith.addf %59, %63 : vector<16x256xf32>
    %c9_65 = arith.constant 9 : index
    %c0_66 = arith.constant 0 : index
    %65 = vector.load %arg4[%c9_65, %c0_66] : memref<27x432xf32, #tpu.memory_space<vmem>>, vector<16x432xf32>
    %c11_67 = arith.constant 11 : index
    %c0_68 = arith.constant 0 : index
    %c0_69 = arith.constant 0 : index
    %66 = vector.load %arg2[%c11_67, %c0_68, %c0_69] : memref<30x432x256xf32, #tpu.memory_space<vmem>>, vector<1x432x256xf32>
    %67 = vector.shape_cast %66 : vector<1x432x256xf32> to vector<432x256xf32>
    %cst_70 = arith.constant dense<0.000000e+00> : vector<16x256xf32>
    %68 = tpu.matmul %65, %67, %cst_70 {dimension_numbers = #tpu.dot_dimension_numbers<[1], [0], [0], [1], [0, 0, 1, 1], [], []>} : vector<16x432xf32>, vector<432x256xf32>, vector<16x256xf32> -> vector<16x256xf32>
    %69 = arith.addf %64, %68 : vector<16x256xf32>
    %c10_71 = arith.constant 10 : index
    %c0_72 = arith.constant 0 : index
    %70 = vector.load %arg4[%c10_71, %c0_72] : memref<27x432xf32, #tpu.memory_space<vmem>>, vector<16x432xf32>
    %c12 = arith.constant 12 : index
    %c0_73 = arith.constant 0 : index
    %c0_74 = arith.constant 0 : index
    %71 = vector.load %arg2[%c12, %c0_73, %c0_74] : memref<30x432x256xf32, #tpu.memory_space<vmem>>, vector<1x432x256xf32>
    %72 = vector.shape_cast %71 : vector<1x432x256xf32> to vector<432x256xf32>
    %cst_75 = arith.constant dense<0.000000e+00> : vector<16x256xf32>
    %73 = tpu.matmul %70, %72, %cst_75 {dimension_numbers = #tpu.dot_dimension_numbers<[1], [0], [0], [1], [0, 0, 1, 1], [], []>} : vector<16x432xf32>, vector<432x256xf32>, vector<16x256xf32> -> vector<16x256xf32>
    %74 = arith.addf %69, %73 : vector<16x256xf32>
    %c11_76 = arith.constant 11 : index
    %c0_77 = arith.constant 0 : index
    %75 = vector.load %arg4[%c11_76, %c0_77] : memref<27x432xf32, #tpu.memory_space<vmem>>, vector<16x432xf32>
    %c13 = arith.constant 13 : index
    %c0_78 = arith.constant 0 : index
    %c0_79 = arith.constant 0 : index
    %76 = vector.load %arg2[%c13, %c0_78, %c0_79] : memref<30x432x256xf32, #tpu.memory_space<vmem>>, vector<1x432x256xf32>
    %77 = vector.shape_cast %76 : vector<1x432x256xf32> to vector<432x256xf32>
    %cst_80 = arith.constant dense<0.000000e+00> : vector<16x256xf32>
    %78 = tpu.matmul %75, %77, %cst_80 {dimension_numbers = #tpu.dot_dimension_numbers<[1], [0], [0], [1], [0, 0, 1, 1], [], []>} : vector<16x432xf32>, vector<432x256xf32>, vector<16x256xf32> -> vector<16x256xf32>
    %79 = arith.addf %74, %78 : vector<16x256xf32>
    %cst_81 = arith.constant 0.000000e+00 : f32
    %80 = vector.broadcast %cst_81 : f32 to vector<16x256xf32>
    %81 = arith.maximumf %79, %80 : vector<16x256xf32>
    %c8_82 = arith.constant 8 : index
    %c128_83 = arith.constant 128 : index
    %82 = vector.load %arg4[%c8_82, %c128_83] : memref<27x432xf32, #tpu.memory_space<vmem>>, vector<16x256xf32>
    tpu.vector_store %arg4[%c8_82, %c128_83], %81 {strides = array<i32>} : memref<27x432xf32, #tpu.memory_space<vmem>>, vector<16x256xf32>,
    %cst_84 = arith.constant 0.000000e+00 : f32
    %83 = vector.broadcast %cst_84 : f32 to vector<16x256xf32>
    %c7_85 = arith.constant 7 : index
    %c0_86 = arith.constant 0 : index
    %84 = vector.load %arg4[%c7_85, %c0_86] : memref<27x432xf32, #tpu.memory_space<vmem>>, vector<16x432xf32>
    %c14 = arith.constant 14 : index
    %c0_87 = arith.constant 0 : index
    %c0_88 = arith.constant 0 : index
    %85 = vector.load %arg2[%c14, %c0_87, %c0_88] : memref<30x432x256xf32, #tpu.memory_space<vmem>>, vector<1x432x256xf32>
    %86 = vector.shape_cast %85 : vector<1x432x256xf32> to vector<432x256xf32>
    %cst_89 = arith.constant dense<0.000000e+00> : vector<16x256xf32>
    %87 = tpu.matmul %84, %86, %cst_89 {dimension_numbers = #tpu.dot_dimension_numbers<[1], [0], [0], [1], [0, 0, 1, 1], [], []>} : vector<16x432xf32>, vector<432x256xf32>, vector<16x256xf32> -> vector<16x256xf32>
    %88 = arith.addf %83, %87 : vector<16x256xf32>
    %c8_90 = arith.constant 8 : index
    %c0_91 = arith.constant 0 : index
    %89 = vector.load %arg4[%c8_90, %c0_91] : memref<27x432xf32, #tpu.memory_space<vmem>>, vector<16x432xf32>
    %c15 = arith.constant 15 : index
    %c0_92 = arith.constant 0 : index
    %c0_93 = arith.constant 0 : index
    %90 = vector.load %arg2[%c15, %c0_92, %c0_93] : memref<30x432x256xf32, #tpu.memory_space<vmem>>, vector<1x432x256xf32>
    %91 = vector.shape_cast %90 : vector<1x432x256xf32> to vector<432x256xf32>
    %cst_94 = arith.constant dense<0.000000e+00> : vector<16x256xf32>
    %92 = tpu.matmul %89, %91, %cst_94 {dimension_numbers = #tpu.dot_dimension_numbers<[1], [0], [0], [1], [0, 0, 1, 1], [], []>} : vector<16x432xf32>, vector<432x256xf32>, vector<16x256xf32> -> vector<16x256xf32>
    %93 = arith.addf %88, %92 : vector<16x256xf32>
    %c9_95 = arith.constant 9 : index
    %c0_96 = arith.constant 0 : index
    %94 = vector.load %arg4[%c9_95, %c0_96] : memref<27x432xf32, #tpu.memory_space<vmem>>, vector<16x432xf32>
    %c16 = arith.constant 16 : index
    %c0_97 = arith.constant 0 : index
    %c0_98 = arith.constant 0 : index
    %95 = vector.load %arg2[%c16, %c0_97, %c0_98] : memref<30x432x256xf32, #tpu.memory_space<vmem>>, vector<1x432x256xf32>
    %96 = vector.shape_cast %95 : vector<1x432x256xf32> to vector<432x256xf32>
    %cst_99 = arith.constant dense<0.000000e+00> : vector<16x256xf32>
    %97 = tpu.matmul %94, %96, %cst_99 {dimension_numbers = #tpu.dot_dimension_numbers<[1], [0], [0], [1], [0, 0, 1, 1], [], []>} : vector<16x432xf32>, vector<432x256xf32>, vector<16x256xf32> -> vector<16x256xf32>
    %98 = arith.addf %93, %97 : vector<16x256xf32>
    %cst_100 = arith.constant 0.000000e+00 : f32
    %99 = vector.broadcast %cst_100 : f32 to vector<16x256xf32>
    %100 = arith.maximumf %98, %99 : vector<16x256xf32>
    %c8_101 = arith.constant 8 : index
    %c128_102 = arith.constant 128 : index
    %101 = vector.load %arg4[%c8_101, %c128_102] : memref<27x432xf32, #tpu.memory_space<vmem>>, vector<16x256xf32>
    tpu.vector_store %arg4[%c8_101, %c128_102], %100 {strides = array<i32>} : memref<27x432xf32, #tpu.memory_space<vmem>>, vector<16x256xf32>,
    %cst_103 = arith.constant 0.000000e+00 : f32
    %102 = vector.broadcast %cst_103 : f32 to vector<16x256xf32>
    %c5_104 = arith.constant 5 : index
    %c0_105 = arith.constant 0 : index
    %103 = vector.load %arg4[%c5_104, %c0_105] : memref<27x432xf32, #tpu.memory_space<vmem>>, vector<16x432xf32>
    %c17 = arith.constant 17 : index
    %c0_106 = arith.constant 0 : index
    %c0_107 = arith.constant 0 : index
    %104 = vector.load %arg2[%c17, %c0_106, %c0_107] : memref<30x432x256xf32, #tpu.memory_space<vmem>>, vector<1x432x256xf32>
    %105 = vector.shape_cast %104 : vector<1x432x256xf32> to vector<432x256xf32>
    %cst_108 = arith.constant dense<0.000000e+00> : vector<16x256xf32>
    %106 = tpu.matmul %103, %105, %cst_108 {dimension_numbers = #tpu.dot_dimension_numbers<[1], [0], [0], [1], [0, 0, 1, 1], [], []>} : vector<16x432xf32>, vector<432x256xf32>, vector<16x256xf32> -> vector<16x256xf32>
    %107 = arith.addf %102, %106 : vector<16x256xf32>
    %c6_109 = arith.constant 6 : index
    %c0_110 = arith.constant 0 : index
    %108 = vector.load %arg4[%c6_109, %c0_110] : memref<27x432xf32, #tpu.memory_space<vmem>>, vector<16x432xf32>
    %c18 = arith.constant 18 : index
    %c0_111 = arith.constant 0 : index
    %c0_112 = arith.constant 0 : index
    %109 = vector.load %arg2[%c18, %c0_111, %c0_112] : memref<30x432x256xf32, #tpu.memory_space<vmem>>, vector<1x432x256xf32>
    %110 = vector.shape_cast %109 : vector<1x432x256xf32> to vector<432x256xf32>
    %cst_113 = arith.constant dense<0.000000e+00> : vector<16x256xf32>
    %111 = tpu.matmul %108, %110, %cst_113 {dimension_numbers = #tpu.dot_dimension_numbers<[1], [0], [0], [1], [0, 0, 1, 1], [], []>} : vector<16x432xf32>, vector<432x256xf32>, vector<16x256xf32> -> vector<16x256xf32>
    %112 = arith.addf %107, %111 : vector<16x256xf32>
    %c7_114 = arith.constant 7 : index
    %c0_115 = arith.constant 0 : index
    %113 = vector.load %arg4[%c7_114, %c0_115] : memref<27x432xf32, #tpu.memory_space<vmem>>, vector<16x432xf32>
    %c19 = arith.constant 19 : index
    %c0_116 = arith.constant 0 : index
    %c0_117 = arith.constant 0 : index
    %114 = vector.load %arg2[%c19, %c0_116, %c0_117] : memref<30x432x256xf32, #tpu.memory_space<vmem>>, vector<1x432x256xf32>
    %115 = vector.shape_cast %114 : vector<1x432x256xf32> to vector<432x256xf32>
    %cst_118 = arith.constant dense<0.000000e+00> : vector<16x256xf32>
    %116 = tpu.matmul %113, %115, %cst_118 {dimension_numbers = #tpu.dot_dimension_numbers<[1], [0], [0], [1], [0, 0, 1, 1], [], []>} : vector<16x432xf32>, vector<432x256xf32>, vector<16x256xf32> -> vector<16x256xf32>
    %117 = arith.addf %112, %116 : vector<16x256xf32>
    %c8_119 = arith.constant 8 : index
    %c0_120 = arith.constant 0 : index
    %118 = vector.load %arg4[%c8_119, %c0_120] : memref<27x432xf32, #tpu.memory_space<vmem>>, vector<16x432xf32>
    %c20 = arith.constant 20 : index
    %c0_121 = arith.constant 0 : index
    %c0_122 = arith.constant 0 : index
    %119 = vector.load %arg2[%c20, %c0_121, %c0_122] : memref<30x432x256xf32, #tpu.memory_space<vmem>>, vector<1x432x256xf32>
    %120 = vector.shape_cast %119 : vector<1x432x256xf32> to vector<432x256xf32>
    %cst_123 = arith.constant dense<0.000000e+00> : vector<16x256xf32>
    %121 = tpu.matmul %118, %120, %cst_123 {dimension_numbers = #tpu.dot_dimension_numbers<[1], [0], [0], [1], [0, 0, 1, 1], [], []>} : vector<16x432xf32>, vector<432x256xf32>, vector<16x256xf32> -> vector<16x256xf32>
    %122 = arith.addf %117, %121 : vector<16x256xf32>
    %c9_124 = arith.constant 9 : index
    %c0_125 = arith.constant 0 : index
    %123 = vector.load %arg4[%c9_124, %c0_125] : memref<27x432xf32, #tpu.memory_space<vmem>>, vector<16x432xf32>
    %c21 = arith.constant 21 : index
    %c0_126 = arith.constant 0 : index
    %c0_127 = arith.constant 0 : index
    %124 = vector.load %arg2[%c21, %c0_126, %c0_127] : memref<30x432x256xf32, #tpu.memory_space<vmem>>, vector<1x432x256xf32>
    %125 = vector.shape_cast %124 : vector<1x432x256xf32> to vector<432x256xf32>
    %cst_128 = arith.constant dense<0.000000e+00> : vector<16x256xf32>
    %126 = tpu.matmul %123, %125, %cst_128 {dimension_numbers = #tpu.dot_dimension_numbers<[1], [0], [0], [1], [0, 0, 1, 1], [], []>} : vector<16x432xf32>, vector<432x256xf32>, vector<16x256xf32> -> vector<16x256xf32>
    %127 = arith.addf %122, %126 : vector<16x256xf32>
    %c10_129 = arith.constant 10 : index
    %c0_130 = arith.constant 0 : index
    %128 = vector.load %arg4[%c10_129, %c0_130] : memref<27x432xf32, #tpu.memory_space<vmem>>, vector<16x432xf32>
    %c22 = arith.constant 22 : index
    %c0_131 = arith.constant 0 : index
    %c0_132 = arith.constant 0 : index
    %129 = vector.load %arg2[%c22, %c0_131, %c0_132] : memref<30x432x256xf32, #tpu.memory_space<vmem>>, vector<1x432x256xf32>
    %130 = vector.shape_cast %129 : vector<1x432x256xf32> to vector<432x256xf32>
    %cst_133 = arith.constant dense<0.000000e+00> : vector<16x256xf32>
    %131 = tpu.matmul %128, %130, %cst_133 {dimension_numbers = #tpu.dot_dimension_numbers<[1], [0], [0], [1], [0, 0, 1, 1], [], []>} : vector<16x432xf32>, vector<432x256xf32>, vector<16x256xf32> -> vector<16x256xf32>
    %132 = arith.addf %127, %131 : vector<16x256xf32>
    %c11_134 = arith.constant 11 : index
    %c0_135 = arith.constant 0 : index
    %133 = vector.load %arg4[%c11_134, %c0_135] : memref<27x432xf32, #tpu.memory_space<vmem>>, vector<16x432xf32>
    %c23 = arith.constant 23 : index
    %c0_136 = arith.constant 0 : index
    %c0_137 = arith.constant 0 : index
    %134 = vector.load %arg2[%c23, %c0_136, %c0_137] : memref<30x432x256xf32, #tpu.memory_space<vmem>>, vector<1x432x256xf32>
    %135 = vector.shape_cast %134 : vector<1x432x256xf32> to vector<432x256xf32>
    %cst_138 = arith.constant dense<0.000000e+00> : vector<16x256xf32>
    %136 = tpu.matmul %133, %135, %cst_138 {dimension_numbers = #tpu.dot_dimension_numbers<[1], [0], [0], [1], [0, 0, 1, 1], [], []>} : vector<16x432xf32>, vector<432x256xf32>, vector<16x256xf32> -> vector<16x256xf32>
    %137 = arith.addf %132, %136 : vector<16x256xf32>
    %cst_139 = arith.constant 0.000000e+00 : f32
    %138 = vector.broadcast %cst_139 : f32 to vector<16x256xf32>
    %139 = arith.maximumf %137, %138 : vector<16x256xf32>
    %c8_140 = arith.constant 8 : index
    %c128_141 = arith.constant 128 : index
    %140 = vector.load %arg4[%c8_140, %c128_141] : memref<27x432xf32, #tpu.memory_space<vmem>>, vector<16x256xf32>
    tpu.vector_store %arg4[%c8_140, %c128_141], %139 {strides = array<i32>} : memref<27x432xf32, #tpu.memory_space<vmem>>, vector<16x256xf32>,
    %cst_142 = arith.constant 0.000000e+00 : f32
    %141 = vector.broadcast %cst_142 : f32 to vector<16x256xf32>
    %c7_143 = arith.constant 7 : index
    %c0_144 = arith.constant 0 : index
    %142 = vector.load %arg4[%c7_143, %c0_144] : memref<27x432xf32, #tpu.memory_space<vmem>>, vector<16x432xf32>
    %c24 = arith.constant 24 : index
    %c0_145 = arith.constant 0 : index
    %c0_146 = arith.constant 0 : index
    %143 = vector.load %arg2[%c24, %c0_145, %c0_146] : memref<30x432x256xf32, #tpu.memory_space<vmem>>, vector<1x432x256xf32>
    %144 = vector.shape_cast %143 : vector<1x432x256xf32> to vector<432x256xf32>
    %cst_147 = arith.constant dense<0.000000e+00> : vector<16x256xf32>
    %145 = tpu.matmul %142, %144, %cst_147 {dimension_numbers = #tpu.dot_dimension_numbers<[1], [0], [0], [1], [0, 0, 1, 1], [], []>} : vector<16x432xf32>, vector<432x256xf32>, vector<16x256xf32> -> vector<16x256xf32>
    %146 = arith.addf %141, %145 : vector<16x256xf32>
    %c8_148 = arith.constant 8 : index
    %c0_149 = arith.constant 0 : index
    %147 = vector.load %arg4[%c8_148, %c0_149] : memref<27x432xf32, #tpu.memory_space<vmem>>, vector<16x432xf32>
    %c25 = arith.constant 25 : index
    %c0_150 = arith.constant 0 : index
    %c0_151 = arith.constant 0 : index
    %148 = vector.load %arg2[%c25, %c0_150, %c0_151] : memref<30x432x256xf32, #tpu.memory_space<vmem>>, vector<1x432x256xf32>
    %149 = vector.shape_cast %148 : vector<1x432x256xf32> to vector<432x256xf32>
    %cst_152 = arith.constant dense<0.000000e+00> : vector<16x256xf32>
    %150 = tpu.matmul %147, %149, %cst_152 {dimension_numbers = #tpu.dot_dimension_numbers<[1], [0], [0], [1], [0, 0, 1, 1], [], []>} : vector<16x432xf32>, vector<432x256xf32>, vector<16x256xf32> -> vector<16x256xf32>
    %151 = arith.addf %146, %150 : vector<16x256xf32>
    %c9_153 = arith.constant 9 : index
    %c0_154 = arith.constant 0 : index
    %152 = vector.load %arg4[%c9_153, %c0_154] : memref<27x432xf32, #tpu.memory_space<vmem>>, vector<16x432xf32>
    %c26 = arith.constant 26 : index
    %c0_155 = arith.constant 0 : index
    %c0_156 = arith.constant 0 : index
    %153 = vector.load %arg2[%c26, %c0_155, %c0_156] : memref<30x432x256xf32, #tpu.memory_space<vmem>>, vector<1x432x256xf32>
    %154 = vector.shape_cast %153 : vector<1x432x256xf32> to vector<432x256xf32>
    %cst_157 = arith.constant dense<0.000000e+00> : vector<16x256xf32>
    %155 = tpu.matmul %152, %154, %cst_157 {dimension_numbers = #tpu.dot_dimension_numbers<[1], [0], [0], [1], [0, 0, 1, 1], [], []>} : vector<16x432xf32>, vector<432x256xf32>, vector<16x256xf32> -> vector<16x256xf32>
    %156 = arith.addf %151, %155 : vector<16x256xf32>
    %cst_158 = arith.constant 0.000000e+00 : f32
    %157 = vector.broadcast %cst_158 : f32 to vector<16x256xf32>
    %158 = arith.maximumf %156, %157 : vector<16x256xf32>
    %c8_159 = arith.constant 8 : index
    %c128_160 = arith.constant 128 : index
    %159 = vector.load %arg4[%c8_159, %c128_160] : memref<27x432xf32, #tpu.memory_space<vmem>>, vector<16x256xf32>
    tpu.vector_store %arg4[%c8_159, %c128_160], %158 {strides = array<i32>} : memref<27x432xf32, #tpu.memory_space<vmem>>, vector<16x256xf32>,
    %cst_161 = arith.constant 0.000000e+00 : f32
    %160 = vector.broadcast %cst_161 : f32 to vector<16x256xf32>
    %c7_162 = arith.constant 7 : index
    %c0_163 = arith.constant 0 : index
    %161 = vector.load %arg4[%c7_162, %c0_163] : memref<27x432xf32, #tpu.memory_space<vmem>>, vector<16x432xf32>
    %c27 = arith.constant 27 : index
    %c0_164 = arith.constant 0 : index
    %c0_165 = arith.constant 0 : index
    %162 = vector.load %arg2[%c27, %c0_164, %c0_165] : memref<30x432x256xf32, #tpu.memory_space<vmem>>, vector<1x432x256xf32>
    %163 = vector.shape_cast %162 : vector<1x432x256xf32> to vector<432x256xf32>
    %cst_166 = arith.constant dense<0.000000e+00> : vector<16x256xf32>
    %164 = tpu.matmul %161, %163, %cst_166 {dimension_numbers = #tpu.dot_dimension_numbers<[1], [0], [0], [1], [0, 0, 1, 1], [], []>} : vector<16x432xf32>, vector<432x256xf32>, vector<16x256xf32> -> vector<16x256xf32>
    %165 = arith.addf %160, %164 : vector<16x256xf32>
    %c8_167 = arith.constant 8 : index
    %c0_168 = arith.constant 0 : index
    %166 = vector.load %arg4[%c8_167, %c0_168] : memref<27x432xf32, #tpu.memory_space<vmem>>, vector<16x432xf32>
    %c28 = arith.constant 28 : index
    %c0_169 = arith.constant 0 : index
    %c0_170 = arith.constant 0 : index
    %167 = vector.load %arg2[%c28, %c0_169, %c0_170] : memref<30x432x256xf32, #tpu.memory_space<vmem>>, vector<1x432x256xf32>
    %168 = vector.shape_cast %167 : vector<1x432x256xf32> to vector<432x256xf32>
    %cst_171 = arith.constant dense<0.000000e+00> : vector<16x256xf32>
    %169 = tpu.matmul %166, %168, %cst_171 {dimension_numbers = #tpu.dot_dimension_numbers<[1], [0], [0], [1], [0, 0, 1, 1], [], []>} : vector<16x432xf32>, vector<432x256xf32>, vector<16x256xf32> -> vector<16x256xf32>
    %170 = arith.addf %165, %169 : vector<16x256xf32>
    %c9_172 = arith.constant 9 : index
    %c0_173 = arith.constant 0 : index
    %171 = vector.load %arg4[%c9_172, %c0_173] : memref<27x432xf32, #tpu.memory_space<vmem>>, vector<16x432xf32>
    %c29 = arith.constant 29 : index
    %c0_174 = arith.constant 0 : index
    %c0_175 = arith.constant 0 : index
    %172 = vector.load %arg2[%c29, %c0_174, %c0_175] : memref<30x432x256xf32, #tpu.memory_space<vmem>>, vector<1x432x256xf32>
    %173 = vector.shape_cast %172 : vector<1x432x256xf32> to vector<432x256xf32>
    %cst_176 = arith.constant dense<0.000000e+00> : vector<16x256xf32>
    %174 = tpu.matmul %171, %173, %cst_176 {dimension_numbers = #tpu.dot_dimension_numbers<[1], [0], [0], [1], [0, 0, 1, 1], [], []>} : vector<16x432xf32>, vector<432x256xf32>, vector<16x256xf32> -> vector<16x256xf32>
    %175 = arith.addf %170, %174 : vector<16x256xf32>
    %176 = arith.negf %175 : vector<16x256xf32>
    %177 = math.exp %176 : vector<16x256xf32>
    %cst_177 = arith.constant 1.000000e+00 : f32
    %178 = vector.broadcast %cst_177 : f32 to vector<16x256xf32>
    %179 = arith.addf %178, %177 : vector<16x256xf32>
    %180 = arith.divf %178, %179 : vector<16x256xf32>
    %c0_178 = arith.constant 0 : index
    %c0_179 = arith.constant 0 : index
    %c0_180 = arith.constant 0 : index
    %181 = vector.load %arg3[%c0_178, %c0_179, %c0_180] : memref<1x16x256xf32, #tpu.memory_space<vmem>>, vector<1x16x256xf32>
    %182 = vector.shape_cast %181 : vector<1x16x256xf32> to vector<16x256xf32>
    %183 = vector.shape_cast %180 : vector<16x256xf32> to vector<1x16x256xf32>
    tpu.vector_store %arg3[%c0_178, %c0_179, %c0_180], %183 {strides = array<i32>} : memref<1x16x256xf32, #tpu.memory_space<vmem>>, vector<1x16x256xf32>,
    return
  }
  func.func @transform_0(%arg0: i32) -> (i32, i32, i32) {
    %c0_i32 = arith.constant 0 : i32
    %c0_i32_0 = arith.constant 0 : i32
    %c0_i32_1 = arith.constant 0 : i32
    return %arg0, %c0_i32, %c0_i32_0 : i32, i32, i32
  }
  func.func @transform_1(%arg0: i32) -> (i32, i32, i32) {
    %c0_i32 = arith.constant 0 : i32
    %c0_i32_0 = arith.constant 0 : i32
    %c0_i32_1 = arith.constant 0 : i32
    %c0_i32_2 = arith.constant 0 : i32
    return %c0_i32, %c0_i32_0, %c0_i32_1 : i32, i32, i32
  }
  func.func @transform_2(%arg0: i32) -> (i32, i32, i32) {
    %c0_i32 = arith.constant 0 : i32
    %c0_i32_0 = arith.constant 0 : i32
    %c0_i32_1 = arith.constant 0 : i32
    return %arg0, %c0_i32, %c0_i32_0 : i32, i32, i32
  }
}

</mosaic_0001>

<llo_original>
// kernel: mnet_forward.1
$region0: #{mnet_forward.1}
  #allocation0 [shape = 'u32[]', space=smem, size = 0x4, offset = 0x4, fixed_abs, tag = 'smem constant byte address 0x4 - core index']
  #allocation1 [shape = 'u32[144,128]{1,0:T(1,128)}', space=vmem, size = 0x12000, scoped, tag = 'internal scratch']
  #allocation2 [shape = 'f32[27,432]{1,0:T(8,128)}', space=vmem, size = 0x10000, scoped, tag = 'scratch operand']
  %s0 = inlined_call_operand.vmem [shape: f32[2,16,256], index: 0, kind: input, shape index: {}]
  %s1 = inlined_call_operand.hbm [shape: f32[30,432,256], index: 1, kind: input, shape index: {}]
  %s2 = inlined_call_operand.vmem [shape: f32[2,16,256], index: 2, kind: output, shape index: {}]
  %s3 = sld [smem:[#allocation0]]
  $region45: #{mnet_forward.1} parent=0
    _
  %s5 = ssub.s32 1, %s3
  %s6 = scalar_select 0, %s5, %s3
  $region1: #{mnet_forward.1} parent=0
    #allocation3 [shape = 'u8[13271040]{0}', space=vmem, size = 0xca8000, scoped, tag = 'input window, operand 1, single buffered']
    #allocation4 [shape = 's32[2]{0}', space=sflag, size = 0x8, scoped, tag = 'scoped memory for mnet_forward.1']
    %7 = vsyncpa [#allocation4], 0
    loop: start=0, step=1, limit=4
    $region2: #{mnet_forward.1} parent=1 // loop_pre_header
      _
    $region3: #{mnet_forward.1} parent=1 // loop_header
      %s9 = sphi 0, %s13
      %p10 = scmp.ge.s32.totalorder %s9, 4
      %s19 = sphi 0, %s21
      %s22 = sphi 0, %s19
      %s23 = sphi 0, %s22
      %s39 = sphi 0, %s23
      %s43 = sphi 0, %s43
      %s45 = sphi 0, %s43
      %s46 = sphi 0, %s45
      %s60 = sphi 0, %s46
      %s66 = sphi 0, %s68
      %s69 = sphi 0, %s66
      %s70 = sphi 0, %s69
      %s86 = sphi 0, %s70
    $region4: #{mnet_forward.1} parent=1 // loop_header_branch
      %12 = sbr.rel (%p10) target = $region8
    $region5: #{mnet_forward.1} parent=1 // loop_body
      %s14 = ssub.s32 %s9, 1
      %s15 = ssub.s32 %s9, 2
      %s16 = sadd.s32 %s9, 1
      %s17 = ssub.s32 %s9, %s16
      %p18 = scmp.eq.s32.totalorder %s17, 0
      %s20 = sadd.s32 %s19, 1
      %s21 = scalar_select %p18, %s19, %s20
      %p24 = pneg %p18
      %p25 = scmp.eq.s32.totalorder %s9, 1
      %p26 = por %p24, %p25
      %p27 = scmp.ne.s32.totalorder %s19, %s22
      %p28 = scmp.eq.s32.totalorder %s9, 0
      %p29 = por %p27, %p28
      %p30 = scmp.ne.s32.totalorder %s19, %s22
      %p31 = scmp.eq.s32.totalorder %s14, 1
      %p32 = por %p30, %p31
      %p33 = scmp.ne.s32.totalorder %s22, %s23
      %p34 = scmp.eq.s32.totalorder %s14, 0
      %p35 = por %p33, %p34
      %p36 = scmp.ne.s32.totalorder %s22, %s23
      %p37 = scmp.eq.s32.totalorder %s15, 1
      %p38 = por %p36, %p37
      %p40 = scmp.ne.s32.totalorder %s23, %s39
      %p41 = scmp.eq.s32.totalorder %s15, 0
      %p42 = por %p40, %p41
      %s44 = sadd.s32 %s43, 1
      %p47 = scmp.eq.s32.totalorder %s9, 1
      %p48 = scmp.ne.s32.totalorder %s43, %s45
      %p49 = scmp.eq.s32.totalorder %s9, 0
      %p50 = por %p48, %p49
      %p51 = scmp.ne.s32.totalorder %s43, %s45
      %p52 = scmp.eq.s32.totalorder %s14, 1
      %p53 = por %p51, %p52
      %p54 = scmp.ne.s32.totalorder %s45, %s46
      %p55 = scmp.eq.s32.totalorder %s14, 0
      %p56 = por %p54, %p55
      %p57 = scmp.ne.s32.totalorder %s45, %s46
      %p58 = scmp.eq.s32.totalorder %s15, 1
      %p59 = por %p57, %p58
      %p61 = scmp.ne.s32.totalorder %s46, %s60
      %p62 = scmp.eq.s32.totalorder %s15, 0
      %p63 = por %p61, %p62
      %s64 = ssub.s32 %s9, %s16
      %p65 = scmp.eq.s32.totalorder %s64, 0
      %s67 = sadd.s32 %s66, 1
      %s68 = scalar_select %p65, %s66, %s67
      %p71 = pneg %p65
      %p72 = scmp.eq.s32.totalorder %s9, 1
      %p73 = por %p71, %p72
      %p74 = scmp.ne.s32.totalorder %s66, %s69
      %p75 = scmp.eq.s32.totalorder %s9, 0
      %p76 = por %p74, %p75
      %p77 = scmp.ne.s32.totalorder %s66, %s69
      %p78 = scmp.eq.s32.totalorder %s14, 1
      %p79 = por %p77, %p78
      %p80 = scmp.ne.s32.totalorder %s69, %s70
      %p81 = scmp.eq.s32.totalorder %s14, 0
      %p82 = por %p80, %p81
      %p83 = scmp.ne.s32.totalorder %s69, %s70
      %p84 = scmp.eq.s32.totalorder %s15, 1
      %p85 = por %p83, %p84
      %p87 = scmp.ne.s32.totalorder %s70, %s86
      %p88 = scmp.eq.s32.totalorder %s15, 0
      %p89 = por %p87, %p88
      %p90 = scmp.le.s32.totalorder 1, %s9
      %p91 = scmp.lt.s32.totalorder %s9, 3
      %p92 = pnand %p90, %p91
      %p93 = pneg %p92
      // Predicated region
      $region9: #{mnet_forward.1} parent=5 // pred_check
        _
      $region10: #{mnet_forward.1} parent=5 // pred_check_branch
        %95 = sbr.rel (%p92) target = $region12
      $region11: #{mnet_forward.1} parent=5 // pred_region
        %s96 = ssub.s32 %s9, 1
        // Predicated region
        $region13: #{mnet_forward.1} parent=11 // pred_check
          %p97 = pneg %p56
        $region14: #{mnet_forward.1} parent=11 // pred_check_branch
          %99 = sbr.rel (%p97) target = $region16
        $region15: #{mnet_forward.1} parent=11 // pred_region
          %s101 = ssub.s32 414720, 414720
          %102 = vsyncadd [#allocation4], %s101
          %s103 = sshll.u32 [#allocation3], 4
          %s104 = int_to_ptr.vmem [resolvable:$true] %s103
          %109 = dma.hbm_to_vmem [thread:$0]  %s1, 414720, %s104, [#allocation4], 256, 256, 16
        $region16: #{mnet_forward.1} parent=11 // pred_fallthru
          _
      $region12: #{mnet_forward.1} parent=5 // pred_fallthru
        _
      %p110 = scmp.lt.s32.totalorder %s9, 2
      // Predicated region
      $region17: #{mnet_forward.1} parent=5 // pred_check
        %p111 = pneg %p110
      $region18: #{mnet_forward.1} parent=5 // pred_check_branch
        %113 = sbr.rel (%p111) target = $region20
      $region19: #{mnet_forward.1} parent=5 // pred_region
        // Predicated region
        $region21: #{mnet_forward.1} parent=19 // pred_check
          %p114 = pneg %p29
        $region22: #{mnet_forward.1} parent=19 // pred_check_branch
          %116 = sbr.rel (%p114) target = $region24
        $region23: #{mnet_forward.1} parent=19 // pred_region
          %p117 = scmp.lt.s32.totalorder %s9, 1
          %s118 = scalar_select %p117, %s9, 1
          %s119 = smul.addr %s118, 4
          %s120 = smul.addr %s119, 8
          %s121 = scalar_lea.vmem %s0, %s120
        $region24: #{mnet_forward.1} parent=19 // pred_fallthru
          _
      $region20: #{mnet_forward.1} parent=5 // pred_fallthru
        _
      %p122 = scmp.le.s32.totalorder 1, %s9
      %p123 = scmp.lt.s32.totalorder %s9, 3
      %p124 = pnand %p122, %p123
      %p125 = pneg %p124
      // Predicated region
      $region25: #{mnet_forward.1} parent=5 // pred_check
        _
      $region26: #{mnet_forward.1} parent=5 // pred_check_branch
        %127 = sbr.rel (%p124) target = $region28
      $region27: #{mnet_forward.1} parent=5 // pred_region
        %s128 = ssub.s32 %s9, 1
        // Predicated region
        $region29: #{mnet_forward.1} parent=27 // pred_check
          %p129 = pneg %p56
        $region30: #{mnet_forward.1} parent=27 // pred_check_branch
          %131 = sbr.rel (%p129) target = $region32
        $region31: #{mnet_forward.1} parent=27 // pred_region
          %132 = dma.done [#allocation4], 414720
        $region32: #{mnet_forward.1} parent=27 // pred_fallthru
          _
        %p133 = scmp.lt.s32.totalorder %s14, 1
        %s134 = scalar_select %p133, %s14, 1
        %s135 = smul.addr %s134, 4
        %s136 = smul.addr %s135, 8
        %s137 = scalar_lea.vmem %s0, %s136
        %p138 = pneg %p35
        %p139 = pneg %p32
        %p140 = pneg %p56
        %p141 = pneg %p53
        %p142 = pneg %p82
        %p143 = pneg %p79
        %p144 = scmp.lt.s32.totalorder %s14, 1
        %s145 = scalar_select %p144, %s14, 1
        %s146 = smul.addr %s145, 4
        %s147 = smul.addr %s146, 8
        %s148 = scalar_lea.vmem %s2, %s147
        %p149 = scmp.lt.s32.totalorder %s14, 1
        %s150 = scalar_select %p149, %s14, 1
        %s151 = smul.addr %s150, 4
        %s152 = smul.addr %s151, 8
        %s153 = scalar_lea.vmem %s0, %s152
        %p154 = scmp.lt.s32.totalorder %s14, 1
        %s155 = scalar_select %p154, %s14, 1
        %s156 = smul.addr %s155, 4
        %s157 = smul.addr %s156, 8
        %s158 = scalar_lea.vmem %s2, %s157
        %159 = vst [vmem:[#allocation2] sm:$0xff] 0.0
        %160 = vst [vmem:[#allocation2 + $0x8] sm:$0xff] 0.0
        %161 = vst [vmem:[#allocation2 + $0x10] sm:$0xff] 0.0
        %vm162 = vcmask 392192
        %163 = vst.msk [vmem:[#allocation2 + $0x18] sm:$0xff] %vm162, 0.0
        %164 = vst [vmem:[#allocation2 + $0x20] sm:$0xff] 0.0
        %165 = vst [vmem:[#allocation2 + $0x28] sm:$0xff] 0.0
        %166 = vst [vmem:[#allocation2 + $0x30] sm:$0xff] 0.0
        %167 = vst.msk [vmem:[#allocation2 + $0x38] sm:$0xff] %vm162, 0.0
        %168 = vst [vmem:[#allocation2 + $0x40] sm:$0xff] 0.0
        %169 = vst [vmem:[#allocation2 + $0x48] sm:$0xff] 0.0
        %170 = vst [vmem:[#allocation2 + $0x50] sm:$0xff] 0.0
        %171 = vst.msk [vmem:[#allocation2 + $0x58] sm:$0xff] %vm162, 0.0
        %172 = vst [vmem:[#allocation2 + $0x60] sm:$0x7] 0.0
        %173 = vst [vmem:[#allocation2 + $0x68] sm:$0x7] 0.0
        %174 = vst [vmem:[#allocation2 + $0x70] sm:$0x7] 0.0
        %vm175 = vcmask 387072
        %176 = vst.msk [vmem:[#allocation2 + $0x78] sm:$0x7] %vm175, 0.0
        %v177 = vld [vmem:[%s153] sm:$0xff]
        %v178 = vld [vmem:[%s153 + $0x8] sm:$0xff]
        %v179 = vld [vmem:[%s153 + $0x10] sm:$0xff]
        %v180 = vld [vmem:[%s153 + $0x18] sm:$0xff]
        %181 = vst [vmem:[#allocation2 + $0x28] sm:$0xff] %v177
        %182 = vst [vmem:[#allocation2 + $0x30] sm:$0xff] %v178
        %183 = vst [vmem:[#allocation2 + $0x48] sm:$0xff] %v179
        %184 = vst [vmem:[#allocation2 + $0x50] sm:$0xff] %v180
        %v185 = vld [vmem:[#allocation2] sm:$0xe0]
        %v186 = vld [vmem:[#allocation2 + $0x8] sm:$0xe0]
        %v187 = vld [vmem:[#allocation2 + $0x10] sm:$0xe0]
        %v188 = vld [vmem:[#allocation2 + $0x18] sm:$0xe0]
        %v189 = vld [vmem:[#allocation2 + $0x20] sm:$0xff]
        %v190 = vld [vmem:[#allocation2 + $0x28] sm:$0xff]
        %v191 = vld [vmem:[#allocation2 + $0x30] sm:$0xff]
        %v192 = vld [vmem:[#allocation2 + $0x38] sm:$0xff]
        %v193 = vld [vmem:[#allocation2 + $0x40] sm:$0x1f]
        %v194 = vld [vmem:[#allocation2 + $0x48] sm:$0x1f]
        %v195 = vld [vmem:[#allocation2 + $0x50] sm:$0x1f]
        %v196 = vld [vmem:[#allocation2 + $0x58] sm:$0x1f]
        %v197 = vld [vmem:[#allocation3] sm:$0xff]
        %v198 = vld [vmem:[#allocation3 + $0x8] sm:$0xff]
        %v199 = vld [vmem:[#allocation3 + $0x10] sm:$0xff]
        %v200 = vld [vmem:[#allocation3 + $0x18] sm:$0xff]
        %v201 = vld [vmem:[#allocation3 + $0x20] sm:$0xff]
        %v202 = vld [vmem:[#allocation3 + $0x28] sm:$0xff]
        %v203 = vld [vmem:[#allocation3 + $0x30] sm:$0xff]
        %v204 = vld [vmem:[#allocation3 + $0x38] sm:$0xff]
        %v205 = vld [vmem:[#allocation3 + $0x40] sm:$0xff]
        %v206 = vld [vmem:[#allocation3 + $0x48] sm:$0xff]
        %v207 = vld [vmem:[#allocation3 + $0x50] sm:$0xff]
        %v208 = vld [vmem:[#allocation3 + $0x58] sm:$0xff]
        %v209 = vld [vmem:[#allocation3 + $0x60] sm:$0xff]
        %v210 = vld [vmem:[#allocation3 + $0x68] sm:$0xff]
        %v211 = vld [vmem:[#allocation3 + $0x70] sm:$0xff]
        %v212 = vld [vmem:[#allocation3 + $0x78] sm:$0xff]
        %v213 = vld [vmem:[#allocation3 + $0x80] sm:$0xff]
        %v214 = vld [vmem:[#allocation3 + $0x88] sm:$0xff]
        %v215 = vld [vmem:[#allocation3 + $0x90] sm:$0xff]
        %v216 = vld [vmem:[#allocation3 + $0x98] sm:$0xff]
        %v217 = vld [vmem:[#allocation3 + $0xa0] sm:$0xff]
        %v218 = vld [vmem:[#allocation3 + $0xa8] sm:$0xff]
        %v219 = vld [vmem:[#allocation3 + $0xb0] sm:$0xff]
        %v220 = vld [vmem:[#allocation3 + $0xb8] sm:$0xff]
        %v221 = vld [vmem:[#allocation3 + $0xc0] sm:$0xff]
        %v222 = vld [vmem:[#allocation3 + $0xc8] sm:$0xff]
        %v223 = vld [vmem:[#allocation3 + $0xd0] sm:$0xff]
        %v224 = vld [vmem:[#allocation3 + $0xd8] sm:$0xff]
        %v225 = vld [vmem:[#allocation3 + $0xe0] sm:$0xff]
        %v226 = vld [vmem:[#allocation3 + $0xe8] sm:$0xff]
        %v227 = vld [vmem:[#allocation3 + $0xf0] sm:$0xff]
        %v228 = vld [vmem:[#allocation3 + $0xf8] sm:$0xff]
        %v229 = vld [vmem:[#allocation3 + $0x100] sm:$0xff]
        %v230 = vld [vmem:[#allocation3 + $0x108] sm:$0xff]
        %v231 = vld [vmem:[#allocation3 + $0x110] sm:$0xff]
        %v232 = vld [vmem:[#allocation3 + $0x118] sm:$0xff]
        %v233 = vld [vmem:[#allocation3 + $0x120] sm:$0xff]
        %v234 = vld [vmem:[#allocation3 + $0x128] sm:$0xff]
        %v235 = vld [vmem:[#allocation3 + $0x130] sm:$0xff]
        %v236 = vld [vmem:[#allocation3 + $0x138] sm:$0xff]
        %v237 = vld [vmem:[#allocation3 + $0x140] sm:$0xff]
        %v238 = vld [vmem:[#allocation3 + $0x148] sm:$0xff]
        %v239 = vld [vmem:[#allocation3 + $0x150] sm:$0xff]
        %v240 = vld [vmem:[#allocation3 + $0x158] sm:$0xff]
        %v241 = vld [vmem:[#allocation3 + $0x160] sm:$0xff]
        %v242 = vld [vmem:[#allocation3 + $0x168] sm:$0xff]
        %v243 = vld [vmem:[#allocation3 + $0x170] sm:$0xff]
        %v244 = vld [vmem:[#allocation3 + $0x178] sm:$0xff]
        %v245 = vld [vmem:[#allocation3 + $0x180] sm:$0xff]
        %v246 = vld [vmem:[#allocation3 + $0x188] sm:$0xff]
        %v247 = vld [vmem:[#allocation3 + $0x190] sm:$0xff]
        %v248 = vld [vmem:[#allocation3 + $0x198] sm:$0xff]
        %v249 = vld [vmem:[#allocation3 + $0x1a0] sm:$0xff]
        %v250 = vld [vmem:[#allocation3 + $0x1a8] sm:$0xff]
        %v251 = vld [vmem:[#allocation3 + $0x1b0] sm:$0xff]
        %v252 = vld [vmem:[#allocation3 + $0x1b8] sm:$0xff]
        %v253 = vld [vmem:[#allocation3 + $0x1c0] sm:$0xff]
        %v254 = vld [vmem:[#allocation3 + $0x1c8] sm:$0xff]
        %v255 = vld [vmem:[#allocation3 + $0x1d0] sm:$0xff]
        %v256 = vld [vmem:[#allocation3 + $0x1d8] sm:$0xff]
        %v257 = vld [vmem:[#allocation3 + $0x1e0] sm:$0xff]
        %v258 = vld [vmem:[#allocation3 + $0x1e8] sm:$0xff]
        %v259 = vld [vmem:[#allocation3 + $0x1f0] sm:$0xff]
        %v260 = vld [vmem:[#allocation3 + $0x1f8] sm:$0xff]
        %v261 = vld [vmem:[#allocation3 + $0x200] sm:$0xff]
        %v262 = vld [vmem:[#allocation3 + $0x208] sm:$0xff]
        %v263 = vld [vmem:[#allocation3 + $0x210] sm:$0xff]
        %v264 = vld [vmem:[#allocation3 + $0x218] sm:$0xff]
        %v265 = vld [vmem:[#allocation3 + $0x220] sm:$0xff]
        %v266 = vld [vmem:[#allocation3 + $0x228] sm:$0xff]
        %v267 = vld [vmem:[#allocation3 + $0x230] sm:$0xff]
        %v268 = vld [vmem:[#allocation3 + $0x238] sm:$0xff]
        %v269 = vld [vmem:[#allocation3 + $0x240] sm:$0xff]
        %v270 = vld [vmem:[#allocation3 + $0x248] sm:$0xff]
        %v271 = vld [vmem:[#allocation3 + $0x250] sm:$0xff]
        %v272 = vld [vmem:[#allocation3 + $0x258] sm:$0xff]
        %v273 = vld [vmem:[#allocation3 + $0x260] sm:$0xff]
        %v274 = vld [vmem:[#allocation3 + $0x268] sm:$0xff]
        %v275 = vld [vmem:[#allocation3 + $0x270] sm:$0xff]
        %v276 = vld [vmem:[#allocation3 + $0x278] sm:$0xff]
        %v277 = vld [vmem:[#allocation3 + $0x280] sm:$0xff]
        %v278 = vld [vmem:[#allocation3 + $0x288] sm:$0xff]
        %v279 = vld [vmem:[#allocation3 + $0x290] sm:$0xff]
        %v280 = vld [vmem:[#allocation3 + $0x298] sm:$0xff]
        %v281 = vld [vmem:[#allocation3 + $0x2a0] sm:$0xff]
        %v282 = vld [vmem:[#allocation3 + $0x2a8] sm:$0xff]
        %v283 = vld [vmem:[#allocation3 + $0x2b0] sm:$0xff]
        %v284 = vld [vmem:[#allocation3 + $0x2b8] sm:$0xff]
        %v285 = vld [vmem:[#allocation3 + $0x2c0] sm:$0xff]
        %v286 = vld [vmem:[#allocation3 + $0x2c8] sm:$0xff]
        %v287 = vld [vmem:[#allocation3 + $0x2d0] sm:$0xff]
        %v288 = vld [vmem:[#allocation3 + $0x2d8] sm:$0xff]
        %v289 = vld [vmem:[#allocation3 + $0x2e0] sm:$0xff]
        %v290 = vld [vmem:[#allocation3 + $0x2e8] sm:$0xff]
        %v291 = vld [vmem:[#allocation3 + $0x2f0] sm:$0xff]
        %v292 = vld [vmem:[#allocation3 + $0x2f8] sm:$0xff]
        %v293 = vld [vmem:[#allocation3 + $0x300] sm:$0xff]
        %v294 = vld [vmem:[#allocation3 + $0x308] sm:$0xff]
        %v295 = vld [vmem:[#allocation3 + $0x310] sm:$0xff]
        %v296 = vld [vmem:[#allocation3 + $0x318] sm:$0xff]
        %v297 = vld [vmem:[#allocation3 + $0x320] sm:$0xff]
        %v298 = vld [vmem:[#allocation3 + $0x328] sm:$0xff]
        %v299 = vld [vmem:[#allocation3 + $0x330] sm:$0xff]
        %v300 = vld [vmem:[#allocation3 + $0x338] sm:$0xff]
        %v301 = vld [vmem:[#allocation3 + $0x340] sm:$0xff]
        %v302 = vld [vmem:[#allocation3 + $0x348] sm:$0xff]
        %v303 = vld [vmem:[#allocation3 + $0x350] sm:$0xff]
        %v304 = vld [vmem:[#allocation3 + $0x358] sm:$0xff]
        %v305 = vld [vmem:[#allocation2] sm:$0xc0]
        %v306 = vld [vmem:[#allocation2 + $0x8] sm:$0xc0]
        %v307 = vld [vmem:[#allocation2 + $0x10] sm:$0xc0]
        %v308 = vld [vmem:[#allocation2 + $0x18] sm:$0xc0]
        %v309 = vld [vmem:[#allocation2 + $0x40] sm:$0x3f]
        %v310 = vld [vmem:[#allocation2 + $0x48] sm:$0x3f]
        %v311 = vld [vmem:[#allocation2 + $0x50] sm:$0x3f]
        %v312 = vld [vmem:[#allocation2 + $0x58] sm:$0x3f]
        %s313 = scalar_lea.vmem [#allocation3], 864
        %v314 = vld [vmem:[%s313] sm:$0xff]
        %v315 = vld [vmem:[%s313 + $0x8] sm:$0xff]
        %v316 = vld [vmem:[%s313 + $0x10] sm:$0xff]
        %v317 = vld [vmem:[%s313 + $0x18] sm:$0xff]
        %v318 = vld [vmem:[%s313 + $0x20] sm:$0xff]
        %v319 = vld [vmem:[%s313 + $0x28] sm:$0xff]
        %v320 = vld [vmem:[%s313 + $0x30] sm:$0xff]
        %v321 = vld [vmem:[%s313 + $0x38] sm:$0xff]
        %v322 = vld [vmem:[%s313 + $0x40] sm:$0xff]
        %v323 = vld [vmem:[%s313 + $0x48] sm:$0xff]
        %v324 = vld [vmem:[%s313 + $0x50] sm:$0xff]
        %v325 = vld [vmem:[%s313 + $0x58] sm:$0xff]
        %v326 = vld [vmem:[%s313 + $0x60] sm:$0xff]
        %v327 = vld [vmem:[%s313 + $0x68] sm:$0xff]
        %v328 = vld [vmem:[%s313 + $0x70] sm:$0xff]
        %v329 = vld [vmem:[%s313 + $0x78] sm:$0xff]
        %v330 = vld [vmem:[%s313 + $0x80] sm:$0xff]
        %v331 = vld [vmem:[%s313 + $0x88] sm:$0xff]
        %v332 = vld [vmem:[%s313 + $0x90] sm:$0xff]
        %v333 = vld [vmem:[%s313 + $0x98] sm:$0xff]
        %v334 = vld [vmem:[%s313 + $0xa0] sm:$0xff]
        %v335 = vld [vmem:[%s313 + $0xa8] sm:$0xff]
        %v336 = vld [vmem:[%s313 + $0xb0] sm:$0xff]
        %v337 = vld [vmem:[%s313 + $0xb8] sm:$0xff]
        %v338 = vld [vmem:[%s313 + $0xc0] sm:$0xff]
        %v339 = vld [vmem:[%s313 + $0xc8] sm:$0xff]
        %v340 = vld [vmem:[%s313 + $0xd0] sm:$0xff]
        %v341 = vld [vmem:[%s313 + $0xd8] sm:$0xff]
        %v342 = vld [vmem:[%s313 + $0xe0] sm:$0xff]
        %v343 = vld [vmem:[%s313 + $0xe8] sm:$0xff]
        %v344 = vld [vmem:[%s313 + $0xf0] sm:$0xff]
        %v345 = vld [vmem:[%s313 + $0xf8] sm:$0xff]
        %v346 = vld [vmem:[%s313 + $0x100] sm:$0xff]
        %v347 = vld [vmem:[%s313 + $0x108] sm:$0xff]
        %v348 = vld [vmem:[%s313 + $0x110] sm:$0xff]
        %v349 = vld [vmem:[%s313 + $0x118] sm:$0xff]
        %v350 = vld [vmem:[%s313 + $0x120] sm:$0xff]
        %v351 = vld [vmem:[%s313 + $0x128] sm:$0xff]
        %v352 = vld [vmem:[%s313 + $0x130] sm:$0xff]
        %v353 = vld [vmem:[%s313 + $0x138] sm:$0xff]
        %v354 = vld [vmem:[%s313 + $0x140] sm:$0xff]
        %v355 = vld [vmem:[%s313 + $0x148] sm:$0xff]
        %v356 = vld [vmem:[%s313 + $0x150] sm:$0xff]
        %v357 = vld [vmem:[%s313 + $0x158] sm:$0xff]
        %v358 = vld [vmem:[%s313 + $0x160] sm:$0xff]
        %v359 = vld [vmem:[%s313 + $0x168] sm:$0xff]
        %v360 = vld [vmem:[%s313 + $0x170] sm:$0xff]
        %v361 = vld [vmem:[%s313 + $0x178] sm:$0xff]
        %v362 = vld [vmem:[%s313 + $0x180] sm:$0xff]
        %v363 = vld [vmem:[%s313 + $0x188] sm:$0xff]
        %v364 = vld [vmem:[%s313 + $0x190] sm:$0xff]
        %v365 = vld [vmem:[%s313 + $0x198] sm:$0xff]
        %v366 = vld [vmem:[%s313 + $0x1a0] sm:$0xff]
        %v367 = vld [vmem:[%s313 + $0x1a8] sm:$0xff]
        %v368 = vld [vmem:[%s313 + $0x1b0] sm:$0xff]
        %v369 = vld [vmem:[%s313 + $0x1b8] sm:$0xff]
        %v370 = vld [vmem:[%s313 + $0x1c0] sm:$0xff]
        %v371 = vld [vmem:[%s313 + $0x1c8] sm:$0xff]
        %v372 = vld [vmem:[%s313 + $0x1d0] sm:$0xff]
        %v373 = vld [vmem:[%s313 + $0x1d8] sm:$0xff]
        %v374 = vld [vmem:[%s313 + $0x1e0] sm:$0xff]
        %v375 = vld [vmem:[%s313 + $0x1e8] sm:$0xff]
        %v376 = vld [vmem:[%s313 + $0x1f0] sm:$0xff]
        %v377 = vld [vmem:[%s313 + $0x1f8] sm:$0xff]
        %v378 = vld [vmem:[%s313 + $0x200] sm:$0xff]
        %v379 = vld [vmem:[%s313 + $0x208] sm:$0xff]
        %v380 = vld [vmem:[%s313 + $0x210] sm:$0xff]
        %v381 = vld [vmem:[%s313 + $0x218] sm:$0xff]
        %v382 = vld [vmem:[%s313 + $0x220] sm:$0xff]
        %v383 = vld [vmem:[%s313 + $0x228] sm:$0xff]
        %v384 = vld [vmem:[%s313 + $0x230] sm:$0xff]
        %v385 = vld [vmem:[%s313 + $0x238] sm:$0xff]
        %v386 = vld [vmem:[%s313 + $0x240] sm:$0xff]
        %v387 = vld [vmem:[%s313 + $0x248] sm:$0xff]
        %v388 = vld [vmem:[%s313 + $0x250] sm:$0xff]
        %v389 = vld [vmem:[%s313 + $0x258] sm:$0xff]
        %v390 = vld [vmem:[%s313 + $0x260] sm:$0xff]
        %v391 = vld [vmem:[%s313 + $0x268] sm:$0xff]
        %v392 = vld [vmem:[%s313 + $0x270] sm:$0xff]
        %v393 = vld [vmem:[%s313 + $0x278] sm:$0xff]
        %v394 = vld [vmem:[%s313 + $0x280] sm:$0xff]
        %v395 = vld [vmem:[%s313 + $0x288] sm:$0xff]
        %v396 = vld [vmem:[%s313 + $0x290] sm:$0xff]
        %v397 = vld [vmem:[%s313 + $0x298] sm:$0xff]
        %v398 = vld [vmem:[%s313 + $0x2a0] sm:$0xff]
        %v399 = vld [vmem:[%s313 + $0x2a8] sm:$0xff]
        %v400 = vld [vmem:[%s313 + $0x2b0] sm:$0xff]
        %v401 = vld [vmem:[%s313 + $0x2b8] sm:$0xff]
        %v402 = vld [vmem:[%s313 + $0x2c0] sm:$0xff]
        %v403 = vld [vmem:[%s313 + $0x2c8] sm:$0xff]
        %v404 = vld [vmem:[%s313 + $0x2d0] sm:$0xff]
        %v405 = vld [vmem:[%s313 + $0x2d8] sm:$0xff]
        %v406 = vld [vmem:[%s313 + $0x2e0] sm:$0xff]
        %v407 = vld [vmem:[%s313 + $0x2e8] sm:$0xff]
        %v408 = vld [vmem:[%s313 + $0x2f0] sm:$0xff]
        %v409 = vld [vmem:[%s313 + $0x2f8] sm:$0xff]
        %v410 = vld [vmem:[%s313 + $0x300] sm:$0xff]
        %v411 = vld [vmem:[%s313 + $0x308] sm:$0xff]
        %v412 = vld [vmem:[%s313 + $0x310] sm:$0xff]
        %v413 = vld [vmem:[%s313 + $0x318] sm:$0xff]
        %v414 = vld [vmem:[%s313 + $0x320] sm:$0xff]
        %v415 = vld [vmem:[%s313 + $0x328] sm:$0xff]
        %v416 = vld [vmem:[%s313 + $0x330] sm:$0xff]
        %v417 = vld [vmem:[%s313 + $0x338] sm:$0xff]
        %v418 = vld [vmem:[%s313 + $0x340] sm:$0xff]
        %v419 = vld [vmem:[%s313 + $0x348] sm:$0xff]
        %v420 = vld [vmem:[%s313 + $0x350] sm:$0xff]
        %v421 = vld [vmem:[%s313 + $0x358] sm:$0xff]
        %vm434 = vcmask 1041408
        %v435 = vrot.slane %v305, 6
        %v436 = vrot.slane %v189, 6
        %v437 = vsel %vm434, %v435, %v436
        %v438 = vrot.slane %v306, 6
        %v439 = vrot.slane %v190, 6
        %v440 = vsel %vm434, %v438, %v439
        %v441 = vrot.slane %v307, 6
        %v442 = vrot.slane %v191, 6
        %v443 = vsel %vm434, %v441, %v442
        %v444 = vrot.slane %v308, 6
        %v445 = vrot.slane %v192, 6
        %v446 = vsel %vm434, %v444, %v445
        %v447 = vrot.slane %v309, 6
        %v448 = vsel %vm434, %v436, %v447
        %v449 = vrot.slane %v310, 6
        %v450 = vsel %vm434, %v439, %v449
        %v451 = vrot.slane %v311, 6
        %v452 = vsel %vm434, %v442, %v451
        %v453 = vrot.slane %v312, 6
        %v454 = vsel %vm434, %v445, %v453
        %v461 = vsel %vm162, %v446, 0
        %v463 = vsel %vm162, %v454, 0
        %465 = vmatprep.subr.mxu0 %v315
        %466 = vmatpush1.msra.mxu0 %v314
        %467 = vmatprep.subr.mxu0 %v317
        %468 = vmatpush1.msra.mxu0 %v316
        %469 = vmatprep.subr.mxu0 %v319
        %470 = vmatpush1.msra.mxu0 %v318
        %471 = vmatprep.subr.mxu0 %v321
        %472 = vmatpush1.msra.mxu0 %v320
        %473 = vmatprep.subr.mxu0 %v323
        %474 = vmatpush1.msra.mxu0 %v322
        %475 = vmatprep.subr.mxu0 %v325
        %476 = vmatpush1.msra.mxu0 %v324
        %477 = vmatprep.subr.mxu0 %v327
        %478 = vmatpush1.msra.mxu0 %v326
        %479 = vmatprep.subr.mxu0 %v329
        %480 = vmatpush1.msra.mxu0 %v328
        %481 = vmatprep.subr.mxu0 %v331
        %482 = vmatpush1.msra.mxu0 %v330
        %483 = vmatprep.subr.mxu0 %v333
        %484 = vmatpush1.msra.mxu0 %v332
        %485 = vmatprep.subr.mxu0 %v335
        %486 = vmatpush1.msra.mxu0 %v334
        %487 = vmatprep.subr.mxu0 %v337
        %488 = vmatpush1.msra.mxu0 %v336
        %489 = vmatprep.subr.mxu0 %v339
        %490 = vmatpush1.msra.mxu0 %v338
        %491 = vmatprep.subr.mxu0 %v341
        %492 = vmatpush1.msra.mxu0 %v340
        %493 = vmatprep.subr.mxu0 %v343
        %494 = vmatpush1.msra.mxu0 %v342
        %495 = vmatprep.subr.mxu0 %v345
        %496 = vmatpush1.msra.mxu0 %v344
        %497 = vmatprep.subr.mxu0 %v347
        %498 = vmatpush1.msra.mxu0 %v346
        %499 = vmatprep.subr.mxu0 %v349
        %500 = vmatpush1.msra.mxu0 %v348
        %501 = vmatprep.subr.mxu0 %v351
        %502 = vmatpush1.msra.mxu0 %v350
        %503 = vmatprep.subr.mxu0 %v353
        %504 = vmatpush1.msra.mxu0 %v352
        %505 = vmatprep.subr.mxu0 %v355
        %506 = vmatpush1.msra.mxu0 %v354
        %507 = vmatprep.subr.mxu0 %v357
        %508 = vmatpush1.msra.mxu0 %v356
        %509 = vmatprep.subr.mxu0 %v359
        %510 = vmatpush1.msra.mxu0 %v358
        %511 = vmatprep.subr.mxu0 %v361
        %512 = vmatpush1.msra.mxu0 %v360
        %513 = vmatprep.subr.mxu0 %v363
        %514 = vmatpush1.msra.mxu0 %v362
        %515 = vmatprep.subr.mxu0 %v365
        %516 = vmatpush1.msra.mxu0 %v364
        %517 = vmatprep.subr.mxu0 %v367
        %518 = vmatpush1.msra.mxu0 %v366
        %519 = vmatprep.subr.mxu0 %v369
        %520 = vmatpush1.msra.mxu0 %v368
        %521 = vmatprep.subr.mxu0 %v371
        %522 = vmatpush1.msra.mxu0 %v370
        %523 = vmatprep.subr.mxu0 %v373
        %524 = vmatpush1.msra.mxu0 %v372
        %525 = vmatprep.subr.mxu0 %v375
        %526 = vmatpush1.msra.mxu0 %v374
        %527 = vmatprep.subr.mxu0 %v377
        %528 = vmatpush1.msra.mxu0 %v376
        %529 = vmatprep.mubr.f32.mxu0 %v440
        %530 = vmatmul.mubr.f32.gmra.mrb[0].mxu0 %v437
        %v531 = vpop.f32.mrb[0].mxu0
        %v532 = vadd.f32 0.0, %v531
        %v533 = vpop.f32.mrb[0].mxu0
        %v534 = vadd.f32 0.0, %v533
        %535 = vmatprep.mubr.f32.mxu0 %v450
        %536 = vmatmul.mubr.f32.gmra.mrb[0].mxu0 %v448
        %v537 = vpop.f32.mrb[0].mxu0
        %v538 = vadd.f32 0.0, %v537
        %v539 = vpop.f32.mrb[0].mxu0
        %v540 = vadd.f32 0.0, %v539
        %541 = vdwg.mxu0
        %542 = vmatprep.subr.mxu0 %v379
        %543 = vmatpush1.msra.mxu0 %v378
        %544 = vmatprep.subr.mxu0 %v381
        %545 = vmatpush1.msra.mxu0 %v380
        %546 = vmatprep.subr.mxu0 %v383
        %547 = vmatpush1.msra.mxu0 %v382
        %548 = vmatprep.subr.mxu0 %v385
        %549 = vmatpush1.msra.mxu0 %v384
        %550 = vmatprep.subr.mxu0 %v387
        %551 = vmatpush1.msra.mxu0 %v386
        %552 = vmatprep.subr.mxu0 %v389
        %553 = vmatpush1.msra.mxu0 %v388
        %554 = vmatprep.subr.mxu0 %v391
        %555 = vmatpush1.msra.mxu0 %v390
        %556 = vmatprep.subr.mxu0 %v393
        %557 = vmatpush1.msra.mxu0 %v392
        %558 = vmatprep.subr.mxu0 %v395
        %559 = vmatpush1.msra.mxu0 %v394
        %560 = vmatprep.subr.mxu0 %v397
        %561 = vmatpush1.msra.mxu0 %v396
        %562 = vmatprep.subr.mxu0 %v399
        %563 = vmatpush1.msra.mxu0 %v398
        %564 = vmatprep.subr.mxu0 %v401
        %565 = vmatpush1.msra.mxu0 %v400
        %566 = vmatprep.subr.mxu0 %v403
        %567 = vmatpush1.msra.mxu0 %v402
        %568 = vmatprep.subr.mxu0 %v405
        %569 = vmatpush1.msra.mxu0 %v404
        %570 = vmatprep.subr.mxu0 %v407
        %571 = vmatpush1.msra.mxu0 %v406
        %572 = vmatprep.subr.mxu0 %v409
        %573 = vmatpush1.msra.mxu0 %v408
        %574 = vmatprep.subr.mxu0 %v411
        %575 = vmatpush1.msra.mxu0 %v410
        %576 = vmatprep.subr.mxu0 %v413
        %577 = vmatpush1.msra.mxu0 %v412
        %578 = vmatprep.subr.mxu0 %v415
        %579 = vmatpush1.msra.mxu0 %v414
        %580 = vmatprep.subr.mxu0 %v417
        %581 = vmatpush1.msra.mxu0 %v416
        %582 = vmatprep.subr.mxu0 %v419
        %583 = vmatpush1.msra.mxu0 %v418
        %584 = vmatprep.subr.mxu0 %v421
        %585 = vmatpush1.msra.mxu0 %v420
        %586 = vmatprep.subr.mxu0 0.0
        %587 = vmatpush1.msra.mxu0 0.0
        %588 = vmatprep.subr.mxu0 0.0
        %589 = vmatpush1.msra.mxu0 0.0
        %590 = vmatprep.subr.mxu0 0.0
        %591 = vmatpush1.msra.mxu0 0.0
        %592 = vmatprep.subr.mxu0 0.0
        %593 = vmatpush1.msra.mxu0 0.0
        %594 = vmatprep.subr.mxu0 0.0
        %595 = vmatpush1.msra.mxu0 0.0
        %596 = vmatprep.subr.mxu0 0.0
        %597 = vmatpush1.msra.mxu0 0.0
        %598 = vmatprep.subr.mxu0 0.0
        %599 = vmatpush1.msra.mxu0 0.0
        %600 = vmatprep.subr.mxu0 0.0
        %601 = vmatpush1.msra.mxu0 0.0
        %602 = vmatprep.subr.mxu0 0.0
        %603 = vmatpush1.msra.mxu0 0.0
        %604 = vmatprep.subr.mxu0 0.0
        %605 = vmatpush1.msra.mxu0 0.0
        %606 = vmatprep.mubr.f32.mxu0 %v461
        %607 = vmatmul.mubr.f32.gmra.mrb[0].mxu0 %v443
        %v608 = vpop.f32.mrb[0].mxu0
        %v609 = vadd.f32 %v532, %v608
        %v610 = vpop.f32.mrb[0].mxu0
        %v611 = vadd.f32 %v534, %v610
        %612 = vmatprep.mubr.f32.mxu0 %v463
        %613 = vmatmul.mubr.f32.gmra.mrb[0].mxu0 %v452
        %v614 = vpop.f32.mrb[0].mxu0
        %v615 = vadd.f32 %v538, %v614
        %v616 = vpop.f32.mrb[0].mxu0
        %v617 = vadd.f32 %v540, %v616
        %618 = vdwg.mxu0
        %vm627 = vcmask 1042432
        %v628 = vrot.slane %v185, 5
        %v629 = vrot.slane %v189, 5
        %v630 = vsel %vm627, %v628, %v629
        %v631 = vrot.slane %v186, 5
        %v632 = vrot.slane %v190, 5
        %v633 = vsel %vm627, %v631, %v632
        %v634 = vrot.slane %v187, 5
        %v635 = vrot.slane %v191, 5
        %v636 = vsel %vm627, %v634, %v635
        %v637 = vrot.slane %v188, 5
        %v638 = vrot.slane %v192, 5
        %v639 = vsel %vm627, %v637, %v638
        %v640 = vrot.slane %v193, 5
        %v641 = vsel %vm627, %v629, %v640
        %v642 = vrot.slane %v194, 5
        %v643 = vsel %vm627, %v632, %v642
        %v644 = vrot.slane %v195, 5
        %v645 = vsel %vm627, %v635, %v644
        %v646 = vrot.slane %v196, 5
        %v647 = vsel %vm627, %v638, %v646
        %v654 = vsel %vm162, %v639, 0
        %v656 = vsel %vm162, %v647, 0
        %658 = vmatprep.subr.mxu0 %v198
        %659 = vmatpush1.msra.mxu0 %v197
        %660 = vmatprep.subr.mxu0 %v200
        %661 = vmatpush1.msra.mxu0 %v199
        %662 = vmatprep.subr.mxu0 %v202
        %663 = vmatpush1.msra.mxu0 %v201
        %664 = vmatprep.subr.mxu0 %v204
        %665 = vmatpush1.msra.mxu0 %v203
        %666 = vmatprep.subr.mxu0 %v206
        %667 = vmatpush1.msra.mxu0 %v205
        %668 = vmatprep.subr.mxu0 %v208
        %669 = vmatpush1.msra.mxu0 %v207
        %670 = vmatprep.subr.mxu0 %v210
        %671 = vmatpush1.msra.mxu0 %v209
        %672 = vmatprep.subr.mxu0 %v212
        %673 = vmatpush1.msra.mxu0 %v211
        %674 = vmatprep.subr.mxu0 %v214
        %675 = vmatpush1.msra.mxu0 %v213
        %676 = vmatprep.subr.mxu0 %v216
        %677 = vmatpush1.msra.mxu0 %v215
        %678 = vmatprep.subr.mxu0 %v218
        %679 = vmatpush1.msra.mxu0 %v217
        %680 = vmatprep.subr.mxu0 %v220
        %681 = vmatpush1.msra.mxu0 %v219
        %682 = vmatprep.subr.mxu0 %v222
        %683 = vmatpush1.msra.mxu0 %v221
        %684 = vmatprep.subr.mxu0 %v224
        %685 = vmatpush1.msra.mxu0 %v223
        %686 = vmatprep.subr.mxu0 %v226
        %687 = vmatpush1.msra.mxu0 %v225
        %688 = vmatprep.subr.mxu0 %v228
        %689 = vmatpush1.msra.mxu0 %v227
        %690 = vmatprep.subr.mxu0 %v230
        %691 = vmatpush1.msra.mxu0 %v229
        %692 = vmatprep.subr.mxu0 %v232
        %693 = vmatpush1.msra.mxu0 %v231
        %694 = vmatprep.subr.mxu0 %v234
        %695 = vmatpush1.msra.mxu0 %v233
        %696 = vmatprep.subr.mxu0 %v236
        %697 = vmatpush1.msra.mxu0 %v235
        %698 = vmatprep.subr.mxu0 %v238
        %699 = vmatpush1.msra.mxu0 %v237
        %700 = vmatprep.subr.mxu0 %v240
        %701 = vmatpush1.msra.mxu0 %v239
        %702 = vmatprep.subr.mxu0 %v242
        %703 = vmatpush1.msra.mxu0 %v241
        %704 = vmatprep.subr.mxu0 %v244
        %705 = vmatpush1.msra.mxu0 %v243
        %706 = vmatprep.subr.mxu0 %v246
        %707 = vmatpush1.msra.mxu0 %v245
        %708 = vmatprep.subr.mxu0 %v248
        %709 = vmatpush1.msra.mxu0 %v247
        %710 = vmatprep.subr.mxu0 %v250
        %711 = vmatpush1.msra.mxu0 %v249
        %712 = vmatprep.subr.mxu0 %v252
        %713 = vmatpush1.msra.mxu0 %v251
        %714 = vmatprep.subr.mxu0 %v254
        %715 = vmatpush1.msra.mxu0 %v253
        %716 = vmatprep.subr.mxu0 %v256
        %717 = vmatpush1.msra.mxu0 %v255
        %718 = vmatprep.subr.mxu0 %v258
        %719 = vmatpush1.msra.mxu0 %v257
        %720 = vmatprep.subr.mxu0 %v260
        %721 = vmatpush1.msra.mxu0 %v259
        %722 = vmatprep.mubr.f32.mxu0 %v633
        %723 = vmatmul.mubr.f32.gmra.mrb[0].mxu0 %v630
        %v724 = vpop.f32.mrb[0].mxu0
        %v725 = vadd.f32 %v609, %v724
        %v726 = vpop.f32.mrb[0].mxu0
        %v727 = vadd.f32 %v611, %v726
        %728 = vmatprep.mubr.f32.mxu0 %v643
        %729 = vmatmul.mubr.f32.gmra.mrb[0].mxu0 %v641
        %v730 = vpop.f32.mrb[0].mxu0
        %v731 = vadd.f32 %v615, %v730
        %v732 = vpop.f32.mrb[0].mxu0
        %v733 = vadd.f32 %v617, %v732
        %734 = vdwg.mxu0
        %735 = vmatprep.subr.mxu0 %v262
        %736 = vmatpush1.msra.mxu0 %v261
        %737 = vmatprep.subr.mxu0 %v264
        %738 = vmatpush1.msra.mxu0 %v263
        %739 = vmatprep.subr.mxu0 %v266
        %740 = vmatpush1.msra.mxu0 %v265
        %741 = vmatprep.subr.mxu0 %v268
        %742 = vmatpush1.msra.mxu0 %v267
        %743 = vmatprep.subr.mxu0 %v270
        %744 = vmatpush1.msra.mxu0 %v269
        %745 = vmatprep.subr.mxu0 %v272
        %746 = vmatpush1.msra.mxu0 %v271
        %747 = vmatprep.subr.mxu0 %v274
        %748 = vmatpush1.msra.mxu0 %v273
        %749 = vmatprep.subr.mxu0 %v276
        %750 = vmatpush1.msra.mxu0 %v275
        %751 = vmatprep.subr.mxu0 %v278
        %752 = vmatpush1.msra.mxu0 %v277
        %753 = vmatprep.subr.mxu0 %v280
        %754 = vmatpush1.msra.mxu0 %v279
        %755 = vmatprep.subr.mxu0 %v282
        %756 = vmatpush1.msra.mxu0 %v281
        %757 = vmatprep.subr.mxu0 %v284
        %758 = vmatpush1.msra.mxu0 %v283
        %759 = vmatprep.subr.mxu0 %v286
        %760 = vmatpush1.msra.mxu0 %v285
        %761 = vmatprep.subr.mxu0 %v288
        %762 = vmatpush1.msra.mxu0 %v287
        %763 = vmatprep.subr.mxu0 %v290
        %764 = vmatpush1.msra.mxu0 %v289
        %765 = vmatprep.subr.mxu0 %v292
        %766 = vmatpush1.msra.mxu0 %v291
        %767 = vmatprep.subr.mxu0 %v294
        %768 = vmatpush1.msra.mxu0 %v293
        %769 = vmatprep.subr.mxu0 %v296
        %770 = vmatpush1.msra.mxu0 %v295
        %771 = vmatprep.subr.mxu0 %v298
        %772 = vmatpush1.msra.mxu0 %v297
        %773 = vmatprep.subr.mxu0 %v300
        %774 = vmatpush1.msra.mxu0 %v299
        %775 = vmatprep.subr.mxu0 %v302
        %776 = vmatpush1.msra.mxu0 %v301
        %777 = vmatprep.subr.mxu0 %v304
        %778 = vmatpush1.msra.mxu0 %v303
        %779 = vmatprep.subr.mxu0 0.0
        %780 = vmatpush1.msra.mxu0 0.0
        %781 = vmatprep.subr.mxu0 0.0
        %782 = vmatpush1.msra.mxu0 0.0
        %783 = vmatprep.subr.mxu0 0.0
        %784 = vmatpush1.msra.mxu0 0.0
        %785 = vmatprep.subr.mxu0 0.0
        %786 = vmatpush1.msra.mxu0 0.0
        %787 = vmatprep.subr.mxu0 0.0
        %788 = vmatpush1.msra.mxu0 0.0
        %789 = vmatprep.subr.mxu0 0.0
        %790 = vmatpush1.msra.mxu0 0.0
        %791 = vmatprep.subr.mxu0 0.0
        %792 = vmatpush1.msra.mxu0 0.0
        %793 = vmatprep.subr.mxu0 0.0
        %794 = vmatpush1.msra.mxu0 0.0
        %795 = vmatprep.subr.mxu0 0.0
        %796 = vmatpush1.msra.mxu0 0.0
        %797 = vmatprep.subr.mxu0 0.0
        %798 = vmatpush1.msra.mxu0 0.0
        %799 = vmatprep.mubr.f32.mxu0 %v654
        %800 = vmatmul.mubr.f32.gmra.mrb[0].mxu0 %v636
        %v801 = vpop.f32.mrb[0].mxu0
        %v802 = vadd.f32 %v725, %v801
        %v803 = vpop.f32.mrb[0].mxu0
        %v804 = vadd.f32 %v727, %v803
        %805 = vmatprep.mubr.f32.mxu0 %v656
        %806 = vmatmul.mubr.f32.gmra.mrb[0].mxu0 %v645
        %v807 = vpop.f32.mrb[0].mxu0
        %v808 = vadd.f32 %v731, %v807
        %v809 = vpop.f32.mrb[0].mxu0
        %v810 = vadd.f32 %v733, %v809
        %811 = vdwg.mxu0
        %v812 = vld [vmem:[#allocation2] sm:$0x80]
        %v813 = vld [vmem:[#allocation2 + $0x8] sm:$0x80]
        %v814 = vld [vmem:[#allocation2 + $0x10] sm:$0x80]
        %v815 = vld [vmem:[#allocation2 + $0x18] sm:$0x80]
        %v816 = vld [vmem:[#allocation2 + $0x40] sm:$0x7f]
        %v817 = vld [vmem:[#allocation2 + $0x48] sm:$0x7f]
        %v818 = vld [vmem:[#allocation2 + $0x50] sm:$0x7f]
        %v819 = vld [vmem:[#allocation2 + $0x58] sm:$0x7f]
        %s820 = scalar_lea.vmem [#allocation3], 1728
        %v821 = vld [vmem:[%s820] sm:$0xff]
        %v822 = vld [vmem:[%s820 + $0x8] sm:$0xff]
        %v823 = vld [vmem:[%s820 + $0x10] sm:$0xff]
        %v824 = vld [vmem:[%s820 + $0x18] sm:$0xff]
        %v825 = vld [vmem:[%s820 + $0x20] sm:$0xff]
        %v826 = vld [vmem:[%s820 + $0x28] sm:$0xff]
        %v827 = vld [vmem:[%s820 + $0x30] sm:$0xff]
        %v828 = vld [vmem:[%s820 + $0x38] sm:$0xff]
        %v829 = vld [vmem:[%s820 + $0x40] sm:$0xff]
        %v830 = vld [vmem:[%s820 + $0x48] sm:$0xff]
        %v831 = vld [vmem:[%s820 + $0x50] sm:$0xff]
        %v832 = vld [vmem:[%s820 + $0x58] sm:$0xff]
        %v833 = vld [vmem:[%s820 + $0x60] sm:$0xff]
        %v834 = vld [vmem:[%s820 + $0x68] sm:$0xff]
        %v835 = vld [vmem:[%s820 + $0x70] sm:$0xff]
        %v836 = vld [vmem:[%s820 + $0x78] sm:$0xff]
        %v837 = vld [vmem:[%s820 + $0x80] sm:$0xff]
        %v838 = vld [vmem:[%s820 + $0x88] sm:$0xff]
        %v839 = vld [vmem:[%s820 + $0x90] sm:$0xff]
        %v840 = vld [vmem:[%s820 + $0x98] sm:$0xff]
        %v841 = vld [vmem:[%s820 + $0xa0] sm:$0xff]
        %v842 = vld [vmem:[%s820 + $0xa8] sm:$0xff]
        %v843 = vld [vmem:[%s820 + $0xb0] sm:$0xff]
        %v844 = vld [vmem:[%s820 + $0xb8] sm:$0xff]
        %v845 = vld [vmem:[%s820 + $0xc0] sm:$0xff]
        %v846 = vld [vmem:[%s820 + $0xc8] sm:$0xff]
        %v847 = vld [vmem:[%s820 + $0xd0] sm:$0xff]
        %v848 = vld [vmem:[%s820 + $0xd8] sm:$0xff]
        %v849 = vld [vmem:[%s820 + $0xe0] sm:$0xff]
        %v850 = vld [vmem:[%s820 + $0xe8] sm:$0xff]
        %v851 = vld [vmem:[%s820 + $0xf0] sm:$0xff]
        %v852 = vld [vmem:[%s820 + $0xf8] sm:$0xff]
        %v853 = vld [vmem:[%s820 + $0x100] sm:$0xff]
        %v854 = vld [vmem:[%s820 + $0x108] sm:$0xff]
        %v855 = vld [vmem:[%s820 + $0x110] sm:$0xff]
        %v856 = vld [vmem:[%s820 + $0x118] sm:$0xff]
        %v857 = vld [vmem:[%s820 + $0x120] sm:$0xff]
        %v858 = vld [vmem:[%s820 + $0x128] sm:$0xff]
        %v859 = vld [vmem:[%s820 + $0x130] sm:$0xff]
        %v860 = vld [vmem:[%s820 + $0x138] sm:$0xff]
        %v861 = vld [vmem:[%s820 + $0x140] sm:$0xff]
        %v862 = vld [vmem:[%s820 + $0x148] sm:$0xff]
        %v863 = vld [vmem:[%s820 + $0x150] sm:$0xff]
        %v864 = vld [vmem:[%s820 + $0x158] sm:$0xff]
        %v865 = vld [vmem:[%s820 + $0x160] sm:$0xff]
        %v866 = vld [vmem:[%s820 + $0x168] sm:$0xff]
        %v867 = vld [vmem:[%s820 + $0x170] sm:$0xff]
        %v868 = vld [vmem:[%s820 + $0x178] sm:$0xff]
        %v869 = vld [vmem:[%s820 + $0x180] sm:$0xff]
        %v870 = vld [vmem:[%s820 + $0x188] sm:$0xff]
        %v871 = vld [vmem:[%s820 + $0x190] sm:$0xff]
        %v872 = vld [vmem:[%s820 + $0x198] sm:$0xff]
        %v873 = vld [vmem:[%s820 + $0x1a0] sm:$0xff]
        %v874 = vld [vmem:[%s820 + $0x1a8] sm:$0xff]
        %v875 = vld [vmem:[%s820 + $0x1b0] sm:$0xff]
        %v876 = vld [vmem:[%s820 + $0x1b8] sm:$0xff]
        %v877 = vld [vmem:[%s820 + $0x1c0] sm:$0xff]
        %v878 = vld [vmem:[%s820 + $0x1c8] sm:$0xff]
        %v879 = vld [vmem:[%s820 + $0x1d0] sm:$0xff]
        %v880 = vld [vmem:[%s820 + $0x1d8] sm:$0xff]
        %v881 = vld [vmem:[%s820 + $0x1e0] sm:$0xff]
        %v882 = vld [vmem:[%s820 + $0x1e8] sm:$0xff]
        %v883 = vld [vmem:[%s820 + $0x1f0] sm:$0xff]
        %v884 = vld [vmem:[%s820 + $0x1f8] sm:$0xff]
        %v885 = vld [vmem:[%s820 + $0x200] sm:$0xff]
        %v886 = vld [vmem:[%s820 + $0x208] sm:$0xff]
        %v887 = vld [vmem:[%s820 + $0x210] sm:$0xff]
        %v888 = vld [vmem:[%s820 + $0x218] sm:$0xff]
        %v889 = vld [vmem:[%s820 + $0x220] sm:$0xff]
        %v890 = vld [vmem:[%s820 + $0x228] sm:$0xff]
        %v891 = vld [vmem:[%s820 + $0x230] sm:$0xff]
        %v892 = vld [vmem:[%s820 + $0x238] sm:$0xff]
        %v893 = vld [vmem:[%s820 + $0x240] sm:$0xff]
        %v894 = vld [vmem:[%s820 + $0x248] sm:$0xff]
        %v895 = vld [vmem:[%s820 + $0x250] sm:$0xff]
        %v896 = vld [vmem:[%s820 + $0x258] sm:$0xff]
        %v897 = vld [vmem:[%s820 + $0x260] sm:$0xff]
        %v898 = vld [vmem:[%s820 + $0x268] sm:$0xff]
        %v899 = vld [vmem:[%s820 + $0x270] sm:$0xff]
        %v900 = vld [vmem:[%s820 + $0x278] sm:$0xff]
        %v901 = vld [vmem:[%s820 + $0x280] sm:$0xff]
        %v902 = vld [vmem:[%s820 + $0x288] sm:$0xff]
        %v903 = vld [vmem:[%s820 + $0x290] sm:$0xff]
        %v904 = vld [vmem:[%s820 + $0x298] sm:$0xff]
        %v905 = vld [vmem:[%s820 + $0x2a0] sm:$0xff]
        %v906 = vld [vmem:[%s820 + $0x2a8] sm:$0xff]
        %v907 = vld [vmem:[%s820 + $0x2b0] sm:$0xff]
        %v908 = vld [vmem:[%s820 + $0x2b8] sm:$0xff]
        %v909 = vld [vmem:[%s820 + $0x2c0] sm:$0xff]
        %v910 = vld [vmem:[%s820 + $0x2c8] sm:$0xff]
        %v911 = vld [vmem:[%s820 + $0x2d0] sm:$0xff]
        %v912 = vld [vmem:[%s820 + $0x2d8] sm:$0xff]
        %v913 = vld [vmem:[%s820 + $0x2e0] sm:$0xff]
        %v914 = vld [vmem:[%s820 + $0x2e8] sm:$0xff]
        %v915 = vld [vmem:[%s820 + $0x2f0] sm:$0xff]
        %v916 = vld [vmem:[%s820 + $0x2f8] sm:$0xff]
        %v917 = vld [vmem:[%s820 + $0x300] sm:$0xff]
        %v918 = vld [vmem:[%s820 + $0x308] sm:$0xff]
        %v919 = vld [vmem:[%s820 + $0x310] sm:$0xff]
        %v920 = vld [vmem:[%s820 + $0x318] sm:$0xff]
        %v921 = vld [vmem:[%s820 + $0x320] sm:$0xff]
        %v922 = vld [vmem:[%s820 + $0x328] sm:$0xff]
        %v923 = vld [vmem:[%s820 + $0x330] sm:$0xff]
        %v924 = vld [vmem:[%s820 + $0x338] sm:$0xff]
        %v925 = vld [vmem:[%s820 + $0x340] sm:$0xff]
        %v926 = vld [vmem:[%s820 + $0x348] sm:$0xff]
        %v927 = vld [vmem:[%s820 + $0x350] sm:$0xff]
        %v928 = vld [vmem:[%s820 + $0x358] sm:$0xff]
        %vm937 = vcmask 1040384
        %v938 = vrot.slane %v812, 7
        %v939 = vrot.slane %v189, 7
        %v940 = vsel %vm937, %v938, %v939
        %v941 = vrot.slane %v813, 7
        %v942 = vrot.slane %v190, 7
        %v943 = vsel %vm937, %v941, %v942
        %v944 = vrot.slane %v814, 7
        %v945 = vrot.slane %v191, 7
        %v946 = vsel %vm937, %v944, %v945
        %v947 = vrot.slane %v815, 7
        %v948 = vrot.slane %v192, 7
        %v949 = vsel %vm937, %v947, %v948
        %v950 = vrot.slane %v816, 7
        %v951 = vsel %vm937, %v939, %v950
        %v952 = vrot.slane %v817, 7
        %v953 = vsel %vm937, %v942, %v952
        %v954 = vrot.slane %v818, 7
        %v955 = vsel %vm937, %v945, %v954
        %v956 = vrot.slane %v819, 7
        %v957 = vsel %vm937, %v948, %v956
        %v964 = vsel %vm162, %v949, 0
        %v966 = vsel %vm162, %v957, 0
        %968 = vmatprep.subr.mxu0 %v822
        %969 = vmatpush1.msra.mxu0 %v821
        %970 = vmatprep.subr.mxu0 %v824
        %971 = vmatpush1.msra.mxu0 %v823
        %972 = vmatprep.subr.mxu0 %v826
        %973 = vmatpush1.msra.mxu0 %v825
        %974 = vmatprep.subr.mxu0 %v828
        %975 = vmatpush1.msra.mxu0 %v827
        %976 = vmatprep.subr.mxu0 %v830
        %977 = vmatpush1.msra.mxu0 %v829
        %978 = vmatprep.subr.mxu0 %v832
        %979 = vmatpush1.msra.mxu0 %v831
        %980 = vmatprep.subr.mxu0 %v834
        %981 = vmatpush1.msra.mxu0 %v833
        %982 = vmatprep.subr.mxu0 %v836
        %983 = vmatpush1.msra.mxu0 %v835
        %984 = vmatprep.subr.mxu0 %v838
        %985 = vmatpush1.msra.mxu0 %v837
        %986 = vmatprep.subr.mxu0 %v840
        %987 = vmatpush1.msra.mxu0 %v839
        %988 = vmatprep.subr.mxu0 %v842
        %989 = vmatpush1.msra.mxu0 %v841
        %990 = vmatprep.subr.mxu0 %v844
        %991 = vmatpush1.msra.mxu0 %v843
        %992 = vmatprep.subr.mxu0 %v846
        %993 = vmatpush1.msra.mxu0 %v845
        %994 = vmatprep.subr.mxu0 %v848
        %995 = vmatpush1.msra.mxu0 %v847
        %996 = vmatprep.subr.mxu0 %v850
        %997 = vmatpush1.msra.mxu0 %v849
        %998 = vmatprep.subr.mxu0 %v852
        %999 = vmatpush1.msra.mxu0 %v851
        %1000 = vmatprep.subr.mxu0 %v854
        %1001 = vmatpush1.msra.mxu0 %v853
        %1002 = vmatprep.subr.mxu0 %v856
        %1003 = vmatpush1.msra.mxu0 %v855
        %1004 = vmatprep.subr.mxu0 %v858
        %1005 = vmatpush1.msra.mxu0 %v857
        %1006 = vmatprep.subr.mxu0 %v860
        %1007 = vmatpush1.msra.mxu0 %v859
        %1008 = vmatprep.subr.mxu0 %v862
        %1009 = vmatpush1.msra.mxu0 %v861
        %1010 = vmatprep.subr.mxu0 %v864
        %1011 = vmatpush1.msra.mxu0 %v863
        %1012 = vmatprep.subr.mxu0 %v866
        %1013 = vmatpush1.msra.mxu0 %v865
        %1014 = vmatprep.subr.mxu0 %v868
        %1015 = vmatpush1.msra.mxu0 %v867
        %1016 = vmatprep.subr.mxu0 %v870
        %1017 = vmatpush1.msra.mxu0 %v869
        %1018 = vmatprep.subr.mxu0 %v872
        %1019 = vmatpush1.msra.mxu0 %v871
        %1020 = vmatprep.subr.mxu0 %v874
        %1021 = vmatpush1.msra.mxu0 %v873
        %1022 = vmatprep.subr.mxu0 %v876
        %1023 = vmatpush1.msra.mxu0 %v875
        %1024 = vmatprep.subr.mxu0 %v878
        %1025 = vmatpush1.msra.mxu0 %v877
        %1026 = vmatprep.subr.mxu0 %v880
        %1027 = vmatpush1.msra.mxu0 %v879
        %1028 = vmatprep.subr.mxu0 %v882
        %1029 = vmatpush1.msra.mxu0 %v881
        %1030 = vmatprep.subr.mxu0 %v884
        %1031 = vmatpush1.msra.mxu0 %v883
        %1032 = vmatprep.mubr.f32.mxu0 %v943
        %1033 = vmatmul.mubr.f32.gmra.mrb[0].mxu0 %v940
        %v1034 = vpop.f32.mrb[0].mxu0
        %v1035 = vadd.f32 0.0, %v1034
        %v1036 = vpop.f32.mrb[0].mxu0
        %v1037 = vadd.f32 0.0, %v1036
        %1038 = vmatprep.mubr.f32.mxu0 %v953
        %1039 = vmatmul.mubr.f32.gmra.mrb[0].mxu0 %v951
        %v1040 = vpop.f32.mrb[0].mxu0
        %v1041 = vadd.f32 0.0, %v1040
        %v1042 = vpop.f32.mrb[0].mxu0
        %v1043 = vadd.f32 0.0, %v1042
        %1044 = vdwg.mxu0
        %1045 = vmatprep.subr.mxu0 %v886
        %1046 = vmatpush1.msra.mxu0 %v885
        %1047 = vmatprep.subr.mxu0 %v888
        %1048 = vmatpush1.msra.mxu0 %v887
        %1049 = vmatprep.subr.mxu0 %v890
        %1050 = vmatpush1.msra.mxu0 %v889
        %1051 = vmatprep.subr.mxu0 %v892
        %1052 = vmatpush1.msra.mxu0 %v891
        %1053 = vmatprep.subr.mxu0 %v894
        %1054 = vmatpush1.msra.mxu0 %v893
        %1055 = vmatprep.subr.mxu0 %v896
        %1056 = vmatpush1.msra.mxu0 %v895
        %1057 = vmatprep.subr.mxu0 %v898
        %1058 = vmatpush1.msra.mxu0 %v897
        %1059 = vmatprep.subr.mxu0 %v900
        %1060 = vmatpush1.msra.mxu0 %v899
        %1061 = vmatprep.subr.mxu0 %v902
        %1062 = vmatpush1.msra.mxu0 %v901
        %1063 = vmatprep.subr.mxu0 %v904
        %1064 = vmatpush1.msra.mxu0 %v903
        %1065 = vmatprep.subr.mxu0 %v906
        %1066 = vmatpush1.msra.mxu0 %v905
        %1067 = vmatprep.subr.mxu0 %v908
        %1068 = vmatpush1.msra.mxu0 %v907
        %1069 = vmatprep.subr.mxu0 %v910
        %1070 = vmatpush1.msra.mxu0 %v909
        %1071 = vmatprep.subr.mxu0 %v912
        %1072 = vmatpush1.msra.mxu0 %v911
        %1073 = vmatprep.subr.mxu0 %v914
        %1074 = vmatpush1.msra.mxu0 %v913
        %1075 = vmatprep.subr.mxu0 %v916
        %1076 = vmatpush1.msra.mxu0 %v915
        %1077 = vmatprep.subr.mxu0 %v918
        %1078 = vmatpush1.msra.mxu0 %v917
        %1079 = vmatprep.subr.mxu0 %v920
        %1080 = vmatpush1.msra.mxu0 %v919
        %1081 = vmatprep.subr.mxu0 %v922
        %1082 = vmatpush1.msra.mxu0 %v921
        %1083 = vmatprep.subr.mxu0 %v924
        %1084 = vmatpush1.msra.mxu0 %v923
        %1085 = vmatprep.subr.mxu0 %v926
        %1086 = vmatpush1.msra.mxu0 %v925
        %1087 = vmatprep.subr.mxu0 %v928
        %1088 = vmatpush1.msra.mxu0 %v927
        %1089 = vmatprep.subr.mxu0 0.0
        %1090 = vmatpush1.msra.mxu0 0.0
        %1091 = vmatprep.subr.mxu0 0.0
        %1092 = vmatpush1.msra.mxu0 0.0
        %1093 = vmatprep.subr.mxu0 0.0
        %1094 = vmatpush1.msra.mxu0 0.0
        %1095 = vmatprep.subr.mxu0 0.0
        %1096 = vmatpush1.msra.mxu0 0.0
        %1097 = vmatprep.subr.mxu0 0.0
        %1098 = vmatpush1.msra.mxu0 0.0
        %1099 = vmatprep.subr.mxu0 0.0
        %1100 = vmatpush1.msra.mxu0 0.0
        %1101 = vmatprep.subr.mxu0 0.0
        %1102 = vmatpush1.msra.mxu0 0.0
        %1103 = vmatprep.subr.mxu0 0.0
        %1104 = vmatpush1.msra.mxu0 0.0
        %1105 = vmatprep.subr.mxu0 0.0
        %1106 = vmatpush1.msra.mxu0 0.0
        %1107 = vmatprep.subr.mxu0 0.0
        %1108 = vmatpush1.msra.mxu0 0.0
        %1109 = vmatprep.mubr.f32.mxu0 %v964
        %1110 = vmatmul.mubr.f32.gmra.mrb[0].mxu0 %v946
        %v1111 = vpop.f32.mrb[0].mxu0
        %v1112 = vadd.f32 %v1035, %v1111
        %v1113 = vpop.f32.mrb[0].mxu0
        %v1114 = vadd.f32 %v1037, %v1113
        %1115 = vmatprep.mubr.f32.mxu0 %v966
        %1116 = vmatmul.mubr.f32.gmra.mrb[0].mxu0 %v955
        %v1117 = vpop.f32.mrb[0].mxu0
        %v1118 = vadd.f32 %v1041, %v1117
        %v1119 = vpop.f32.mrb[0].mxu0
        %v1120 = vadd.f32 %v1043, %v1119
        %1121 = vdwg.mxu0
        %v1122 = vadd.f32 %v802, %v1112
        %v1123 = vadd.f32 %v804, %v1114
        %v1124 = vadd.f32 %v808, %v1118
        %v1125 = vadd.f32 %v810, %v1120
        %v1126 = vld [vmem:[#allocation2 + $0x40] sm:$0xff]
        %v1127 = vld [vmem:[#allocation2 + $0x48] sm:$0xff]
        %v1128 = vld [vmem:[#allocation2 + $0x50] sm:$0xff]
        %v1129 = vld [vmem:[#allocation2 + $0x58] sm:$0xff]
        %s1130 = scalar_lea.vmem [#allocation3], 2592
        %v1131 = vld [vmem:[%s1130] sm:$0xff]
        %v1132 = vld [vmem:[%s1130 + $0x8] sm:$0xff]
        %v1133 = vld [vmem:[%s1130 + $0x10] sm:$0xff]
        %v1134 = vld [vmem:[%s1130 + $0x18] sm:$0xff]
        %v1135 = vld [vmem:[%s1130 + $0x20] sm:$0xff]
        %v1136 = vld [vmem:[%s1130 + $0x28] sm:$0xff]
        %v1137 = vld [vmem:[%s1130 + $0x30] sm:$0xff]
        %v1138 = vld [vmem:[%s1130 + $0x38] sm:$0xff]
        %v1139 = vld [vmem:[%s1130 + $0x40] sm:$0xff]
        %v1140 = vld [vmem:[%s1130 + $0x48] sm:$0xff]
        %v1141 = vld [vmem:[%s1130 + $0x50] sm:$0xff]
        %v1142 = vld [vmem:[%s1130 + $0x58] sm:$0xff]
        %v1143 = vld [vmem:[%s1130 + $0x60] sm:$0xff]
        %v1144 = vld [vmem:[%s1130 + $0x68] sm:$0xff]
        %v1145 = vld [vmem:[%s1130 + $0x70] sm:$0xff]
        %v1146 = vld [vmem:[%s1130 + $0x78] sm:$0xff]
        %v1147 = vld [vmem:[%s1130 + $0x80] sm:$0xff]
        %v1148 = vld [vmem:[%s1130 + $0x88] sm:$0xff]
        %v1149 = vld [vmem:[%s1130 + $0x90] sm:$0xff]
        %v1150 = vld [vmem:[%s1130 + $0x98] sm:$0xff]
        %v1151 = vld [vmem:[%s1130 + $0xa0] sm:$0xff]
        %v1152 = vld [vmem:[%s1130 + $0xa8] sm:$0xff]
        %v1153 = vld [vmem:[%s1130 + $0xb0] sm:$0xff]
        %v1154 = vld [vmem:[%s1130 + $0xb8] sm:$0xff]
        %v1155 = vld [vmem:[%s1130 + $0xc0] sm:$0xff]
        %v1156 = vld [vmem:[%s1130 + $0xc8] sm:$0xff]
        %v1157 = vld [vmem:[%s1130 + $0xd0] sm:$0xff]
        %v1158 = vld [vmem:[%s1130 + $0xd8] sm:$0xff]
        %v1159 = vld [vmem:[%s1130 + $0xe0] sm:$0xff]
        %v1160 = vld [vmem:[%s1130 + $0xe8] sm:$0xff]
        %v1161 = vld [vmem:[%s1130 + $0xf0] sm:$0xff]
        %v1162 = vld [vmem:[%s1130 + $0xf8] sm:$0xff]
        %v1163 = vld [vmem:[%s1130 + $0x100] sm:$0xff]
        %v1164 = vld [vmem:[%s1130 + $0x108] sm:$0xff]
        %v1165 = vld [vmem:[%s1130 + $0x110] sm:$0xff]
        %v1166 = vld [vmem:[%s1130 + $0x118] sm:$0xff]
        %v1167 = vld [vmem:[%s1130 + $0x120] sm:$0xff]
        %v1168 = vld [vmem:[%s1130 + $0x128] sm:$0xff]
        %v1169 = vld [vmem:[%s1130 + $0x130] sm:$0xff]
        %v1170 = vld [vmem:[%s1130 + $0x138] sm:$0xff]
        %v1171 = vld [vmem:[%s1130 + $0x140] sm:$0xff]
        %v1172 = vld [vmem:[%s1130 + $0x148] sm:$0xff]
        %v1173 = vld [vmem:[%s1130 + $0x150] sm:$0xff]
        %v1174 = vld [vmem:[%s1130 + $0x158] sm:$0xff]
        %v1175 = vld [vmem:[%s1130 + $0x160] sm:$0xff]
        %v1176 = vld [vmem:[%s1130 + $0x168] sm:$0xff]
        %v1177 = vld [vmem:[%s1130 + $0x170] sm:$0xff]
        %v1178 = vld [vmem:[%s1130 + $0x178] sm:$0xff]
        %v1179 = vld [vmem:[%s1130 + $0x180] sm:$0xff]
        %v1180 = vld [vmem:[%s1130 + $0x188] sm:$0xff]
        %v1181 = vld [vmem:[%s1130 + $0x190] sm:$0xff]
        %v1182 = vld [vmem:[%s1130 + $0x198] sm:$0xff]
        %v1183 = vld [vmem:[%s1130 + $0x1a0] sm:$0xff]
        %v1184 = vld [vmem:[%s1130 + $0x1a8] sm:$0xff]
        %v1185 = vld [vmem:[%s1130 + $0x1b0] sm:$0xff]
        %v1186 = vld [vmem:[%s1130 + $0x1b8] sm:$0xff]
        %v1187 = vld [vmem:[%s1130 + $0x1c0] sm:$0xff]
        %v1188 = vld [vmem:[%s1130 + $0x1c8] sm:$0xff]
        %v1189 = vld [vmem:[%s1130 + $0x1d0] sm:$0xff]
        %v1190 = vld [vmem:[%s1130 + $0x1d8] sm:$0xff]
        %v1191 = vld [vmem:[%s1130 + $0x1e0] sm:$0xff]
        %v1192 = vld [vmem:[%s1130 + $0x1e8] sm:$0xff]
        %v1193 = vld [vmem:[%s1130 + $0x1f0] sm:$0xff]
        %v1194 = vld [vmem:[%s1130 + $0x1f8] sm:$0xff]
        %v1195 = vld [vmem:[%s1130 + $0x200] sm:$0xff]
        %v1196 = vld [vmem:[%s1130 + $0x208] sm:$0xff]
        %v1197 = vld [vmem:[%s1130 + $0x210] sm:$0xff]
        %v1198 = vld [vmem:[%s1130 + $0x218] sm:$0xff]
        %v1199 = vld [vmem:[%s1130 + $0x220] sm:$0xff]
        %v1200 = vld [vmem:[%s1130 + $0x228] sm:$0xff]
        %v1201 = vld [vmem:[%s1130 + $0x230] sm:$0xff]
        %v1202 = vld [vmem:[%s1130 + $0x238] sm:$0xff]
        %v1203 = vld [vmem:[%s1130 + $0x240] sm:$0xff]
        %v1204 = vld [vmem:[%s1130 + $0x248] sm:$0xff]
        %v1205 = vld [vmem:[%s1130 + $0x250] sm:$0xff]
        %v1206 = vld [vmem:[%s1130 + $0x258] sm:$0xff]
        %v1207 = vld [vmem:[%s1130 + $0x260] sm:$0xff]
        %v1208 = vld [vmem:[%s1130 + $0x268] sm:$0xff]
        %v1209 = vld [vmem:[%s1130 + $0x270] sm:$0xff]
        %v1210 = vld [vmem:[%s1130 + $0x278] sm:$0xff]
        %v1211 = vld [vmem:[%s1130 + $0x280] sm:$0xff]
        %v1212 = vld [vmem:[%s1130 + $0x288] sm:$0xff]
        %v1213 = vld [vmem:[%s1130 + $0x290] sm:$0xff]
        %v1214 = vld [vmem:[%s1130 + $0x298] sm:$0xff]
        %v1215 = vld [vmem:[%s1130 + $0x2a0] sm:$0xff]
        %v1216 = vld [vmem:[%s1130 + $0x2a8] sm:$0xff]
        %v1217 = vld [vmem:[%s1130 + $0x2b0] sm:$0xff]
        %v1218 = vld [vmem:[%s1130 + $0x2b8] sm:$0xff]
        %v1219 = vld [vmem:[%s1130 + $0x2c0] sm:$0xff]
        %v1220 = vld [vmem:[%s1130 + $0x2c8] sm:$0xff]
        %v1221 = vld [vmem:[%s1130 + $0x2d0] sm:$0xff]
        %v1222 = vld [vmem:[%s1130 + $0x2d8] sm:$0xff]
        %v1223 = vld [vmem:[%s1130 + $0x2e0] sm:$0xff]
        %v1224 = vld [vmem:[%s1130 + $0x2e8] sm:$0xff]
        %v1225 = vld [vmem:[%s1130 + $0x2f0] sm:$0xff]
        %v1226 = vld [vmem:[%s1130 + $0x2f8] sm:$0xff]
        %v1227 = vld [vmem:[%s1130 + $0x300] sm:$0xff]
        %v1228 = vld [vmem:[%s1130 + $0x308] sm:$0xff]
        %v1229 = vld [vmem:[%s1130 + $0x310] sm:$0xff]
        %v1230 = vld [vmem:[%s1130 + $0x318] sm:$0xff]
        %v1231 = vld [vmem:[%s1130 + $0x320] sm:$0xff]
        %v1232 = vld [vmem:[%s1130 + $0x328] sm:$0xff]
        %v1233 = vld [vmem:[%s1130 + $0x330] sm:$0xff]
        %v1234 = vld [vmem:[%s1130 + $0x338] sm:$0xff]
        %v1235 = vld [vmem:[%s1130 + $0x340] sm:$0xff]
        %v1236 = vld [vmem:[%s1130 + $0x348] sm:$0xff]
        %v1237 = vld [vmem:[%s1130 + $0x350] sm:$0xff]
        %v1238 = vld [vmem:[%s1130 + $0x358] sm:$0xff]
        %v1239 = vsel %vm162, %v192, 0
        %v1242 = vsel %vm162, %v1129, 0
        %1244 = vmatprep.subr.mxu0 %v1132
        %1245 = vmatpush1.msra.mxu0 %v1131
        %1246 = vmatprep.subr.mxu0 %v1134
        %1247 = vmatpush1.msra.mxu0 %v1133
        %1248 = vmatprep.subr.mxu0 %v1136
        %1249 = vmatpush1.msra.mxu0 %v1135
        %1250 = vmatprep.subr.mxu0 %v1138
        %1251 = vmatpush1.msra.mxu0 %v1137
        %1252 = vmatprep.subr.mxu0 %v1140
        %1253 = vmatpush1.msra.mxu0 %v1139
        %1254 = vmatprep.subr.mxu0 %v1142
        %1255 = vmatpush1.msra.mxu0 %v1141
        %1256 = vmatprep.subr.mxu0 %v1144
        %1257 = vmatpush1.msra.mxu0 %v1143
        %1258 = vmatprep.subr.mxu0 %v1146
        %1259 = vmatpush1.msra.mxu0 %v1145
        %1260 = vmatprep.subr.mxu0 %v1148
        %1261 = vmatpush1.msra.mxu0 %v1147
        %1262 = vmatprep.subr.mxu0 %v1150
        %1263 = vmatpush1.msra.mxu0 %v1149
        %1264 = vmatprep.subr.mxu0 %v1152
        %1265 = vmatpush1.msra.mxu0 %v1151
        %1266 = vmatprep.subr.mxu0 %v1154
        %1267 = vmatpush1.msra.mxu0 %v1153
        %1268 = vmatprep.subr.mxu0 %v1156
        %1269 = vmatpush1.msra.mxu0 %v1155
        %1270 = vmatprep.subr.mxu0 %v1158
        %1271 = vmatpush1.msra.mxu0 %v1157
        %1272 = vmatprep.subr.mxu0 %v1160
        %1273 = vmatpush1.msra.mxu0 %v1159
        %1274 = vmatprep.subr.mxu0 %v1162
        %1275 = vmatpush1.msra.mxu0 %v1161
        %1276 = vmatprep.subr.mxu0 %v1164
        %1277 = vmatpush1.msra.mxu0 %v1163
        %1278 = vmatprep.subr.mxu0 %v1166
        %1279 = vmatpush1.msra.mxu0 %v1165
        %1280 = vmatprep.subr.mxu0 %v1168
        %1281 = vmatpush1.msra.mxu0 %v1167
        %1282 = vmatprep.subr.mxu0 %v1170
        %1283 = vmatpush1.msra.mxu0 %v1169
        %1284 = vmatprep.subr.mxu0 %v1172
        %1285 = vmatpush1.msra.mxu0 %v1171
        %1286 = vmatprep.subr.mxu0 %v1174
        %1287 = vmatpush1.msra.mxu0 %v1173
        %1288 = vmatprep.subr.mxu0 %v1176
        %1289 = vmatpush1.msra.mxu0 %v1175
        %1290 = vmatprep.subr.mxu0 %v1178
        %1291 = vmatpush1.msra.mxu0 %v1177
        %1292 = vmatprep.subr.mxu0 %v1180
        %1293 = vmatpush1.msra.mxu0 %v1179
        %1294 = vmatprep.subr.mxu0 %v1182
        %1295 = vmatpush1.msra.mxu0 %v1181
        %1296 = vmatprep.subr.mxu0 %v1184
        %1297 = vmatpush1.msra.mxu0 %v1183
        %1298 = vmatprep.subr.mxu0 %v1186
        %1299 = vmatpush1.msra.mxu0 %v1185
        %1300 = vmatprep.subr.mxu0 %v1188
        %1301 = vmatpush1.msra.mxu0 %v1187
        %1302 = vmatprep.subr.mxu0 %v1190
        %1303 = vmatpush1.msra.mxu0 %v1189
        %1304 = vmatprep.subr.mxu0 %v1192
        %1305 = vmatpush1.msra.mxu0 %v1191
        %1306 = vmatprep.subr.mxu0 %v1194
        %1307 = vmatpush1.msra.mxu0 %v1193
        %1308 = vmatprep.mubr.f32.mxu0 %v190
        %1309 = vmatmul.mubr.f32.gmra.mrb[0].mxu0 %v189
        %v1310 = vpop.f32.mrb[0].mxu0
        %v1311 = vadd.f32 0.0, %v1310
        %v1312 = vpop.f32.mrb[0].mxu0
        %v1313 = vadd.f32 0.0, %v1312
        %1314 = vmatprep.mubr.f32.mxu0 %v1127
        %1315 = vmatmul.mubr.f32.gmra.mrb[0].mxu0 %v1126
        %v1316 = vpop.f32.mrb[0].mxu0
        %v1317 = vadd.f32 0.0, %v1316
        %v1318 = vpop.f32.mrb[0].mxu0
        %v1319 = vadd.f32 0.0, %v1318
        %1320 = vdwg.mxu0
        %1321 = vmatprep.subr.mxu0 %v1196
        %1322 = vmatpush1.msra.mxu0 %v1195
        %1323 = vmatprep.subr.mxu0 %v1198
        %1324 = vmatpush1.msra.mxu0 %v1197
        %1325 = vmatprep.subr.mxu0 %v1200
        %1326 = vmatpush1.msra.mxu0 %v1199
        %1327 = vmatprep.subr.mxu0 %v1202
        %1328 = vmatpush1.msra.mxu0 %v1201
        %1329 = vmatprep.subr.mxu0 %v1204
        %1330 = vmatpush1.msra.mxu0 %v1203
        %1331 = vmatprep.subr.mxu0 %v1206
        %1332 = vmatpush1.msra.mxu0 %v1205
        %1333 = vmatprep.subr.mxu0 %v1208
        %1334 = vmatpush1.msra.mxu0 %v1207
        %1335 = vmatprep.subr.mxu0 %v1210
        %1336 = vmatpush1.msra.mxu0 %v1209
        %1337 = vmatprep.subr.mxu0 %v1212
        %1338 = vmatpush1.msra.mxu0 %v1211
        %1339 = vmatprep.subr.mxu0 %v1214
        %1340 = vmatpush1.msra.mxu0 %v1213
        %1341 = vmatprep.subr.mxu0 %v1216
        %1342 = vmatpush1.msra.mxu0 %v1215
        %1343 = vmatprep.subr.mxu0 %v1218
        %1344 = vmatpush1.msra.mxu0 %v1217
        %1345 = vmatprep.subr.mxu0 %v1220
        %1346 = vmatpush1.msra.mxu0 %v1219
        %1347 = vmatprep.subr.mxu0 %v1222
        %1348 = vmatpush1.msra.mxu0 %v1221
        %1349 = vmatprep.subr.mxu0 %v1224
        %1350 = vmatpush1.msra.mxu0 %v1223
        %1351 = vmatprep.subr.mxu0 %v1226
        %1352 = vmatpush1.msra.mxu0 %v1225
        %1353 = vmatprep.subr.mxu0 %v1228
        %1354 = vmatpush1.msra.mxu0 %v1227
        %1355 = vmatprep.subr.mxu0 %v1230
        %1356 = vmatpush1.msra.mxu0 %v1229
        %1357 = vmatprep.subr.mxu0 %v1232
        %1358 = vmatpush1.msra.mxu0 %v1231
        %1359 = vmatprep.subr.mxu0 %v1234
        %1360 = vmatpush1.msra.mxu0 %v1233
        %1361 = vmatprep.subr.mxu0 %v1236
        %1362 = vmatpush1.msra.mxu0 %v1235
        %1363 = vmatprep.subr.mxu0 %v1238
        %1364 = vmatpush1.msra.mxu0 %v1237
        %1365 = vmatprep.subr.mxu0 0.0
        %1366 = vmatpush1.msra.mxu0 0.0
        %1367 = vmatprep.subr.mxu0 0.0
        %1368 = vmatpush1.msra.mxu0 0.0
        %1369 = vmatprep.subr.mxu0 0.0
        %1370 = vmatpush1.msra.mxu0 0.0
        %1371 = vmatprep.subr.mxu0 0.0
        %1372 = vmatpush1.msra.mxu0 0.0
        %1373 = vmatprep.subr.mxu0 0.0
        %1374 = vmatpush1.msra.mxu0 0.0
        %1375 = vmatprep.subr.mxu0 0.0
        %1376 = vmatpush1.msra.mxu0 0.0
        %1377 = vmatprep.subr.mxu0 0.0
        %1378 = vmatpush1.msra.mxu0 0.0
        %1379 = vmatprep.subr.mxu0 0.0
        %1380 = vmatpush1.msra.mxu0 0.0
        %1381 = vmatprep.subr.mxu0 0.0
        %1382 = vmatpush1.msra.mxu0 0.0
        %1383 = vmatprep.subr.mxu0 0.0
        %1384 = vmatpush1.msra.mxu0 0.0
        %1385 = vmatprep.mubr.f32.mxu0 %v1239
        %1386 = vmatmul.mubr.f32.gmra.mrb[0].mxu0 %v191
        %v1387 = vpop.f32.mrb[0].mxu0
        %v1388 = vadd.f32 %v1311, %v1387
        %v1389 = vpop.f32.mrb[0].mxu0
        %v1390 = vadd.f32 %v1313, %v1389
        %1391 = vmatprep.mubr.f32.mxu0 %v1242
        %1392 = vmatmul.mubr.f32.gmra.mrb[0].mxu0 %v1128
        %v1393 = vpop.f32.mrb[0].mxu0
        %v1394 = vadd.f32 %v1317, %v1393
        %v1395 = vpop.f32.mrb[0].mxu0
        %v1396 = vadd.f32 %v1319, %v1395
        %1397 = vdwg.mxu0
        %v1398 = vadd.f32 %v1122, %v1388
        %v1399 = vadd.f32 %v1123, %v1390
        %v1400 = vadd.f32 %v1124, %v1394
        %v1401 = vadd.f32 %v1125, %v1396
        %v1402 = vld [vmem:[#allocation2 + $0x20] sm:$0xfe]
        %v1403 = vld [vmem:[#allocation2 + $0x28] sm:$0xfe]
        %v1404 = vld [vmem:[#allocation2 + $0x30] sm:$0xfe]
        %v1405 = vld [vmem:[#allocation2 + $0x38] sm:$0xfe]
        %v1406 = vld [vmem:[#allocation2 + $0x40] sm:$0xff]
        %v1407 = vld [vmem:[#allocation2 + $0x48] sm:$0xff]
        %v1408 = vld [vmem:[#allocation2 + $0x50] sm:$0xff]
        %v1409 = vld [vmem:[#allocation2 + $0x58] sm:$0xff]
        %v1410 = vld [vmem:[#allocation2 + $0x60] sm:$0x1]
        %v1411 = vld [vmem:[#allocation2 + $0x68] sm:$0x1]
        %v1412 = vld [vmem:[#allocation2 + $0x70] sm:$0x1]
        %v1413 = vld [vmem:[#allocation2 + $0x78] sm:$0x1]
        %s1414 = scalar_lea.vmem [#allocation3], 3456
        %v1415 = vld [vmem:[%s1414] sm:$0xff]
        %v1416 = vld [vmem:[%s1414 + $0x8] sm:$0xff]
        %v1417 = vld [vmem:[%s1414 + $0x10] sm:$0xff]
        %v1418 = vld [vmem:[%s1414 + $0x18] sm:$0xff]
        %v1419 = vld [vmem:[%s1414 + $0x20] sm:$0xff]
        %v1420 = vld [vmem:[%s1414 + $0x28] sm:$0xff]
        %v1421 = vld [vmem:[%s1414 + $0x30] sm:$0xff]
        %v1422 = vld [vmem:[%s1414 + $0x38] sm:$0xff]
        %v1423 = vld [vmem:[%s1414 + $0x40] sm:$0xff]
        %v1424 = vld [vmem:[%s1414 + $0x48] sm:$0xff]
        %v1425 = vld [vmem:[%s1414 + $0x50] sm:$0xff]
        %v1426 = vld [vmem:[%s1414 + $0x58] sm:$0xff]
        %v1427 = vld [vmem:[%s1414 + $0x60] sm:$0xff]
        %v1428 = vld [vmem:[%s1414 + $0x68] sm:$0xff]
        %v1429 = vld [vmem:[%s1414 + $0x70] sm:$0xff]
        %v1430 = vld [vmem:[%s1414 + $0x78] sm:$0xff]
        %v1431 = vld [vmem:[%s1414 + $0x80] sm:$0xff]
        %v1432 = vld [vmem:[%s1414 + $0x88] sm:$0xff]
        %v1433 = vld [vmem:[%s1414 + $0x90] sm:$0xff]
        %v1434 = vld [vmem:[%s1414 + $0x98] sm:$0xff]
        %v1435 = vld [vmem:[%s1414 + $0xa0] sm:$0xff]
        %v1436 = vld [vmem:[%s1414 + $0xa8] sm:$0xff]
        %v1437 = vld [vmem:[%s1414 + $0xb0] sm:$0xff]
        %v1438 = vld [vmem:[%s1414 + $0xb8] sm:$0xff]
        %v1439 = vld [vmem:[%s1414 + $0xc0] sm:$0xff]
        %v1440 = vld [vmem:[%s1414 + $0xc8] sm:$0xff]
        %v1441 = vld [vmem:[%s1414 + $0xd0] sm:$0xff]
        %v1442 = vld [vmem:[%s1414 + $0xd8] sm:$0xff]
        %v1443 = vld [vmem:[%s1414 + $0xe0] sm:$0xff]
        %v1444 = vld [vmem:[%s1414 + $0xe8] sm:$0xff]
        %v1445 = vld [vmem:[%s1414 + $0xf0] sm:$0xff]
        %v1446 = vld [vmem:[%s1414 + $0xf8] sm:$0xff]
        %v1447 = vld [vmem:[%s1414 + $0x100] sm:$0xff]
        %v1448 = vld [vmem:[%s1414 + $0x108] sm:$0xff]
        %v1449 = vld [vmem:[%s1414 + $0x110] sm:$0xff]
        %v1450 = vld [vmem:[%s1414 + $0x118] sm:$0xff]
        %v1451 = vld [vmem:[%s1414 + $0x120] sm:$0xff]
        %v1452 = vld [vmem:[%s1414 + $0x128] sm:$0xff]
        %v1453 = vld [vmem:[%s1414 + $0x130] sm:$0xff]
        %v1454 = vld [vmem:[%s1414 + $0x138] sm:$0xff]
        %v1455 = vld [vmem:[%s1414 + $0x140] sm:$0xff]
        %v1456 = vld [vmem:[%s1414 + $0x148] sm:$0xff]
        %v1457 = vld [vmem:[%s1414 + $0x150] sm:$0xff]
        %v1458 = vld [vmem:[%s1414 + $0x158] sm:$0xff]
        %v1459 = vld [vmem:[%s1414 + $0x160] sm:$0xff]
        %v1460 = vld [vmem:[%s1414 + $0x168] sm:$0xff]
        %v1461 = vld [vmem:[%s1414 + $0x170] sm:$0xff]
        %v1462 = vld [vmem:[%s1414 + $0x178] sm:$0xff]
        %v1463 = vld [vmem:[%s1414 + $0x180] sm:$0xff]
        %v1464 = vld [vmem:[%s1414 + $0x188] sm:$0xff]
        %v1465 = vld [vmem:[%s1414 + $0x190] sm:$0xff]
        %v1466 = vld [vmem:[%s1414 + $0x198] sm:$0xff]
        %v1467 = vld [vmem:[%s1414 + $0x1a0] sm:$0xff]
        %v1468 = vld [vmem:[%s1414 + $0x1a8] sm:$0xff]
        %v1469 = vld [vmem:[%s1414 + $0x1b0] sm:$0xff]
        %v1470 = vld [vmem:[%s1414 + $0x1b8] sm:$0xff]
        %v1471 = vld [vmem:[%s1414 + $0x1c0] sm:$0xff]
        %v1472 = vld [vmem:[%s1414 + $0x1c8] sm:$0xff]
        %v1473 = vld [vmem:[%s1414 + $0x1d0] sm:$0xff]
        %v1474 = vld [vmem:[%s1414 + $0x1d8] sm:$0xff]
        %v1475 = vld [vmem:[%s1414 + $0x1e0] sm:$0xff]
        %v1476 = vld [vmem:[%s1414 + $0x1e8] sm:$0xff]
        %v1477 = vld [vmem:[%s1414 + $0x1f0] sm:$0xff]
        %v1478 = vld [vmem:[%s1414 + $0x1f8] sm:$0xff]
        %v1479 = vld [vmem:[%s1414 + $0x200] sm:$0xff]
        %v1480 = vld [vmem:[%s1414 + $0x208] sm:$0xff]
        %v1481 = vld [vmem:[%s1414 + $0x210] sm:$0xff]
        %v1482 = vld [vmem:[%s1414 + $0x218] sm:$0xff]
        %v1483 = vld [vmem:[%s1414 + $0x220] sm:$0xff]
        %v1484 = vld [vmem:[%s1414 + $0x228] sm:$0xff]
        %v1485 = vld [vmem:[%s1414 + $0x230] sm:$0xff]
        %v1486 = vld [vmem:[%s1414 + $0x238] sm:$0xff]
        %v1487 = vld [vmem:[%s1414 + $0x240] sm:$0xff]
        %v1488 = vld [vmem:[%s1414 + $0x248] sm:$0xff]
        %v1489 = vld [vmem:[%s1414 + $0x250] sm:$0xff]
        %v1490 = vld [vmem:[%s1414 + $0x258] sm:$0xff]
        %v1491 = vld [vmem:[%s1414 + $0x260] sm:$0xff]
        %v1492 = vld [vmem:[%s1414 + $0x268] sm:$0xff]
        %v1493 = vld [vmem:[%s1414 + $0x270] sm:$0xff]
        %v1494 = vld [vmem:[%s1414 + $0x278] sm:$0xff]
        %v1495 = vld [vmem:[%s1414 + $0x280] sm:$0xff]
        %v1496 = vld [vmem:[%s1414 + $0x288] sm:$0xff]
        %v1497 = vld [vmem:[%s1414 + $0x290] sm:$0xff]
        %v1498 = vld [vmem:[%s1414 + $0x298] sm:$0xff]
        %v1499 = vld [vmem:[%s1414 + $0x2a0] sm:$0xff]
        %v1500 = vld [vmem:[%s1414 + $0x2a8] sm:$0xff]
        %v1501 = vld [vmem:[%s1414 + $0x2b0] sm:$0xff]
        %v1502 = vld [vmem:[%s1414 + $0x2b8] sm:$0xff]
        %v1503 = vld [vmem:[%s1414 + $0x2c0] sm:$0xff]
        %v1504 = vld [vmem:[%s1414 + $0x2c8] sm:$0xff]
        %v1505 = vld [vmem:[%s1414 + $0x2d0] sm:$0xff]
        %v1506 = vld [vmem:[%s1414 + $0x2d8] sm:$0xff]
        %v1507 = vld [vmem:[%s1414 + $0x2e0] sm:$0xff]
        %v1508 = vld [vmem:[%s1414 + $0x2e8] sm:$0xff]
        %v1509 = vld [vmem:[%s1414 + $0x2f0] sm:$0xff]
        %v1510 = vld [vmem:[%s1414 + $0x2f8] sm:$0xff]
        %v1511 = vld [vmem:[%s1414 + $0x300] sm:$0xff]
        %v1512 = vld [vmem:[%s1414 + $0x308] sm:$0xff]
        %v1513 = vld [vmem:[%s1414 + $0x310] sm:$0xff]
        %v1514 = vld [vmem:[%s1414 + $0x318] sm:$0xff]
        %v1515 = vld [vmem:[%s1414 + $0x320] sm:$0xff]
        %v1516 = vld [vmem:[%s1414 + $0x328] sm:$0xff]
        %v1517 = vld [vmem:[%s1414 + $0x330] sm:$0xff]
        %v1518 = vld [vmem:[%s1414 + $0x338] sm:$0xff]
        %v1519 = vld [vmem:[%s1414 + $0x340] sm:$0xff]
        %v1520 = vld [vmem:[%s1414 + $0x348] sm:$0xff]
        %v1521 = vld [vmem:[%s1414 + $0x350] sm:$0xff]
        %v1522 = vld [vmem:[%s1414 + $0x358] sm:$0xff]
        %vm1535 = vcmask 1046528
        %v1536 = vrot.slane %v1402, 1
        %v1537 = vrot.slane %v1406, 1
        %v1538 = vsel %vm1535, %v1536, %v1537
        %v1539 = vrot.slane %v1403, 1
        %v1540 = vrot.slane %v1407, 1
        %v1541 = vsel %vm1535, %v1539, %v1540
        %v1542 = vrot.slane %v1404, 1
        %v1543 = vrot.slane %v1408, 1
        %v1544 = vsel %vm1535, %v1542, %v1543
        %v1545 = vrot.slane %v1405, 1
        %v1546 = vrot.slane %v1409, 1
        %v1547 = vsel %vm1535, %v1545, %v1546
        %v1548 = vrot.slane %v1410, 1
        %v1549 = vsel %vm1535, %v1537, %v1548
        %v1550 = vrot.slane %v1411, 1
        %v1551 = vsel %vm1535, %v1540, %v1550
        %v1552 = vrot.slane %v1412, 1
        %v1553 = vsel %vm1535, %v1543, %v1552
        %v1554 = vrot.slane %v1413, 1
        %v1555 = vsel %vm1535, %v1546, %v1554
        %v1562 = vsel %vm162, %v1547, 0
        %v1564 = vsel %vm162, %v1555, 0
        %1566 = vmatprep.subr.mxu0 %v1416
        %1567 = vmatpush1.msra.mxu0 %v1415
        %1568 = vmatprep.subr.mxu0 %v1418
        %1569 = vmatpush1.msra.mxu0 %v1417
        %1570 = vmatprep.subr.mxu0 %v1420
        %1571 = vmatpush1.msra.mxu0 %v1419
        %1572 = vmatprep.subr.mxu0 %v1422
        %1573 = vmatpush1.msra.mxu0 %v1421
        %1574 = vmatprep.subr.mxu0 %v1424
        %1575 = vmatpush1.msra.mxu0 %v1423
        %1576 = vmatprep.subr.mxu0 %v1426
        %1577 = vmatpush1.msra.mxu0 %v1425
        %1578 = vmatprep.subr.mxu0 %v1428
        %1579 = vmatpush1.msra.mxu0 %v1427
        %1580 = vmatprep.subr.mxu0 %v1430
        %1581 = vmatpush1.msra.mxu0 %v1429
        %1582 = vmatprep.subr.mxu0 %v1432
        %1583 = vmatpush1.msra.mxu0 %v1431
        %1584 = vmatprep.subr.mxu0 %v1434
        %1585 = vmatpush1.msra.mxu0 %v1433
        %1586 = vmatprep.subr.mxu0 %v1436
        %1587 = vmatpush1.msra.mxu0 %v1435
        %1588 = vmatprep.subr.mxu0 %v1438
        %1589 = vmatpush1.msra.mxu0 %v1437
        %1590 = vmatprep.subr.mxu0 %v1440
        %1591 = vmatpush1.msra.mxu0 %v1439
        %1592 = vmatprep.subr.mxu0 %v1442
        %1593 = vmatpush1.msra.mxu0 %v1441
        %1594 = vmatprep.subr.mxu0 %v1444
        %1595 = vmatpush1.msra.mxu0 %v1443
        %1596 = vmatprep.subr.mxu0 %v1446
        %1597 = vmatpush1.msra.mxu0 %v1445
        %1598 = vmatprep.subr.mxu0 %v1448
        %1599 = vmatpush1.msra.mxu0 %v1447
        %1600 = vmatprep.subr.mxu0 %v1450
        %1601 = vmatpush1.msra.mxu0 %v1449
        %1602 = vmatprep.subr.mxu0 %v1452
        %1603 = vmatpush1.msra.mxu0 %v1451
        %1604 = vmatprep.subr.mxu0 %v1454
        %1605 = vmatpush1.msra.mxu0 %v1453
        %1606 = vmatprep.subr.mxu0 %v1456
        %1607 = vmatpush1.msra.mxu0 %v1455
        %1608 = vmatprep.subr.mxu0 %v1458
        %1609 = vmatpush1.msra.mxu0 %v1457
        %1610 = vmatprep.subr.mxu0 %v1460
        %1611 = vmatpush1.msra.mxu0 %v1459
        %1612 = vmatprep.subr.mxu0 %v1462
        %1613 = vmatpush1.msra.mxu0 %v1461
        %1614 = vmatprep.subr.mxu0 %v1464
        %1615 = vmatpush1.msra.mxu0 %v1463
        %1616 = vmatprep.subr.mxu0 %v1466
        %1617 = vmatpush1.msra.mxu0 %v1465
        %1618 = vmatprep.subr.mxu0 %v1468
        %1619 = vmatpush1.msra.mxu0 %v1467
        %1620 = vmatprep.subr.mxu0 %v1470
        %1621 = vmatpush1.msra.mxu0 %v1469
        %1622 = vmatprep.subr.mxu0 %v1472
        %1623 = vmatpush1.msra.mxu0 %v1471
        %1624 = vmatprep.subr.mxu0 %v1474
        %1625 = vmatpush1.msra.mxu0 %v1473
        %1626 = vmatprep.subr.mxu0 %v1476
        %1627 = vmatpush1.msra.mxu0 %v1475
        %1628 = vmatprep.subr.mxu0 %v1478
        %1629 = vmatpush1.msra.mxu0 %v1477
        %1630 = vmatprep.mubr.f32.mxu0 %v1541
        %1631 = vmatmul.mubr.f32.gmra.mrb[0].mxu0 %v1538
        %v1632 = vpop.f32.mrb[0].mxu0
        %v1633 = vadd.f32 0.0, %v1632
        %v1634 = vpop.f32.mrb[0].mxu0
        %v1635 = vadd.f32 0.0, %v1634
        %1636 = vmatprep.mubr.f32.mxu0 %v1551
        %1637 = vmatmul.mubr.f32.gmra.mrb[0].mxu0 %v1549
        %v1638 = vpop.f32.mrb[0].mxu0
        %v1639 = vadd.f32 0.0, %v1638
        %v1640 = vpop.f32.mrb[0].mxu0
        %v1641 = vadd.f32 0.0, %v1640
        %1642 = vdwg.mxu0
        %1643 = vmatprep.subr.mxu0 %v1480
        %1644 = vmatpush1.msra.mxu0 %v1479
        %1645 = vmatprep.subr.mxu0 %v1482
        %1646 = vmatpush1.msra.mxu0 %v1481
        %1647 = vmatprep.subr.mxu0 %v1484
        %1648 = vmatpush1.msra.mxu0 %v1483
        %1649 = vmatprep.subr.mxu0 %v1486
        %1650 = vmatpush1.msra.mxu0 %v1485
        %1651 = vmatprep.subr.mxu0 %v1488
        %1652 = vmatpush1.msra.mxu0 %v1487
        %1653 = vmatprep.subr.mxu0 %v1490
        %1654 = vmatpush1.msra.mxu0 %v1489
        %1655 = vmatprep.subr.mxu0 %v1492
        %1656 = vmatpush1.msra.mxu0 %v1491
        %1657 = vmatprep.subr.mxu0 %v1494
        %1658 = vmatpush1.msra.mxu0 %v1493
        %1659 = vmatprep.subr.mxu0 %v1496
        %1660 = vmatpush1.msra.mxu0 %v1495
        %1661 = vmatprep.subr.mxu0 %v1498
        %1662 = vmatpush1.msra.mxu0 %v1497
        %1663 = vmatprep.subr.mxu0 %v1500
        %1664 = vmatpush1.msra.mxu0 %v1499
        %1665 = vmatprep.subr.mxu0 %v1502
        %1666 = vmatpush1.msra.mxu0 %v1501
        %1667 = vmatprep.subr.mxu0 %v1504
        %1668 = vmatpush1.msra.mxu0 %v1503
        %1669 = vmatprep.subr.mxu0 %v1506
        %1670 = vmatpush1.msra.mxu0 %v1505
        %1671 = vmatprep.subr.mxu0 %v1508
        %1672 = vmatpush1.msra.mxu0 %v1507
        %1673 = vmatprep.subr.mxu0 %v1510
        %1674 = vmatpush1.msra.mxu0 %v1509
        %1675 = vmatprep.subr.mxu0 %v1512
        %1676 = vmatpush1.msra.mxu0 %v1511
        %1677 = vmatprep.subr.mxu0 %v1514
        %1678 = vmatpush1.msra.mxu0 %v1513
        %1679 = vmatprep.subr.mxu0 %v1516
        %1680 = vmatpush1.msra.mxu0 %v1515
        %1681 = vmatprep.subr.mxu0 %v1518
        %1682 = vmatpush1.msra.mxu0 %v1517
        %1683 = vmatprep.subr.mxu0 %v1520
        %1684 = vmatpush1.msra.mxu0 %v1519
        %1685 = vmatprep.subr.mxu0 %v1522
        %1686 = vmatpush1.msra.mxu0 %v1521
        %1687 = vmatprep.subr.mxu0 0.0
        %1688 = vmatpush1.msra.mxu0 0.0
        %1689 = vmatprep.subr.mxu0 0.0
        %1690 = vmatpush1.msra.mxu0 0.0
        %1691 = vmatprep.subr.mxu0 0.0
        %1692 = vmatpush1.msra.mxu0 0.0
        %1693 = vmatprep.subr.mxu0 0.0
        %1694 = vmatpush1.msra.mxu0 0.0
        %1695 = vmatprep.subr.mxu0 0.0
        %1696 = vmatpush1.msra.mxu0 0.0
        %1697 = vmatprep.subr.mxu0 0.0
        %1698 = vmatpush1.msra.mxu0 0.0
        %1699 = vmatprep.subr.mxu0 0.0
        %1700 = vmatpush1.msra.mxu0 0.0
        %1701 = vmatprep.subr.mxu0 0.0
        %1702 = vmatpush1.msra.mxu0 0.0
        %1703 = vmatprep.subr.mxu0 0.0
        %1704 = vmatpush1.msra.mxu0 0.0
        %1705 = vmatprep.subr.mxu0 0.0
        %1706 = vmatpush1.msra.mxu0 0.0
        %1707 = vmatprep.mubr.f32.mxu0 %v1562
        %1708 = vmatmul.mubr.f32.gmra.mrb[0].mxu0 %v1544
        %v1709 = vpop.f32.mrb[0].mxu0
        %v1710 = vadd.f32 %v1633, %v1709
        %v1711 = vpop.f32.mrb[0].mxu0
        %v1712 = vadd.f32 %v1635, %v1711
        %1713 = vmatprep.mubr.f32.mxu0 %v1564
        %1714 = vmatmul.mubr.f32.gmra.mrb[0].mxu0 %v1553
        %v1715 = vpop.f32.mrb[0].mxu0
        %v1716 = vadd.f32 %v1639, %v1715
        %v1717 = vpop.f32.mrb[0].mxu0
        %v1718 = vadd.f32 %v1641, %v1717
        %1719 = vdwg.mxu0
        %v1720 = vadd.f32 %v1398, %v1710
        %v1721 = vadd.f32 %v1399, %v1712
        %v1722 = vadd.f32 %v1400, %v1716
        %v1723 = vadd.f32 %v1401, %v1718
        %v1724 = vld [vmem:[#allocation2 + $0x20] sm:$0xfc]
        %v1725 = vld [vmem:[#allocation2 + $0x28] sm:$0xfc]
        %v1726 = vld [vmem:[#allocation2 + $0x30] sm:$0xfc]
        %v1727 = vld [vmem:[#allocation2 + $0x38] sm:$0xfc]
        %v1728 = vld [vmem:[#allocation2 + $0x60] sm:$0x3]
        %v1729 = vld [vmem:[#allocation2 + $0x68] sm:$0x3]
        %v1730 = vld [vmem:[#allocation2 + $0x70] sm:$0x3]
        %v1731 = vld [vmem:[#allocation2 + $0x78] sm:$0x3]
        %s1732 = scalar_lea.vmem [#allocation3], 4320
        %v1733 = vld [vmem:[%s1732] sm:$0xff]
        %v1734 = vld [vmem:[%s1732 + $0x8] sm:$0xff]
        %v1735 = vld [vmem:[%s1732 + $0x10] sm:$0xff]
        %v1736 = vld [vmem:[%s1732 + $0x18] sm:$0xff]
        %v1737 = vld [vmem:[%s1732 + $0x20] sm:$0xff]
        %v1738 = vld [vmem:[%s1732 + $0x28] sm:$0xff]
        %v1739 = vld [vmem:[%s1732 + $0x30] sm:$0xff]
        %v1740 = vld [vmem:[%s1732 + $0x38] sm:$0xff]
        %v1741 = vld [vmem:[%s1732 + $0x40] sm:$0xff]
        %v1742 = vld [vmem:[%s1732 + $0x48] sm:$0xff]
        %v1743 = vld [vmem:[%s1732 + $0x50] sm:$0xff]
        %v1744 = vld [vmem:[%s1732 + $0x58] sm:$0xff]
        %v1745 = vld [vmem:[%s1732 + $0x60] sm:$0xff]
        %v1746 = vld [vmem:[%s1732 + $0x68] sm:$0xff]
        %v1747 = vld [vmem:[%s1732 + $0x70] sm:$0xff]
        %v1748 = vld [vmem:[%s1732 + $0x78] sm:$0xff]
        %v1749 = vld [vmem:[%s1732 + $0x80] sm:$0xff]
        %v1750 = vld [vmem:[%s1732 + $0x88] sm:$0xff]
        %v1751 = vld [vmem:[%s1732 + $0x90] sm:$0xff]
        %v1752 = vld [vmem:[%s1732 + $0x98] sm:$0xff]
        %v1753 = vld [vmem:[%s1732 + $0xa0] sm:$0xff]
        %v1754 = vld [vmem:[%s1732 + $0xa8] sm:$0xff]
        %v1755 = vld [vmem:[%s1732 + $0xb0] sm:$0xff]
        %v1756 = vld [vmem:[%s1732 + $0xb8] sm:$0xff]
        %v1757 = vld [vmem:[%s1732 + $0xc0] sm:$0xff]
        %v1758 = vld [vmem:[%s1732 + $0xc8] sm:$0xff]
        %v1759 = vld [vmem:[%s1732 + $0xd0] sm:$0xff]
        %v1760 = vld [vmem:[%s1732 + $0xd8] sm:$0xff]
        %v1761 = vld [vmem:[%s1732 + $0xe0] sm:$0xff]
        %v1762 = vld [vmem:[%s1732 + $0xe8] sm:$0xff]
        %v1763 = vld [vmem:[%s1732 + $0xf0] sm:$0xff]
        %v1764 = vld [vmem:[%s1732 + $0xf8] sm:$0xff]
        %v1765 = vld [vmem:[%s1732 + $0x100] sm:$0xff]
        %v1766 = vld [vmem:[%s1732 + $0x108] sm:$0xff]
        %v1767 = vld [vmem:[%s1732 + $0x110] sm:$0xff]
        %v1768 = vld [vmem:[%s1732 + $0x118] sm:$0xff]
        %v1769 = vld [vmem:[%s1732 + $0x120] sm:$0xff]
        %v1770 = vld [vmem:[%s1732 + $0x128] sm:$0xff]
        %v1771 = vld [vmem:[%s1732 + $0x130] sm:$0xff]
        %v1772 = vld [vmem:[%s1732 + $0x138] sm:$0xff]
        %v1773 = vld [vmem:[%s1732 + $0x140] sm:$0xff]
        %v1774 = vld [vmem:[%s1732 + $0x148] sm:$0xff]
        %v1775 = vld [vmem:[%s1732 + $0x150] sm:$0xff]
        %v1776 = vld [vmem:[%s1732 + $0x158] sm:$0xff]
        %v1777 = vld [vmem:[%s1732 + $0x160] sm:$0xff]
        %v1778 = vld [vmem:[%s1732 + $0x168] sm:$0xff]
        %v1779 = vld [vmem:[%s1732 + $0x170] sm:$0xff]
        %v1780 = vld [vmem:[%s1732 + $0x178] sm:$0xff]
        %v1781 = vld [vmem:[%s1732 + $0x180] sm:$0xff]
        %v1782 = vld [vmem:[%s1732 + $0x188] sm:$0xff]
        %v1783 = vld [vmem:[%s1732 + $0x190] sm:$0xff]
        %v1784 = vld [vmem:[%s1732 + $0x198] sm:$0xff]
        %v1785 = vld [vmem:[%s1732 + $0x1a0] sm:$0xff]
        %v1786 = vld [vmem:[%s1732 + $0x1a8] sm:$0xff]
        %v1787 = vld [vmem:[%s1732 + $0x1b0] sm:$0xff]
        %v1788 = vld [vmem:[%s1732 + $0x1b8] sm:$0xff]
        %v1789 = vld [vmem:[%s1732 + $0x1c0] sm:$0xff]
        %v1790 = vld [vmem:[%s1732 + $0x1c8] sm:$0xff]
        %v1791 = vld [vmem:[%s1732 + $0x1d0] sm:$0xff]
        %v1792 = vld [vmem:[%s1732 + $0x1d8] sm:$0xff]
        %v1793 = vld [vmem:[%s1732 + $0x1e0] sm:$0xff]
        %v1794 = vld [vmem:[%s1732 + $0x1e8] sm:$0xff]
        %v1795 = vld [vmem:[%s1732 + $0x1f0] sm:$0xff]
        %v1796 = vld [vmem:[%s1732 + $0x1f8] sm:$0xff]
        %v1797 = vld [vmem:[%s1732 + $0x200] sm:$0xff]
        %v1798 = vld [vmem:[%s1732 + $0x208] sm:$0xff]
        %v1799 = vld [vmem:[%s1732 + $0x210] sm:$0xff]
        %v1800 = vld [vmem:[%s1732 + $0x218] sm:$0xff]
        %v1801 = vld [vmem:[%s1732 + $0x220] sm:$0xff]
        %v1802 = vld [vmem:[%s1732 + $0x228] sm:$0xff]
        %v1803 = vld [vmem:[%s1732 + $0x230] sm:$0xff]
        %v1804 = vld [vmem:[%s1732 + $0x238] sm:$0xff]
        %v1805 = vld [vmem:[%s1732 + $0x240] sm:$0xff]
        %v1806 = vld [vmem:[%s1732 + $0x248] sm:$0xff]
        %v1807 = vld [vmem:[%s1732 + $0x250] sm:$0xff]
        %v1808 = vld [vmem:[%s1732 + $0x258] sm:$0xff]
        %v1809 = vld [vmem:[%s1732 + $0x260] sm:$0xff]
        %v1810 = vld [vmem:[%s1732 + $0x268] sm:$0xff]
        %v1811 = vld [vmem:[%s1732 + $0x270] sm:$0xff]
        %v1812 = vld [vmem:[%s1732 + $0x278] sm:$0xff]
        %v1813 = vld [vmem:[%s1732 + $0x280] sm:$0xff]
        %v1814 = vld [vmem:[%s1732 + $0x288] sm:$0xff]
        %v1815 = vld [vmem:[%s1732 + $0x290] sm:$0xff]
        %v1816 = vld [vmem:[%s1732 + $0x298] sm:$0xff]
        %v1817 = vld [vmem:[%s1732 + $0x2a0] sm:$0xff]
        %v1818 = vld [vmem:[%s1732 + $0x2a8] sm:$0xff]
        %v1819 = vld [vmem:[%s1732 + $0x2b0] sm:$0xff]
        %v1820 = vld [vmem:[%s1732 + $0x2b8] sm:$0xff]
        %v1821 = vld [vmem:[%s1732 + $0x2c0] sm:$0xff]
        %v1822 = vld [vmem:[%s1732 + $0x2c8] sm:$0xff]
        %v1823 = vld [vmem:[%s1732 + $0x2d0] sm:$0xff]
        %v1824 = vld [vmem:[%s1732 + $0x2d8] sm:$0xff]
        %v1825 = vld [vmem:[%s1732 + $0x2e0] sm:$0xff]
        %v1826 = vld [vmem:[%s1732 + $0x2e8] sm:$0xff]
        %v1827 = vld [vmem:[%s1732 + $0x2f0] sm:$0xff]
        %v1828 = vld [vmem:[%s1732 + $0x2f8] sm:$0xff]
        %v1829 = vld [vmem:[%s1732 + $0x300] sm:$0xff]
        %v1830 = vld [vmem:[%s1732 + $0x308] sm:$0xff]
        %v1831 = vld [vmem:[%s1732 + $0x310] sm:$0xff]
        %v1832 = vld [vmem:[%s1732 + $0x318] sm:$0xff]
        %v1833 = vld [vmem:[%s1732 + $0x320] sm:$0xff]
        %v1834 = vld [vmem:[%s1732 + $0x328] sm:$0xff]
        %v1835 = vld [vmem:[%s1732 + $0x330] sm:$0xff]
        %v1836 = vld [vmem:[%s1732 + $0x338] sm:$0xff]
        %v1837 = vld [vmem:[%s1732 + $0x340] sm:$0xff]
        %v1838 = vld [vmem:[%s1732 + $0x348] sm:$0xff]
        %v1839 = vld [vmem:[%s1732 + $0x350] sm:$0xff]
        %v1840 = vld [vmem:[%s1732 + $0x358] sm:$0xff]
        %vm1849 = vcmask 1045504
        %v1850 = vrot.slane %v1724, 2
        %v1851 = vrot.slane %v1406, 2
        %v1852 = vsel %vm1849, %v1850, %v1851
        %v1853 = vrot.slane %v1725, 2
        %v1854 = vrot.slane %v1407, 2
        %v1855 = vsel %vm1849, %v1853, %v1854
        %v1856 = vrot.slane %v1726, 2
        %v1857 = vrot.slane %v1408, 2
        %v1858 = vsel %vm1849, %v1856, %v1857
        %v1859 = vrot.slane %v1727, 2
        %v1860 = vrot.slane %v1409, 2
        %v1861 = vsel %vm1849, %v1859, %v1860
        %v1862 = vrot.slane %v1728, 2
        %v1863 = vsel %vm1849, %v1851, %v1862
        %v1864 = vrot.slane %v1729, 2
        %v1865 = vsel %vm1849, %v1854, %v1864
        %v1866 = vrot.slane %v1730, 2
        %v1867 = vsel %vm1849, %v1857, %v1866
        %v1868 = vrot.slane %v1731, 2
        %v1869 = vsel %vm1849, %v1860, %v1868
        %v1876 = vsel %vm162, %v1861, 0
        %v1878 = vsel %vm162, %v1869, 0
        %1880 = vmatprep.subr.mxu0 %v1734
        %1881 = vmatpush1.msra.mxu0 %v1733
        %1882 = vmatprep.subr.mxu0 %v1736
        %1883 = vmatpush1.msra.mxu0 %v1735
        %1884 = vmatprep.subr.mxu0 %v1738
        %1885 = vmatpush1.msra.mxu0 %v1737
        %1886 = vmatprep.subr.mxu0 %v1740
        %1887 = vmatpush1.msra.mxu0 %v1739
        %1888 = vmatprep.subr.mxu0 %v1742
        %1889 = vmatpush1.msra.mxu0 %v1741
        %1890 = vmatprep.subr.mxu0 %v1744
        %1891 = vmatpush1.msra.mxu0 %v1743
        %1892 = vmatprep.subr.mxu0 %v1746
        %1893 = vmatpush1.msra.mxu0 %v1745
        %1894 = vmatprep.subr.mxu0 %v1748
        %1895 = vmatpush1.msra.mxu0 %v1747
        %1896 = vmatprep.subr.mxu0 %v1750
        %1897 = vmatpush1.msra.mxu0 %v1749
        %1898 = vmatprep.subr.mxu0 %v1752
        %1899 = vmatpush1.msra.mxu0 %v1751
        %1900 = vmatprep.subr.mxu0 %v1754
        %1901 = vmatpush1.msra.mxu0 %v1753
        %1902 = vmatprep.subr.mxu0 %v1756
        %1903 = vmatpush1.msra.mxu0 %v1755
        %1904 = vmatprep.subr.mxu0 %v1758
        %1905 = vmatpush1.msra.mxu0 %v1757
        %1906 = vmatprep.subr.mxu0 %v1760
        %1907 = vmatpush1.msra.mxu0 %v1759
        %1908 = vmatprep.subr.mxu0 %v1762
        %1909 = vmatpush1.msra.mxu0 %v1761
        %1910 = vmatprep.subr.mxu0 %v1764
        %1911 = vmatpush1.msra.mxu0 %v1763
        %1912 = vmatprep.subr.mxu0 %v1766
        %1913 = vmatpush1.msra.mxu0 %v1765
        %1914 = vmatprep.subr.mxu0 %v1768
        %1915 = vmatpush1.msra.mxu0 %v1767
        %1916 = vmatprep.subr.mxu0 %v1770
        %1917 = vmatpush1.msra.mxu0 %v1769
        %1918 = vmatprep.subr.mxu0 %v1772
        %1919 = vmatpush1.msra.mxu0 %v1771
        %1920 = vmatprep.subr.mxu0 %v1774
        %1921 = vmatpush1.msra.mxu0 %v1773
        %1922 = vmatprep.subr.mxu0 %v1776
        %1923 = vmatpush1.msra.mxu0 %v1775
        %1924 = vmatprep.subr.mxu0 %v1778
        %1925 = vmatpush1.msra.mxu0 %v1777
        %1926 = vmatprep.subr.mxu0 %v1780
        %1927 = vmatpush1.msra.mxu0 %v1779
        %1928 = vmatprep.subr.mxu0 %v1782
        %1929 = vmatpush1.msra.mxu0 %v1781
        %1930 = vmatprep.subr.mxu0 %v1784
        %1931 = vmatpush1.msra.mxu0 %v1783
        %1932 = vmatprep.subr.mxu0 %v1786
        %1933 = vmatpush1.msra.mxu0 %v1785
        %1934 = vmatprep.subr.mxu0 %v1788
        %1935 = vmatpush1.msra.mxu0 %v1787
        %1936 = vmatprep.subr.mxu0 %v1790
        %1937 = vmatpush1.msra.mxu0 %v1789
        %1938 = vmatprep.subr.mxu0 %v1792
        %1939 = vmatpush1.msra.mxu0 %v1791
        %1940 = vmatprep.subr.mxu0 %v1794
        %1941 = vmatpush1.msra.mxu0 %v1793
        %1942 = vmatprep.subr.mxu0 %v1796
        %1943 = vmatpush1.msra.mxu0 %v1795
        %1944 = vmatprep.mubr.f32.mxu0 %v1855
        %1945 = vmatmul.mubr.f32.gmra.mrb[0].mxu0 %v1852
        %v1946 = vpop.f32.mrb[0].mxu0
        %v1947 = vadd.f32 0.0, %v1946
        %v1948 = vpop.f32.mrb[0].mxu0
        %v1949 = vadd.f32 0.0, %v1948
        %1950 = vmatprep.mubr.f32.mxu0 %v1865
        %1951 = vmatmul.mubr.f32.gmra.mrb[0].mxu0 %v1863
        %v1952 = vpop.f32.mrb[0].mxu0
        %v1953 = vadd.f32 0.0, %v1952
        %v1954 = vpop.f32.mrb[0].mxu0
        %v1955 = vadd.f32 0.0, %v1954
        %1956 = vdwg.mxu0
        %1957 = vmatprep.subr.mxu0 %v1798
        %1958 = vmatpush1.msra.mxu0 %v1797
        %1959 = vmatprep.subr.mxu0 %v1800
        %1960 = vmatpush1.msra.mxu0 %v1799
        %1961 = vmatprep.subr.mxu0 %v1802
        %1962 = vmatpush1.msra.mxu0 %v1801
        %1963 = vmatprep.subr.mxu0 %v1804
        %1964 = vmatpush1.msra.mxu0 %v1803
        %1965 = vmatprep.subr.mxu0 %v1806
        %1966 = vmatpush1.msra.mxu0 %v1805
        %1967 = vmatprep.subr.mxu0 %v1808
        %1968 = vmatpush1.msra.mxu0 %v1807
        %1969 = vmatprep.subr.mxu0 %v1810
        %1970 = vmatpush1.msra.mxu0 %v1809
        %1971 = vmatprep.subr.mxu0 %v1812
        %1972 = vmatpush1.msra.mxu0 %v1811
        %1973 = vmatprep.subr.mxu0 %v1814
        %1974 = vmatpush1.msra.mxu0 %v1813
        %1975 = vmatprep.subr.mxu0 %v1816
        %1976 = vmatpush1.msra.mxu0 %v1815
        %1977 = vmatprep.subr.mxu0 %v1818
        %1978 = vmatpush1.msra.mxu0 %v1817
        %1979 = vmatprep.subr.mxu0 %v1820
        %1980 = vmatpush1.msra.mxu0 %v1819
        %1981 = vmatprep.subr.mxu0 %v1822
        %1982 = vmatpush1.msra.mxu0 %v1821
        %1983 = vmatprep.subr.mxu0 %v1824
        %1984 = vmatpush1.msra.mxu0 %v1823
        %1985 = vmatprep.subr.mxu0 %v1826
        %1986 = vmatpush1.msra.mxu0 %v1825
        %1987 = vmatprep.subr.mxu0 %v1828
        %1988 = vmatpush1.msra.mxu0 %v1827
        %1989 = vmatprep.subr.mxu0 %v1830
        %1990 = vmatpush1.msra.mxu0 %v1829
        %1991 = vmatprep.subr.mxu0 %v1832
        %1992 = vmatpush1.msra.mxu0 %v1831
        %1993 = vmatprep.subr.mxu0 %v1834
        %1994 = vmatpush1.msra.mxu0 %v1833
        %1995 = vmatprep.subr.mxu0 %v1836
        %1996 = vmatpush1.msra.mxu0 %v1835
        %1997 = vmatprep.subr.mxu0 %v1838
        %1998 = vmatpush1.msra.mxu0 %v1837
        %1999 = vmatprep.subr.mxu0 %v1840
        %2000 = vmatpush1.msra.mxu0 %v1839
        %2001 = vmatprep.subr.mxu0 0.0
        %2002 = vmatpush1.msra.mxu0 0.0
        %2003 = vmatprep.subr.mxu0 0.0
        %2004 = vmatpush1.msra.mxu0 0.0
        %2005 = vmatprep.subr.mxu0 0.0
        %2006 = vmatpush1.msra.mxu0 0.0
        %2007 = vmatprep.subr.mxu0 0.0
        %2008 = vmatpush1.msra.mxu0 0.0
        %2009 = vmatprep.subr.mxu0 0.0
        %2010 = vmatpush1.msra.mxu0 0.0
        %2011 = vmatprep.subr.mxu0 0.0
        %2012 = vmatpush1.msra.mxu0 0.0
        %2013 = vmatprep.subr.mxu0 0.0
        %2014 = vmatpush1.msra.mxu0 0.0
        %2015 = vmatprep.subr.mxu0 0.0
        %2016 = vmatpush1.msra.mxu0 0.0
        %2017 = vmatprep.subr.mxu0 0.0
        %2018 = vmatpush1.msra.mxu0 0.0
        %2019 = vmatprep.subr.mxu0 0.0
        %2020 = vmatpush1.msra.mxu0 0.0
        %2021 = vmatprep.mubr.f32.mxu0 %v1876
        %2022 = vmatmul.mubr.f32.gmra.mrb[0].mxu0 %v1858
        %v2023 = vpop.f32.mrb[0].mxu0
        %v2024 = vadd.f32 %v1947, %v2023
        %v2025 = vpop.f32.mrb[0].mxu0
        %v2026 = vadd.f32 %v1949, %v2025
        %2027 = vmatprep.mubr.f32.mxu0 %v1878
        %2028 = vmatmul.mubr.f32.gmra.mrb[0].mxu0 %v1867
        %v2029 = vpop.f32.mrb[0].mxu0
        %v2030 = vadd.f32 %v1953, %v2029
        %v2031 = vpop.f32.mrb[0].mxu0
        %v2032 = vadd.f32 %v1955, %v2031
        %2033 = vdwg.mxu0
        %v2034 = vadd.f32 %v1720, %v2024
        %v2035 = vadd.f32 %v1721, %v2026
        %v2036 = vadd.f32 %v1722, %v2030
        %v2037 = vadd.f32 %v1723, %v2032
        %v2038 = vld [vmem:[#allocation2 + $0x20] sm:$0xf8]
        %v2039 = vld [vmem:[#allocation2 + $0x28] sm:$0xf8]
        %v2040 = vld [vmem:[#allocation2 + $0x30] sm:$0xf8]
        %v2041 = vld [vmem:[#allocation2 + $0x38] sm:$0xf8]
        %v2042 = vld [vmem:[#allocation2 + $0x60] sm:$0x7]
        %v2043 = vld [vmem:[#allocation2 + $0x68] sm:$0x7]
        %v2044 = vld [vmem:[#allocation2 + $0x70] sm:$0x7]
        %v2045 = vld [vmem:[#allocation2 + $0x78] sm:$0x7]
        %s2046 = scalar_lea.vmem [#allocation3], 5184
        %v2047 = vld [vmem:[%s2046] sm:$0xff]
        %v2048 = vld [vmem:[%s2046 + $0x8] sm:$0xff]
        %v2049 = vld [vmem:[%s2046 + $0x10] sm:$0xff]
        %v2050 = vld [vmem:[%s2046 + $0x18] sm:$0xff]
        %v2051 = vld [vmem:[%s2046 + $0x20] sm:$0xff]
        %v2052 = vld [vmem:[%s2046 + $0x28] sm:$0xff]
        %v2053 = vld [vmem:[%s2046 + $0x30] sm:$0xff]
        %v2054 = vld [vmem:[%s2046 + $0x38] sm:$0xff]
        %v2055 = vld [vmem:[%s2046 + $0x40] sm:$0xff]
        %v2056 = vld [vmem:[%s2046 + $0x48] sm:$0xff]
        %v2057 = vld [vmem:[%s2046 + $0x50] sm:$0xff]
        %v2058 = vld [vmem:[%s2046 + $0x58] sm:$0xff]
        %v2059 = vld [vmem:[%s2046 + $0x60] sm:$0xff]
        %v2060 = vld [vmem:[%s2046 + $0x68] sm:$0xff]
        %v2061 = vld [vmem:[%s2046 + $0x70] sm:$0xff]
        %v2062 = vld [vmem:[%s2046 + $0x78] sm:$0xff]
        %v2063 = vld [vmem:[%s2046 + $0x80] sm:$0xff]
        %v2064 = vld [vmem:[%s2046 + $0x88] sm:$0xff]
        %v2065 = vld [vmem:[%s2046 + $0x90] sm:$0xff]
        %v2066 = vld [vmem:[%s2046 + $0x98] sm:$0xff]
        %v2067 = vld [vmem:[%s2046 + $0xa0] sm:$0xff]
        %v2068 = vld [vmem:[%s2046 + $0xa8] sm:$0xff]
        %v2069 = vld [vmem:[%s2046 + $0xb0] sm:$0xff]
        %v2070 = vld [vmem:[%s2046 + $0xb8] sm:$0xff]
        %v2071 = vld [vmem:[%s2046 + $0xc0] sm:$0xff]
        %v2072 = vld [vmem:[%s2046 + $0xc8] sm:$0xff]
        %v2073 = vld [vmem:[%s2046 + $0xd0] sm:$0xff]
        %v2074 = vld [vmem:[%s2046 + $0xd8] sm:$0xff]
        %v2075 = vld [vmem:[%s2046 + $0xe0] sm:$0xff]
        %v2076 = vld [vmem:[%s2046 + $0xe8] sm:$0xff]
        %v2077 = vld [vmem:[%s2046 + $0xf0] sm:$0xff]
        %v2078 = vld [vmem:[%s2046 + $0xf8] sm:$0xff]
        %v2079 = vld [vmem:[%s2046 + $0x100] sm:$0xff]
        %v2080 = vld [vmem:[%s2046 + $0x108] sm:$0xff]
        %v2081 = vld [vmem:[%s2046 + $0x110] sm:$0xff]
        %v2082 = vld [vmem:[%s2046 + $0x118] sm:$0xff]
        %v2083 = vld [vmem:[%s2046 + $0x120] sm:$0xff]
        %v2084 = vld [vmem:[%s2046 + $0x128] sm:$0xff]
        %v2085 = vld [vmem:[%s2046 + $0x130] sm:$0xff]
        %v2086 = vld [vmem:[%s2046 + $0x138] sm:$0xff]
        %v2087 = vld [vmem:[%s2046 + $0x140] sm:$0xff]
        %v2088 = vld [vmem:[%s2046 + $0x148] sm:$0xff]
        %v2089 = vld [vmem:[%s2046 + $0x150] sm:$0xff]
        %v2090 = vld [vmem:[%s2046 + $0x158] sm:$0xff]
        %v2091 = vld [vmem:[%s2046 + $0x160] sm:$0xff]
        %v2092 = vld [vmem:[%s2046 + $0x168] sm:$0xff]
        %v2093 = vld [vmem:[%s2046 + $0x170] sm:$0xff]
        %v2094 = vld [vmem:[%s2046 + $0x178] sm:$0xff]
        %v2095 = vld [vmem:[%s2046 + $0x180] sm:$0xff]
        %v2096 = vld [vmem:[%s2046 + $0x188] sm:$0xff]
        %v2097 = vld [vmem:[%s2046 + $0x190] sm:$0xff]
        %v2098 = vld [vmem:[%s2046 + $0x198] sm:$0xff]
        %v2099 = vld [vmem:[%s2046 + $0x1a0] sm:$0xff]
        %v2100 = vld [vmem:[%s2046 + $0x1a8] sm:$0xff]
        %v2101 = vld [vmem:[%s2046 + $0x1b0] sm:$0xff]
        %v2102 = vld [vmem:[%s2046 + $0x1b8] sm:$0xff]
        %v2103 = vld [vmem:[%s2046 + $0x1c0] sm:$0xff]
        %v2104 = vld [vmem:[%s2046 + $0x1c8] sm:$0xff]
        %v2105 = vld [vmem:[%s2046 + $0x1d0] sm:$0xff]
        %v2106 = vld [vmem:[%s2046 + $0x1d8] sm:$0xff]
        %v2107 = vld [vmem:[%s2046 + $0x1e0] sm:$0xff]
        %v2108 = vld [vmem:[%s2046 + $0x1e8] sm:$0xff]
        %v2109 = vld [vmem:[%s2046 + $0x1f0] sm:$0xff]
        %v2110 = vld [vmem:[%s2046 + $0x1f8] sm:$0xff]
        %v2111 = vld [vmem:[%s2046 + $0x200] sm:$0xff]
        %v2112 = vld [vmem:[%s2046 + $0x208] sm:$0xff]
        %v2113 = vld [vmem:[%s2046 + $0x210] sm:$0xff]
        %v2114 = vld [vmem:[%s2046 + $0x218] sm:$0xff]
        %v2115 = vld [vmem:[%s2046 + $0x220] sm:$0xff]
        %v2116 = vld [vmem:[%s2046 + $0x228] sm:$0xff]
        %v2117 = vld [vmem:[%s2046 + $0x230] sm:$0xff]
        %v2118 = vld [vmem:[%s2046 + $0x238] sm:$0xff]
        %v2119 = vld [vmem:[%s2046 + $0x240] sm:$0xff]
        %v2120 = vld [vmem:[%s2046 + $0x248] sm:$0xff]
        %v2121 = vld [vmem:[%s2046 + $0x250] sm:$0xff]
        %v2122 = vld [vmem:[%s2046 + $0x258] sm:$0xff]
        %v2123 = vld [vmem:[%s2046 + $0x260] sm:$0xff]
        %v2124 = vld [vmem:[%s2046 + $0x268] sm:$0xff]
        %v2125 = vld [vmem:[%s2046 + $0x270] sm:$0xff]
        %v2126 = vld [vmem:[%s2046 + $0x278] sm:$0xff]
        %v2127 = vld [vmem:[%s2046 + $0x280] sm:$0xff]
        %v2128 = vld [vmem:[%s2046 + $0x288] sm:$0xff]
        %v2129 = vld [vmem:[%s2046 + $0x290] sm:$0xff]
        %v2130 = vld [vmem:[%s2046 + $0x298] sm:$0xff]
        %v2131 = vld [vmem:[%s2046 + $0x2a0] sm:$0xff]
        %v2132 = vld [vmem:[%s2046 + $0x2a8] sm:$0xff]
        %v2133 = vld [vmem:[%s2046 + $0x2b0] sm:$0xff]
        %v2134 = vld [vmem:[%s2046 + $0x2b8] sm:$0xff]
        %v2135 = vld [vmem:[%s2046 + $0x2c0] sm:$0xff]
        %v2136 = vld [vmem:[%s2046 + $0x2c8] sm:$0xff]
        %v2137 = vld [vmem:[%s2046 + $0x2d0] sm:$0xff]
        %v2138 = vld [vmem:[%s2046 + $0x2d8] sm:$0xff]
        %v2139 = vld [vmem:[%s2046 + $0x2e0] sm:$0xff]
        %v2140 = vld [vmem:[%s2046 + $0x2e8] sm:$0xff]
        %v2141 = vld [vmem:[%s2046 + $0x2f0] sm:$0xff]
        %v2142 = vld [vmem:[%s2046 + $0x2f8] sm:$0xff]
        %v2143 = vld [vmem:[%s2046 + $0x300] sm:$0xff]
        %v2144 = vld [vmem:[%s2046 + $0x308] sm:$0xff]
        %v2145 = vld [vmem:[%s2046 + $0x310] sm:$0xff]
        %v2146 = vld [vmem:[%s2046 + $0x318] sm:$0xff]
        %v2147 = vld [vmem:[%s2046 + $0x320] sm:$0xff]
        %v2148 = vld [vmem:[%s2046 + $0x328] sm:$0xff]
        %v2149 = vld [vmem:[%s2046 + $0x330] sm:$0xff]
        %v2150 = vld [vmem:[%s2046 + $0x338] sm:$0xff]
        %v2151 = vld [vmem:[%s2046 + $0x340] sm:$0xff]
        %v2152 = vld [vmem:[%s2046 + $0x348] sm:$0xff]
        %v2153 = vld [vmem:[%s2046 + $0x350] sm:$0xff]
        %v2154 = vld [vmem:[%s2046 + $0x358] sm:$0xff]
        %vm2163 = vcmask 1044480
        %v2164 = vrot.slane %v2038, 3
        %v2165 = vrot.slane %v1406, 3
        %v2166 = vsel %vm2163, %v2164, %v2165
        %v2167 = vrot.slane %v2039, 3
        %v2168 = vrot.slane %v1407, 3
        %v2169 = vsel %vm2163, %v2167, %v2168
        %v2170 = vrot.slane %v2040, 3
        %v2171 = vrot.slane %v1408, 3
        %v2172 = vsel %vm2163, %v2170, %v2171
        %v2173 = vrot.slane %v2041, 3
        %v2174 = vrot.slane %v1409, 3
        %v2175 = vsel %vm2163, %v2173, %v2174
        %v2176 = vrot.slane %v2042, 3
        %v2177 = vsel %vm2163, %v2165, %v2176
        %v2178 = vrot.slane %v2043, 3
        %v2179 = vsel %vm2163, %v2168, %v2178
        %v2180 = vrot.slane %v2044, 3
        %v2181 = vsel %vm2163, %v2171, %v2180
        %v2182 = vrot.slane %v2045, 3
        %v2183 = vsel %vm2163, %v2174, %v2182
        %v2190 = vsel %vm162, %v2175, 0
        %v2192 = vsel %vm162, %v2183, 0
        %2194 = vmatprep.subr.mxu0 %v2048
        %2195 = vmatpush1.msra.mxu0 %v2047
        %2196 = vmatprep.subr.mxu0 %v2050
        %2197 = vmatpush1.msra.mxu0 %v2049
        %2198 = vmatprep.subr.mxu0 %v2052
        %2199 = vmatpush1.msra.mxu0 %v2051
        %2200 = vmatprep.subr.mxu0 %v2054
        %2201 = vmatpush1.msra.mxu0 %v2053
        %2202 = vmatprep.subr.mxu0 %v2056
        %2203 = vmatpush1.msra.mxu0 %v2055
        %2204 = vmatprep.subr.mxu0 %v2058
        %2205 = vmatpush1.msra.mxu0 %v2057
        %2206 = vmatprep.subr.mxu0 %v2060
        %2207 = vmatpush1.msra.mxu0 %v2059
        %2208 = vmatprep.subr.mxu0 %v2062
        %2209 = vmatpush1.msra.mxu0 %v2061
        %2210 = vmatprep.subr.mxu0 %v2064
        %2211 = vmatpush1.msra.mxu0 %v2063
        %2212 = vmatprep.subr.mxu0 %v2066
        %2213 = vmatpush1.msra.mxu0 %v2065
        %2214 = vmatprep.subr.mxu0 %v2068
        %2215 = vmatpush1.msra.mxu0 %v2067
        %2216 = vmatprep.subr.mxu0 %v2070
        %2217 = vmatpush1.msra.mxu0 %v2069
        %2218 = vmatprep.subr.mxu0 %v2072
        %2219 = vmatpush1.msra.mxu0 %v2071
        %2220 = vmatprep.subr.mxu0 %v2074
        %2221 = vmatpush1.msra.mxu0 %v2073
        %2222 = vmatprep.subr.mxu0 %v2076
        %2223 = vmatpush1.msra.mxu0 %v2075
        %2224 = vmatprep.subr.mxu0 %v2078
        %2225 = vmatpush1.msra.mxu0 %v2077
        %2226 = vmatprep.subr.mxu0 %v2080
        %2227 = vmatpush1.msra.mxu0 %v2079
        %2228 = vmatprep.subr.mxu0 %v2082
        %2229 = vmatpush1.msra.mxu0 %v2081
        %2230 = vmatprep.subr.mxu0 %v2084
        %2231 = vmatpush1.msra.mxu0 %v2083
        %2232 = vmatprep.subr.mxu0 %v2086
        %2233 = vmatpush1.msra.mxu0 %v2085
        %2234 = vmatprep.subr.mxu0 %v2088
        %2235 = vmatpush1.msra.mxu0 %v2087
        %2236 = vmatprep.subr.mxu0 %v2090
        %2237 = vmatpush1.msra.mxu0 %v2089
        %2238 = vmatprep.subr.mxu0 %v2092
        %2239 = vmatpush1.msra.mxu0 %v2091
        %2240 = vmatprep.subr.mxu0 %v2094
        %2241 = vmatpush1.msra.mxu0 %v2093
        %2242 = vmatprep.subr.mxu0 %v2096
        %2243 = vmatpush1.msra.mxu0 %v2095
        %2244 = vmatprep.subr.mxu0 %v2098
        %2245 = vmatpush1.msra.mxu0 %v2097
        %2246 = vmatprep.subr.mxu0 %v2100
        %2247 = vmatpush1.msra.mxu0 %v2099
        %2248 = vmatprep.subr.mxu0 %v2102
        %2249 = vmatpush1.msra.mxu0 %v2101
        %2250 = vmatprep.subr.mxu0 %v2104
        %2251 = vmatpush1.msra.mxu0 %v2103
        %2252 = vmatprep.subr.mxu0 %v2106
        %2253 = vmatpush1.msra.mxu0 %v2105
        %2254 = vmatprep.subr.mxu0 %v2108
        %2255 = vmatpush1.msra.mxu0 %v2107
        %2256 = vmatprep.subr.mxu0 %v2110
        %2257 = vmatpush1.msra.mxu0 %v2109
        %2258 = vmatprep.mubr.f32.mxu0 %v2169
        %2259 = vmatmul.mubr.f32.gmra.mrb[0].mxu0 %v2166
        %v2260 = vpop.f32.mrb[0].mxu0
        %v2261 = vadd.f32 0.0, %v2260
        %v2262 = vpop.f32.mrb[0].mxu0
        %v2263 = vadd.f32 0.0, %v2262
        %2264 = vmatprep.mubr.f32.mxu0 %v2179
        %2265 = vmatmul.mubr.f32.gmra.mrb[0].mxu0 %v2177
        %v2266 = vpop.f32.mrb[0].mxu0
        %v2267 = vadd.f32 0.0, %v2266
        %v2268 = vpop.f32.mrb[0].mxu0
        %v2269 = vadd.f32 0.0, %v2268
        %2270 = vdwg.mxu0
        %2271 = vmatprep.subr.mxu0 %v2112
        %2272 = vmatpush1.msra.mxu0 %v2111
        %2273 = vmatprep.subr.mxu0 %v2114
        %2274 = vmatpush1.msra.mxu0 %v2113
        %2275 = vmatprep.subr.mxu0 %v2116
        %2276 = vmatpush1.msra.mxu0 %v2115
        %2277 = vmatprep.subr.mxu0 %v2118
        %2278 = vmatpush1.msra.mxu0 %v2117
        %2279 = vmatprep.subr.mxu0 %v2120
        %2280 = vmatpush1.msra.mxu0 %v2119
        %2281 = vmatprep.subr.mxu0 %v2122
        %2282 = vmatpush1.msra.mxu0 %v2121
        %2283 = vmatprep.subr.mxu0 %v2124
        %2284 = vmatpush1.msra.mxu0 %v2123
        %2285 = vmatprep.subr.mxu0 %v2126
        %2286 = vmatpush1.msra.mxu0 %v2125
        %2287 = vmatprep.subr.mxu0 %v2128
        %2288 = vmatpush1.msra.mxu0 %v2127
        %2289 = vmatprep.subr.mxu0 %v2130
        %2290 = vmatpush1.msra.mxu0 %v2129
        %2291 = vmatprep.subr.mxu0 %v2132
        %2292 = vmatpush1.msra.mxu0 %v2131
        %2293 = vmatprep.subr.mxu0 %v2134
        %2294 = vmatpush1.msra.mxu0 %v2133
        %2295 = vmatprep.subr.mxu0 %v2136
        %2296 = vmatpush1.msra.mxu0 %v2135
        %2297 = vmatprep.subr.mxu0 %v2138
        %2298 = vmatpush1.msra.mxu0 %v2137
        %2299 = vmatprep.subr.mxu0 %v2140
        %2300 = vmatpush1.msra.mxu0 %v2139
        %2301 = vmatprep.subr.mxu0 %v2142
        %2302 = vmatpush1.msra.mxu0 %v2141
        %2303 = vmatprep.subr.mxu0 %v2144
        %2304 = vmatpush1.msra.mxu0 %v2143
        %2305 = vmatprep.subr.mxu0 %v2146
        %2306 = vmatpush1.msra.mxu0 %v2145
        %2307 = vmatprep.subr.mxu0 %v2148
        %2308 = vmatpush1.msra.mxu0 %v2147
        %2309 = vmatprep.subr.mxu0 %v2150
        %2310 = vmatpush1.msra.mxu0 %v2149
        %2311 = vmatprep.subr.mxu0 %v2152
        %2312 = vmatpush1.msra.mxu0 %v2151
        %2313 = vmatprep.subr.mxu0 %v2154
        %2314 = vmatpush1.msra.mxu0 %v2153
        %2315 = vmatprep.subr.mxu0 0.0
        %2316 = vmatpush1.msra.mxu0 0.0
        %2317 = vmatprep.subr.mxu0 0.0
        %2318 = vmatpush1.msra.mxu0 0.0
        %2319 = vmatprep.subr.mxu0 0.0
        %2320 = vmatpush1.msra.mxu0 0.0
        %2321 = vmatprep.subr.mxu0 0.0
        %2322 = vmatpush1.msra.mxu0 0.0
        %2323 = vmatprep.subr.mxu0 0.0
        %2324 = vmatpush1.msra.mxu0 0.0
        %2325 = vmatprep.subr.mxu0 0.0
        %2326 = vmatpush1.msra.mxu0 0.0
        %2327 = vmatprep.subr.mxu0 0.0
        %2328 = vmatpush1.msra.mxu0 0.0
        %2329 = vmatprep.subr.mxu0 0.0
        %2330 = vmatpush1.msra.mxu0 0.0
        %2331 = vmatprep.subr.mxu0 0.0
        %2332 = vmatpush1.msra.mxu0 0.0
        %2333 = vmatprep.subr.mxu0 0.0
        %2334 = vmatpush1.msra.mxu0 0.0
        %2335 = vmatprep.mubr.f32.mxu0 %v2190
        %2336 = vmatmul.mubr.f32.gmra.mrb[0].mxu0 %v2172
        %v2337 = vpop.f32.mrb[0].mxu0
        %v2338 = vadd.f32 %v2261, %v2337
        %v2339 = vpop.f32.mrb[0].mxu0
        %v2340 = vadd.f32 %v2263, %v2339
        %2341 = vmatprep.mubr.f32.mxu0 %v2192
        %2342 = vmatmul.mubr.f32.gmra.mrb[0].mxu0 %v2181
        %v2343 = vpop.f32.mrb[0].mxu0
        %v2344 = vadd.f32 %v2267, %v2343
        %v2345 = vpop.f32.mrb[0].mxu0
        %v2346 = vadd.f32 %v2269, %v2345
        %2347 = vdwg.mxu0
        %v2348 = vadd.f32 %v2034, %v2338
        %v2349 = vadd.f32 %v2035, %v2340
        %v2350 = vadd.f32 %v2036, %v2344
        %v2351 = vadd.f32 %v2037, %v2346
        %v2352 = vmax.f32 %v2348, 0.0
        %v2353 = vmax.f32 %v2349, 0.0
        %v2354 = vmax.f32 %v2350, 0.0
        %v2355 = vmax.f32 %v2351, 0.0
        %2356 = vst [vmem:[#allocation2 + $0x28] sm:$0xff] %v2352
        %2357 = vst [vmem:[#allocation2 + $0x30] sm:$0xff] %v2353
        %2358 = vst [vmem:[#allocation2 + $0x48] sm:$0xff] %v2354
        %2359 = vst [vmem:[#allocation2 + $0x50] sm:$0xff] %v2355
        %v2360 = vld [vmem:[#allocation2] sm:$0xe0]
        %v2361 = vld [vmem:[#allocation2 + $0x8] sm:$0xe0]
        %v2362 = vld [vmem:[#allocation2 + $0x10] sm:$0xe0]
        %v2363 = vld [vmem:[#allocation2 + $0x18] sm:$0xe0]
        %v2364 = vld [vmem:[#allocation2 + $0x20] sm:$0xff]
        %v2365 = vld [vmem:[#allocation2 + $0x28] sm:$0xff]
        %v2366 = vld [vmem:[#allocation2 + $0x30] sm:$0xff]
        %v2367 = vld [vmem:[#allocation2 + $0x38] sm:$0xff]
        %v2368 = vld [vmem:[#allocation2 + $0x40] sm:$0x1f]
        %v2369 = vld [vmem:[#allocation2 + $0x48] sm:$0x1f]
        %v2370 = vld [vmem:[#allocation2 + $0x50] sm:$0x1f]
        %v2371 = vld [vmem:[#allocation2 + $0x58] sm:$0x1f]
        %s2372 = scalar_lea.vmem [#allocation3], 6048
        %v2373 = vld [vmem:[%s2372] sm:$0xff]
        %v2374 = vld [vmem:[%s2372 + $0x8] sm:$0xff]
        %v2375 = vld [vmem:[%s2372 + $0x10] sm:$0xff]
        %v2376 = vld [vmem:[%s2372 + $0x18] sm:$0xff]
        %v2377 = vld [vmem:[%s2372 + $0x20] sm:$0xff]
        %v2378 = vld [vmem:[%s2372 + $0x28] sm:$0xff]
        %v2379 = vld [vmem:[%s2372 + $0x30] sm:$0xff]
        %v2380 = vld [vmem:[%s2372 + $0x38] sm:$0xff]
        %v2381 = vld [vmem:[%s2372 + $0x40] sm:$0xff]
        %v2382 = vld [vmem:[%s2372 + $0x48] sm:$0xff]
        %v2383 = vld [vmem:[%s2372 + $0x50] sm:$0xff]
        %v2384 = vld [vmem:[%s2372 + $0x58] sm:$0xff]
        %v2385 = vld [vmem:[%s2372 + $0x60] sm:$0xff]
        %v2386 = vld [vmem:[%s2372 + $0x68] sm:$0xff]
        %v2387 = vld [vmem:[%s2372 + $0x70] sm:$0xff]
        %v2388 = vld [vmem:[%s2372 + $0x78] sm:$0xff]
        %v2389 = vld [vmem:[%s2372 + $0x80] sm:$0xff]
        %v2390 = vld [vmem:[%s2372 + $0x88] sm:$0xff]
        %v2391 = vld [vmem:[%s2372 + $0x90] sm:$0xff]
        %v2392 = vld [vmem:[%s2372 + $0x98] sm:$0xff]
        %v2393 = vld [vmem:[%s2372 + $0xa0] sm:$0xff]
        %v2394 = vld [vmem:[%s2372 + $0xa8] sm:$0xff]
        %v2395 = vld [vmem:[%s2372 + $0xb0] sm:$0xff]
        %v2396 = vld [vmem:[%s2372 + $0xb8] sm:$0xff]
        %v2397 = vld [vmem:[%s2372 + $0xc0] sm:$0xff]
        %v2398 = vld [vmem:[%s2372 + $0xc8] sm:$0xff]
        %v2399 = vld [vmem:[%s2372 + $0xd0] sm:$0xff]
        %v2400 = vld [vmem:[%s2372 + $0xd8] sm:$0xff]
        %v2401 = vld [vmem:[%s2372 + $0xe0] sm:$0xff]
        %v2402 = vld [vmem:[%s2372 + $0xe8] sm:$0xff]
        %v2403 = vld [vmem:[%s2372 + $0xf0] sm:$0xff]
        %v2404 = vld [vmem:[%s2372 + $0xf8] sm:$0xff]
        %v2405 = vld [vmem:[%s2372 + $0x100] sm:$0xff]
        %v2406 = vld [vmem:[%s2372 + $0x108] sm:$0xff]
        %v2407 = vld [vmem:[%s2372 + $0x110] sm:$0xff]
        %v2408 = vld [vmem:[%s2372 + $0x118] sm:$0xff]
        %v2409 = vld [vmem:[%s2372 + $0x120] sm:$0xff]
        %v2410 = vld [vmem:[%s2372 + $0x128] sm:$0xff]
        %v2411 = vld [vmem:[%s2372 + $0x130] sm:$0xff]
        %v2412 = vld [vmem:[%s2372 + $0x138] sm:$0xff]
        %v2413 = vld [vmem:[%s2372 + $0x140] sm:$0xff]
        %v2414 = vld [vmem:[%s2372 + $0x148] sm:$0xff]
        %v2415 = vld [vmem:[%s2372 + $0x150] sm:$0xff]
        %v2416 = vld [vmem:[%s2372 + $0x158] sm:$0xff]
        %v2417 = vld [vmem:[%s2372 + $0x160] sm:$0xff]
        %v2418 = vld [vmem:[%s2372 + $0x168] sm:$0xff]
        %v2419 = vld [vmem:[%s2372 + $0x170] sm:$0xff]
        %v2420 = vld [vmem:[%s2372 + $0x178] sm:$0xff]
        %v2421 = vld [vmem:[%s2372 + $0x180] sm:$0xff]
        %v2422 = vld [vmem:[%s2372 + $0x188] sm:$0xff]
        %v2423 = vld [vmem:[%s2372 + $0x190] sm:$0xff]
        %v2424 = vld [vmem:[%s2372 + $0x198] sm:$0xff]
        %v2425 = vld [vmem:[%s2372 + $0x1a0] sm:$0xff]
        %v2426 = vld [vmem:[%s2372 + $0x1a8] sm:$0xff]
        %v2427 = vld [vmem:[%s2372 + $0x1b0] sm:$0xff]
        %v2428 = vld [vmem:[%s2372 + $0x1b8] sm:$0xff]
        %v2429 = vld [vmem:[%s2372 + $0x1c0] sm:$0xff]
        %v2430 = vld [vmem:[%s2372 + $0x1c8] sm:$0xff]
        %v2431 = vld [vmem:[%s2372 + $0x1d0] sm:$0xff]
        %v2432 = vld [vmem:[%s2372 + $0x1d8] sm:$0xff]
        %v2433 = vld [vmem:[%s2372 + $0x1e0] sm:$0xff]
        %v2434 = vld [vmem:[%s2372 + $0x1e8] sm:$0xff]
        %v2435 = vld [vmem:[%s2372 + $0x1f0] sm:$0xff]
        %v2436 = vld [vmem:[%s2372 + $0x1f8] sm:$0xff]
        %v2437 = vld [vmem:[%s2372 + $0x200] sm:$0xff]
        %v2438 = vld [vmem:[%s2372 + $0x208] sm:$0xff]
        %v2439 = vld [vmem:[%s2372 + $0x210] sm:$0xff]
        %v2440 = vld [vmem:[%s2372 + $0x218] sm:$0xff]
        %v2441 = vld [vmem:[%s2372 + $0x220] sm:$0xff]
        %v2442 = vld [vmem:[%s2372 + $0x228] sm:$0xff]
        %v2443 = vld [vmem:[%s2372 + $0x230] sm:$0xff]
        %v2444 = vld [vmem:[%s2372 + $0x238] sm:$0xff]
        %v2445 = vld [vmem:[%s2372 + $0x240] sm:$0xff]
        %v2446 = vld [vmem:[%s2372 + $0x248] sm:$0xff]
        %v2447 = vld [vmem:[%s2372 + $0x250] sm:$0xff]
        %v2448 = vld [vmem:[%s2372 + $0x258] sm:$0xff]
        %v2449 = vld [vmem:[%s2372 + $0x260] sm:$0xff]
        %v2450 = vld [vmem:[%s2372 + $0x268] sm:$0xff]
        %v2451 = vld [vmem:[%s2372 + $0x270] sm:$0xff]
        %v2452 = vld [vmem:[%s2372 + $0x278] sm:$0xff]
        %v2453 = vld [vmem:[%s2372 + $0x280] sm:$0xff]
        %v2454 = vld [vmem:[%s2372 + $0x288] sm:$0xff]
        %v2455 = vld [vmem:[%s2372 + $0x290] sm:$0xff]
        %v2456 = vld [vmem:[%s2372 + $0x298] sm:$0xff]
        %v2457 = vld [vmem:[%s2372 + $0x2a0] sm:$0xff]
        %v2458 = vld [vmem:[%s2372 + $0x2a8] sm:$0xff]
        %v2459 = vld [vmem:[%s2372 + $0x2b0] sm:$0xff]
        %v2460 = vld [vmem:[%s2372 + $0x2b8] sm:$0xff]
        %v2461 = vld [vmem:[%s2372 + $0x2c0] sm:$0xff]
        %v2462 = vld [vmem:[%s2372 + $0x2c8] sm:$0xff]
        %v2463 = vld [vmem:[%s2372 + $0x2d0] sm:$0xff]
        %v2464 = vld [vmem:[%s2372 + $0x2d8] sm:$0xff]
        %v2465 = vld [vmem:[%s2372 + $0x2e0] sm:$0xff]
        %v2466 = vld [vmem:[%s2372 + $0x2e8] sm:$0xff]
        %v2467 = vld [vmem:[%s2372 + $0x2f0] sm:$0xff]
        %v2468 = vld [vmem:[%s2372 + $0x2f8] sm:$0xff]
        %v2469 = vld [vmem:[%s2372 + $0x300] sm:$0xff]
        %v2470 = vld [vmem:[%s2372 + $0x308] sm:$0xff]
        %v2471 = vld [vmem:[%s2372 + $0x310] sm:$0xff]
        %v2472 = vld [vmem:[%s2372 + $0x318] sm:$0xff]
        %v2473 = vld [vmem:[%s2372 + $0x320] sm:$0xff]
        %v2474 = vld [vmem:[%s2372 + $0x328] sm:$0xff]
        %v2475 = vld [vmem:[%s2372 + $0x330] sm:$0xff]
        %v2476 = vld [vmem:[%s2372 + $0x338] sm:$0xff]
        %v2477 = vld [vmem:[%s2372 + $0x340] sm:$0xff]
        %v2478 = vld [vmem:[%s2372 + $0x348] sm:$0xff]
        %v2479 = vld [vmem:[%s2372 + $0x350] sm:$0xff]
        %v2480 = vld [vmem:[%s2372 + $0x358] sm:$0xff]
        %v2481 = vld [vmem:[#allocation2] sm:$0xc0]
        %v2482 = vld [vmem:[#allocation2 + $0x8] sm:$0xc0]
        %v2483 = vld [vmem:[#allocation2 + $0x10] sm:$0xc0]
        %v2484 = vld [vmem:[#allocation2 + $0x18] sm:$0xc0]
        %v2485 = vld [vmem:[#allocation2 + $0x40] sm:$0x3f]
        %v2486 = vld [vmem:[#allocation2 + $0x48] sm:$0x3f]
        %v2487 = vld [vmem:[#allocation2 + $0x50] sm:$0x3f]
        %v2488 = vld [vmem:[#allocation2 + $0x58] sm:$0x3f]
        %s2489 = scalar_lea.vmem [#allocation3], 6912
        %v2490 = vld [vmem:[%s2489] sm:$0xff]
        %v2491 = vld [vmem:[%s2489 + $0x8] sm:$0xff]
        %v2492 = vld [vmem:[%s2489 + $0x10] sm:$0xff]
        %v2493 = vld [vmem:[%s2489 + $0x18] sm:$0xff]
        %v2494 = vld [vmem:[%s2489 + $0x20] sm:$0xff]
        %v2495 = vld [vmem:[%s2489 + $0x28] sm:$0xff]
        %v2496 = vld [vmem:[%s2489 + $0x30] sm:$0xff]
        %v2497 = vld [vmem:[%s2489 + $0x38] sm:$0xff]
        %v2498 = vld [vmem:[%s2489 + $0x40] sm:$0xff]
        %v2499 = vld [vmem:[%s2489 + $0x48] sm:$0xff]
        %v2500 = vld [vmem:[%s2489 + $0x50] sm:$0xff]
        %v2501 = vld [vmem:[%s2489 + $0x58] sm:$0xff]
        %v2502 = vld [vmem:[%s2489 + $0x60] sm:$0xff]
        %v2503 = vld [vmem:[%s2489 + $0x68] sm:$0xff]
        %v2504 = vld [vmem:[%s2489 + $0x70] sm:$0xff]
        %v2505 = vld [vmem:[%s2489 + $0x78] sm:$0xff]
        %v2506 = vld [vmem:[%s2489 + $0x80] sm:$0xff]
        %v2507 = vld [vmem:[%s2489 + $0x88] sm:$0xff]
        %v2508 = vld [vmem:[%s2489 + $0x90] sm:$0xff]
        %v2509 = vld [vmem:[%s2489 + $0x98] sm:$0xff]
        %v2510 = vld [vmem:[%s2489 + $0xa0] sm:$0xff]
        %v2511 = vld [vmem:[%s2489 + $0xa8] sm:$0xff]
        %v2512 = vld [vmem:[%s2489 + $0xb0] sm:$0xff]
        %v2513 = vld [vmem:[%s2489 + $0xb8] sm:$0xff]
        %v2514 = vld [vmem:[%s2489 + $0xc0] sm:$0xff]
        %v2515 = vld [vmem:[%s2489 + $0xc8] sm:$0xff]
        %v2516 = vld [vmem:[%s2489 + $0xd0] sm:$0xff]
        %v2517 = vld [vmem:[%s2489 + $0xd8] sm:$0xff]
        %v2518 = vld [vmem:[%s2489 + $0xe0] sm:$0xff]
        %v2519 = vld [vmem:[%s2489 + $0xe8] sm:$0xff]
        %v2520 = vld [vmem:[%s2489 + $0xf0] sm:$0xff]
        %v2521 = vld [vmem:[%s2489 + $0xf8] sm:$0xff]
        %v2522 = vld [vmem:[%s2489 + $0x100] sm:$0xff]
        %v2523 = vld [vmem:[%s2489 + $0x108] sm:$0xff]
        %v2524 = vld [vmem:[%s2489 + $0x110] sm:$0xff]
        %v2525 = vld [vmem:[%s2489 + $0x118] sm:$0xff]
        %v2526 = vld [vmem:[%s2489 + $0x120] sm:$0xff]
        %v2527 = vld [vmem:[%s2489 + $0x128] sm:$0xff]
        %v2528 = vld [vmem:[%s2489 + $0x130] sm:$0xff]
        %v2529 = vld [vmem:[%s2489 + $0x138] sm:$0xff]
        %v2530 = vld [vmem:[%s2489 + $0x140] sm:$0xff]
        %v2531 = vld [vmem:[%s2489 + $0x148] sm:$0xff]
        %v2532 = vld [vmem:[%s2489 + $0x150] sm:$0xff]
        %v2533 = vld [vmem:[%s2489 + $0x158] sm:$0xff]
        %v2534 = vld [vmem:[%s2489 + $0x160] sm:$0xff]
        %v2535 = vld [vmem:[%s2489 + $0x168] sm:$0xff]
        %v2536 = vld [vmem:[%s2489 + $0x170] sm:$0xff]
        %v2537 = vld [vmem:[%s2489 + $0x178] sm:$0xff]
        %v2538 = vld [vmem:[%s2489 + $0x180] sm:$0xff]
        %v2539 = vld [vmem:[%s2489 + $0x188] sm:$0xff]
        %v2540 = vld [vmem:[%s2489 + $0x190] sm:$0xff]
        %v2541 = vld [vmem:[%s2489 + $0x198] sm:$0xff]
        %v2542 = vld [vmem:[%s2489 + $0x1a0] sm:$0xff]
        %v2543 = vld [vmem:[%s2489 + $0x1a8] sm:$0xff]
        %v2544 = vld [vmem:[%s2489 + $0x1b0] sm:$0xff]
        %v2545 = vld [vmem:[%s2489 + $0x1b8] sm:$0xff]
        %v2546 = vld [vmem:[%s2489 + $0x1c0] sm:$0xff]
        %v2547 = vld [vmem:[%s2489 + $0x1c8] sm:$0xff]
        %v2548 = vld [vmem:[%s2489 + $0x1d0] sm:$0xff]
        %v2549 = vld [vmem:[%s2489 + $0x1d8] sm:$0xff]
        %v2550 = vld [vmem:[%s2489 + $0x1e0] sm:$0xff]
        %v2551 = vld [vmem:[%s2489 + $0x1e8] sm:$0xff]
        %v2552 = vld [vmem:[%s2489 + $0x1f0] sm:$0xff]
        %v2553 = vld [vmem:[%s2489 + $0x1f8] sm:$0xff]
        %v2554 = vld [vmem:[%s2489 + $0x200] sm:$0xff]
        %v2555 = vld [vmem:[%s2489 + $0x208] sm:$0xff]
        %v2556 = vld [vmem:[%s2489 + $0x210] sm:$0xff]
        %v2557 = vld [vmem:[%s2489 + $0x218] sm:$0xff]
        %v2558 = vld [vmem:[%s2489 + $0x220] sm:$0xff]
        %v2559 = vld [vmem:[%s2489 + $0x228] sm:$0xff]
        %v2560 = vld [vmem:[%s2489 + $0x230] sm:$0xff]
        %v2561 = vld [vmem:[%s2489 + $0x238] sm:$0xff]
        %v2562 = vld [vmem:[%s2489 + $0x240] sm:$0xff]
        %v2563 = vld [vmem:[%s2489 + $0x248] sm:$0xff]
        %v2564 = vld [vmem:[%s2489 + $0x250] sm:$0xff]
        %v2565 = vld [vmem:[%s2489 + $0x258] sm:$0xff]
        %v2566 = vld [vmem:[%s2489 + $0x260] sm:$0xff]
        %v2567 = vld [vmem:[%s2489 + $0x268] sm:$0xff]
        %v2568 = vld [vmem:[%s2489 + $0x270] sm:$0xff]
        %v2569 = vld [vmem:[%s2489 + $0x278] sm:$0xff]
        %v2570 = vld [vmem:[%s2489 + $0x280] sm:$0xff]
        %v2571 = vld [vmem:[%s2489 + $0x288] sm:$0xff]
        %v2572 = vld [vmem:[%s2489 + $0x290] sm:$0xff]
        %v2573 = vld [vmem:[%s2489 + $0x298] sm:$0xff]
        %v2574 = vld [vmem:[%s2489 + $0x2a0] sm:$0xff]
        %v2575 = vld [vmem:[%s2489 + $0x2a8] sm:$0xff]
        %v2576 = vld [vmem:[%s2489 + $0x2b0] sm:$0xff]
        %v2577 = vld [vmem:[%s2489 + $0x2b8] sm:$0xff]
        %v2578 = vld [vmem:[%s2489 + $0x2c0] sm:$0xff]
        %v2579 = vld [vmem:[%s2489 + $0x2c8] sm:$0xff]
        %v2580 = vld [vmem:[%s2489 + $0x2d0] sm:$0xff]
        %v2581 = vld [vmem:[%s2489 + $0x2d8] sm:$0xff]
        %v2582 = vld [vmem:[%s2489 + $0x2e0] sm:$0xff]
        %v2583 = vld [vmem:[%s2489 + $0x2e8] sm:$0xff]
        %v2584 = vld [vmem:[%s2489 + $0x2f0] sm:$0xff]
        %v2585 = vld [vmem:[%s2489 + $0x2f8] sm:$0xff]
        %v2586 = vld [vmem:[%s2489 + $0x300] sm:$0xff]
        %v2587 = vld [vmem:[%s2489 + $0x308] sm:$0xff]
        %v2588 = vld [vmem:[%s2489 + $0x310] sm:$0xff]
        %v2589 = vld [vmem:[%s2489 + $0x318] sm:$0xff]
        %v2590 = vld [vmem:[%s2489 + $0x320] sm:$0xff]
        %v2591 = vld [vmem:[%s2489 + $0x328] sm:$0xff]
        %v2592 = vld [vmem:[%s2489 + $0x330] sm:$0xff]
        %v2593 = vld [vmem:[%s2489 + $0x338] sm:$0xff]
        %v2594 = vld [vmem:[%s2489 + $0x340] sm:$0xff]
        %v2595 = vld [vmem:[%s2489 + $0x348] sm:$0xff]
        %v2596 = vld [vmem:[%s2489 + $0x350] sm:$0xff]
        %v2597 = vld [vmem:[%s2489 + $0x358] sm:$0xff]
        %v2610 = vrot.slane %v2481, 6
        %v2611 = vrot.slane %v2364, 6
        %v2612 = vsel %vm434, %v2610, %v2611
        %v2613 = vrot.slane %v2482, 6
        %v2614 = vrot.slane %v2365, 6
        %v2615 = vsel %vm434, %v2613, %v2614
        %v2616 = vrot.slane %v2483, 6
        %v2617 = vrot.slane %v2366, 6
        %v2618 = vsel %vm434, %v2616, %v2617
        %v2619 = vrot.slane %v2484, 6
        %v2620 = vrot.slane %v2367, 6
        %v2621 = vsel %vm434, %v2619, %v2620
        %v2622 = vrot.slane %v2485, 6
        %v2623 = vsel %vm434, %v2611, %v2622
        %v2624 = vrot.slane %v2486, 6
        %v2625 = vsel %vm434, %v2614, %v2624
        %v2626 = vrot.slane %v2487, 6
        %v2627 = vsel %vm434, %v2617, %v2626
        %v2628 = vrot.slane %v2488, 6
        %v2629 = vsel %vm434, %v2620, %v2628
        %v2636 = vsel %vm162, %v2621, 0
        %v2638 = vsel %vm162, %v2629, 0
        %2640 = vmatprep.subr.mxu0 %v2491
        %2641 = vmatpush1.msra.mxu0 %v2490
        %2642 = vmatprep.subr.mxu0 %v2493
        %2643 = vmatpush1.msra.mxu0 %v2492
        %2644 = vmatprep.subr.mxu0 %v2495
        %2645 = vmatpush1.msra.mxu0 %v2494
        %2646 = vmatprep.subr.mxu0 %v2497
        %2647 = vmatpush1.msra.mxu0 %v2496
        %2648 = vmatprep.subr.mxu0 %v2499
        %2649 = vmatpush1.msra.mxu0 %v2498
        %2650 = vmatprep.subr.mxu0 %v2501
        %2651 = vmatpush1.msra.mxu0 %v2500
        %2652 = vmatprep.subr.mxu0 %v2503
        %2653 = vmatpush1.msra.mxu0 %v2502
        %2654 = vmatprep.subr.mxu0 %v2505
        %2655 = vmatpush1.msra.mxu0 %v2504
        %2656 = vmatprep.subr.mxu0 %v2507
        %2657 = vmatpush1.msra.mxu0 %v2506
        %2658 = vmatprep.subr.mxu0 %v2509
        %2659 = vmatpush1.msra.mxu0 %v2508
        %2660 = vmatprep.subr.mxu0 %v2511
        %2661 = vmatpush1.msra.mxu0 %v2510
        %2662 = vmatprep.subr.mxu0 %v2513
        %2663 = vmatpush1.msra.mxu0 %v2512
        %2664 = vmatprep.subr.mxu0 %v2515
        %2665 = vmatpush1.msra.mxu0 %v2514
        %2666 = vmatprep.subr.mxu0 %v2517
        %2667 = vmatpush1.msra.mxu0 %v2516
        %2668 = vmatprep.subr.mxu0 %v2519
        %2669 = vmatpush1.msra.mxu0 %v2518
        %2670 = vmatprep.subr.mxu0 %v2521
        %2671 = vmatpush1.msra.mxu0 %v2520
        %2672 = vmatprep.subr.mxu0 %v2523
        %2673 = vmatpush1.msra.mxu0 %v2522
        %2674 = vmatprep.subr.mxu0 %v2525
        %2675 = vmatpush1.msra.mxu0 %v2524
        %2676 = vmatprep.subr.mxu0 %v2527
        %2677 = vmatpush1.msra.mxu0 %v2526
        %2678 = vmatprep.subr.mxu0 %v2529
        %2679 = vmatpush1.msra.mxu0 %v2528
        %2680 = vmatprep.subr.mxu0 %v2531
        %2681 = vmatpush1.msra.mxu0 %v2530
        %2682 = vmatprep.subr.mxu0 %v2533
        %2683 = vmatpush1.msra.mxu0 %v2532
        %2684 = vmatprep.subr.mxu0 %v2535
        %2685 = vmatpush1.msra.mxu0 %v2534
        %2686 = vmatprep.subr.mxu0 %v2537
        %2687 = vmatpush1.msra.mxu0 %v2536
        %2688 = vmatprep.subr.mxu0 %v2539
        %2689 = vmatpush1.msra.mxu0 %v2538
        %2690 = vmatprep.subr.mxu0 %v2541
        %2691 = vmatpush1.msra.mxu0 %v2540
        %2692 = vmatprep.subr.mxu0 %v2543
        %2693 = vmatpush1.msra.mxu0 %v2542
        %2694 = vmatprep.subr.mxu0 %v2545
        %2695 = vmatpush1.msra.mxu0 %v2544
        %2696 = vmatprep.subr.mxu0 %v2547
        %2697 = vmatpush1.msra.mxu0 %v2546
        %2698 = vmatprep.subr.mxu0 %v2549
        %2699 = vmatpush1.msra.mxu0 %v2548
        %2700 = vmatprep.subr.mxu0 %v2551
        %2701 = vmatpush1.msra.mxu0 %v2550
        %2702 = vmatprep.subr.mxu0 %v2553
        %2703 = vmatpush1.msra.mxu0 %v2552
        %2704 = vmatprep.mubr.f32.mxu0 %v2615
        %2705 = vmatmul.mubr.f32.gmra.mrb[0].mxu0 %v2612
        %v2706 = vpop.f32.mrb[0].mxu0
        %v2707 = vadd.f32 0.0, %v2706
        %v2708 = vpop.f32.mrb[0].mxu0
        %v2709 = vadd.f32 0.0, %v2708
        %2710 = vmatprep.mubr.f32.mxu0 %v2625
        %2711 = vmatmul.mubr.f32.gmra.mrb[0].mxu0 %v2623
        %v2712 = vpop.f32.mrb[0].mxu0
        %v2713 = vadd.f32 0.0, %v2712
        %v2714 = vpop.f32.mrb[0].mxu0
        %v2715 = vadd.f32 0.0, %v2714
        %2716 = vdwg.mxu0
        %2717 = vmatprep.subr.mxu0 %v2555
        %2718 = vmatpush1.msra.mxu0 %v2554
        %2719 = vmatprep.subr.mxu0 %v2557
        %2720 = vmatpush1.msra.mxu0 %v2556
        %2721 = vmatprep.subr.mxu0 %v2559
        %2722 = vmatpush1.msra.mxu0 %v2558
        %2723 = vmatprep.subr.mxu0 %v2561
        %2724 = vmatpush1.msra.mxu0 %v2560
        %2725 = vmatprep.subr.mxu0 %v2563
        %2726 = vmatpush1.msra.mxu0 %v2562
        %2727 = vmatprep.subr.mxu0 %v2565
        %2728 = vmatpush1.msra.mxu0 %v2564
        %2729 = vmatprep.subr.mxu0 %v2567
        %2730 = vmatpush1.msra.mxu0 %v2566
        %2731 = vmatprep.subr.mxu0 %v2569
        %2732 = vmatpush1.msra.mxu0 %v2568
        %2733 = vmatprep.subr.mxu0 %v2571
        %2734 = vmatpush1.msra.mxu0 %v2570
        %2735 = vmatprep.subr.mxu0 %v2573
        %2736 = vmatpush1.msra.mxu0 %v2572
        %2737 = vmatprep.subr.mxu0 %v2575
        %2738 = vmatpush1.msra.mxu0 %v2574
        %2739 = vmatprep.subr.mxu0 %v2577
        %2740 = vmatpush1.msra.mxu0 %v2576
        %2741 = vmatprep.subr.mxu0 %v2579
        %2742 = vmatpush1.msra.mxu0 %v2578
        %2743 = vmatprep.subr.mxu0 %v2581
        %2744 = vmatpush1.msra.mxu0 %v2580
        %2745 = vmatprep.subr.mxu0 %v2583
        %2746 = vmatpush1.msra.mxu0 %v2582
        %2747 = vmatprep.subr.mxu0 %v2585
        %2748 = vmatpush1.msra.mxu0 %v2584
        %2749 = vmatprep.subr.mxu0 %v2587
        %2750 = vmatpush1.msra.mxu0 %v2586
        %2751 = vmatprep.subr.mxu0 %v2589
        %2752 = vmatpush1.msra.mxu0 %v2588
        %2753 = vmatprep.subr.mxu0 %v2591
        %2754 = vmatpush1.msra.mxu0 %v2590
        %2755 = vmatprep.subr.mxu0 %v2593
        %2756 = vmatpush1.msra.mxu0 %v2592
        %2757 = vmatprep.subr.mxu0 %v2595
        %2758 = vmatpush1.msra.mxu0 %v2594
        %2759 = vmatprep.subr.mxu0 %v2597
        %2760 = vmatpush1.msra.mxu0 %v2596
        %2761 = vmatprep.subr.mxu0 0.0
        %2762 = vmatpush1.msra.mxu0 0.0
        %2763 = vmatprep.subr.mxu0 0.0
        %2764 = vmatpush1.msra.mxu0 0.0
        %2765 = vmatprep.subr.mxu0 0.0
        %2766 = vmatpush1.msra.mxu0 0.0
        %2767 = vmatprep.subr.mxu0 0.0
        %2768 = vmatpush1.msra.mxu0 0.0
        %2769 = vmatprep.subr.mxu0 0.0
        %2770 = vmatpush1.msra.mxu0 0.0
        %2771 = vmatprep.subr.mxu0 0.0
        %2772 = vmatpush1.msra.mxu0 0.0
        %2773 = vmatprep.subr.mxu0 0.0
        %2774 = vmatpush1.msra.mxu0 0.0
        %2775 = vmatprep.subr.mxu0 0.0
        %2776 = vmatpush1.msra.mxu0 0.0
        %2777 = vmatprep.subr.mxu0 0.0
        %2778 = vmatpush1.msra.mxu0 0.0
        %2779 = vmatprep.subr.mxu0 0.0
        %2780 = vmatpush1.msra.mxu0 0.0
        %2781 = vmatprep.mubr.f32.mxu0 %v2636
        %2782 = vmatmul.mubr.f32.gmra.mrb[0].mxu0 %v2618
        %v2783 = vpop.f32.mrb[0].mxu0
        %v2784 = vadd.f32 %v2707, %v2783
        %v2785 = vpop.f32.mrb[0].mxu0
        %v2786 = vadd.f32 %v2709, %v2785
        %2787 = vmatprep.mubr.f32.mxu0 %v2638
        %2788 = vmatmul.mubr.f32.gmra.mrb[0].mxu0 %v2627
        %v2789 = vpop.f32.mrb[0].mxu0
        %v2790 = vadd.f32 %v2713, %v2789
        %v2791 = vpop.f32.mrb[0].mxu0
        %v2792 = vadd.f32 %v2715, %v2791
        %2793 = vdwg.mxu0
        %v2802 = vrot.slane %v2360, 5
        %v2803 = vrot.slane %v2364, 5
        %v2804 = vsel %vm627, %v2802, %v2803
        %v2805 = vrot.slane %v2361, 5
        %v2806 = vrot.slane %v2365, 5
        %v2807 = vsel %vm627, %v2805, %v2806
        %v2808 = vrot.slane %v2362, 5
        %v2809 = vrot.slane %v2366, 5
        %v2810 = vsel %vm627, %v2808, %v2809
        %v2811 = vrot.slane %v2363, 5
        %v2812 = vrot.slane %v2367, 5
        %v2813 = vsel %vm627, %v2811, %v2812
        %v2814 = vrot.slane %v2368, 5
        %v2815 = vsel %vm627, %v2803, %v2814
        %v2816 = vrot.slane %v2369, 5
        %v2817 = vsel %vm627, %v2806, %v2816
        %v2818 = vrot.slane %v2370, 5
        %v2819 = vsel %vm627, %v2809, %v2818
        %v2820 = vrot.slane %v2371, 5
        %v2821 = vsel %vm627, %v2812, %v2820
        %v2828 = vsel %vm162, %v2813, 0
        %v2830 = vsel %vm162, %v2821, 0
        %2832 = vmatprep.subr.mxu0 %v2374
        %2833 = vmatpush1.msra.mxu0 %v2373
        %2834 = vmatprep.subr.mxu0 %v2376
        %2835 = vmatpush1.msra.mxu0 %v2375
        %2836 = vmatprep.subr.mxu0 %v2378
        %2837 = vmatpush1.msra.mxu0 %v2377
        %2838 = vmatprep.subr.mxu0 %v2380
        %2839 = vmatpush1.msra.mxu0 %v2379
        %2840 = vmatprep.subr.mxu0 %v2382
        %2841 = vmatpush1.msra.mxu0 %v2381
        %2842 = vmatprep.subr.mxu0 %v2384
        %2843 = vmatpush1.msra.mxu0 %v2383
        %2844 = vmatprep.subr.mxu0 %v2386
        %2845 = vmatpush1.msra.mxu0 %v2385
        %2846 = vmatprep.subr.mxu0 %v2388
        %2847 = vmatpush1.msra.mxu0 %v2387
        %2848 = vmatprep.subr.mxu0 %v2390
        %2849 = vmatpush1.msra.mxu0 %v2389
        %2850 = vmatprep.subr.mxu0 %v2392
        %2851 = vmatpush1.msra.mxu0 %v2391
        %2852 = vmatprep.subr.mxu0 %v2394
        %2853 = vmatpush1.msra.mxu0 %v2393
        %2854 = vmatprep.subr.mxu0 %v2396
        %2855 = vmatpush1.msra.mxu0 %v2395
        %2856 = vmatprep.subr.mxu0 %v2398
        %2857 = vmatpush1.msra.mxu0 %v2397
        %2858 = vmatprep.subr.mxu0 %v2400
        %2859 = vmatpush1.msra.mxu0 %v2399
        %2860 = vmatprep.subr.mxu0 %v2402
        %2861 = vmatpush1.msra.mxu0 %v2401
        %2862 = vmatprep.subr.mxu0 %v2404
        %2863 = vmatpush1.msra.mxu0 %v2403
        %2864 = vmatprep.subr.mxu0 %v2406
        %2865 = vmatpush1.msra.mxu0 %v2405
        %2866 = vmatprep.subr.mxu0 %v2408
        %2867 = vmatpush1.msra.mxu0 %v2407
        %2868 = vmatprep.subr.mxu0 %v2410
        %2869 = vmatpush1.msra.mxu0 %v2409
        %2870 = vmatprep.subr.mxu0 %v2412
        %2871 = vmatpush1.msra.mxu0 %v2411
        %2872 = vmatprep.subr.mxu0 %v2414
        %2873 = vmatpush1.msra.mxu0 %v2413
        %2874 = vmatprep.subr.mxu0 %v2416
        %2875 = vmatpush1.msra.mxu0 %v2415
        %2876 = vmatprep.subr.mxu0 %v2418
        %2877 = vmatpush1.msra.mxu0 %v2417
        %2878 = vmatprep.subr.mxu0 %v2420
        %2879 = vmatpush1.msra.mxu0 %v2419
        %2880 = vmatprep.subr.mxu0 %v2422
        %2881 = vmatpush1.msra.mxu0 %v2421
        %2882 = vmatprep.subr.mxu0 %v2424
        %2883 = vmatpush1.msra.mxu0 %v2423
        %2884 = vmatprep.subr.mxu0 %v2426
        %2885 = vmatpush1.msra.mxu0 %v2425
        %2886 = vmatprep.subr.mxu0 %v2428
        %2887 = vmatpush1.msra.mxu0 %v2427
        %2888 = vmatprep.subr.mxu0 %v2430
        %2889 = vmatpush1.msra.mxu0 %v2429
        %2890 = vmatprep.subr.mxu0 %v2432
        %2891 = vmatpush1.msra.mxu0 %v2431
        %2892 = vmatprep.subr.mxu0 %v2434
        %2893 = vmatpush1.msra.mxu0 %v2433
        %2894 = vmatprep.subr.mxu0 %v2436
        %2895 = vmatpush1.msra.mxu0 %v2435
        %2896 = vmatprep.mubr.f32.mxu0 %v2807
        %2897 = vmatmul.mubr.f32.gmra.mrb[0].mxu0 %v2804
        %v2898 = vpop.f32.mrb[0].mxu0
        %v2899 = vadd.f32 %v2784, %v2898
        %v2900 = vpop.f32.mrb[0].mxu0
        %v2901 = vadd.f32 %v2786, %v2900
        %2902 = vmatprep.mubr.f32.mxu0 %v2817
        %2903 = vmatmul.mubr.f32.gmra.mrb[0].mxu0 %v2815
        %v2904 = vpop.f32.mrb[0].mxu0
        %v2905 = vadd.f32 %v2790, %v2904
        %v2906 = vpop.f32.mrb[0].mxu0
        %v2907 = vadd.f32 %v2792, %v2906
        %2908 = vdwg.mxu0
        %2909 = vmatprep.subr.mxu0 %v2438
        %2910 = vmatpush1.msra.mxu0 %v2437
        %2911 = vmatprep.subr.mxu0 %v2440
        %2912 = vmatpush1.msra.mxu0 %v2439
        %2913 = vmatprep.subr.mxu0 %v2442
        %2914 = vmatpush1.msra.mxu0 %v2441
        %2915 = vmatprep.subr.mxu0 %v2444
        %2916 = vmatpush1.msra.mxu0 %v2443
        %2917 = vmatprep.subr.mxu0 %v2446
        %2918 = vmatpush1.msra.mxu0 %v2445
        %2919 = vmatprep.subr.mxu0 %v2448
        %2920 = vmatpush1.msra.mxu0 %v2447
        %2921 = vmatprep.subr.mxu0 %v2450
        %2922 = vmatpush1.msra.mxu0 %v2449
        %2923 = vmatprep.subr.mxu0 %v2452
        %2924 = vmatpush1.msra.mxu0 %v2451
        %2925 = vmatprep.subr.mxu0 %v2454
        %2926 = vmatpush1.msra.mxu0 %v2453
        %2927 = vmatprep.subr.mxu0 %v2456
        %2928 = vmatpush1.msra.mxu0 %v2455
        %2929 = vmatprep.subr.mxu0 %v2458
        %2930 = vmatpush1.msra.mxu0 %v2457
        %2931 = vmatprep.subr.mxu0 %v2460
        %2932 = vmatpush1.msra.mxu0 %v2459
        %2933 = vmatprep.subr.mxu0 %v2462
        %2934 = vmatpush1.msra.mxu0 %v2461
        %2935 = vmatprep.subr.mxu0 %v2464
        %2936 = vmatpush1.msra.mxu0 %v2463
        %2937 = vmatprep.subr.mxu0 %v2466
        %2938 = vmatpush1.msra.mxu0 %v2465
        %2939 = vmatprep.subr.mxu0 %v2468
        %2940 = vmatpush1.msra.mxu0 %v2467
        %2941 = vmatprep.subr.mxu0 %v2470
        %2942 = vmatpush1.msra.mxu0 %v2469
        %2943 = vmatprep.subr.mxu0 %v2472
        %2944 = vmatpush1.msra.mxu0 %v2471
        %2945 = vmatprep.subr.mxu0 %v2474
        %2946 = vmatpush1.msra.mxu0 %v2473
        %2947 = vmatprep.subr.mxu0 %v2476
        %2948 = vmatpush1.msra.mxu0 %v2475
        %2949 = vmatprep.subr.mxu0 %v2478
        %2950 = vmatpush1.msra.mxu0 %v2477
        %2951 = vmatprep.subr.mxu0 %v2480
        %2952 = vmatpush1.msra.mxu0 %v2479
        %2953 = vmatprep.subr.mxu0 0.0
        %2954 = vmatpush1.msra.mxu0 0.0
        %2955 = vmatprep.subr.mxu0 0.0
        %2956 = vmatpush1.msra.mxu0 0.0
        %2957 = vmatprep.subr.mxu0 0.0
        %2958 = vmatpush1.msra.mxu0 0.0
        %2959 = vmatprep.subr.mxu0 0.0
        %2960 = vmatpush1.msra.mxu0 0.0
        %2961 = vmatprep.subr.mxu0 0.0
        %2962 = vmatpush1.msra.mxu0 0.0
        %2963 = vmatprep.subr.mxu0 0.0
        %2964 = vmatpush1.msra.mxu0 0.0
        %2965 = vmatprep.subr.mxu0 0.0
        %2966 = vmatpush1.msra.mxu0 0.0
        %2967 = vmatprep.subr.mxu0 0.0
        %2968 = vmatpush1.msra.mxu0 0.0
        %2969 = vmatprep.subr.mxu0 0.0
        %2970 = vmatpush1.msra.mxu0 0.0
        %2971 = vmatprep.subr.mxu0 0.0
        %2972 = vmatpush1.msra.mxu0 0.0
        %2973 = vmatprep.mubr.f32.mxu0 %v2828
        %2974 = vmatmul.mubr.f32.gmra.mrb[0].mxu0 %v2810
        %v2975 = vpop.f32.mrb[0].mxu0
        %v2976 = vadd.f32 %v2899, %v2975
        %v2977 = vpop.f32.mrb[0].mxu0
        %v2978 = vadd.f32 %v2901, %v2977
        %2979 = vmatprep.mubr.f32.mxu0 %v2830
        %2980 = vmatmul.mubr.f32.gmra.mrb[0].mxu0 %v2819
        %v2981 = vpop.f32.mrb[0].mxu0
        %v2982 = vadd.f32 %v2905, %v2981
        %v2983 = vpop.f32.mrb[0].mxu0
        %v2984 = vadd.f32 %v2907, %v2983
        %2985 = vdwg.mxu0
        %v2986 = vld [vmem:[#allocation2] sm:$0x80]
        %v2987 = vld [vmem:[#allocation2 + $0x8] sm:$0x80]
        %v2988 = vld [vmem:[#allocation2 + $0x10] sm:$0x80]
        %v2989 = vld [vmem:[#allocation2 + $0x18] sm:$0x80]
        %v2990 = vld [vmem:[#allocation2 + $0x40] sm:$0x7f]
        %v2991 = vld [vmem:[#allocation2 + $0x48] sm:$0x7f]
        %v2992 = vld [vmem:[#allocation2 + $0x50] sm:$0x7f]
        %v2993 = vld [vmem:[#allocation2 + $0x58] sm:$0x7f]
        %s2994 = scalar_lea.vmem [#allocation3], 7776
        %v2995 = vld [vmem:[%s2994] sm:$0xff]
        %v2996 = vld [vmem:[%s2994 + $0x8] sm:$0xff]
        %v2997 = vld [vmem:[%s2994 + $0x10] sm:$0xff]
        %v2998 = vld [vmem:[%s2994 + $0x18] sm:$0xff]
        %v2999 = vld [vmem:[%s2994 + $0x20] sm:$0xff]
        %v3000 = vld [vmem:[%s2994 + $0x28] sm:$0xff]
        %v3001 = vld [vmem:[%s2994 + $0x30] sm:$0xff]
        %v3002 = vld [vmem:[%s2994 + $0x38] sm:$0xff]
        %v3003 = vld [vmem:[%s2994 + $0x40] sm:$0xff]
        %v3004 = vld [vmem:[%s2994 + $0x48] sm:$0xff]
        %v3005 = vld [vmem:[%s2994 + $0x50] sm:$0xff]
        %v3006 = vld [vmem:[%s2994 + $0x58] sm:$0xff]
        %v3007 = vld [vmem:[%s2994 + $0x60] sm:$0xff]
        %v3008 = vld [vmem:[%s2994 + $0x68] sm:$0xff]
        %v3009 = vld [vmem:[%s2994 + $0x70] sm:$0xff]
        %v3010 = vld [vmem:[%s2994 + $0x78] sm:$0xff]
        %v3011 = vld [vmem:[%s2994 + $0x80] sm:$0xff]
        %v3012 = vld [vmem:[%s2994 + $0x88] sm:$0xff]
        %v3013 = vld [vmem:[%s2994 + $0x90] sm:$0xff]
        %v3014 = vld [vmem:[%s2994 + $0x98] sm:$0xff]
        %v3015 = vld [vmem:[%s2994 + $0xa0] sm:$0xff]
        %v3016 = vld [vmem:[%s2994 + $0xa8] sm:$0xff]
        %v3017 = vld [vmem:[%s2994 + $0xb0] sm:$0xff]
        %v3018 = vld [vmem:[%s2994 + $0xb8] sm:$0xff]
        %v3019 = vld [vmem:[%s2994 + $0xc0] sm:$0xff]
        %v3020 = vld [vmem:[%s2994 + $0xc8] sm:$0xff]
        %v3021 = vld [vmem:[%s2994 + $0xd0] sm:$0xff]
        %v3022 = vld [vmem:[%s2994 + $0xd8] sm:$0xff]
        %v3023 = vld [vmem:[%s2994 + $0xe0] sm:$0xff]
        %v3024 = vld [vmem:[%s2994 + $0xe8] sm:$0xff]
        %v3025 = vld [vmem:[%s2994 + $0xf0] sm:$0xff]
        %v3026 = vld [vmem:[%s2994 + $0xf8] sm:$0xff]
        %v3027 = vld [vmem:[%s2994 + $0x100] sm:$0xff]
        %v3028 = vld [vmem:[%s2994 + $0x108] sm:$0xff]
        %v3029 = vld [vmem:[%s2994 + $0x110] sm:$0xff]
        %v3030 = vld [vmem:[%s2994 + $0x118] sm:$0xff]
        %v3031 = vld [vmem:[%s2994 + $0x120] sm:$0xff]
        %v3032 = vld [vmem:[%s2994 + $0x128] sm:$0xff]
        %v3033 = vld [vmem:[%s2994 + $0x130] sm:$0xff]
        %v3034 = vld [vmem:[%s2994 + $0x138] sm:$0xff]
        %v3035 = vld [vmem:[%s2994 + $0x140] sm:$0xff]
        %v3036 = vld [vmem:[%s2994 + $0x148] sm:$0xff]
        %v3037 = vld [vmem:[%s2994 + $0x150] sm:$0xff]
        %v3038 = vld [vmem:[%s2994 + $0x158] sm:$0xff]
        %v3039 = vld [vmem:[%s2994 + $0x160] sm:$0xff]
        %v3040 = vld [vmem:[%s2994 + $0x168] sm:$0xff]
        %v3041 = vld [vmem:[%s2994 + $0x170] sm:$0xff]
        %v3042 = vld [vmem:[%s2994 + $0x178] sm:$0xff]
        %v3043 = vld [vmem:[%s2994 + $0x180] sm:$0xff]
        %v3044 = vld [vmem:[%s2994 + $0x188] sm:$0xff]
        %v3045 = vld [vmem:[%s2994 + $0x190] sm:$0xff]
        %v3046 = vld [vmem:[%s2994 + $0x198] sm:$0xff]
        %v3047 = vld [vmem:[%s2994 + $0x1a0] sm:$0xff]
        %v3048 = vld [vmem:[%s2994 + $0x1a8] sm:$0xff]
        %v3049 = vld [vmem:[%s2994 + $0x1b0] sm:$0xff]
        %v3050 = vld [vmem:[%s2994 + $0x1b8] sm:$0xff]
        %v3051 = vld [vmem:[%s2994 + $0x1c0] sm:$0xff]
        %v3052 = vld [vmem:[%s2994 + $0x1c8] sm:$0xff]
        %v3053 = vld [vmem:[%s2994 + $0x1d0] sm:$0xff]
        %v3054 = vld [vmem:[%s2994 + $0x1d8] sm:$0xff]
        %v3055 = vld [vmem:[%s2994 + $0x1e0] sm:$0xff]
        %v3056 = vld [vmem:[%s2994 + $0x1e8] sm:$0xff]
        %v3057 = vld [vmem:[%s2994 + $0x1f0] sm:$0xff]
        %v3058 = vld [vmem:[%s2994 + $0x1f8] sm:$0xff]
        %v3059 = vld [vmem:[%s2994 + $0x200] sm:$0xff]
        %v3060 = vld [vmem:[%s2994 + $0x208] sm:$0xff]
        %v3061 = vld [vmem:[%s2994 + $0x210] sm:$0xff]
        %v3062 = vld [vmem:[%s2994 + $0x218] sm:$0xff]
        %v3063 = vld [vmem:[%s2994 + $0x220] sm:$0xff]
        %v3064 = vld [vmem:[%s2994 + $0x228] sm:$0xff]
        %v3065 = vld [vmem:[%s2994 + $0x230] sm:$0xff]
        %v3066 = vld [vmem:[%s2994 + $0x238] sm:$0xff]
        %v3067 = vld [vmem:[%s2994 + $0x240] sm:$0xff]
        %v3068 = vld [vmem:[%s2994 + $0x248] sm:$0xff]
        %v3069 = vld [vmem:[%s2994 + $0x250] sm:$0xff]
        %v3070 = vld [vmem:[%s2994 + $0x258] sm:$0xff]
        %v3071 = vld [vmem:[%s2994 + $0x260] sm:$0xff]
        %v3072 = vld [vmem:[%s2994 + $0x268] sm:$0xff]
        %v3073 = vld [vmem:[%s2994 + $0x270] sm:$0xff]
        %v3074 = vld [vmem:[%s2994 + $0x278] sm:$0xff]
        %v3075 = vld [vmem:[%s2994 + $0x280] sm:$0xff]
        %v3076 = vld [vmem:[%s2994 + $0x288] sm:$0xff]
        %v3077 = vld [vmem:[%s2994 + $0x290] sm:$0xff]
        %v3078 = vld [vmem:[%s2994 + $0x298] sm:$0xff]
        %v3079 = vld [vmem:[%s2994 + $0x2a0] sm:$0xff]
        %v3080 = vld [vmem:[%s2994 + $0x2a8] sm:$0xff]
        %v3081 = vld [vmem:[%s2994 + $0x2b0] sm:$0xff]
        %v3082 = vld [vmem:[%s2994 + $0x2b8] sm:$0xff]
        %v3083 = vld [vmem:[%s2994 + $0x2c0] sm:$0xff]
        %v3084 = vld [vmem:[%s2994 + $0x2c8] sm:$0xff]
        %v3085 = vld [vmem:[%s2994 + $0x2d0] sm:$0xff]
        %v3086 = vld [vmem:[%s2994 + $0x2d8] sm:$0xff]
        %v3087 = vld [vmem:[%s2994 + $0x2e0] sm:$0xff]
        %v3088 = vld [vmem:[%s2994 + $0x2e8] sm:$0xff]
        %v3089 = vld [vmem:[%s2994 + $0x2f0] sm:$0xff]
        %v3090 = vld [vmem:[%s2994 + $0x2f8] sm:$0xff]
        %v3091 = vld [vmem:[%s2994 + $0x300] sm:$0xff]
        %v3092 = vld [vmem:[%s2994 + $0x308] sm:$0xff]
        %v3093 = vld [vmem:[%s2994 + $0x310] sm:$0xff]
        %v3094 = vld [vmem:[%s2994 + $0x318] sm:$0xff]
        %v3095 = vld [vmem:[%s2994 + $0x320] sm:$0xff]
        %v3096 = vld [vmem:[%s2994 + $0x328] sm:$0xff]
        %v3097 = vld [vmem:[%s2994 + $0x330] sm:$0xff]
        %v3098 = vld [vmem:[%s2994 + $0x338] sm:$0xff]
        %v3099 = vld [vmem:[%s2994 + $0x340] sm:$0xff]
        %v3100 = vld [vmem:[%s2994 + $0x348] sm:$0xff]
        %v3101 = vld [vmem:[%s2994 + $0x350] sm:$0xff]
        %v3102 = vld [vmem:[%s2994 + $0x358] sm:$0xff]
        %v3111 = vrot.slane %v2986, 7
        %v3112 = vrot.slane %v2364, 7
        %v3113 = vsel %vm937, %v3111, %v3112
        %v3114 = vrot.slane %v2987, 7
        %v3115 = vrot.slane %v2365, 7
        %v3116 = vsel %vm937, %v3114, %v3115
        %v3117 = vrot.slane %v2988, 7
        %v3118 = vrot.slane %v2366, 7
        %v3119 = vsel %vm937, %v3117, %v3118
        %v3120 = vrot.slane %v2989, 7
        %v3121 = vrot.slane %v2367, 7
        %v3122 = vsel %vm937, %v3120, %v3121
        %v3123 = vrot.slane %v2990, 7
        %v3124 = vsel %vm937, %v3112, %v3123
        %v3125 = vrot.slane %v2991, 7
        %v3126 = vsel %vm937, %v3115, %v3125
        %v3127 = vrot.slane %v2992, 7
        %v3128 = vsel %vm937, %v3118, %v3127
        %v3129 = vrot.slane %v2993, 7
        %v3130 = vsel %vm937, %v3121, %v3129
        %v3137 = vsel %vm162, %v3122, 0
        %v3139 = vsel %vm162, %v3130, 0
        %3141 = vmatprep.subr.mxu0 %v2996
        %3142 = vmatpush1.msra.mxu0 %v2995
        %3143 = vmatprep.subr.mxu0 %v2998
        %3144 = vmatpush1.msra.mxu0 %v2997
        %3145 = vmatprep.subr.mxu0 %v3000
        %3146 = vmatpush1.msra.mxu0 %v2999
        %3147 = vmatprep.subr.mxu0 %v3002
        %3148 = vmatpush1.msra.mxu0 %v3001
        %3149 = vmatprep.subr.mxu0 %v3004
        %3150 = vmatpush1.msra.mxu0 %v3003
        %3151 = vmatprep.subr.mxu0 %v3006
        %3152 = vmatpush1.msra.mxu0 %v3005
        %3153 = vmatprep.subr.mxu0 %v3008
        %3154 = vmatpush1.msra.mxu0 %v3007
        %3155 = vmatprep.subr.mxu0 %v3010
        %3156 = vmatpush1.msra.mxu0 %v3009
        %3157 = vmatprep.subr.mxu0 %v3012
        %3158 = vmatpush1.msra.mxu0 %v3011
        %3159 = vmatprep.subr.mxu0 %v3014
        %3160 = vmatpush1.msra.mxu0 %v3013
        %3161 = vmatprep.subr.mxu0 %v3016
        %3162 = vmatpush1.msra.mxu0 %v3015
        %3163 = vmatprep.subr.mxu0 %v3018
        %3164 = vmatpush1.msra.mxu0 %v3017
        %3165 = vmatprep.subr.mxu0 %v3020
        %3166 = vmatpush1.msra.mxu0 %v3019
        %3167 = vmatprep.subr.mxu0 %v3022
        %3168 = vmatpush1.msra.mxu0 %v3021
        %3169 = vmatprep.subr.mxu0 %v3024
        %3170 = vmatpush1.msra.mxu0 %v3023
        %3171 = vmatprep.subr.mxu0 %v3026
        %3172 = vmatpush1.msra.mxu0 %v3025
        %3173 = vmatprep.subr.mxu0 %v3028
        %3174 = vmatpush1.msra.mxu0 %v3027
        %3175 = vmatprep.subr.mxu0 %v3030
        %3176 = vmatpush1.msra.mxu0 %v3029
        %3177 = vmatprep.subr.mxu0 %v3032
        %3178 = vmatpush1.msra.mxu0 %v3031
        %3179 = vmatprep.subr.mxu0 %v3034
        %3180 = vmatpush1.msra.mxu0 %v3033
        %3181 = vmatprep.subr.mxu0 %v3036
        %3182 = vmatpush1.msra.mxu0 %v3035
        %3183 = vmatprep.subr.mxu0 %v3038
        %3184 = vmatpush1.msra.mxu0 %v3037
        %3185 = vmatprep.subr.mxu0 %v3040
        %3186 = vmatpush1.msra.mxu0 %v3039
        %3187 = vmatprep.subr.mxu0 %v3042
        %3188 = vmatpush1.msra.mxu0 %v3041
        %3189 = vmatprep.subr.mxu0 %v3044
        %3190 = vmatpush1.msra.mxu0 %v3043
        %3191 = vmatprep.subr.mxu0 %v3046
        %3192 = vmatpush1.msra.mxu0 %v3045
        %3193 = vmatprep.subr.mxu0 %v3048
        %3194 = vmatpush1.msra.mxu0 %v3047
        %3195 = vmatprep.subr.mxu0 %v3050
        %3196 = vmatpush1.msra.mxu0 %v3049
        %3197 = vmatprep.subr.mxu0 %v3052
        %3198 = vmatpush1.msra.mxu0 %v3051
        %3199 = vmatprep.subr.mxu0 %v3054
        %3200 = vmatpush1.msra.mxu0 %v3053
        %3201 = vmatprep.subr.mxu0 %v3056
        %3202 = vmatpush1.msra.mxu0 %v3055
        %3203 = vmatprep.subr.mxu0 %v3058
        %3204 = vmatpush1.msra.mxu0 %v3057
        %3205 = vmatprep.mubr.f32.mxu0 %v3116
        %3206 = vmatmul.mubr.f32.gmra.mrb[0].mxu0 %v3113
        %v3207 = vpop.f32.mrb[0].mxu0
        %v3208 = vadd.f32 0.0, %v3207
        %v3209 = vpop.f32.mrb[0].mxu0
        %v3210 = vadd.f32 0.0, %v3209
        %3211 = vmatprep.mubr.f32.mxu0 %v3126
        %3212 = vmatmul.mubr.f32.gmra.mrb[0].mxu0 %v3124
        %v3213 = vpop.f32.mrb[0].mxu0
        %v3214 = vadd.f32 0.0, %v3213
        %v3215 = vpop.f32.mrb[0].mxu0
        %v3216 = vadd.f32 0.0, %v3215
        %3217 = vdwg.mxu0
        %3218 = vmatprep.subr.mxu0 %v3060
        %3219 = vmatpush1.msra.mxu0 %v3059
        %3220 = vmatprep.subr.mxu0 %v3062
        %3221 = vmatpush1.msra.mxu0 %v3061
        %3222 = vmatprep.subr.mxu0 %v3064
        %3223 = vmatpush1.msra.mxu0 %v3063
        %3224 = vmatprep.subr.mxu0 %v3066
        %3225 = vmatpush1.msra.mxu0 %v3065
        %3226 = vmatprep.subr.mxu0 %v3068
        %3227 = vmatpush1.msra.mxu0 %v3067
        %3228 = vmatprep.subr.mxu0 %v3070
        %3229 = vmatpush1.msra.mxu0 %v3069
        %3230 = vmatprep.subr.mxu0 %v3072
        %3231 = vmatpush1.msra.mxu0 %v3071
        %3232 = vmatprep.subr.mxu0 %v3074
        %3233 = vmatpush1.msra.mxu0 %v3073
        %3234 = vmatprep.subr.mxu0 %v3076
        %3235 = vmatpush1.msra.mxu0 %v3075
        %3236 = vmatprep.subr.mxu0 %v3078
        %3237 = vmatpush1.msra.mxu0 %v3077
        %3238 = vmatprep.subr.mxu0 %v3080
        %3239 = vmatpush1.msra.mxu0 %v3079
        %3240 = vmatprep.subr.mxu0 %v3082
        %3241 = vmatpush1.msra.mxu0 %v3081
        %3242 = vmatprep.subr.mxu0 %v3084
        %3243 = vmatpush1.msra.mxu0 %v3083
        %3244 = vmatprep.subr.mxu0 %v3086
        %3245 = vmatpush1.msra.mxu0 %v3085
        %3246 = vmatprep.subr.mxu0 %v3088
        %3247 = vmatpush1.msra.mxu0 %v3087
        %3248 = vmatprep.subr.mxu0 %v3090
        %3249 = vmatpush1.msra.mxu0 %v3089
        %3250 = vmatprep.subr.mxu0 %v3092
        %3251 = vmatpush1.msra.mxu0 %v3091
        %3252 = vmatprep.subr.mxu0 %v3094
        %3253 = vmatpush1.msra.mxu0 %v3093
        %3254 = vmatprep.subr.mxu0 %v3096
        %3255 = vmatpush1.msra.mxu0 %v3095
        %3256 = vmatprep.subr.mxu0 %v3098
        %3257 = vmatpush1.msra.mxu0 %v3097
        %3258 = vmatprep.subr.mxu0 %v3100
        %3259 = vmatpush1.msra.mxu0 %v3099
        %3260 = vmatprep.subr.mxu0 %v3102
        %3261 = vmatpush1.msra.mxu0 %v3101
        %3262 = vmatprep.subr.mxu0 0.0
        %3263 = vmatpush1.msra.mxu0 0.0
        %3264 = vmatprep.subr.mxu0 0.0
        %3265 = vmatpush1.msra.mxu0 0.0
        %3266 = vmatprep.subr.mxu0 0.0
        %3267 = vmatpush1.msra.mxu0 0.0
        %3268 = vmatprep.subr.mxu0 0.0
        %3269 = vmatpush1.msra.mxu0 0.0
        %3270 = vmatprep.subr.mxu0 0.0
        %3271 = vmatpush1.msra.mxu0 0.0
        %3272 = vmatprep.subr.mxu0 0.0
        %3273 = vmatpush1.msra.mxu0 0.0
        %3274 = vmatprep.subr.mxu0 0.0
        %3275 = vmatpush1.msra.mxu0 0.0
        %3276 = vmatprep.subr.mxu0 0.0
        %3277 = vmatpush1.msra.mxu0 0.0
        %3278 = vmatprep.subr.mxu0 0.0
        %3279 = vmatpush1.msra.mxu0 0.0
        %3280 = vmatprep.subr.mxu0 0.0
        %3281 = vmatpush1.msra.mxu0 0.0
        %3282 = vmatprep.mubr.f32.mxu0 %v3137
        %3283 = vmatmul.mubr.f32.gmra.mrb[0].mxu0 %v3119
        %v3284 = vpop.f32.mrb[0].mxu0
        %v3285 = vadd.f32 %v3208, %v3284
        %v3286 = vpop.f32.mrb[0].mxu0
        %v3287 = vadd.f32 %v3210, %v3286
        %3288 = vmatprep.mubr.f32.mxu0 %v3139
        %3289 = vmatmul.mubr.f32.gmra.mrb[0].mxu0 %v3128
        %v3290 = vpop.f32.mrb[0].mxu0
        %v3291 = vadd.f32 %v3214, %v3290
        %v3292 = vpop.f32.mrb[0].mxu0
        %v3293 = vadd.f32 %v3216, %v3292
        %3294 = vdwg.mxu0
        %v3295 = vadd.f32 %v2976, %v3285
        %v3296 = vadd.f32 %v2978, %v3287
        %v3297 = vadd.f32 %v2982, %v3291
        %v3298 = vadd.f32 %v2984, %v3293
        %v3299 = vld [vmem:[#allocation2 + $0x40] sm:$0xff]
        %v3300 = vld [vmem:[#allocation2 + $0x48] sm:$0xff]
        %v3301 = vld [vmem:[#allocation2 + $0x50] sm:$0xff]
        %v3302 = vld [vmem:[#allocation2 + $0x58] sm:$0xff]
        %s3303 = scalar_lea.vmem [#allocation3], 8640
        %v3304 = vld [vmem:[%s3303] sm:$0xff]
        %v3305 = vld [vmem:[%s3303 + $0x8] sm:$0xff]
        %v3306 = vld [vmem:[%s3303 + $0x10] sm:$0xff]
        %v3307 = vld [vmem:[%s3303 + $0x18] sm:$0xff]
        %v3308 = vld [vmem:[%s3303 + $0x20] sm:$0xff]
        %v3309 = vld [vmem:[%s3303 + $0x28] sm:$0xff]
        %v3310 = vld [vmem:[%s3303 + $0x30] sm:$0xff]
        %v3311 = vld [vmem:[%s3303 + $0x38] sm:$0xff]
        %v3312 = vld [vmem:[%s3303 + $0x40] sm:$0xff]
        %v3313 = vld [vmem:[%s3303 + $0x48] sm:$0xff]
        %v3314 = vld [vmem:[%s3303 + $0x50] sm:$0xff]
        %v3315 = vld [vmem:[%s3303 + $0x58] sm:$0xff]
        %v3316 = vld [vmem:[%s3303 + $0x60] sm:$0xff]
        %v3317 = vld [vmem:[%s3303 + $0x68] sm:$0xff]
        %v3318 = vld [vmem:[%s3303 + $0x70] sm:$0xff]
        %v3319 = vld [vmem:[%s3303 + $0x78] sm:$0xff]
        %v3320 = vld [vmem:[%s3303 + $0x80] sm:$0xff]
        %v3321 = vld [vmem:[%s3303 + $0x88] sm:$0xff]
        %v3322 = vld [vmem:[%s3303 + $0x90] sm:$0xff]
        %v3323 = vld [vmem:[%s3303 + $0x98] sm:$0xff]
        %v3324 = vld [vmem:[%s3303 + $0xa0] sm:$0xff]
        %v3325 = vld [vmem:[%s3303 + $0xa8] sm:$0xff]
        %v3326 = vld [vmem:[%s3303 + $0xb0] sm:$0xff]
        %v3327 = vld [vmem:[%s3303 + $0xb8] sm:$0xff]
        %v3328 = vld [vmem:[%s3303 + $0xc0] sm:$0xff]
        %v3329 = vld [vmem:[%s3303 + $0xc8] sm:$0xff]
        %v3330 = vld [vmem:[%s3303 + $0xd0] sm:$0xff]
        %v3331 = vld [vmem:[%s3303 + $0xd8] sm:$0xff]
        %v3332 = vld [vmem:[%s3303 + $0xe0] sm:$0xff]
        %v3333 = vld [vmem:[%s3303 + $0xe8] sm:$0xff]
        %v3334 = vld [vmem:[%s3303 + $0xf0] sm:$0xff]
        %v3335 = vld [vmem:[%s3303 + $0xf8] sm:$0xff]
        %v3336 = vld [vmem:[%s3303 + $0x100] sm:$0xff]
        %v3337 = vld [vmem:[%s3303 + $0x108] sm:$0xff]
        %v3338 = vld [vmem:[%s3303 + $0x110] sm:$0xff]
        %v3339 = vld [vmem:[%s3303 + $0x118] sm:$0xff]
        %v3340 = vld [vmem:[%s3303 + $0x120] sm:$0xff]
        %v3341 = vld [vmem:[%s3303 + $0x128] sm:$0xff]
        %v3342 = vld [vmem:[%s3303 + $0x130] sm:$0xff]
        %v3343 = vld [vmem:[%s3303 + $0x138] sm:$0xff]
        %v3344 = vld [vmem:[%s3303 + $0x140] sm:$0xff]
        %v3345 = vld [vmem:[%s3303 + $0x148] sm:$0xff]
        %v3346 = vld [vmem:[%s3303 + $0x150] sm:$0xff]
        %v3347 = vld [vmem:[%s3303 + $0x158] sm:$0xff]
        %v3348 = vld [vmem:[%s3303 + $0x160] sm:$0xff]
        %v3349 = vld [vmem:[%s3303 + $0x168] sm:$0xff]
        %v3350 = vld [vmem:[%s3303 + $0x170] sm:$0xff]
        %v3351 = vld [vmem:[%s3303 + $0x178] sm:$0xff]
        %v3352 = vld [vmem:[%s3303 + $0x180] sm:$0xff]
        %v3353 = vld [vmem:[%s3303 + $0x188] sm:$0xff]
        %v3354 = vld [vmem:[%s3303 + $0x190] sm:$0xff]
        %v3355 = vld [vmem:[%s3303 + $0x198] sm:$0xff]
        %v3356 = vld [vmem:[%s3303 + $0x1a0] sm:$0xff]
        %v3357 = vld [vmem:[%s3303 + $0x1a8] sm:$0xff]
        %v3358 = vld [vmem:[%s3303 + $0x1b0] sm:$0xff]
        %v3359 = vld [vmem:[%s3303 + $0x1b8] sm:$0xff]
        %v3360 = vld [vmem:[%s3303 + $0x1c0] sm:$0xff]
        %v3361 = vld [vmem:[%s3303 + $0x1c8] sm:$0xff]
        %v3362 = vld [vmem:[%s3303 + $0x1d0] sm:$0xff]
        %v3363 = vld [vmem:[%s3303 + $0x1d8] sm:$0xff]
        %v3364 = vld [vmem:[%s3303 + $0x1e0] sm:$0xff]
        %v3365 = vld [vmem:[%s3303 + $0x1e8] sm:$0xff]
        %v3366 = vld [vmem:[%s3303 + $0x1f0] sm:$0xff]
        %v3367 = vld [vmem:[%s3303 + $0x1f8] sm:$0xff]
        %v3368 = vld [vmem:[%s3303 + $0x200] sm:$0xff]
        %v3369 = vld [vmem:[%s3303 + $0x208] sm:$0xff]
        %v3370 = vld [vmem:[%s3303 + $0x210] sm:$0xff]
        %v3371 = vld [vmem:[%s3303 + $0x218] sm:$0xff]
        %v3372 = vld [vmem:[%s3303 + $0x220] sm:$0xff]
        %v3373 = vld [vmem:[%s3303 + $0x228] sm:$0xff]
        %v3374 = vld [vmem:[%s3303 + $0x230] sm:$0xff]
        %v3375 = vld [vmem:[%s3303 + $0x238] sm:$0xff]
        %v3376 = vld [vmem:[%s3303 + $0x240] sm:$0xff]
        %v3377 = vld [vmem:[%s3303 + $0x248] sm:$0xff]
        %v3378 = vld [vmem:[%s3303 + $0x250] sm:$0xff]
        %v3379 = vld [vmem:[%s3303 + $0x258] sm:$0xff]
        %v3380 = vld [vmem:[%s3303 + $0x260] sm:$0xff]
        %v3381 = vld [vmem:[%s3303 + $0x268] sm:$0xff]
        %v3382 = vld [vmem:[%s3303 + $0x270] sm:$0xff]
        %v3383 = vld [vmem:[%s3303 + $0x278] sm:$0xff]
        %v3384 = vld [vmem:[%s3303 + $0x280] sm:$0xff]
        %v3385 = vld [vmem:[%s3303 + $0x288] sm:$0xff]
        %v3386 = vld [vmem:[%s3303 + $0x290] sm:$0xff]
        %v3387 = vld [vmem:[%s3303 + $0x298] sm:$0xff]
        %v3388 = vld [vmem:[%s3303 + $0x2a0] sm:$0xff]
        %v3389 = vld [vmem:[%s3303 + $0x2a8] sm:$0xff]
        %v3390 = vld [vmem:[%s3303 + $0x2b0] sm:$0xff]
        %v3391 = vld [vmem:[%s3303 + $0x2b8] sm:$0xff]
        %v3392 = vld [vmem:[%s3303 + $0x2c0] sm:$0xff]
        %v3393 = vld [vmem:[%s3303 + $0x2c8] sm:$0xff]
        %v3394 = vld [vmem:[%s3303 + $0x2d0] sm:$0xff]
        %v3395 = vld [vmem:[%s3303 + $0x2d8] sm:$0xff]
        %v3396 = vld [vmem:[%s3303 + $0x2e0] sm:$0xff]
        %v3397 = vld [vmem:[%s3303 + $0x2e8] sm:$0xff]
        %v3398 = vld [vmem:[%s3303 + $0x2f0] sm:$0xff]
        %v3399 = vld [vmem:[%s3303 + $0x2f8] sm:$0xff]
        %v3400 = vld [vmem:[%s3303 + $0x300] sm:$0xff]
        %v3401 = vld [vmem:[%s3303 + $0x308] sm:$0xff]
        %v3402 = vld [vmem:[%s3303 + $0x310] sm:$0xff]
        %v3403 = vld [vmem:[%s3303 + $0x318] sm:$0xff]
        %v3404 = vld [vmem:[%s3303 + $0x320] sm:$0xff]
        %v3405 = vld [vmem:[%s3303 + $0x328] sm:$0xff]
        %v3406 = vld [vmem:[%s3303 + $0x330] sm:$0xff]
        %v3407 = vld [vmem:[%s3303 + $0x338] sm:$0xff]
        %v3408 = vld [vmem:[%s3303 + $0x340] sm:$0xff]
        %v3409 = vld [vmem:[%s3303 + $0x348] sm:$0xff]
        %v3410 = vld [vmem:[%s3303 + $0x350] sm:$0xff]
        %v3411 = vld [vmem:[%s3303 + $0x358] sm:$0xff]
        %v3412 = vsel %vm162, %v2367, 0
        %v3415 = vsel %vm162, %v3302, 0
        %3417 = vmatprep.subr.mxu0 %v3305
        %3418 = vmatpush1.msra.mxu0 %v3304
        %3419 = vmatprep.subr.mxu0 %v3307
        %3420 = vmatpush1.msra.mxu0 %v3306
        %3421 = vmatprep.subr.mxu0 %v3309
        %3422 = vmatpush1.msra.mxu0 %v3308
        %3423 = vmatprep.subr.mxu0 %v3311
        %3424 = vmatpush1.msra.mxu0 %v3310
        %3425 = vmatprep.subr.mxu0 %v3313
        %3426 = vmatpush1.msra.mxu0 %v3312
        %3427 = vmatprep.subr.mxu0 %v3315
        %3428 = vmatpush1.msra.mxu0 %v3314
        %3429 = vmatprep.subr.mxu0 %v3317
        %3430 = vmatpush1.msra.mxu0 %v3316
        %3431 = vmatprep.subr.mxu0 %v3319
        %3432 = vmatpush1.msra.mxu0 %v3318
        %3433 = vmatprep.subr.mxu0 %v3321
        %3434 = vmatpush1.msra.mxu0 %v3320
        %3435 = vmatprep.subr.mxu0 %v3323
        %3436 = vmatpush1.msra.mxu0 %v3322
        %3437 = vmatprep.subr.mxu0 %v3325
        %3438 = vmatpush1.msra.mxu0 %v3324
        %3439 = vmatprep.subr.mxu0 %v3327
        %3440 = vmatpush1.msra.mxu0 %v3326
        %3441 = vmatprep.subr.mxu0 %v3329
        %3442 = vmatpush1.msra.mxu0 %v3328
        %3443 = vmatprep.subr.mxu0 %v3331
        %3444 = vmatpush1.msra.mxu0 %v3330
        %3445 = vmatprep.subr.mxu0 %v3333
        %3446 = vmatpush1.msra.mxu0 %v3332
        %3447 = vmatprep.subr.mxu0 %v3335
        %3448 = vmatpush1.msra.mxu0 %v3334
        %3449 = vmatprep.subr.mxu0 %v3337
        %3450 = vmatpush1.msra.mxu0 %v3336
        %3451 = vmatprep.subr.mxu0 %v3339
        %3452 = vmatpush1.msra.mxu0 %v3338
        %3453 = vmatprep.subr.mxu0 %v3341
        %3454 = vmatpush1.msra.mxu0 %v3340
        %3455 = vmatprep.subr.mxu0 %v3343
        %3456 = vmatpush1.msra.mxu0 %v3342
        %3457 = vmatprep.subr.mxu0 %v3345
        %3458 = vmatpush1.msra.mxu0 %v3344
        %3459 = vmatprep.subr.mxu0 %v3347
        %3460 = vmatpush1.msra.mxu0 %v3346
        %3461 = vmatprep.subr.mxu0 %v3349
        %3462 = vmatpush1.msra.mxu0 %v3348
        %3463 = vmatprep.subr.mxu0 %v3351
        %3464 = vmatpush1.msra.mxu0 %v3350
        %3465 = vmatprep.subr.mxu0 %v3353
        %3466 = vmatpush1.msra.mxu0 %v3352
        %3467 = vmatprep.subr.mxu0 %v3355
        %3468 = vmatpush1.msra.mxu0 %v3354
        %3469 = vmatprep.subr.mxu0 %v3357
        %3470 = vmatpush1.msra.mxu0 %v3356
        %3471 = vmatprep.subr.mxu0 %v3359
        %3472 = vmatpush1.msra.mxu0 %v3358
        %3473 = vmatprep.subr.mxu0 %v3361
        %3474 = vmatpush1.msra.mxu0 %v3360
        %3475 = vmatprep.subr.mxu0 %v3363
        %3476 = vmatpush1.msra.mxu0 %v3362
        %3477 = vmatprep.subr.mxu0 %v3365
        %3478 = vmatpush1.msra.mxu0 %v3364
        %3479 = vmatprep.subr.mxu0 %v3367
        %3480 = vmatpush1.msra.mxu0 %v3366
        %3481 = vmatprep.mubr.f32.mxu0 %v2365
        %3482 = vmatmul.mubr.f32.gmra.mrb[0].mxu0 %v2364
        %v3483 = vpop.f32.mrb[0].mxu0
        %v3484 = vadd.f32 0.0, %v3483
        %v3485 = vpop.f32.mrb[0].mxu0
        %v3486 = vadd.f32 0.0, %v3485
        %3487 = vmatprep.mubr.f32.mxu0 %v3300
        %3488 = vmatmul.mubr.f32.gmra.mrb[0].mxu0 %v3299
        %v3489 = vpop.f32.mrb[0].mxu0
        %v3490 = vadd.f32 0.0, %v3489
        %v3491 = vpop.f32.mrb[0].mxu0
        %v3492 = vadd.f32 0.0, %v3491
        %3493 = vdwg.mxu0
        %3494 = vmatprep.subr.mxu0 %v3369
        %3495 = vmatpush1.msra.mxu0 %v3368
        %3496 = vmatprep.subr.mxu0 %v3371
        %3497 = vmatpush1.msra.mxu0 %v3370
        %3498 = vmatprep.subr.mxu0 %v3373
        %3499 = vmatpush1.msra.mxu0 %v3372
        %3500 = vmatprep.subr.mxu0 %v3375
        %3501 = vmatpush1.msra.mxu0 %v3374
        %3502 = vmatprep.subr.mxu0 %v3377
        %3503 = vmatpush1.msra.mxu0 %v3376
        %3504 = vmatprep.subr.mxu0 %v3379
        %3505 = vmatpush1.msra.mxu0 %v3378
        %3506 = vmatprep.subr.mxu0 %v3381
        %3507 = vmatpush1.msra.mxu0 %v3380
        %3508 = vmatprep.subr.mxu0 %v3383
        %3509 = vmatpush1.msra.mxu0 %v3382
        %3510 = vmatprep.subr.mxu0 %v3385
        %3511 = vmatpush1.msra.mxu0 %v3384
        %3512 = vmatprep.subr.mxu0 %v3387
        %3513 = vmatpush1.msra.mxu0 %v3386
        %3514 = vmatprep.subr.mxu0 %v3389
        %3515 = vmatpush1.msra.mxu0 %v3388
        %3516 = vmatprep.subr.mxu0 %v3391
        %3517 = vmatpush1.msra.mxu0 %v3390
        %3518 = vmatprep.subr.mxu0 %v3393
        %3519 = vmatpush1.msra.mxu0 %v3392
        %3520 = vmatprep.subr.mxu0 %v3395
        %3521 = vmatpush1.msra.mxu0 %v3394
        %3522 = vmatprep.subr.mxu0 %v3397
        %3523 = vmatpush1.msra.mxu0 %v3396
        %3524 = vmatprep.subr.mxu0 %v3399
        %3525 = vmatpush1.msra.mxu0 %v3398
        %3526 = vmatprep.subr.mxu0 %v3401
        %3527 = vmatpush1.msra.mxu0 %v3400
        %3528 = vmatprep.subr.mxu0 %v3403
        %3529 = vmatpush1.msra.mxu0 %v3402
        %3530 = vmatprep.subr.mxu0 %v3405
        %3531 = vmatpush1.msra.mxu0 %v3404
        %3532 = vmatprep.subr.mxu0 %v3407
        %3533 = vmatpush1.msra.mxu0 %v3406
        %3534 = vmatprep.subr.mxu0 %v3409
        %3535 = vmatpush1.msra.mxu0 %v3408
        %3536 = vmatprep.subr.mxu0 %v3411
        %3537 = vmatpush1.msra.mxu0 %v3410
        %3538 = vmatprep.subr.mxu0 0.0
        %3539 = vmatpush1.msra.mxu0 0.0
        %3540 = vmatprep.subr.mxu0 0.0
        %3541 = vmatpush1.msra.mxu0 0.0
        %3542 = vmatprep.subr.mxu0 0.0
        %3543 = vmatpush1.msra.mxu0 0.0
        %3544 = vmatprep.subr.mxu0 0.0
        %3545 = vmatpush1.msra.mxu0 0.0
        %3546 = vmatprep.subr.mxu0 0.0
        %3547 = vmatpush1.msra.mxu0 0.0
        %3548 = vmatprep.subr.mxu0 0.0
        %3549 = vmatpush1.msra.mxu0 0.0
        %3550 = vmatprep.subr.mxu0 0.0
        %3551 = vmatpush1.msra.mxu0 0.0
        %3552 = vmatprep.subr.mxu0 0.0
        %3553 = vmatpush1.msra.mxu0 0.0
        %3554 = vmatprep.subr.mxu0 0.0
        %3555 = vmatpush1.msra.mxu0 0.0
        %3556 = vmatprep.subr.mxu0 0.0
        %3557 = vmatpush1.msra.mxu0 0.0
        %3558 = vmatprep.mubr.f32.mxu0 %v3412
        %3559 = vmatmul.mubr.f32.gmra.mrb[0].mxu0 %v2366
        %v3560 = vpop.f32.mrb[0].mxu0
        %v3561 = vadd.f32 %v3484, %v3560
        %v3562 = vpop.f32.mrb[0].mxu0
        %v3563 = vadd.f32 %v3486, %v3562
        %3564 = vmatprep.mubr.f32.mxu0 %v3415
        %3565 = vmatmul.mubr.f32.gmra.mrb[0].mxu0 %v3301
        %v3566 = vpop.f32.mrb[0].mxu0
        %v3567 = vadd.f32 %v3490, %v3566
        %v3568 = vpop.f32.mrb[0].mxu0
        %v3569 = vadd.f32 %v3492, %v3568
        %3570 = vdwg.mxu0
        %v3571 = vadd.f32 %v3295, %v3561
        %v3572 = vadd.f32 %v3296, %v3563
        %v3573 = vadd.f32 %v3297, %v3567
        %v3574 = vadd.f32 %v3298, %v3569
        %v3575 = vld [vmem:[#allocation2 + $0x20] sm:$0xfe]
        %v3576 = vld [vmem:[#allocation2 + $0x28] sm:$0xfe]
        %v3577 = vld [vmem:[#allocation2 + $0x30] sm:$0xfe]
        %v3578 = vld [vmem:[#allocation2 + $0x38] sm:$0xfe]
        %v3579 = vld [vmem:[#allocation2 + $0x40] sm:$0xff]
        %v3580 = vld [vmem:[#allocation2 + $0x48] sm:$0xff]
        %v3581 = vld [vmem:[#allocation2 + $0x50] sm:$0xff]
        %v3582 = vld [vmem:[#allocation2 + $0x58] sm:$0xff]
        %v3583 = vld [vmem:[#allocation2 + $0x60] sm:$0x1]
        %v3584 = vld [vmem:[#allocation2 + $0x68] sm:$0x1]
        %v3585 = vld [vmem:[#allocation2 + $0x70] sm:$0x1]
        %v3586 = vld [vmem:[#allocation2 + $0x78] sm:$0x1]
        %s3587 = scalar_lea.vmem [#allocation3], 9504
        %v3588 = vld [vmem:[%s3587] sm:$0xff]
        %v3589 = vld [vmem:[%s3587 + $0x8] sm:$0xff]
        %v3590 = vld [vmem:[%s3587 + $0x10] sm:$0xff]
        %v3591 = vld [vmem:[%s3587 + $0x18] sm:$0xff]
        %v3592 = vld [vmem:[%s3587 + $0x20] sm:$0xff]
        %v3593 = vld [vmem:[%s3587 + $0x28] sm:$0xff]
        %v3594 = vld [vmem:[%s3587 + $0x30] sm:$0xff]
        %v3595 = vld [vmem:[%s3587 + $0x38] sm:$0xff]
        %v3596 = vld [vmem:[%s3587 + $0x40] sm:$0xff]
        %v3597 = vld [vmem:[%s3587 + $0x48] sm:$0xff]
        %v3598 = vld [vmem:[%s3587 + $0x50] sm:$0xff]
        %v3599 = vld [vmem:[%s3587 + $0x58] sm:$0xff]
        %v3600 = vld [vmem:[%s3587 + $0x60] sm:$0xff]
        %v3601 = vld [vmem:[%s3587 + $0x68] sm:$0xff]
        %v3602 = vld [vmem:[%s3587 + $0x70] sm:$0xff]
        %v3603 = vld [vmem:[%s3587 + $0x78] sm:$0xff]
        %v3604 = vld [vmem:[%s3587 + $0x80] sm:$0xff]
        %v3605 = vld [vmem:[%s3587 + $0x88] sm:$0xff]
        %v3606 = vld [vmem:[%s3587 + $0x90] sm:$0xff]
        %v3607 = vld [vmem:[%s3587 + $0x98] sm:$0xff]
        %v3608 = vld [vmem:[%s3587 + $0xa0] sm:$0xff]
        %v3609 = vld [vmem:[%s3587 + $0xa8] sm:$0xff]
        %v3610 = vld [vmem:[%s3587 + $0xb0] sm:$0xff]
        %v3611 = vld [vmem:[%s3587 + $0xb8] sm:$0xff]
        %v3612 = vld [vmem:[%s3587 + $0xc0] sm:$0xff]
        %v3613 = vld [vmem:[%s3587 + $0xc8] sm:$0xff]
        %v3614 = vld [vmem:[%s3587 + $0xd0] sm:$0xff]
        %v3615 = vld [vmem:[%s3587 + $0xd8] sm:$0xff]
        %v3616 = vld [vmem:[%s3587 + $0xe0] sm:$0xff]
        %v3617 = vld [vmem:[%s3587 + $0xe8] sm:$0xff]
        %v3618 = vld [vmem:[%s3587 + $0xf0] sm:$0xff]
        %v3619 = vld [vmem:[%s3587 + $0xf8] sm:$0xff]
        %v3620 = vld [vmem:[%s3587 + $0x100] sm:$0xff]
        %v3621 = vld [vmem:[%s3587 + $0x108] sm:$0xff]
        %v3622 = vld [vmem:[%s3587 + $0x110] sm:$0xff]
        %v3623 = vld [vmem:[%s3587 + $0x118] sm:$0xff]
        %v3624 = vld [vmem:[%s3587 + $0x120] sm:$0xff]
        %v3625 = vld [vmem:[%s3587 + $0x128] sm:$0xff]
        %v3626 = vld [vmem:[%s3587 + $0x130] sm:$0xff]
        %v3627 = vld [vmem:[%s3587 + $0x138] sm:$0xff]
        %v3628 = vld [vmem:[%s3587 + $0x140] sm:$0xff]
        %v3629 = vld [vmem:[%s3587 + $0x148] sm:$0xff]
        %v3630 = vld [vmem:[%s3587 + $0x150] sm:$0xff]
        %v3631 = vld [vmem:[%s3587 + $0x158] sm:$0xff]
        %v3632 = vld [vmem:[%s3587 + $0x160] sm:$0xff]
        %v3633 = vld [vmem:[%s3587 + $0x168] sm:$0xff]
        %v3634 = vld [vmem:[%s3587 + $0x170] sm:$0xff]
        %v3635 = vld [vmem:[%s3587 + $0x178] sm:$0xff]
        %v3636 = vld [vmem:[%s3587 + $0x180] sm:$0xff]
        %v3637 = vld [vmem:[%s3587 + $0x188] sm:$0xff]
        %v3638 = vld [vmem:[%s3587 + $0x190] sm:$0xff]
        %v3639 = vld [vmem:[%s3587 + $0x198] sm:$0xff]
        %v3640 = vld [vmem:[%s3587 + $0x1a0] sm:$0xff]
        %v3641 = vld [vmem:[%s3587 + $0x1a8] sm:$0xff]
        %v3642 = vld [vmem:[%s3587 + $0x1b0] sm:$0xff]
        %v3643 = vld [vmem:[%s3587 + $0x1b8] sm:$0xff]
        %v3644 = vld [vmem:[%s3587 + $0x1c0] sm:$0xff]
        %v3645 = vld [vmem:[%s3587 + $0x1c8] sm:$0xff]
        %v3646 = vld [vmem:[%s3587 + $0x1d0] sm:$0xff]
        %v3647 = vld [vmem:[%s3587 + $0x1d8] sm:$0xff]
        %v3648 = vld [vmem:[%s3587 + $0x1e0] sm:$0xff]
        %v3649 = vld [vmem:[%s3587 + $0x1e8] sm:$0xff]
        %v3650 = vld [vmem:[%s3587 + $0x1f0] sm:$0xff]
        %v3651 = vld [vmem:[%s3587 + $0x1f8] sm:$0xff]
        %v3652 = vld [vmem:[%s3587 + $0x200] sm:$0xff]
        %v3653 = vld [vmem:[%s3587 + $0x208] sm:$0xff]
        %v3654 = vld [vmem:[%s3587 + $0x210] sm:$0xff]
        %v3655 = vld [vmem:[%s3587 + $0x218] sm:$0xff]
        %v3656 = vld [vmem:[%s3587 + $0x220] sm:$0xff]
        %v3657 = vld [vmem:[%s3587 + $0x228] sm:$0xff]
        %v3658 = vld [vmem:[%s3587 + $0x230] sm:$0xff]
        %v3659 = vld [vmem:[%s3587 + $0x238] sm:$0xff]
        %v3660 = vld [vmem:[%s3587 + $0x240] sm:$0xff]
        %v3661 = vld [vmem:[%s3587 + $0x248] sm:$0xff]
        %v3662 = vld [vmem:[%s3587 + $0x250] sm:$0xff]
        %v3663 = vld [vmem:[%s3587 + $0x258] sm:$0xff]
        %v3664 = vld [vmem:[%s3587 + $0x260] sm:$0xff]
        %v3665 = vld [vmem:[%s3587 + $0x268] sm:$0xff]
        %v3666 = vld [vmem:[%s3587 + $0x270] sm:$0xff]
        %v3667 = vld [vmem:[%s3587 + $0x278] sm:$0xff]
        %v3668 = vld [vmem:[%s3587 + $0x280] sm:$0xff]
        %v3669 = vld [vmem:[%s3587 + $0x288] sm:$0xff]
        %v3670 = vld [vmem:[%s3587 + $0x290] sm:$0xff]
        %v3671 = vld [vmem:[%s3587 + $0x298] sm:$0xff]
        %v3672 = vld [vmem:[%s3587 + $0x2a0] sm:$0xff]
        %v3673 = vld [vmem:[%s3587 + $0x2a8] sm:$0xff]
        %v3674 = vld [vmem:[%s3587 + $0x2b0] sm:$0xff]
        %v3675 = vld [vmem:[%s3587 + $0x2b8] sm:$0xff]
        %v3676 = vld [vmem:[%s3587 + $0x2c0] sm:$0xff]
        %v3677 = vld [vmem:[%s3587 + $0x2c8] sm:$0xff]
        %v3678 = vld [vmem:[%s3587 + $0x2d0] sm:$0xff]
        %v3679 = vld [vmem:[%s3587 + $0x2d8] sm:$0xff]
        %v3680 = vld [vmem:[%s3587 + $0x2e0] sm:$0xff]
        %v3681 = vld [vmem:[%s3587 + $0x2e8] sm:$0xff]
        %v3682 = vld [vmem:[%s3587 + $0x2f0] sm:$0xff]
        %v3683 = vld [vmem:[%s3587 + $0x2f8] sm:$0xff]
        %v3684 = vld [vmem:[%s3587 + $0x300] sm:$0xff]
        %v3685 = vld [vmem:[%s3587 + $0x308] sm:$0xff]
        %v3686 = vld [vmem:[%s3587 + $0x310] sm:$0xff]
        %v3687 = vld [vmem:[%s3587 + $0x318] sm:$0xff]
        %v3688 = vld [vmem:[%s3587 + $0x320] sm:$0xff]
        %v3689 = vld [vmem:[%s3587 + $0x328] sm:$0xff]
        %v3690 = vld [vmem:[%s3587 + $0x330] sm:$0xff]
        %v3691 = vld [vmem:[%s3587 + $0x338] sm:$0xff]
        %v3692 = vld [vmem:[%s3587 + $0x340] sm:$0xff]
        %v3693 = vld [vmem:[%s3587 + $0x348] sm:$0xff]
        %v3694 = vld [vmem:[%s3587 + $0x350] sm:$0xff]
        %v3695 = vld [vmem:[%s3587 + $0x358] sm:$0xff]
        %v3708 = vrot.slane %v3575, 1
        %v3709 = vrot.slane %v3579, 1
        %v3710 = vsel %vm1535, %v3708, %v3709
        %v3711 = vrot.slane %v3576, 1
        %v3712 = vrot.slane %v3580, 1
        %v3713 = vsel %vm1535, %v3711, %v3712
        %v3714 = vrot.slane %v3577, 1
        %v3715 = vrot.slane %v3581, 1
        %v3716 = vsel %vm1535, %v3714, %v3715
        %v3717 = vrot.slane %v3578, 1
        %v3718 = vrot.slane %v3582, 1
        %v3719 = vsel %vm1535, %v3717, %v3718
        %v3720 = vrot.slane %v3583, 1
        %v3721 = vsel %vm1535, %v3709, %v3720
        %v3722 = vrot.slane %v3584, 1
        %v3723 = vsel %vm1535, %v3712, %v3722
        %v3724 = vrot.slane %v3585, 1
        %v3725 = vsel %vm1535, %v3715, %v3724
        %v3726 = vrot.slane %v3586, 1
        %v3727 = vsel %vm1535, %v3718, %v3726
        %v3734 = vsel %vm162, %v3719, 0
        %v3736 = vsel %vm162, %v3727, 0
        %3738 = vmatprep.subr.mxu0 %v3589
        %3739 = vmatpush1.msra.mxu0 %v3588
        %3740 = vmatprep.subr.mxu0 %v3591
        %3741 = vmatpush1.msra.mxu0 %v3590
        %3742 = vmatprep.subr.mxu0 %v3593
        %3743 = vmatpush1.msra.mxu0 %v3592
        %3744 = vmatprep.subr.mxu0 %v3595
        %3745 = vmatpush1.msra.mxu0 %v3594
        %3746 = vmatprep.subr.mxu0 %v3597
        %3747 = vmatpush1.msra.mxu0 %v3596
        %3748 = vmatprep.subr.mxu0 %v3599
        %3749 = vmatpush1.msra.mxu0 %v3598
        %3750 = vmatprep.subr.mxu0 %v3601
        %3751 = vmatpush1.msra.mxu0 %v3600
        %3752 = vmatprep.subr.mxu0 %v3603
        %3753 = vmatpush1.msra.mxu0 %v3602
        %3754 = vmatprep.subr.mxu0 %v3605
        %3755 = vmatpush1.msra.mxu0 %v3604
        %3756 = vmatprep.subr.mxu0 %v3607
        %3757 = vmatpush1.msra.mxu0 %v3606
        %3758 = vmatprep.subr.mxu0 %v3609
        %3759 = vmatpush1.msra.mxu0 %v3608
        %3760 = vmatprep.subr.mxu0 %v3611
        %3761 = vmatpush1.msra.mxu0 %v3610
        %3762 = vmatprep.subr.mxu0 %v3613
        %3763 = vmatpush1.msra.mxu0 %v3612
        %3764 = vmatprep.subr.mxu0 %v3615
        %3765 = vmatpush1.msra.mxu0 %v3614
        %3766 = vmatprep.subr.mxu0 %v3617
        %3767 = vmatpush1.msra.mxu0 %v3616
        %3768 = vmatprep.subr.mxu0 %v3619
        %3769 = vmatpush1.msra.mxu0 %v3618
        %3770 = vmatprep.subr.mxu0 %v3621
        %3771 = vmatpush1.msra.mxu0 %v3620
        %3772 = vmatprep.subr.mxu0 %v3623
        %3773 = vmatpush1.msra.mxu0 %v3622
        %3774 = vmatprep.subr.mxu0 %v3625
        %3775 = vmatpush1.msra.mxu0 %v3624
        %3776 = vmatprep.subr.mxu0 %v3627
        %3777 = vmatpush1.msra.mxu0 %v3626
        %3778 = vmatprep.subr.mxu0 %v3629
        %3779 = vmatpush1.msra.mxu0 %v3628
        %3780 = vmatprep.subr.mxu0 %v3631
        %3781 = vmatpush1.msra.mxu0 %v3630
        %3782 = vmatprep.subr.mxu0 %v3633
        %3783 = vmatpush1.msra.mxu0 %v3632
        %3784 = vmatprep.subr.mxu0 %v3635
        %3785 = vmatpush1.msra.mxu0 %v3634
        %3786 = vmatprep.subr.mxu0 %v3637
        %3787 = vmatpush1.msra.mxu0 %v3636
        %3788 = vmatprep.subr.mxu0 %v3639
        %3789 = vmatpush1.msra.mxu0 %v3638
        %3790 = vmatprep.subr.mxu0 %v3641
        %3791 = vmatpush1.msra.mxu0 %v3640
        %3792 = vmatprep.subr.mxu0 %v3643
        %3793 = vmatpush1.msra.mxu0 %v3642
        %3794 = vmatprep.subr.mxu0 %v3645
        %3795 = vmatpush1.msra.mxu0 %v3644
        %3796 = vmatprep.subr.mxu0 %v3647
        %3797 = vmatpush1.msra.mxu0 %v3646
        %3798 = vmatprep.subr.mxu0 %v3649
        %3799 = vmatpush1.msra.mxu0 %v3648
        %3800 = vmatprep.subr.mxu0 %v3651
        %3801 = vmatpush1.msra.mxu0 %v3650
        %3802 = vmatprep.mubr.f32.mxu0 %v3713
        %3803 = vmatmul.mubr.f32.gmra.mrb[0].mxu0 %v3710
        %v3804 = vpop.f32.mrb[0].mxu0
        %v3805 = vadd.f32 0.0, %v3804
        %v3806 = vpop.f32.mrb[0].mxu0
        %v3807 = vadd.f32 0.0, %v3806
        %3808 = vmatprep.mubr.f32.mxu0 %v3723
        %3809 = vmatmul.mubr.f32.gmra.mrb[0].mxu0 %v3721
        %v3810 = vpop.f32.mrb[0].mxu0
        %v3811 = vadd.f32 0.0, %v3810
        %v3812 = vpop.f32.mrb[0].mxu0
        %v3813 = vadd.f32 0.0, %v3812
        %3814 = vdwg.mxu0
        %3815 = vmatprep.subr.mxu0 %v3653
        %3816 = vmatpush1.msra.mxu0 %v3652
        %3817 = vmatprep.subr.mxu0 %v3655
        %3818 = vmatpush1.msra.mxu0 %v3654
        %3819 = vmatprep.subr.mxu0 %v3657
        %3820 = vmatpush1.msra.mxu0 %v3656
        %3821 = vmatprep.subr.mxu0 %v3659
        %3822 = vmatpush1.msra.mxu0 %v3658
        %3823 = vmatprep.subr.mxu0 %v3661
        %3824 = vmatpush1.msra.mxu0 %v3660
        %3825 = vmatprep.subr.mxu0 %v3663
        %3826 = vmatpush1.msra.mxu0 %v3662
        %3827 = vmatprep.subr.mxu0 %v3665
        %3828 = vmatpush1.msra.mxu0 %v3664
        %3829 = vmatprep.subr.mxu0 %v3667
        %3830 = vmatpush1.msra.mxu0 %v3666
        %3831 = vmatprep.subr.mxu0 %v3669
        %3832 = vmatpush1.msra.mxu0 %v3668
        %3833 = vmatprep.subr.mxu0 %v3671
        %3834 = vmatpush1.msra.mxu0 %v3670
        %3835 = vmatprep.subr.mxu0 %v3673
        %3836 = vmatpush1.msra.mxu0 %v3672
        %3837 = vmatprep.subr.mxu0 %v3675
        %3838 = vmatpush1.msra.mxu0 %v3674
        %3839 = vmatprep.subr.mxu0 %v3677
        %3840 = vmatpush1.msra.mxu0 %v3676
        %3841 = vmatprep.subr.mxu0 %v3679
        %3842 = vmatpush1.msra.mxu0 %v3678
        %3843 = vmatprep.subr.mxu0 %v3681
        %3844 = vmatpush1.msra.mxu0 %v3680
        %3845 = vmatprep.subr.mxu0 %v3683
        %3846 = vmatpush1.msra.mxu0 %v3682
        %3847 = vmatprep.subr.mxu0 %v3685
        %3848 = vmatpush1.msra.mxu0 %v3684
        %3849 = vmatprep.subr.mxu0 %v3687
        %3850 = vmatpush1.msra.mxu0 %v3686
        %3851 = vmatprep.subr.mxu0 %v3689
        %3852 = vmatpush1.msra.mxu0 %v3688
        %3853 = vmatprep.subr.mxu0 %v3691
        %3854 = vmatpush1.msra.mxu0 %v3690
        %3855 = vmatprep.subr.mxu0 %v3693
        %3856 = vmatpush1.msra.mxu0 %v3692
        %3857 = vmatprep.subr.mxu0 %v3695
        %3858 = vmatpush1.msra.mxu0 %v3694
        %3859 = vmatprep.subr.mxu0 0.0
        %3860 = vmatpush1.msra.mxu0 0.0
        %3861 = vmatprep.subr.mxu0 0.0
        %3862 = vmatpush1.msra.mxu0 0.0
        %3863 = vmatprep.subr.mxu0 0.0
        %3864 = vmatpush1.msra.mxu0 0.0
        %3865 = vmatprep.subr.mxu0 0.0
        %3866 = vmatpush1.msra.mxu0 0.0
        %3867 = vmatprep.subr.mxu0 0.0
        %3868 = vmatpush1.msra.mxu0 0.0
        %3869 = vmatprep.subr.mxu0 0.0
        %3870 = vmatpush1.msra.mxu0 0.0
        %3871 = vmatprep.subr.mxu0 0.0
        %3872 = vmatpush1.msra.mxu0 0.0
        %3873 = vmatprep.subr.mxu0 0.0
        %3874 = vmatpush1.msra.mxu0 0.0
        %3875 = vmatprep.subr.mxu0 0.0
        %3876 = vmatpush1.msra.mxu0 0.0
        %3877 = vmatprep.subr.mxu0 0.0
        %3878 = vmatpush1.msra.mxu0 0.0
        %3879 = vmatprep.mubr.f32.mxu0 %v3734
        %3880 = vmatmul.mubr.f32.gmra.mrb[0].mxu0 %v3716
        %v3881 = vpop.f32.mrb[0].mxu0
        %v3882 = vadd.f32 %v3805, %v3881
        %v3883 = vpop.f32.mrb[0].mxu0
        %v3884 = vadd.f32 %v3807, %v3883
        %3885 = vmatprep.mubr.f32.mxu0 %v3736
        %3886 = vmatmul.mubr.f32.gmra.mrb[0].mxu0 %v3725
        %v3887 = vpop.f32.mrb[0].mxu0
        %v3888 = vadd.f32 %v3811, %v3887
        %v3889 = vpop.f32.mrb[0].mxu0
        %v3890 = vadd.f32 %v3813, %v3889
        %3891 = vdwg.mxu0
        %v3892 = vadd.f32 %v3571, %v3882
        %v3893 = vadd.f32 %v3572, %v3884
        %v3894 = vadd.f32 %v3573, %v3888
        %v3895 = vadd.f32 %v3574, %v3890
        %v3896 = vld [vmem:[#allocation2 + $0x20] sm:$0xfc]
        %v3897 = vld [vmem:[#allocation2 + $0x28] sm:$0xfc]
        %v3898 = vld [vmem:[#allocation2 + $0x30] sm:$0xfc]
        %v3899 = vld [vmem:[#allocation2 + $0x38] sm:$0xfc]
        %v3900 = vld [vmem:[#allocation2 + $0x60] sm:$0x3]
        %v3901 = vld [vmem:[#allocation2 + $0x68] sm:$0x3]
        %v3902 = vld [vmem:[#allocation2 + $0x70] sm:$0x3]
        %v3903 = vld [vmem:[#allocation2 + $0x78] sm:$0x3]
        %s3904 = scalar_lea.vmem [#allocation3], 10368
        %v3905 = vld [vmem:[%s3904] sm:$0xff]
        %v3906 = vld [vmem:[%s3904 + $0x8] sm:$0xff]
        %v3907 = vld [vmem:[%s3904 + $0x10] sm:$0xff]
        %v3908 = vld [vmem:[%s3904 + $0x18] sm:$0xff]
        %v3909 = vld [vmem:[%s3904 + $0x20] sm:$0xff]
        %v3910 = vld [vmem:[%s3904 + $0x28] sm:$0xff]
        %v3911 = vld [vmem:[%s3904 + $0x30] sm:$0xff]
        %v3912 = vld [vmem:[%s3904 + $0x38] sm:$0xff]
        %v3913 = vld [vmem:[%s3904 + $0x40] sm:$0xff]
        %v3914 = vld [vmem:[%s3904 + $0x48] sm:$0xff]
        %v3915 = vld [vmem:[%s3904 + $0x50] sm:$0xff]
        %v3916 = vld [vmem:[%s3904 + $0x58] sm:$0xff]
        %v3917 = vld [vmem:[%s3904 + $0x60] sm:$0xff]
        %v3918 = vld [vmem:[%s3904 + $0x68] sm:$0xff]
        %v3919 = vld [vmem:[%s3904 + $0x70] sm:$0xff]
        %v3920 = vld [vmem:[%s3904 + $0x78] sm:$0xff]
        %v3921 = vld [vmem:[%s3904 + $0x80] sm:$0xff]
        %v3922 = vld [vmem:[%s3904 + $0x88] sm:$0xff]
        %v3923 = vld [vmem:[%s3904 + $0x90] sm:$0xff]
        %v3924 = vld [vmem:[%s3904 + $0x98] sm:$0xff]
        %v3925 = vld [vmem:[%s3904 + $0xa0] sm:$0xff]
        %v3926 = vld [vmem:[%s3904 + $0xa8] sm:$0xff]
        %v3927 = vld [vmem:[%s3904 + $0xb0] sm:$0xff]
        %v3928 = vld [vmem:[%s3904 + $0xb8] sm:$0xff]
        %v3929 = vld [vmem:[%s3904 + $0xc0] sm:$0xff]
        %v3930 = vld [vmem:[%s3904 + $0xc8] sm:$0xff]
        %v3931 = vld [vmem:[%s3904 + $0xd0] sm:$0xff]
        %v3932 = vld [vmem:[%s3904 + $0xd8] sm:$0xff]
        %v3933 = vld [vmem:[%s3904 + $0xe0] sm:$0xff]
        %v3934 = vld [vmem:[%s3904 + $0xe8] sm:$0xff]
        %v3935 = vld [vmem:[%s3904 + $0xf0] sm:$0xff]
        %v3936 = vld [vmem:[%s3904 + $0xf8] sm:$0xff]
        %v3937 = vld [vmem:[%s3904 + $0x100] sm:$0xff]
        %v3938 = vld [vmem:[%s3904 + $0x108] sm:$0xff]
        %v3939 = vld [vmem:[%s3904 + $0x110] sm:$0xff]
        %v3940 = vld [vmem:[%s3904 + $0x118] sm:$0xff]
        %v3941 = vld [vmem:[%s3904 + $0x120] sm:$0xff]
        %v3942 = vld [vmem:[%s3904 + $0x128] sm:$0xff]
        %v3943 = vld [vmem:[%s3904 + $0x130] sm:$0xff]
        %v3944 = vld [vmem:[%s3904 + $0x138] sm:$0xff]
        %v3945 = vld [vmem:[%s3904 + $0x140] sm:$0xff]
        %v3946 = vld [vmem:[%s3904 + $0x148] sm:$0xff]
        %v3947 = vld [vmem:[%s3904 + $0x150] sm:$0xff]
        %v3948 = vld [vmem:[%s3904 + $0x158] sm:$0xff]
        %v3949 = vld [vmem:[%s3904 + $0x160] sm:$0xff]
        %v3950 = vld [vmem:[%s3904 + $0x168] sm:$0xff]
        %v3951 = vld [vmem:[%s3904 + $0x170] sm:$0xff]
        %v3952 = vld [vmem:[%s3904 + $0x178] sm:$0xff]
        %v3953 = vld [vmem:[%s3904 + $0x180] sm:$0xff]
        %v3954 = vld [vmem:[%s3904 + $0x188] sm:$0xff]
        %v3955 = vld [vmem:[%s3904 + $0x190] sm:$0xff]
        %v3956 = vld [vmem:[%s3904 + $0x198] sm:$0xff]
        %v3957 = vld [vmem:[%s3904 + $0x1a0] sm:$0xff]
        %v3958 = vld [vmem:[%s3904 + $0x1a8] sm:$0xff]
        %v3959 = vld [vmem:[%s3904 + $0x1b0] sm:$0xff]
        %v3960 = vld [vmem:[%s3904 + $0x1b8] sm:$0xff]
        %v3961 = vld [vmem:[%s3904 + $0x1c0] sm:$0xff]
        %v3962 = vld [vmem:[%s3904 + $0x1c8] sm:$0xff]
        %v3963 = vld [vmem:[%s3904 + $0x1d0] sm:$0xff]
        %v3964 = vld [vmem:[%s3904 + $0x1d8] sm:$0xff]
        %v3965 = vld [vmem:[%s3904 + $0x1e0] sm:$0xff]
        %v3966 = vld [vmem:[%s3904 + $0x1e8] sm:$0xff]
        %v3967 = vld [vmem:[%s3904 + $0x1f0] sm:$0xff]
        %v3968 = vld [vmem:[%s3904 + $0x1f8] sm:$0xff]
        %v3969 = vld [vmem:[%s3904 + $0x200] sm:$0xff]
        %v3970 = vld [vmem:[%s3904 + $0x208] sm:$0xff]
        %v3971 = vld [vmem:[%s3904 + $0x210] sm:$0xff]
        %v3972 = vld [vmem:[%s3904 + $0x218] sm:$0xff]
        %v3973 = vld [vmem:[%s3904 + $0x220] sm:$0xff]
        %v3974 = vld [vmem:[%s3904 + $0x228] sm:$0xff]
        %v3975 = vld [vmem:[%s3904 + $0x230] sm:$0xff]
        %v3976 = vld [vmem:[%s3904 + $0x238] sm:$0xff]
        %v3977 = vld [vmem:[%s3904 + $0x240] sm:$0xff]
        %v3978 = vld [vmem:[%s3904 + $0x248] sm:$0xff]
        %v3979 = vld [vmem:[%s3904 + $0x250] sm:$0xff]
        %v3980 = vld [vmem:[%s3904 + $0x258] sm:$0xff]
        %v3981 = vld [vmem:[%s3904 + $0x260] sm:$0xff]
        %v3982 = vld [vmem:[%s3904 + $0x268] sm:$0xff]
        %v3983 = vld [vmem:[%s3904 + $0x270] sm:$0xff]
        %v3984 = vld [vmem:[%s3904 + $0x278] sm:$0xff]
        %v3985 = vld [vmem:[%s3904 + $0x280] sm:$0xff]
        %v3986 = vld [vmem:[%s3904 + $0x288] sm:$0xff]
        %v3987 = vld [vmem:[%s3904 + $0x290] sm:$0xff]
        %v3988 = vld [vmem:[%s3904 + $0x298] sm:$0xff]
        %v3989 = vld [vmem:[%s3904 + $0x2a0] sm:$0xff]
        %v3990 = vld [vmem:[%s3904 + $0x2a8] sm:$0xff]
        %v3991 = vld [vmem:[%s3904 + $0x2b0] sm:$0xff]
        %v3992 = vld [vmem:[%s3904 + $0x2b8] sm:$0xff]
        %v3993 = vld [vmem:[%s3904 + $0x2c0] sm:$0xff]
        %v3994 = vld [vmem:[%s3904 + $0x2c8] sm:$0xff]
        %v3995 = vld [vmem:[%s3904 + $0x2d0] sm:$0xff]
        %v3996 = vld [vmem:[%s3904 + $0x2d8] sm:$0xff]
        %v3997 = vld [vmem:[%s3904 + $0x2e0] sm:$0xff]
        %v3998 = vld [vmem:[%s3904 + $0x2e8] sm:$0xff]
        %v3999 = vld [vmem:[%s3904 + $0x2f0] sm:$0xff]
        %v4000 = vld [vmem:[%s3904 + $0x2f8] sm:$0xff]
        %v4001 = vld [vmem:[%s3904 + $0x300] sm:$0xff]
        %v4002 = vld [vmem:[%s3904 + $0x308] sm:$0xff]
        %v4003 = vld [vmem:[%s3904 + $0x310] sm:$0xff]
        %v4004 = vld [vmem:[%s3904 + $0x318] sm:$0xff]
        %v4005 = vld [vmem:[%s3904 + $0x320] sm:$0xff]
        %v4006 = vld [vmem:[%s3904 + $0x328] sm:$0xff]
        %v4007 = vld [vmem:[%s3904 + $0x330] sm:$0xff]
        %v4008 = vld [vmem:[%s3904 + $0x338] sm:$0xff]
        %v4009 = vld [vmem:[%s3904 + $0x340] sm:$0xff]
        %v4010 = vld [vmem:[%s3904 + $0x348] sm:$0xff]
        %v4011 = vld [vmem:[%s3904 + $0x350] sm:$0xff]
        %v4012 = vld [vmem:[%s3904 + $0x358] sm:$0xff]
        %v4021 = vrot.slane %v3896, 2
        %v4022 = vrot.slane %v3579, 2
        %v4023 = vsel %vm1849, %v4021, %v4022
        %v4024 = vrot.slane %v3897, 2
        %v4025 = vrot.slane %v3580, 2
        %v4026 = vsel %vm1849, %v4024, %v4025
        %v4027 = vrot.slane %v3898, 2
        %v4028 = vrot.slane %v3581, 2
        %v4029 = vsel %vm1849, %v4027, %v4028
        %v4030 = vrot.slane %v3899, 2
        %v4031 = vrot.slane %v3582, 2
        %v4032 = vsel %vm1849, %v4030, %v4031
        %v4033 = vrot.slane %v3900, 2
        %v4034 = vsel %vm1849, %v4022, %v4033
        %v4035 = vrot.slane %v3901, 2
        %v4036 = vsel %vm1849, %v4025, %v4035
        %v4037 = vrot.slane %v3902, 2
        %v4038 = vsel %vm1849, %v4028, %v4037
        %v4039 = vrot.slane %v3903, 2
        %v4040 = vsel %vm1849, %v4031, %v4039
        %v4047 = vsel %vm162, %v4032, 0
        %v4049 = vsel %vm162, %v4040, 0
        %4051 = vmatprep.subr.mxu0 %v3906
        %4052 = vmatpush1.msra.mxu0 %v3905
        %4053 = vmatprep.subr.mxu0 %v3908
        %4054 = vmatpush1.msra.mxu0 %v3907
        %4055 = vmatprep.subr.mxu0 %v3910
        %4056 = vmatpush1.msra.mxu0 %v3909
        %4057 = vmatprep.subr.mxu0 %v3912
        %4058 = vmatpush1.msra.mxu0 %v3911
        %4059 = vmatprep.subr.mxu0 %v3914
        %4060 = vmatpush1.msra.mxu0 %v3913
        %4061 = vmatprep.subr.mxu0 %v3916
        %4062 = vmatpush1.msra.mxu0 %v3915
        %4063 = vmatprep.subr.mxu0 %v3918
        %4064 = vmatpush1.msra.mxu0 %v3917
        %4065 = vmatprep.subr.mxu0 %v3920
        %4066 = vmatpush1.msra.mxu0 %v3919
        %4067 = vmatprep.subr.mxu0 %v3922
        %4068 = vmatpush1.msra.mxu0 %v3921
        %4069 = vmatprep.subr.mxu0 %v3924
        %4070 = vmatpush1.msra.mxu0 %v3923
        %4071 = vmatprep.subr.mxu0 %v3926
        %4072 = vmatpush1.msra.mxu0 %v3925
        %4073 = vmatprep.subr.mxu0 %v3928
        %4074 = vmatpush1.msra.mxu0 %v3927
        %4075 = vmatprep.subr.mxu0 %v3930
        %4076 = vmatpush1.msra.mxu0 %v3929
        %4077 = vmatprep.subr.mxu0 %v3932
        %4078 = vmatpush1.msra.mxu0 %v3931
        %4079 = vmatprep.subr.mxu0 %v3934
        %4080 = vmatpush1.msra.mxu0 %v3933
        %4081 = vmatprep.subr.mxu0 %v3936
        %4082 = vmatpush1.msra.mxu0 %v3935
        %4083 = vmatprep.subr.mxu0 %v3938
        %4084 = vmatpush1.msra.mxu0 %v3937
        %4085 = vmatprep.subr.mxu0 %v3940
        %4086 = vmatpush1.msra.mxu0 %v3939
        %4087 = vmatprep.subr.mxu0 %v3942
        %4088 = vmatpush1.msra.mxu0 %v3941
        %4089 = vmatprep.subr.mxu0 %v3944
        %4090 = vmatpush1.msra.mxu0 %v3943
        %4091 = vmatprep.subr.mxu0 %v3946
        %4092 = vmatpush1.msra.mxu0 %v3945
        %4093 = vmatprep.subr.mxu0 %v3948
        %4094 = vmatpush1.msra.mxu0 %v3947
        %4095 = vmatprep.subr.mxu0 %v3950
        %4096 = vmatpush1.msra.mxu0 %v3949
        %4097 = vmatprep.subr.mxu0 %v3952
        %4098 = vmatpush1.msra.mxu0 %v3951
        %4099 = vmatprep.subr.mxu0 %v3954
        %4100 = vmatpush1.msra.mxu0 %v3953
        %4101 = vmatprep.subr.mxu0 %v3956
        %4102 = vmatpush1.msra.mxu0 %v3955
        %4103 = vmatprep.subr.mxu0 %v3958
        %4104 = vmatpush1.msra.mxu0 %v3957
        %4105 = vmatprep.subr.mxu0 %v3960
        %4106 = vmatpush1.msra.mxu0 %v3959
        %4107 = vmatprep.subr.mxu0 %v3962
        %4108 = vmatpush1.msra.mxu0 %v3961
        %4109 = vmatprep.subr.mxu0 %v3964
        %4110 = vmatpush1.msra.mxu0 %v3963
        %4111 = vmatprep.subr.mxu0 %v3966
        %4112 = vmatpush1.msra.mxu0 %v3965
        %4113 = vmatprep.subr.mxu0 %v3968
        %4114 = vmatpush1.msra.mxu0 %v3967
        %4115 = vmatprep.mubr.f32.mxu0 %v4026
        %4116 = vmatmul.mubr.f32.gmra.mrb[0].mxu0 %v4023
        %v4117 = vpop.f32.mrb[0].mxu0
        %v4118 = vadd.f32 0.0, %v4117
        %v4119 = vpop.f32.mrb[0].mxu0
        %v4120 = vadd.f32 0.0, %v4119
        %4121 = vmatprep.mubr.f32.mxu0 %v4036
        %4122 = vmatmul.mubr.f32.gmra.mrb[0].mxu0 %v4034
        %v4123 = vpop.f32.mrb[0].mxu0
        %v4124 = vadd.f32 0.0, %v4123
        %v4125 = vpop.f32.mrb[0].mxu0
        %v4126 = vadd.f32 0.0, %v4125
        %4127 = vdwg.mxu0
        %4128 = vmatprep.subr.mxu0 %v3970
        %4129 = vmatpush1.msra.mxu0 %v3969
        %4130 = vmatprep.subr.mxu0 %v3972
        %4131 = vmatpush1.msra.mxu0 %v3971
        %4132 = vmatprep.subr.mxu0 %v3974
        %4133 = vmatpush1.msra.mxu0 %v3973
        %4134 = vmatprep.subr.mxu0 %v3976
        %4135 = vmatpush1.msra.mxu0 %v3975
        %4136 = vmatprep.subr.mxu0 %v3978
        %4137 = vmatpush1.msra.mxu0 %v3977
        %4138 = vmatprep.subr.mxu0 %v3980
        %4139 = vmatpush1.msra.mxu0 %v3979
        %4140 = vmatprep.subr.mxu0 %v3982
        %4141 = vmatpush1.msra.mxu0 %v3981
        %4142 = vmatprep.subr.mxu0 %v3984
        %4143 = vmatpush1.msra.mxu0 %v3983
        %4144 = vmatprep.subr.mxu0 %v3986
        %4145 = vmatpush1.msra.mxu0 %v3985
        %4146 = vmatprep.subr.mxu0 %v3988
        %4147 = vmatpush1.msra.mxu0 %v3987
        %4148 = vmatprep.subr.mxu0 %v3990
        %4149 = vmatpush1.msra.mxu0 %v3989
        %4150 = vmatprep.subr.mxu0 %v3992
        %4151 = vmatpush1.msra.mxu0 %v3991
        %4152 = vmatprep.subr.mxu0 %v3994
        %4153 = vmatpush1.msra.mxu0 %v3993
        %4154 = vmatprep.subr.mxu0 %v3996
        %4155 = vmatpush1.msra.mxu0 %v3995
        %4156 = vmatprep.subr.mxu0 %v3998
        %4157 = vmatpush1.msra.mxu0 %v3997
        %4158 = vmatprep.subr.mxu0 %v4000
        %4159 = vmatpush1.msra.mxu0 %v3999
        %4160 = vmatprep.subr.mxu0 %v4002
        %4161 = vmatpush1.msra.mxu0 %v4001
        %4162 = vmatprep.subr.mxu0 %v4004
        %4163 = vmatpush1.msra.mxu0 %v4003
        %4164 = vmatprep.subr.mxu0 %v4006
        %4165 = vmatpush1.msra.mxu0 %v4005
        %4166 = vmatprep.subr.mxu0 %v4008
        %4167 = vmatpush1.msra.mxu0 %v4007
        %4168 = vmatprep.subr.mxu0 %v4010
        %4169 = vmatpush1.msra.mxu0 %v4009
        %4170 = vmatprep.subr.mxu0 %v4012
        %4171 = vmatpush1.msra.mxu0 %v4011
        %4172 = vmatprep.subr.mxu0 0.0
        %4173 = vmatpush1.msra.mxu0 0.0
        %4174 = vmatprep.subr.mxu0 0.0
        %4175 = vmatpush1.msra.mxu0 0.0
        %4176 = vmatprep.subr.mxu0 0.0
        %4177 = vmatpush1.msra.mxu0 0.0
        %4178 = vmatprep.subr.mxu0 0.0
        %4179 = vmatpush1.msra.mxu0 0.0
        %4180 = vmatprep.subr.mxu0 0.0
        %4181 = vmatpush1.msra.mxu0 0.0
        %4182 = vmatprep.subr.mxu0 0.0
        %4183 = vmatpush1.msra.mxu0 0.0
        %4184 = vmatprep.subr.mxu0 0.0
        %4185 = vmatpush1.msra.mxu0 0.0
        %4186 = vmatprep.subr.mxu0 0.0
        %4187 = vmatpush1.msra.mxu0 0.0
        %4188 = vmatprep.subr.mxu0 0.0
        %4189 = vmatpush1.msra.mxu0 0.0
        %4190 = vmatprep.subr.mxu0 0.0
        %4191 = vmatpush1.msra.mxu0 0.0
        %4192 = vmatprep.mubr.f32.mxu0 %v4047
        %4193 = vmatmul.mubr.f32.gmra.mrb[0].mxu0 %v4029
        %v4194 = vpop.f32.mrb[0].mxu0
        %v4195 = vadd.f32 %v4118, %v4194
        %v4196 = vpop.f32.mrb[0].mxu0
        %v4197 = vadd.f32 %v4120, %v4196
        %4198 = vmatprep.mubr.f32.mxu0 %v4049
        %4199 = vmatmul.mubr.f32.gmra.mrb[0].mxu0 %v4038
        %v4200 = vpop.f32.mrb[0].mxu0
        %v4201 = vadd.f32 %v4124, %v4200
        %v4202 = vpop.f32.mrb[0].mxu0
        %v4203 = vadd.f32 %v4126, %v4202
        %4204 = vdwg.mxu0
        %v4205 = vadd.f32 %v3892, %v4195
        %v4206 = vadd.f32 %v3893, %v4197
        %v4207 = vadd.f32 %v3894, %v4201
        %v4208 = vadd.f32 %v3895, %v4203
        %v4209 = vld [vmem:[#allocation2 + $0x20] sm:$0xf8]
        %v4210 = vld [vmem:[#allocation2 + $0x28] sm:$0xf8]
        %v4211 = vld [vmem:[#allocation2 + $0x30] sm:$0xf8]
        %v4212 = vld [vmem:[#allocation2 + $0x38] sm:$0xf8]
        %v4213 = vld [vmem:[#allocation2 + $0x60] sm:$0x7]
        %v4214 = vld [vmem:[#allocation2 + $0x68] sm:$0x7]
        %v4215 = vld [vmem:[#allocation2 + $0x70] sm:$0x7]
        %v4216 = vld [vmem:[#allocation2 + $0x78] sm:$0x7]
        %s4217 = scalar_lea.vmem [#allocation3], 11232
        %v4218 = vld [vmem:[%s4217] sm:$0xff]
        %v4219 = vld [vmem:[%s4217 + $0x8] sm:$0xff]
        %v4220 = vld [vmem:[%s4217 + $0x10] sm:$0xff]
        %v4221 = vld [vmem:[%s4217 + $0x18] sm:$0xff]
        %v4222 = vld [vmem:[%s4217 + $0x20] sm:$0xff]
        %v4223 = vld [vmem:[%s4217 + $0x28] sm:$0xff]
        %v4224 = vld [vmem:[%s4217 + $0x30] sm:$0xff]
        %v4225 = vld [vmem:[%s4217 + $0x38] sm:$0xff]
        %v4226 = vld [vmem:[%s4217 + $0x40] sm:$0xff]
        %v4227 = vld [vmem:[%s4217 + $0x48] sm:$0xff]
        %v4228 = vld [vmem:[%s4217 + $0x50] sm:$0xff]
        %v4229 = vld [vmem:[%s4217 + $0x58] sm:$0xff]
        %v4230 = vld [vmem:[%s4217 + $0x60] sm:$0xff]
        %v4231 = vld [vmem:[%s4217 + $0x68] sm:$0xff]
        %v4232 = vld [vmem:[%s4217 + $0x70] sm:$0xff]
        %v4233 = vld [vmem:[%s4217 + $0x78] sm:$0xff]
        %v4234 = vld [vmem:[%s4217 + $0x80] sm:$0xff]
        %v4235 = vld [vmem:[%s4217 + $0x88] sm:$0xff]
        %v4236 = vld [vmem:[%s4217 + $0x90] sm:$0xff]
        %v4237 = vld [vmem:[%s4217 + $0x98] sm:$0xff]
        %v4238 = vld [vmem:[%s4217 + $0xa0] sm:$0xff]
        %v4239 = vld [vmem:[%s4217 + $0xa8] sm:$0xff]
        %v4240 = vld [vmem:[%s4217 + $0xb0] sm:$0xff]
        %v4241 = vld [vmem:[%s4217 + $0xb8] sm:$0xff]
        %v4242 = vld [vmem:[%s4217 + $0xc0] sm:$0xff]
        %v4243 = vld [vmem:[%s4217 + $0xc8] sm:$0xff]
        %v4244 = vld [vmem:[%s4217 + $0xd0] sm:$0xff]
        %v4245 = vld [vmem:[%s4217 + $0xd8] sm:$0xff]
        %v4246 = vld [vmem:[%s4217 + $0xe0] sm:$0xff]
        %v4247 = vld [vmem:[%s4217 + $0xe8] sm:$0xff]
        %v4248 = vld [vmem:[%s4217 + $0xf0] sm:$0xff]
        %v4249 = vld [vmem:[%s4217 + $0xf8] sm:$0xff]
        %v4250 = vld [vmem:[%s4217 + $0x100] sm:$0xff]
        %v4251 = vld [vmem:[%s4217 + $0x108] sm:$0xff]
        %v4252 = vld [vmem:[%s4217 + $0x110] sm:$0xff]
        %v4253 = vld [vmem:[%s4217 + $0x118] sm:$0xff]
        %v4254 = vld [vmem:[%s4217 + $0x120] sm:$0xff]
        %v4255 = vld [vmem:[%s4217 + $0x128] sm:$0xff]
        %v4256 = vld [vmem:[%s4217 + $0x130] sm:$0xff]
        %v4257 = vld [vmem:[%s4217 + $0x138] sm:$0xff]
        %v4258 = vld [vmem:[%s4217 + $0x140] sm:$0xff]
        %v4259 = vld [vmem:[%s4217 + $0x148] sm:$0xff]
        %v4260 = vld [vmem:[%s4217 + $0x150] sm:$0xff]
        %v4261 = vld [vmem:[%s4217 + $0x158] sm:$0xff]
        %v4262 = vld [vmem:[%s4217 + $0x160] sm:$0xff]
        %v4263 = vld [vmem:[%s4217 + $0x168] sm:$0xff]
        %v4264 = vld [vmem:[%s4217 + $0x170] sm:$0xff]
        %v4265 = vld [vmem:[%s4217 + $0x178] sm:$0xff]
        %v4266 = vld [vmem:[%s4217 + $0x180] sm:$0xff]
        %v4267 = vld [vmem:[%s4217 + $0x188] sm:$0xff]
        %v4268 = vld [vmem:[%s4217 + $0x190] sm:$0xff]
        %v4269 = vld [vmem:[%s4217 + $0x198] sm:$0xff]
        %v4270 = vld [vmem:[%s4217 + $0x1a0] sm:$0xff]
        %v4271 = vld [vmem:[%s4217 + $0x1a8] sm:$0xff]
        %v4272 = vld [vmem:[%s4217 + $0x1b0] sm:$0xff]
        %v4273 = vld [vmem:[%s4217 + $0x1b8] sm:$0xff]
        %v4274 = vld [vmem:[%s4217 + $0x1c0] sm:$0xff]
        %v4275 = vld [vmem:[%s4217 + $0x1c8] sm:$0xff]
        %v4276 = vld [vmem:[%s4217 + $0x1d0] sm:$0xff]
        %v4277 = vld [vmem:[%s4217 + $0x1d8] sm:$0xff]
        %v4278 = vld [vmem:[%s4217 + $0x1e0] sm:$0xff]
        %v4279 = vld [vmem:[%s4217 + $0x1e8] sm:$0xff]
        %v4280 = vld [vmem:[%s4217 + $0x1f0] sm:$0xff]
        %v4281 = vld [vmem:[%s4217 + $0x1f8] sm:$0xff]
        %v4282 = vld [vmem:[%s4217 + $0x200] sm:$0xff]
        %v4283 = vld [vmem:[%s4217 + $0x208] sm:$0xff]
        %v4284 = vld [vmem:[%s4217 + $0x210] sm:$0xff]
        %v4285 = vld [vmem:[%s4217 + $0x218] sm:$0xff]
        %v4286 = vld [vmem:[%s4217 + $0x220] sm:$0xff]
        %v4287 = vld [vmem:[%s4217 + $0x228] sm:$0xff]
        %v4288 = vld [vmem:[%s4217 + $0x230] sm:$0xff]
        %v4289 = vld [vmem:[%s4217 + $0x238] sm:$0xff]
        %v4290 = vld [vmem:[%s4217 + $0x240] sm:$0xff]
        %v4291 = vld [vmem:[%s4217 + $0x248] sm:$0xff]
        %v4292 = vld [vmem:[%s4217 + $0x250] sm:$0xff]
        %v4293 = vld [vmem:[%s4217 + $0x258] sm:$0xff]
        %v4294 = vld [vmem:[%s4217 + $0x260] sm:$0xff]
        %v4295 = vld [vmem:[%s4217 + $0x268] sm:$0xff]
        %v4296 = vld [vmem:[%s4217 + $0x270] sm:$0xff]
        %v4297 = vld [vmem:[%s4217 + $0x278] sm:$0xff]
        %v4298 = vld [vmem:[%s4217 + $0x280] sm:$0xff]
        %v4299 = vld [vmem:[%s4217 + $0x288] sm:$0xff]
        %v4300 = vld [vmem:[%s4217 + $0x290] sm:$0xff]
        %v4301 = vld [vmem:[%s4217 + $0x298] sm:$0xff]
        %v4302 = vld [vmem:[%s4217 + $0x2a0] sm:$0xff]
        %v4303 = vld [vmem:[%s4217 + $0x2a8] sm:$0xff]
        %v4304 = vld [vmem:[%s4217 + $0x2b0] sm:$0xff]
        %v4305 = vld [vmem:[%s4217 + $0x2b8] sm:$0xff]
        %v4306 = vld [vmem:[%s4217 + $0x2c0] sm:$0xff]
        %v4307 = vld [vmem:[%s4217 + $0x2c8] sm:$0xff]
        %v4308 = vld [vmem:[%s4217 + $0x2d0] sm:$0xff]
        %v4309 = vld [vmem:[%s4217 + $0x2d8] sm:$0xff]
        %v4310 = vld [vmem:[%s4217 + $0x2e0] sm:$0xff]
        %v4311 = vld [vmem:[%s4217 + $0x2e8] sm:$0xff]
        %v4312 = vld [vmem:[%s4217 + $0x2f0] sm:$0xff]
        %v4313 = vld [vmem:[%s4217 + $0x2f8] sm:$0xff]
        %v4314 = vld [vmem:[%s4217 + $0x300] sm:$0xff]
        %v4315 = vld [vmem:[%s4217 + $0x308] sm:$0xff]
        %v4316 = vld [vmem:[%s4217 + $0x310] sm:$0xff]
        %v4317 = vld [vmem:[%s4217 + $0x318] sm:$0xff]
        %v4318 = vld [vmem:[%s4217 + $0x320] sm:$0xff]
        %v4319 = vld [vmem:[%s4217 + $0x328] sm:$0xff]
        %v4320 = vld [vmem:[%s4217 + $0x330] sm:$0xff]
        %v4321 = vld [vmem:[%s4217 + $0x338] sm:$0xff]
        %v4322 = vld [vmem:[%s4217 + $0x340] sm:$0xff]
        %v4323 = vld [vmem:[%s4217 + $0x348] sm:$0xff]
        %v4324 = vld [vmem:[%s4217 + $0x350] sm:$0xff]
        %v4325 = vld [vmem:[%s4217 + $0x358] sm:$0xff]
        %v4334 = vrot.slane %v4209, 3
        %v4335 = vrot.slane %v3579, 3
        %v4336 = vsel %vm2163, %v4334, %v4335
        %v4337 = vrot.slane %v4210, 3
        %v4338 = vrot.slane %v3580, 3
        %v4339 = vsel %vm2163, %v4337, %v4338
        %v4340 = vrot.slane %v4211, 3
        %v4341 = vrot.slane %v3581, 3
        %v4342 = vsel %vm2163, %v4340, %v4341
        %v4343 = vrot.slane %v4212, 3
        %v4344 = vrot.slane %v3582, 3
        %v4345 = vsel %vm2163, %v4343, %v4344
        %v4346 = vrot.slane %v4213, 3
        %v4347 = vsel %vm2163, %v4335, %v4346
        %v4348 = vrot.slane %v4214, 3
        %v4349 = vsel %vm2163, %v4338, %v4348
        %v4350 = vrot.slane %v4215, 3
        %v4351 = vsel %vm2163, %v4341, %v4350
        %v4352 = vrot.slane %v4216, 3
        %v4353 = vsel %vm2163, %v4344, %v4352
        %v4360 = vsel %vm162, %v4345, 0
        %v4362 = vsel %vm162, %v4353, 0
        %4364 = vmatprep.subr.mxu0 %v4219
        %4365 = vmatpush1.msra.mxu0 %v4218
        %4366 = vmatprep.subr.mxu0 %v4221
        %4367 = vmatpush1.msra.mxu0 %v4220
        %4368 = vmatprep.subr.mxu0 %v4223
        %4369 = vmatpush1.msra.mxu0 %v4222
        %4370 = vmatprep.subr.mxu0 %v4225
        %4371 = vmatpush1.msra.mxu0 %v4224
        %4372 = vmatprep.subr.mxu0 %v4227
        %4373 = vmatpush1.msra.mxu0 %v4226
        %4374 = vmatprep.subr.mxu0 %v4229
        %4375 = vmatpush1.msra.mxu0 %v4228
        %4376 = vmatprep.subr.mxu0 %v4231
        %4377 = vmatpush1.msra.mxu0 %v4230
        %4378 = vmatprep.subr.mxu0 %v4233
        %4379 = vmatpush1.msra.mxu0 %v4232
        %4380 = vmatprep.subr.mxu0 %v4235
        %4381 = vmatpush1.msra.mxu0 %v4234
        %4382 = vmatprep.subr.mxu0 %v4237
        %4383 = vmatpush1.msra.mxu0 %v4236
        %4384 = vmatprep.subr.mxu0 %v4239
        %4385 = vmatpush1.msra.mxu0 %v4238
        %4386 = vmatprep.subr.mxu0 %v4241
        %4387 = vmatpush1.msra.mxu0 %v4240
        %4388 = vmatprep.subr.mxu0 %v4243
        %4389 = vmatpush1.msra.mxu0 %v4242
        %4390 = vmatprep.subr.mxu0 %v4245
        %4391 = vmatpush1.msra.mxu0 %v4244
        %4392 = vmatprep.subr.mxu0 %v4247
        %4393 = vmatpush1.msra.mxu0 %v4246
        %4394 = vmatprep.subr.mxu0 %v4249
        %4395 = vmatpush1.msra.mxu0 %v4248
        %4396 = vmatprep.subr.mxu0 %v4251
        %4397 = vmatpush1.msra.mxu0 %v4250
        %4398 = vmatprep.subr.mxu0 %v4253
        %4399 = vmatpush1.msra.mxu0 %v4252
        %4400 = vmatprep.subr.mxu0 %v4255
        %4401 = vmatpush1.msra.mxu0 %v4254
        %4402 = vmatprep.subr.mxu0 %v4257
        %4403 = vmatpush1.msra.mxu0 %v4256
        %4404 = vmatprep.subr.mxu0 %v4259
        %4405 = vmatpush1.msra.mxu0 %v4258
        %4406 = vmatprep.subr.mxu0 %v4261
        %4407 = vmatpush1.msra.mxu0 %v4260
        %4408 = vmatprep.subr.mxu0 %v4263
        %4409 = vmatpush1.msra.mxu0 %v4262
        %4410 = vmatprep.subr.mxu0 %v4265
        %4411 = vmatpush1.msra.mxu0 %v4264
        %4412 = vmatprep.subr.mxu0 %v4267
        %4413 = vmatpush1.msra.mxu0 %v4266
        %4414 = vmatprep.subr.mxu0 %v4269
        %4415 = vmatpush1.msra.mxu0 %v4268
        %4416 = vmatprep.subr.mxu0 %v4271
        %4417 = vmatpush1.msra.mxu0 %v4270
        %4418 = vmatprep.subr.mxu0 %v4273
        %4419 = vmatpush1.msra.mxu0 %v4272
        %4420 = vmatprep.subr.mxu0 %v4275
        %4421 = vmatpush1.msra.mxu0 %v4274
        %4422 = vmatprep.subr.mxu0 %v4277
        %4423 = vmatpush1.msra.mxu0 %v4276
        %4424 = vmatprep.subr.mxu0 %v4279
        %4425 = vmatpush1.msra.mxu0 %v4278
        %4426 = vmatprep.subr.mxu0 %v4281
        %4427 = vmatpush1.msra.mxu0 %v4280
        %4428 = vmatprep.mubr.f32.mxu0 %v4339
        %4429 = vmatmul.mubr.f32.gmra.mrb[0].mxu0 %v4336
        %v4430 = vpop.f32.mrb[0].mxu0
        %v4431 = vadd.f32 0.0, %v4430
        %v4432 = vpop.f32.mrb[0].mxu0
        %v4433 = vadd.f32 0.0, %v4432
        %4434 = vmatprep.mubr.f32.mxu0 %v4349
        %4435 = vmatmul.mubr.f32.gmra.mrb[0].mxu0 %v4347
        %v4436 = vpop.f32.mrb[0].mxu0
        %v4437 = vadd.f32 0.0, %v4436
        %v4438 = vpop.f32.mrb[0].mxu0
        %v4439 = vadd.f32 0.0, %v4438
        %4440 = vdwg.mxu0
        %4441 = vmatprep.subr.mxu0 %v4283
        %4442 = vmatpush1.msra.mxu0 %v4282
        %4443 = vmatprep.subr.mxu0 %v4285
        %4444 = vmatpush1.msra.mxu0 %v4284
        %4445 = vmatprep.subr.mxu0 %v4287
        %4446 = vmatpush1.msra.mxu0 %v4286
        %4447 = vmatprep.subr.mxu0 %v4289
        %4448 = vmatpush1.msra.mxu0 %v4288
        %4449 = vmatprep.subr.mxu0 %v4291
        %4450 = vmatpush1.msra.mxu0 %v4290
        %4451 = vmatprep.subr.mxu0 %v4293
        %4452 = vmatpush1.msra.mxu0 %v4292
        %4453 = vmatprep.subr.mxu0 %v4295
        %4454 = vmatpush1.msra.mxu0 %v4294
        %4455 = vmatprep.subr.mxu0 %v4297
        %4456 = vmatpush1.msra.mxu0 %v4296
        %4457 = vmatprep.subr.mxu0 %v4299
        %4458 = vmatpush1.msra.mxu0 %v4298
        %4459 = vmatprep.subr.mxu0 %v4301
        %4460 = vmatpush1.msra.mxu0 %v4300
        %4461 = vmatprep.subr.mxu0 %v4303
        %4462 = vmatpush1.msra.mxu0 %v4302
        %4463 = vmatprep.subr.mxu0 %v4305
        %4464 = vmatpush1.msra.mxu0 %v4304
        %4465 = vmatprep.subr.mxu0 %v4307
        %4466 = vmatpush1.msra.mxu0 %v4306
        %4467 = vmatprep.subr.mxu0 %v4309
        %4468 = vmatpush1.msra.mxu0 %v4308
        %4469 = vmatprep.subr.mxu0 %v4311
        %4470 = vmatpush1.msra.mxu0 %v4310
        %4471 = vmatprep.subr.mxu0 %v4313
        %4472 = vmatpush1.msra.mxu0 %v4312
        %4473 = vmatprep.subr.mxu0 %v4315
        %4474 = vmatpush1.msra.mxu0 %v4314
        %4475 = vmatprep.subr.mxu0 %v4317
        %4476 = vmatpush1.msra.mxu0 %v4316
        %4477 = vmatprep.subr.mxu0 %v4319
        %4478 = vmatpush1.msra.mxu0 %v4318
        %4479 = vmatprep.subr.mxu0 %v4321
        %4480 = vmatpush1.msra.mxu0 %v4320
        %4481 = vmatprep.subr.mxu0 %v4323
        %4482 = vmatpush1.msra.mxu0 %v4322
        %4483 = vmatprep.subr.mxu0 %v4325
        %4484 = vmatpush1.msra.mxu0 %v4324
        %4485 = vmatprep.subr.mxu0 0.0
        %4486 = vmatpush1.msra.mxu0 0.0
        %4487 = vmatprep.subr.mxu0 0.0
        %4488 = vmatpush1.msra.mxu0 0.0
        %4489 = vmatprep.subr.mxu0 0.0
        %4490 = vmatpush1.msra.mxu0 0.0
        %4491 = vmatprep.subr.mxu0 0.0
        %4492 = vmatpush1.msra.mxu0 0.0
        %4493 = vmatprep.subr.mxu0 0.0
        %4494 = vmatpush1.msra.mxu0 0.0
        %4495 = vmatprep.subr.mxu0 0.0
        %4496 = vmatpush1.msra.mxu0 0.0
        %4497 = vmatprep.subr.mxu0 0.0
        %4498 = vmatpush1.msra.mxu0 0.0
        %4499 = vmatprep.subr.mxu0 0.0
        %4500 = vmatpush1.msra.mxu0 0.0
        %4501 = vmatprep.subr.mxu0 0.0
        %4502 = vmatpush1.msra.mxu0 0.0
        %4503 = vmatprep.subr.mxu0 0.0
        %4504 = vmatpush1.msra.mxu0 0.0
        %4505 = vmatprep.mubr.f32.mxu0 %v4360
        %4506 = vmatmul.mubr.f32.gmra.mrb[0].mxu0 %v4342
        %v4507 = vpop.f32.mrb[0].mxu0
        %v4508 = vadd.f32 %v4431, %v4507
        %v4509 = vpop.f32.mrb[0].mxu0
        %v4510 = vadd.f32 %v4433, %v4509
        %4511 = vmatprep.mubr.f32.mxu0 %v4362
        %4512 = vmatmul.mubr.f32.gmra.mrb[0].mxu0 %v4351
        %v4513 = vpop.f32.mrb[0].mxu0
        %v4514 = vadd.f32 %v4437, %v4513
        %v4515 = vpop.f32.mrb[0].mxu0
        %v4516 = vadd.f32 %v4439, %v4515
        %4517 = vdwg.mxu0
        %v4518 = vadd.f32 %v4205, %v4508
        %v4519 = vadd.f32 %v4206, %v4510
        %v4520 = vadd.f32 %v4207, %v4514
        %v4521 = vadd.f32 %v4208, %v4516
        %v4522 = vmax.f32 %v4518, 0.0
        %v4523 = vmax.f32 %v4519, 0.0
        %v4524 = vmax.f32 %v4520, 0.0
        %v4525 = vmax.f32 %v4521, 0.0
        %4526 = vst [vmem:[#allocation2 + $0x28] sm:$0xff] %v4522
        %4527 = vst [vmem:[#allocation2 + $0x30] sm:$0xff] %v4523
        %4528 = vst [vmem:[#allocation2 + $0x48] sm:$0xff] %v4524
        %4529 = vst [vmem:[#allocation2 + $0x50] sm:$0xff] %v4525
        %v4530 = vld [vmem:[#allocation2] sm:$0x80]
        %v4531 = vld [vmem:[#allocation2 + $0x8] sm:$0x80]
        %v4532 = vld [vmem:[#allocation2 + $0x10] sm:$0x80]
        %v4533 = vld [vmem:[#allocation2 + $0x18] sm:$0x80]
        %v4534 = vld [vmem:[#allocation2 + $0x20] sm:$0xff]
        %v4535 = vld [vmem:[#allocation2 + $0x28] sm:$0xff]
        %v4536 = vld [vmem:[#allocation2 + $0x30] sm:$0xff]
        %v4537 = vld [vmem:[#allocation2 + $0x38] sm:$0xff]
        %v4538 = vld [vmem:[#allocation2 + $0x40] sm:$0x7f]
        %v4539 = vld [vmem:[#allocation2 + $0x48] sm:$0x7f]
        %v4540 = vld [vmem:[#allocation2 + $0x50] sm:$0x7f]
        %v4541 = vld [vmem:[#allocation2 + $0x58] sm:$0x7f]
        %s4542 = scalar_lea.vmem [#allocation3], 12096
        %v4543 = vld [vmem:[%s4542] sm:$0xff]
        %v4544 = vld [vmem:[%s4542 + $0x8] sm:$0xff]
        %v4545 = vld [vmem:[%s4542 + $0x10] sm:$0xff]
        %v4546 = vld [vmem:[%s4542 + $0x18] sm:$0xff]
        %v4547 = vld [vmem:[%s4542 + $0x20] sm:$0xff]
        %v4548 = vld [vmem:[%s4542 + $0x28] sm:$0xff]
        %v4549 = vld [vmem:[%s4542 + $0x30] sm:$0xff]
        %v4550 = vld [vmem:[%s4542 + $0x38] sm:$0xff]
        %v4551 = vld [vmem:[%s4542 + $0x40] sm:$0xff]
        %v4552 = vld [vmem:[%s4542 + $0x48] sm:$0xff]
        %v4553 = vld [vmem:[%s4542 + $0x50] sm:$0xff]
        %v4554 = vld [vmem:[%s4542 + $0x58] sm:$0xff]
        %v4555 = vld [vmem:[%s4542 + $0x60] sm:$0xff]
        %v4556 = vld [vmem:[%s4542 + $0x68] sm:$0xff]
        %v4557 = vld [vmem:[%s4542 + $0x70] sm:$0xff]
        %v4558 = vld [vmem:[%s4542 + $0x78] sm:$0xff]
        %v4559 = vld [vmem:[%s4542 + $0x80] sm:$0xff]
        %v4560 = vld [vmem:[%s4542 + $0x88] sm:$0xff]
        %v4561 = vld [vmem:[%s4542 + $0x90] sm:$0xff]
        %v4562 = vld [vmem:[%s4542 + $0x98] sm:$0xff]
        %v4563 = vld [vmem:[%s4542 + $0xa0] sm:$0xff]
        %v4564 = vld [vmem:[%s4542 + $0xa8] sm:$0xff]
        %v4565 = vld [vmem:[%s4542 + $0xb0] sm:$0xff]
        %v4566 = vld [vmem:[%s4542 + $0xb8] sm:$0xff]
        %v4567 = vld [vmem:[%s4542 + $0xc0] sm:$0xff]
        %v4568 = vld [vmem:[%s4542 + $0xc8] sm:$0xff]
        %v4569 = vld [vmem:[%s4542 + $0xd0] sm:$0xff]
        %v4570 = vld [vmem:[%s4542 + $0xd8] sm:$0xff]
        %v4571 = vld [vmem:[%s4542 + $0xe0] sm:$0xff]
        %v4572 = vld [vmem:[%s4542 + $0xe8] sm:$0xff]
        %v4573 = vld [vmem:[%s4542 + $0xf0] sm:$0xff]
        %v4574 = vld [vmem:[%s4542 + $0xf8] sm:$0xff]
        %v4575 = vld [vmem:[%s4542 + $0x100] sm:$0xff]
        %v4576 = vld [vmem:[%s4542 + $0x108] sm:$0xff]
        %v4577 = vld [vmem:[%s4542 + $0x110] sm:$0xff]
        %v4578 = vld [vmem:[%s4542 + $0x118] sm:$0xff]
        %v4579 = vld [vmem:[%s4542 + $0x120] sm:$0xff]
        %v4580 = vld [vmem:[%s4542 + $0x128] sm:$0xff]
        %v4581 = vld [vmem:[%s4542 + $0x130] sm:$0xff]
        %v4582 = vld [vmem:[%s4542 + $0x138] sm:$0xff]
        %v4583 = vld [vmem:[%s4542 + $0x140] sm:$0xff]
        %v4584 = vld [vmem:[%s4542 + $0x148] sm:$0xff]
        %v4585 = vld [vmem:[%s4542 + $0x150] sm:$0xff]
        %v4586 = vld [vmem:[%s4542 + $0x158] sm:$0xff]
        %v4587 = vld [vmem:[%s4542 + $0x160] sm:$0xff]
        %v4588 = vld [vmem:[%s4542 + $0x168] sm:$0xff]
        %v4589 = vld [vmem:[%s4542 + $0x170] sm:$0xff]
        %v4590 = vld [vmem:[%s4542 + $0x178] sm:$0xff]
        %v4591 = vld [vmem:[%s4542 + $0x180] sm:$0xff]
        %v4592 = vld [vmem:[%s4542 + $0x188] sm:$0xff]
        %v4593 = vld [vmem:[%s4542 + $0x190] sm:$0xff]
        %v4594 = vld [vmem:[%s4542 + $0x198] sm:$0xff]
        %v4595 = vld [vmem:[%s4542 + $0x1a0] sm:$0xff]
        %v4596 = vld [vmem:[%s4542 + $0x1a8] sm:$0xff]
        %v4597 = vld [vmem:[%s4542 + $0x1b0] sm:$0xff]
        %v4598 = vld [vmem:[%s4542 + $0x1b8] sm:$0xff]
        %v4599 = vld [vmem:[%s4542 + $0x1c0] sm:$0xff]
        %v4600 = vld [vmem:[%s4542 + $0x1c8] sm:$0xff]
        %v4601 = vld [vmem:[%s4542 + $0x1d0] sm:$0xff]
        %v4602 = vld [vmem:[%s4542 + $0x1d8] sm:$0xff]
        %v4603 = vld [vmem:[%s4542 + $0x1e0] sm:$0xff]
        %v4604 = vld [vmem:[%s4542 + $0x1e8] sm:$0xff]
        %v4605 = vld [vmem:[%s4542 + $0x1f0] sm:$0xff]
        %v4606 = vld [vmem:[%s4542 + $0x1f8] sm:$0xff]
        %v4607 = vld [vmem:[%s4542 + $0x200] sm:$0xff]
        %v4608 = vld [vmem:[%s4542 + $0x208] sm:$0xff]
        %v4609 = vld [vmem:[%s4542 + $0x210] sm:$0xff]
        %v4610 = vld [vmem:[%s4542 + $0x218] sm:$0xff]
        %v4611 = vld [vmem:[%s4542 + $0x220] sm:$0xff]
        %v4612 = vld [vmem:[%s4542 + $0x228] sm:$0xff]
        %v4613 = vld [vmem:[%s4542 + $0x230] sm:$0xff]
        %v4614 = vld [vmem:[%s4542 + $0x238] sm:$0xff]
        %v4615 = vld [vmem:[%s4542 + $0x240] sm:$0xff]
        %v4616 = vld [vmem:[%s4542 + $0x248] sm:$0xff]
        %v4617 = vld [vmem:[%s4542 + $0x250] sm:$0xff]
        %v4618 = vld [vmem:[%s4542 + $0x258] sm:$0xff]
        %v4619 = vld [vmem:[%s4542 + $0x260] sm:$0xff]
        %v4620 = vld [vmem:[%s4542 + $0x268] sm:$0xff]
        %v4621 = vld [vmem:[%s4542 + $0x270] sm:$0xff]
        %v4622 = vld [vmem:[%s4542 + $0x278] sm:$0xff]
        %v4623 = vld [vmem:[%s4542 + $0x280] sm:$0xff]
        %v4624 = vld [vmem:[%s4542 + $0x288] sm:$0xff]
        %v4625 = vld [vmem:[%s4542 + $0x290] sm:$0xff]
        %v4626 = vld [vmem:[%s4542 + $0x298] sm:$0xff]
        %v4627 = vld [vmem:[%s4542 + $0x2a0] sm:$0xff]
        %v4628 = vld [vmem:[%s4542 + $0x2a8] sm:$0xff]
        %v4629 = vld [vmem:[%s4542 + $0x2b0] sm:$0xff]
        %v4630 = vld [vmem:[%s4542 + $0x2b8] sm:$0xff]
        %v4631 = vld [vmem:[%s4542 + $0x2c0] sm:$0xff]
        %v4632 = vld [vmem:[%s4542 + $0x2c8] sm:$0xff]
        %v4633 = vld [vmem:[%s4542 + $0x2d0] sm:$0xff]
        %v4634 = vld [vmem:[%s4542 + $0x2d8] sm:$0xff]
        %v4635 = vld [vmem:[%s4542 + $0x2e0] sm:$0xff]
        %v4636 = vld [vmem:[%s4542 + $0x2e8] sm:$0xff]
        %v4637 = vld [vmem:[%s4542 + $0x2f0] sm:$0xff]
        %v4638 = vld [vmem:[%s4542 + $0x2f8] sm:$0xff]
        %v4639 = vld [vmem:[%s4542 + $0x300] sm:$0xff]
        %v4640 = vld [vmem:[%s4542 + $0x308] sm:$0xff]
        %v4641 = vld [vmem:[%s4542 + $0x310] sm:$0xff]
        %v4642 = vld [vmem:[%s4542 + $0x318] sm:$0xff]
        %v4643 = vld [vmem:[%s4542 + $0x320] sm:$0xff]
        %v4644 = vld [vmem:[%s4542 + $0x328] sm:$0xff]
        %v4645 = vld [vmem:[%s4542 + $0x330] sm:$0xff]
        %v4646 = vld [vmem:[%s4542 + $0x338] sm:$0xff]
        %v4647 = vld [vmem:[%s4542 + $0x340] sm:$0xff]
        %v4648 = vld [vmem:[%s4542 + $0x348] sm:$0xff]
        %v4649 = vld [vmem:[%s4542 + $0x350] sm:$0xff]
        %v4650 = vld [vmem:[%s4542 + $0x358] sm:$0xff]
        %v4651 = vld [vmem:[#allocation2 + $0x40] sm:$0xff]
        %v4652 = vld [vmem:[#allocation2 + $0x48] sm:$0xff]
        %v4653 = vld [vmem:[#allocation2 + $0x50] sm:$0xff]
        %v4654 = vld [vmem:[#allocation2 + $0x58] sm:$0xff]
        %s4655 = scalar_lea.vmem [#allocation3], 12960
        %v4656 = vld [vmem:[%s4655] sm:$0xff]
        %v4657 = vld [vmem:[%s4655 + $0x8] sm:$0xff]
        %v4658 = vld [vmem:[%s4655 + $0x10] sm:$0xff]
        %v4659 = vld [vmem:[%s4655 + $0x18] sm:$0xff]
        %v4660 = vld [vmem:[%s4655 + $0x20] sm:$0xff]
        %v4661 = vld [vmem:[%s4655 + $0x28] sm:$0xff]
        %v4662 = vld [vmem:[%s4655 + $0x30] sm:$0xff]
        %v4663 = vld [vmem:[%s4655 + $0x38] sm:$0xff]
        %v4664 = vld [vmem:[%s4655 + $0x40] sm:$0xff]
        %v4665 = vld [vmem:[%s4655 + $0x48] sm:$0xff]
        %v4666 = vld [vmem:[%s4655 + $0x50] sm:$0xff]
        %v4667 = vld [vmem:[%s4655 + $0x58] sm:$0xff]
        %v4668 = vld [vmem:[%s4655 + $0x60] sm:$0xff]
        %v4669 = vld [vmem:[%s4655 + $0x68] sm:$0xff]
        %v4670 = vld [vmem:[%s4655 + $0x70] sm:$0xff]
        %v4671 = vld [vmem:[%s4655 + $0x78] sm:$0xff]
        %v4672 = vld [vmem:[%s4655 + $0x80] sm:$0xff]
        %v4673 = vld [vmem:[%s4655 + $0x88] sm:$0xff]
        %v4674 = vld [vmem:[%s4655 + $0x90] sm:$0xff]
        %v4675 = vld [vmem:[%s4655 + $0x98] sm:$0xff]
        %v4676 = vld [vmem:[%s4655 + $0xa0] sm:$0xff]
        %v4677 = vld [vmem:[%s4655 + $0xa8] sm:$0xff]
        %v4678 = vld [vmem:[%s4655 + $0xb0] sm:$0xff]
        %v4679 = vld [vmem:[%s4655 + $0xb8] sm:$0xff]
        %v4680 = vld [vmem:[%s4655 + $0xc0] sm:$0xff]
        %v4681 = vld [vmem:[%s4655 + $0xc8] sm:$0xff]
        %v4682 = vld [vmem:[%s4655 + $0xd0] sm:$0xff]
        %v4683 = vld [vmem:[%s4655 + $0xd8] sm:$0xff]
        %v4684 = vld [vmem:[%s4655 + $0xe0] sm:$0xff]
        %v4685 = vld [vmem:[%s4655 + $0xe8] sm:$0xff]
        %v4686 = vld [vmem:[%s4655 + $0xf0] sm:$0xff]
        %v4687 = vld [vmem:[%s4655 + $0xf8] sm:$0xff]
        %v4688 = vld [vmem:[%s4655 + $0x100] sm:$0xff]
        %v4689 = vld [vmem:[%s4655 + $0x108] sm:$0xff]
        %v4690 = vld [vmem:[%s4655 + $0x110] sm:$0xff]
        %v4691 = vld [vmem:[%s4655 + $0x118] sm:$0xff]
        %v4692 = vld [vmem:[%s4655 + $0x120] sm:$0xff]
        %v4693 = vld [vmem:[%s4655 + $0x128] sm:$0xff]
        %v4694 = vld [vmem:[%s4655 + $0x130] sm:$0xff]
        %v4695 = vld [vmem:[%s4655 + $0x138] sm:$0xff]
        %v4696 = vld [vmem:[%s4655 + $0x140] sm:$0xff]
        %v4697 = vld [vmem:[%s4655 + $0x148] sm:$0xff]
        %v4698 = vld [vmem:[%s4655 + $0x150] sm:$0xff]
        %v4699 = vld [vmem:[%s4655 + $0x158] sm:$0xff]
        %v4700 = vld [vmem:[%s4655 + $0x160] sm:$0xff]
        %v4701 = vld [vmem:[%s4655 + $0x168] sm:$0xff]
        %v4702 = vld [vmem:[%s4655 + $0x170] sm:$0xff]
        %v4703 = vld [vmem:[%s4655 + $0x178] sm:$0xff]
        %v4704 = vld [vmem:[%s4655 + $0x180] sm:$0xff]
        %v4705 = vld [vmem:[%s4655 + $0x188] sm:$0xff]
        %v4706 = vld [vmem:[%s4655 + $0x190] sm:$0xff]
        %v4707 = vld [vmem:[%s4655 + $0x198] sm:$0xff]
        %v4708 = vld [vmem:[%s4655 + $0x1a0] sm:$0xff]
        %v4709 = vld [vmem:[%s4655 + $0x1a8] sm:$0xff]
        %v4710 = vld [vmem:[%s4655 + $0x1b0] sm:$0xff]
        %v4711 = vld [vmem:[%s4655 + $0x1b8] sm:$0xff]
        %v4712 = vld [vmem:[%s4655 + $0x1c0] sm:$0xff]
        %v4713 = vld [vmem:[%s4655 + $0x1c8] sm:$0xff]
        %v4714 = vld [vmem:[%s4655 + $0x1d0] sm:$0xff]
        %v4715 = vld [vmem:[%s4655 + $0x1d8] sm:$0xff]
        %v4716 = vld [vmem:[%s4655 + $0x1e0] sm:$0xff]
        %v4717 = vld [vmem:[%s4655 + $0x1e8] sm:$0xff]
        %v4718 = vld [vmem:[%s4655 + $0x1f0] sm:$0xff]
        %v4719 = vld [vmem:[%s4655 + $0x1f8] sm:$0xff]
        %v4720 = vld [vmem:[%s4655 + $0x200] sm:$0xff]
        %v4721 = vld [vmem:[%s4655 + $0x208] sm:$0xff]
        %v4722 = vld [vmem:[%s4655 + $0x210] sm:$0xff]
        %v4723 = vld [vmem:[%s4655 + $0x218] sm:$0xff]
        %v4724 = vld [vmem:[%s4655 + $0x220] sm:$0xff]
        %v4725 = vld [vmem:[%s4655 + $0x228] sm:$0xff]
        %v4726 = vld [vmem:[%s4655 + $0x230] sm:$0xff]
        %v4727 = vld [vmem:[%s4655 + $0x238] sm:$0xff]
        %v4728 = vld [vmem:[%s4655 + $0x240] sm:$0xff]
        %v4729 = vld [vmem:[%s4655 + $0x248] sm:$0xff]
        %v4730 = vld [vmem:[%s4655 + $0x250] sm:$0xff]
        %v4731 = vld [vmem:[%s4655 + $0x258] sm:$0xff]
        %v4732 = vld [vmem:[%s4655 + $0x260] sm:$0xff]
        %v4733 = vld [vmem:[%s4655 + $0x268] sm:$0xff]
        %v4734 = vld [vmem:[%s4655 + $0x270] sm:$0xff]
        %v4735 = vld [vmem:[%s4655 + $0x278] sm:$0xff]
        %v4736 = vld [vmem:[%s4655 + $0x280] sm:$0xff]
        %v4737 = vld [vmem:[%s4655 + $0x288] sm:$0xff]
        %v4738 = vld [vmem:[%s4655 + $0x290] sm:$0xff]
        %v4739 = vld [vmem:[%s4655 + $0x298] sm:$0xff]
        %v4740 = vld [vmem:[%s4655 + $0x2a0] sm:$0xff]
        %v4741 = vld [vmem:[%s4655 + $0x2a8] sm:$0xff]
        %v4742 = vld [vmem:[%s4655 + $0x2b0] sm:$0xff]
        %v4743 = vld [vmem:[%s4655 + $0x2b8] sm:$0xff]
        %v4744 = vld [vmem:[%s4655 + $0x2c0] sm:$0xff]
        %v4745 = vld [vmem:[%s4655 + $0x2c8] sm:$0xff]
        %v4746 = vld [vmem:[%s4655 + $0x2d0] sm:$0xff]
        %v4747 = vld [vmem:[%s4655 + $0x2d8] sm:$0xff]
        %v4748 = vld [vmem:[%s4655 + $0x2e0] sm:$0xff]
        %v4749 = vld [vmem:[%s4655 + $0x2e8] sm:$0xff]
        %v4750 = vld [vmem:[%s4655 + $0x2f0] sm:$0xff]
        %v4751 = vld [vmem:[%s4655 + $0x2f8] sm:$0xff]
        %v4752 = vld [vmem:[%s4655 + $0x300] sm:$0xff]
        %v4753 = vld [vmem:[%s4655 + $0x308] sm:$0xff]
        %v4754 = vld [vmem:[%s4655 + $0x310] sm:$0xff]
        %v4755 = vld [vmem:[%s4655 + $0x318] sm:$0xff]
        %v4756 = vld [vmem:[%s4655 + $0x320] sm:$0xff]
        %v4757 = vld [vmem:[%s4655 + $0x328] sm:$0xff]
        %v4758 = vld [vmem:[%s4655 + $0x330] sm:$0xff]
        %v4759 = vld [vmem:[%s4655 + $0x338] sm:$0xff]
        %v4760 = vld [vmem:[%s4655 + $0x340] sm:$0xff]
        %v4761 = vld [vmem:[%s4655 + $0x348] sm:$0xff]
        %v4762 = vld [vmem:[%s4655 + $0x350] sm:$0xff]
        %v4763 = vld [vmem:[%s4655 + $0x358] sm:$0xff]
        %v4765 = vsel %vm162, %v4537, 0
        %v4768 = vsel %vm162, %v4654, 0
        %4770 = vmatprep.subr.mxu0 %v4657
        %4771 = vmatpush1.msra.mxu0 %v4656
        %4772 = vmatprep.subr.mxu0 %v4659
        %4773 = vmatpush1.msra.mxu0 %v4658
        %4774 = vmatprep.subr.mxu0 %v4661
        %4775 = vmatpush1.msra.mxu0 %v4660
        %4776 = vmatprep.subr.mxu0 %v4663
        %4777 = vmatpush1.msra.mxu0 %v4662
        %4778 = vmatprep.subr.mxu0 %v4665
        %4779 = vmatpush1.msra.mxu0 %v4664
        %4780 = vmatprep.subr.mxu0 %v4667
        %4781 = vmatpush1.msra.mxu0 %v4666
        %4782 = vmatprep.subr.mxu0 %v4669
        %4783 = vmatpush1.msra.mxu0 %v4668
        %4784 = vmatprep.subr.mxu0 %v4671
        %4785 = vmatpush1.msra.mxu0 %v4670
        %4786 = vmatprep.subr.mxu0 %v4673
        %4787 = vmatpush1.msra.mxu0 %v4672
        %4788 = vmatprep.subr.mxu0 %v4675
        %4789 = vmatpush1.msra.mxu0 %v4674
        %4790 = vmatprep.subr.mxu0 %v4677
        %4791 = vmatpush1.msra.mxu0 %v4676
        %4792 = vmatprep.subr.mxu0 %v4679
        %4793 = vmatpush1.msra.mxu0 %v4678
        %4794 = vmatprep.subr.mxu0 %v4681
        %4795 = vmatpush1.msra.mxu0 %v4680
        %4796 = vmatprep.subr.mxu0 %v4683
        %4797 = vmatpush1.msra.mxu0 %v4682
        %4798 = vmatprep.subr.mxu0 %v4685
        %4799 = vmatpush1.msra.mxu0 %v4684
        %4800 = vmatprep.subr.mxu0 %v4687
        %4801 = vmatpush1.msra.mxu0 %v4686
        %4802 = vmatprep.subr.mxu0 %v4689
        %4803 = vmatpush1.msra.mxu0 %v4688
        %4804 = vmatprep.subr.mxu0 %v4691
        %4805 = vmatpush1.msra.mxu0 %v4690
        %4806 = vmatprep.subr.mxu0 %v4693
        %4807 = vmatpush1.msra.mxu0 %v4692
        %4808 = vmatprep.subr.mxu0 %v4695
        %4809 = vmatpush1.msra.mxu0 %v4694
        %4810 = vmatprep.subr.mxu0 %v4697
        %4811 = vmatpush1.msra.mxu0 %v4696
        %4812 = vmatprep.subr.mxu0 %v4699
        %4813 = vmatpush1.msra.mxu0 %v4698
        %4814 = vmatprep.subr.mxu0 %v4701
        %4815 = vmatpush1.msra.mxu0 %v4700
        %4816 = vmatprep.subr.mxu0 %v4703
        %4817 = vmatpush1.msra.mxu0 %v4702
        %4818 = vmatprep.subr.mxu0 %v4705
        %4819 = vmatpush1.msra.mxu0 %v4704
        %4820 = vmatprep.subr.mxu0 %v4707
        %4821 = vmatpush1.msra.mxu0 %v4706
        %4822 = vmatprep.subr.mxu0 %v4709
        %4823 = vmatpush1.msra.mxu0 %v4708
        %4824 = vmatprep.subr.mxu0 %v4711
        %4825 = vmatpush1.msra.mxu0 %v4710
        %4826 = vmatprep.subr.mxu0 %v4713
        %4827 = vmatpush1.msra.mxu0 %v4712
        %4828 = vmatprep.subr.mxu0 %v4715
        %4829 = vmatpush1.msra.mxu0 %v4714
        %4830 = vmatprep.subr.mxu0 %v4717
        %4831 = vmatpush1.msra.mxu0 %v4716
        %4832 = vmatprep.subr.mxu0 %v4719
        %4833 = vmatpush1.msra.mxu0 %v4718
        %4834 = vmatprep.mubr.f32.mxu0 %v4535
        %4835 = vmatmul.mubr.f32.gmra.mrb[0].mxu0 %v4534
        %v4836 = vpop.f32.mrb[0].mxu0
        %v4837 = vadd.f32 0.0, %v4836
        %v4838 = vpop.f32.mrb[0].mxu0
        %v4839 = vadd.f32 0.0, %v4838
        %4840 = vmatprep.mubr.f32.mxu0 %v4652
        %4841 = vmatmul.mubr.f32.gmra.mrb[0].mxu0 %v4651
        %v4842 = vpop.f32.mrb[0].mxu0
        %v4843 = vadd.f32 0.0, %v4842
        %v4844 = vpop.f32.mrb[0].mxu0
        %v4845 = vadd.f32 0.0, %v4844
        %4846 = vdwg.mxu0
        %4847 = vmatprep.subr.mxu0 %v4721
        %4848 = vmatpush1.msra.mxu0 %v4720
        %4849 = vmatprep.subr.mxu0 %v4723
        %4850 = vmatpush1.msra.mxu0 %v4722
        %4851 = vmatprep.subr.mxu0 %v4725
        %4852 = vmatpush1.msra.mxu0 %v4724
        %4853 = vmatprep.subr.mxu0 %v4727
        %4854 = vmatpush1.msra.mxu0 %v4726
        %4855 = vmatprep.subr.mxu0 %v4729
        %4856 = vmatpush1.msra.mxu0 %v4728
        %4857 = vmatprep.subr.mxu0 %v4731
        %4858 = vmatpush1.msra.mxu0 %v4730
        %4859 = vmatprep.subr.mxu0 %v4733
        %4860 = vmatpush1.msra.mxu0 %v4732
        %4861 = vmatprep.subr.mxu0 %v4735
        %4862 = vmatpush1.msra.mxu0 %v4734
        %4863 = vmatprep.subr.mxu0 %v4737
        %4864 = vmatpush1.msra.mxu0 %v4736
        %4865 = vmatprep.subr.mxu0 %v4739
        %4866 = vmatpush1.msra.mxu0 %v4738
        %4867 = vmatprep.subr.mxu0 %v4741
        %4868 = vmatpush1.msra.mxu0 %v4740
        %4869 = vmatprep.subr.mxu0 %v4743
        %4870 = vmatpush1.msra.mxu0 %v4742
        %4871 = vmatprep.subr.mxu0 %v4745
        %4872 = vmatpush1.msra.mxu0 %v4744
        %4873 = vmatprep.subr.mxu0 %v4747
        %4874 = vmatpush1.msra.mxu0 %v4746
        %4875 = vmatprep.subr.mxu0 %v4749
        %4876 = vmatpush1.msra.mxu0 %v4748
        %4877 = vmatprep.subr.mxu0 %v4751
        %4878 = vmatpush1.msra.mxu0 %v4750
        %4879 = vmatprep.subr.mxu0 %v4753
        %4880 = vmatpush1.msra.mxu0 %v4752
        %4881 = vmatprep.subr.mxu0 %v4755
        %4882 = vmatpush1.msra.mxu0 %v4754
        %4883 = vmatprep.subr.mxu0 %v4757
        %4884 = vmatpush1.msra.mxu0 %v4756
        %4885 = vmatprep.subr.mxu0 %v4759
        %4886 = vmatpush1.msra.mxu0 %v4758
        %4887 = vmatprep.subr.mxu0 %v4761
        %4888 = vmatpush1.msra.mxu0 %v4760
        %4889 = vmatprep.subr.mxu0 %v4763
        %4890 = vmatpush1.msra.mxu0 %v4762
        %4891 = vmatprep.subr.mxu0 0.0
        %4892 = vmatpush1.msra.mxu0 0.0
        %4893 = vmatprep.subr.mxu0 0.0
        %4894 = vmatpush1.msra.mxu0 0.0
        %4895 = vmatprep.subr.mxu0 0.0
        %4896 = vmatpush1.msra.mxu0 0.0
        %4897 = vmatprep.subr.mxu0 0.0
        %4898 = vmatpush1.msra.mxu0 0.0
        %4899 = vmatprep.subr.mxu0 0.0
        %4900 = vmatpush1.msra.mxu0 0.0
        %4901 = vmatprep.subr.mxu0 0.0
        %4902 = vmatpush1.msra.mxu0 0.0
        %4903 = vmatprep.subr.mxu0 0.0
        %4904 = vmatpush1.msra.mxu0 0.0
        %4905 = vmatprep.subr.mxu0 0.0
        %4906 = vmatpush1.msra.mxu0 0.0
        %4907 = vmatprep.subr.mxu0 0.0
        %4908 = vmatpush1.msra.mxu0 0.0
        %4909 = vmatprep.subr.mxu0 0.0
        %4910 = vmatpush1.msra.mxu0 0.0
        %4911 = vmatprep.mubr.f32.mxu0 %v4765
        %4912 = vmatmul.mubr.f32.gmra.mrb[0].mxu0 %v4536
        %v4913 = vpop.f32.mrb[0].mxu0
        %v4914 = vadd.f32 %v4837, %v4913
        %v4915 = vpop.f32.mrb[0].mxu0
        %v4916 = vadd.f32 %v4839, %v4915
        %4917 = vmatprep.mubr.f32.mxu0 %v4768
        %4918 = vmatmul.mubr.f32.gmra.mrb[0].mxu0 %v4653
        %v4919 = vpop.f32.mrb[0].mxu0
        %v4920 = vadd.f32 %v4843, %v4919
        %v4921 = vpop.f32.mrb[0].mxu0
        %v4922 = vadd.f32 %v4845, %v4921
        %4923 = vdwg.mxu0
        %v4935 = vrot.slane %v4530, 7
        %v4936 = vrot.slane %v4534, 7
        %v4937 = vsel %vm937, %v4935, %v4936
        %v4938 = vrot.slane %v4531, 7
        %v4939 = vrot.slane %v4535, 7
        %v4940 = vsel %vm937, %v4938, %v4939
        %v4941 = vrot.slane %v4532, 7
        %v4942 = vrot.slane %v4536, 7
        %v4943 = vsel %vm937, %v4941, %v4942
        %v4944 = vrot.slane %v4533, 7
        %v4945 = vrot.slane %v4537, 7
        %v4946 = vsel %vm937, %v4944, %v4945
        %v4947 = vrot.slane %v4538, 7
        %v4948 = vsel %vm937, %v4936, %v4947
        %v4949 = vrot.slane %v4539, 7
        %v4950 = vsel %vm937, %v4939, %v4949
        %v4951 = vrot.slane %v4540, 7
        %v4952 = vsel %vm937, %v4942, %v4951
        %v4953 = vrot.slane %v4541, 7
        %v4954 = vsel %vm937, %v4945, %v4953
        %v4961 = vsel %vm162, %v4946, 0
        %v4963 = vsel %vm162, %v4954, 0
        %4965 = vmatprep.subr.mxu0 %v4544
        %4966 = vmatpush1.msra.mxu0 %v4543
        %4967 = vmatprep.subr.mxu0 %v4546
        %4968 = vmatpush1.msra.mxu0 %v4545
        %4969 = vmatprep.subr.mxu0 %v4548
        %4970 = vmatpush1.msra.mxu0 %v4547
        %4971 = vmatprep.subr.mxu0 %v4550
        %4972 = vmatpush1.msra.mxu0 %v4549
        %4973 = vmatprep.subr.mxu0 %v4552
        %4974 = vmatpush1.msra.mxu0 %v4551
        %4975 = vmatprep.subr.mxu0 %v4554
        %4976 = vmatpush1.msra.mxu0 %v4553
        %4977 = vmatprep.subr.mxu0 %v4556
        %4978 = vmatpush1.msra.mxu0 %v4555
        %4979 = vmatprep.subr.mxu0 %v4558
        %4980 = vmatpush1.msra.mxu0 %v4557
        %4981 = vmatprep.subr.mxu0 %v4560
        %4982 = vmatpush1.msra.mxu0 %v4559
        %4983 = vmatprep.subr.mxu0 %v4562
        %4984 = vmatpush1.msra.mxu0 %v4561
        %4985 = vmatprep.subr.mxu0 %v4564
        %4986 = vmatpush1.msra.mxu0 %v4563
        %4987 = vmatprep.subr.mxu0 %v4566
        %4988 = vmatpush1.msra.mxu0 %v4565
        %4989 = vmatprep.subr.mxu0 %v4568
        %4990 = vmatpush1.msra.mxu0 %v4567
        %4991 = vmatprep.subr.mxu0 %v4570
        %4992 = vmatpush1.msra.mxu0 %v4569
        %4993 = vmatprep.subr.mxu0 %v4572
        %4994 = vmatpush1.msra.mxu0 %v4571
        %4995 = vmatprep.subr.mxu0 %v4574
        %4996 = vmatpush1.msra.mxu0 %v4573
        %4997 = vmatprep.subr.mxu0 %v4576
        %4998 = vmatpush1.msra.mxu0 %v4575
        %4999 = vmatprep.subr.mxu0 %v4578
        %5000 = vmatpush1.msra.mxu0 %v4577
        %5001 = vmatprep.subr.mxu0 %v4580
        %5002 = vmatpush1.msra.mxu0 %v4579
        %5003 = vmatprep.subr.mxu0 %v4582
        %5004 = vmatpush1.msra.mxu0 %v4581
        %5005 = vmatprep.subr.mxu0 %v4584
        %5006 = vmatpush1.msra.mxu0 %v4583
        %5007 = vmatprep.subr.mxu0 %v4586
        %5008 = vmatpush1.msra.mxu0 %v4585
        %5009 = vmatprep.subr.mxu0 %v4588
        %5010 = vmatpush1.msra.mxu0 %v4587
        %5011 = vmatprep.subr.mxu0 %v4590
        %5012 = vmatpush1.msra.mxu0 %v4589
        %5013 = vmatprep.subr.mxu0 %v4592
        %5014 = vmatpush1.msra.mxu0 %v4591
        %5015 = vmatprep.subr.mxu0 %v4594
        %5016 = vmatpush1.msra.mxu0 %v4593
        %5017 = vmatprep.subr.mxu0 %v4596
        %5018 = vmatpush1.msra.mxu0 %v4595
        %5019 = vmatprep.subr.mxu0 %v4598
        %5020 = vmatpush1.msra.mxu0 %v4597
        %5021 = vmatprep.subr.mxu0 %v4600
        %5022 = vmatpush1.msra.mxu0 %v4599
        %5023 = vmatprep.subr.mxu0 %v4602
        %5024 = vmatpush1.msra.mxu0 %v4601
        %5025 = vmatprep.subr.mxu0 %v4604
        %5026 = vmatpush1.msra.mxu0 %v4603
        %5027 = vmatprep.subr.mxu0 %v4606
        %5028 = vmatpush1.msra.mxu0 %v4605
        %5029 = vmatprep.mubr.f32.mxu0 %v4940
        %5030 = vmatmul.mubr.f32.gmra.mrb[0].mxu0 %v4937
        %v5031 = vpop.f32.mrb[0].mxu0
        %v5032 = vadd.f32 %v4914, %v5031
        %v5033 = vpop.f32.mrb[0].mxu0
        %v5034 = vadd.f32 %v4916, %v5033
        %5035 = vmatprep.mubr.f32.mxu0 %v4950
        %5036 = vmatmul.mubr.f32.gmra.mrb[0].mxu0 %v4948
        %v5037 = vpop.f32.mrb[0].mxu0
        %v5038 = vadd.f32 %v4920, %v5037
        %v5039 = vpop.f32.mrb[0].mxu0
        %v5040 = vadd.f32 %v4922, %v5039
        %5041 = vdwg.mxu0
        %5042 = vmatprep.subr.mxu0 %v4608
        %5043 = vmatpush1.msra.mxu0 %v4607
        %5044 = vmatprep.subr.mxu0 %v4610
        %5045 = vmatpush1.msra.mxu0 %v4609
        %5046 = vmatprep.subr.mxu0 %v4612
        %5047 = vmatpush1.msra.mxu0 %v4611
        %5048 = vmatprep.subr.mxu0 %v4614
        %5049 = vmatpush1.msra.mxu0 %v4613
        %5050 = vmatprep.subr.mxu0 %v4616
        %5051 = vmatpush1.msra.mxu0 %v4615
        %5052 = vmatprep.subr.mxu0 %v4618
        %5053 = vmatpush1.msra.mxu0 %v4617
        %5054 = vmatprep.subr.mxu0 %v4620
        %5055 = vmatpush1.msra.mxu0 %v4619
        %5056 = vmatprep.subr.mxu0 %v4622
        %5057 = vmatpush1.msra.mxu0 %v4621
        %5058 = vmatprep.subr.mxu0 %v4624
        %5059 = vmatpush1.msra.mxu0 %v4623
        %5060 = vmatprep.subr.mxu0 %v4626
        %5061 = vmatpush1.msra.mxu0 %v4625
        %5062 = vmatprep.subr.mxu0 %v4628
        %5063 = vmatpush1.msra.mxu0 %v4627
        %5064 = vmatprep.subr.mxu0 %v4630
        %5065 = vmatpush1.msra.mxu0 %v4629
        %5066 = vmatprep.subr.mxu0 %v4632
        %5067 = vmatpush1.msra.mxu0 %v4631
        %5068 = vmatprep.subr.mxu0 %v4634
        %5069 = vmatpush1.msra.mxu0 %v4633
        %5070 = vmatprep.subr.mxu0 %v4636
        %5071 = vmatpush1.msra.mxu0 %v4635
        %5072 = vmatprep.subr.mxu0 %v4638
        %5073 = vmatpush1.msra.mxu0 %v4637
        %5074 = vmatprep.subr.mxu0 %v4640
        %5075 = vmatpush1.msra.mxu0 %v4639
        %5076 = vmatprep.subr.mxu0 %v4642
        %5077 = vmatpush1.msra.mxu0 %v4641
        %5078 = vmatprep.subr.mxu0 %v4644
        %5079 = vmatpush1.msra.mxu0 %v4643
        %5080 = vmatprep.subr.mxu0 %v4646
        %5081 = vmatpush1.msra.mxu0 %v4645
        %5082 = vmatprep.subr.mxu0 %v4648
        %5083 = vmatpush1.msra.mxu0 %v4647
        %5084 = vmatprep.subr.mxu0 %v4650
        %5085 = vmatpush1.msra.mxu0 %v4649
        %5086 = vmatprep.subr.mxu0 0.0
        %5087 = vmatpush1.msra.mxu0 0.0
        %5088 = vmatprep.subr.mxu0 0.0
        %5089 = vmatpush1.msra.mxu0 0.0
        %5090 = vmatprep.subr.mxu0 0.0
        %5091 = vmatpush1.msra.mxu0 0.0
        %5092 = vmatprep.subr.mxu0 0.0
        %5093 = vmatpush1.msra.mxu0 0.0
        %5094 = vmatprep.subr.mxu0 0.0
        %5095 = vmatpush1.msra.mxu0 0.0
        %5096 = vmatprep.subr.mxu0 0.0
        %5097 = vmatpush1.msra.mxu0 0.0
        %5098 = vmatprep.subr.mxu0 0.0
        %5099 = vmatpush1.msra.mxu0 0.0
        %5100 = vmatprep.subr.mxu0 0.0
        %5101 = vmatpush1.msra.mxu0 0.0
        %5102 = vmatprep.subr.mxu0 0.0
        %5103 = vmatpush1.msra.mxu0 0.0
        %5104 = vmatprep.subr.mxu0 0.0
        %5105 = vmatpush1.msra.mxu0 0.0
        %5106 = vmatprep.mubr.f32.mxu0 %v4961
        %5107 = vmatmul.mubr.f32.gmra.mrb[0].mxu0 %v4943
        %v5108 = vpop.f32.mrb[0].mxu0
        %v5109 = vadd.f32 %v5032, %v5108
        %v5110 = vpop.f32.mrb[0].mxu0
        %v5111 = vadd.f32 %v5034, %v5110
        %5112 = vmatprep.mubr.f32.mxu0 %v4963
        %5113 = vmatmul.mubr.f32.gmra.mrb[0].mxu0 %v4952
        %v5114 = vpop.f32.mrb[0].mxu0
        %v5115 = vadd.f32 %v5038, %v5114
        %v5116 = vpop.f32.mrb[0].mxu0
        %v5117 = vadd.f32 %v5040, %v5116
        %5118 = vdwg.mxu0
        %v5119 = vld [vmem:[#allocation2 + $0x20] sm:$0xfe]
        %v5120 = vld [vmem:[#allocation2 + $0x28] sm:$0xfe]
        %v5121 = vld [vmem:[#allocation2 + $0x30] sm:$0xfe]
        %v5122 = vld [vmem:[#allocation2 + $0x38] sm:$0xfe]
        %v5123 = vld [vmem:[#allocation2 + $0x40] sm:$0xff]
        %v5124 = vld [vmem:[#allocation2 + $0x48] sm:$0xff]
        %v5125 = vld [vmem:[#allocation2 + $0x50] sm:$0xff]
        %v5126 = vld [vmem:[#allocation2 + $0x58] sm:$0xff]
        %v5127 = vld [vmem:[#allocation2 + $0x60] sm:$0x1]
        %v5128 = vld [vmem:[#allocation2 + $0x68] sm:$0x1]
        %v5129 = vld [vmem:[#allocation2 + $0x70] sm:$0x1]
        %v5130 = vld [vmem:[#allocation2 + $0x78] sm:$0x1]
        %s5131 = scalar_lea.vmem [#allocation3], 13824
        %v5132 = vld [vmem:[%s5131] sm:$0xff]
        %v5133 = vld [vmem:[%s5131 + $0x8] sm:$0xff]
        %v5134 = vld [vmem:[%s5131 + $0x10] sm:$0xff]
        %v5135 = vld [vmem:[%s5131 + $0x18] sm:$0xff]
        %v5136 = vld [vmem:[%s5131 + $0x20] sm:$0xff]
        %v5137 = vld [vmem:[%s5131 + $0x28] sm:$0xff]
        %v5138 = vld [vmem:[%s5131 + $0x30] sm:$0xff]
        %v5139 = vld [vmem:[%s5131 + $0x38] sm:$0xff]
        %v5140 = vld [vmem:[%s5131 + $0x40] sm:$0xff]
        %v5141 = vld [vmem:[%s5131 + $0x48] sm:$0xff]
        %v5142 = vld [vmem:[%s5131 + $0x50] sm:$0xff]
        %v5143 = vld [vmem:[%s5131 + $0x58] sm:$0xff]
        %v5144 = vld [vmem:[%s5131 + $0x60] sm:$0xff]
        %v5145 = vld [vmem:[%s5131 + $0x68] sm:$0xff]
        %v5146 = vld [vmem:[%s5131 + $0x70] sm:$0xff]
        %v5147 = vld [vmem:[%s5131 + $0x78] sm:$0xff]
        %v5148 = vld [vmem:[%s5131 + $0x80] sm:$0xff]
        %v5149 = vld [vmem:[%s5131 + $0x88] sm:$0xff]
        %v5150 = vld [vmem:[%s5131 + $0x90] sm:$0xff]
        %v5151 = vld [vmem:[%s5131 + $0x98] sm:$0xff]
        %v5152 = vld [vmem:[%s5131 + $0xa0] sm:$0xff]
        %v5153 = vld [vmem:[%s5131 + $0xa8] sm:$0xff]
        %v5154 = vld [vmem:[%s5131 + $0xb0] sm:$0xff]
        %v5155 = vld [vmem:[%s5131 + $0xb8] sm:$0xff]
        %v5156 = vld [vmem:[%s5131 + $0xc0] sm:$0xff]
        %v5157 = vld [vmem:[%s5131 + $0xc8] sm:$0xff]
        %v5158 = vld [vmem:[%s5131 + $0xd0] sm:$0xff]
        %v5159 = vld [vmem:[%s5131 + $0xd8] sm:$0xff]
        %v5160 = vld [vmem:[%s5131 + $0xe0] sm:$0xff]
        %v5161 = vld [vmem:[%s5131 + $0xe8] sm:$0xff]
        %v5162 = vld [vmem:[%s5131 + $0xf0] sm:$0xff]
        %v5163 = vld [vmem:[%s5131 + $0xf8] sm:$0xff]
        %v5164 = vld [vmem:[%s5131 + $0x100] sm:$0xff]
        %v5165 = vld [vmem:[%s5131 + $0x108] sm:$0xff]
        %v5166 = vld [vmem:[%s5131 + $0x110] sm:$0xff]
        %v5167 = vld [vmem:[%s5131 + $0x118] sm:$0xff]
        %v5168 = vld [vmem:[%s5131 + $0x120] sm:$0xff]
        %v5169 = vld [vmem:[%s5131 + $0x128] sm:$0xff]
        %v5170 = vld [vmem:[%s5131 + $0x130] sm:$0xff]
        %v5171 = vld [vmem:[%s5131 + $0x138] sm:$0xff]
        %v5172 = vld [vmem:[%s5131 + $0x140] sm:$0xff]
        %v5173 = vld [vmem:[%s5131 + $0x148] sm:$0xff]
        %v5174 = vld [vmem:[%s5131 + $0x150] sm:$0xff]
        %v5175 = vld [vmem:[%s5131 + $0x158] sm:$0xff]
        %v5176 = vld [vmem:[%s5131 + $0x160] sm:$0xff]
        %v5177 = vld [vmem:[%s5131 + $0x168] sm:$0xff]
        %v5178 = vld [vmem:[%s5131 + $0x170] sm:$0xff]
        %v5179 = vld [vmem:[%s5131 + $0x178] sm:$0xff]
        %v5180 = vld [vmem:[%s5131 + $0x180] sm:$0xff]
        %v5181 = vld [vmem:[%s5131 + $0x188] sm:$0xff]
        %v5182 = vld [vmem:[%s5131 + $0x190] sm:$0xff]
        %v5183 = vld [vmem:[%s5131 + $0x198] sm:$0xff]
        %v5184 = vld [vmem:[%s5131 + $0x1a0] sm:$0xff]
        %v5185 = vld [vmem:[%s5131 + $0x1a8] sm:$0xff]
        %v5186 = vld [vmem:[%s5131 + $0x1b0] sm:$0xff]
        %v5187 = vld [vmem:[%s5131 + $0x1b8] sm:$0xff]
        %v5188 = vld [vmem:[%s5131 + $0x1c0] sm:$0xff]
        %v5189 = vld [vmem:[%s5131 + $0x1c8] sm:$0xff]
        %v5190 = vld [vmem:[%s5131 + $0x1d0] sm:$0xff]
        %v5191 = vld [vmem:[%s5131 + $0x1d8] sm:$0xff]
        %v5192 = vld [vmem:[%s5131 + $0x1e0] sm:$0xff]
        %v5193 = vld [vmem:[%s5131 + $0x1e8] sm:$0xff]
        %v5194 = vld [vmem:[%s5131 + $0x1f0] sm:$0xff]
        %v5195 = vld [vmem:[%s5131 + $0x1f8] sm:$0xff]
        %v5196 = vld [vmem:[%s5131 + $0x200] sm:$0xff]
        %v5197 = vld [vmem:[%s5131 + $0x208] sm:$0xff]
        %v5198 = vld [vmem:[%s5131 + $0x210] sm:$0xff]
        %v5199 = vld [vmem:[%s5131 + $0x218] sm:$0xff]
        %v5200 = vld [vmem:[%s5131 + $0x220] sm:$0xff]
        %v5201 = vld [vmem:[%s5131 + $0x228] sm:$0xff]
        %v5202 = vld [vmem:[%s5131 + $0x230] sm:$0xff]
        %v5203 = vld [vmem:[%s5131 + $0x238] sm:$0xff]
        %v5204 = vld [vmem:[%s5131 + $0x240] sm:$0xff]
        %v5205 = vld [vmem:[%s5131 + $0x248] sm:$0xff]
        %v5206 = vld [vmem:[%s5131 + $0x250] sm:$0xff]
        %v5207 = vld [vmem:[%s5131 + $0x258] sm:$0xff]
        %v5208 = vld [vmem:[%s5131 + $0x260] sm:$0xff]
        %v5209 = vld [vmem:[%s5131 + $0x268] sm:$0xff]
        %v5210 = vld [vmem:[%s5131 + $0x270] sm:$0xff]
        %v5211 = vld [vmem:[%s5131 + $0x278] sm:$0xff]
        %v5212 = vld [vmem:[%s5131 + $0x280] sm:$0xff]
        %v5213 = vld [vmem:[%s5131 + $0x288] sm:$0xff]
        %v5214 = vld [vmem:[%s5131 + $0x290] sm:$0xff]
        %v5215 = vld [vmem:[%s5131 + $0x298] sm:$0xff]
        %v5216 = vld [vmem:[%s5131 + $0x2a0] sm:$0xff]
        %v5217 = vld [vmem:[%s5131 + $0x2a8] sm:$0xff]
        %v5218 = vld [vmem:[%s5131 + $0x2b0] sm:$0xff]
        %v5219 = vld [vmem:[%s5131 + $0x2b8] sm:$0xff]
        %v5220 = vld [vmem:[%s5131 + $0x2c0] sm:$0xff]
        %v5221 = vld [vmem:[%s5131 + $0x2c8] sm:$0xff]
        %v5222 = vld [vmem:[%s5131 + $0x2d0] sm:$0xff]
        %v5223 = vld [vmem:[%s5131 + $0x2d8] sm:$0xff]
        %v5224 = vld [vmem:[%s5131 + $0x2e0] sm:$0xff]
        %v5225 = vld [vmem:[%s5131 + $0x2e8] sm:$0xff]
        %v5226 = vld [vmem:[%s5131 + $0x2f0] sm:$0xff]
        %v5227 = vld [vmem:[%s5131 + $0x2f8] sm:$0xff]
        %v5228 = vld [vmem:[%s5131 + $0x300] sm:$0xff]
        %v5229 = vld [vmem:[%s5131 + $0x308] sm:$0xff]
        %v5230 = vld [vmem:[%s5131 + $0x310] sm:$0xff]
        %v5231 = vld [vmem:[%s5131 + $0x318] sm:$0xff]
        %v5232 = vld [vmem:[%s5131 + $0x320] sm:$0xff]
        %v5233 = vld [vmem:[%s5131 + $0x328] sm:$0xff]
        %v5234 = vld [vmem:[%s5131 + $0x330] sm:$0xff]
        %v5235 = vld [vmem:[%s5131 + $0x338] sm:$0xff]
        %v5236 = vld [vmem:[%s5131 + $0x340] sm:$0xff]
        %v5237 = vld [vmem:[%s5131 + $0x348] sm:$0xff]
        %v5238 = vld [vmem:[%s5131 + $0x350] sm:$0xff]
        %v5239 = vld [vmem:[%s5131 + $0x358] sm:$0xff]
        %v5252 = vrot.slane %v5119, 1
        %v5253 = vrot.slane %v5123, 1
        %v5254 = vsel %vm1535, %v5252, %v5253
        %v5255 = vrot.slane %v5120, 1
        %v5256 = vrot.slane %v5124, 1
        %v5257 = vsel %vm1535, %v5255, %v5256
        %v5258 = vrot.slane %v5121, 1
        %v5259 = vrot.slane %v5125, 1
        %v5260 = vsel %vm1535, %v5258, %v5259
        %v5261 = vrot.slane %v5122, 1
        %v5262 = vrot.slane %v5126, 1
        %v5263 = vsel %vm1535, %v5261, %v5262
        %v5264 = vrot.slane %v5127, 1
        %v5265 = vsel %vm1535, %v5253, %v5264
        %v5266 = vrot.slane %v5128, 1
        %v5267 = vsel %vm1535, %v5256, %v5266
        %v5268 = vrot.slane %v5129, 1
        %v5269 = vsel %vm1535, %v5259, %v5268
        %v5270 = vrot.slane %v5130, 1
        %v5271 = vsel %vm1535, %v5262, %v5270
        %v5278 = vsel %vm162, %v5263, 0
        %v5280 = vsel %vm162, %v5271, 0
        %5282 = vmatprep.subr.mxu0 %v5133
        %5283 = vmatpush1.msra.mxu0 %v5132
        %5284 = vmatprep.subr.mxu0 %v5135
        %5285 = vmatpush1.msra.mxu0 %v5134
        %5286 = vmatprep.subr.mxu0 %v5137
        %5287 = vmatpush1.msra.mxu0 %v5136
        %5288 = vmatprep.subr.mxu0 %v5139
        %5289 = vmatpush1.msra.mxu0 %v5138
        %5290 = vmatprep.subr.mxu0 %v5141
        %5291 = vmatpush1.msra.mxu0 %v5140
        %5292 = vmatprep.subr.mxu0 %v5143
        %5293 = vmatpush1.msra.mxu0 %v5142
        %5294 = vmatprep.subr.mxu0 %v5145
        %5295 = vmatpush1.msra.mxu0 %v5144
        %5296 = vmatprep.subr.mxu0 %v5147
        %5297 = vmatpush1.msra.mxu0 %v5146
        %5298 = vmatprep.subr.mxu0 %v5149
        %5299 = vmatpush1.msra.mxu0 %v5148
        %5300 = vmatprep.subr.mxu0 %v5151
        %5301 = vmatpush1.msra.mxu0 %v5150
        %5302 = vmatprep.subr.mxu0 %v5153
        %5303 = vmatpush1.msra.mxu0 %v5152
        %5304 = vmatprep.subr.mxu0 %v5155
        %5305 = vmatpush1.msra.mxu0 %v5154
        %5306 = vmatprep.subr.mxu0 %v5157
        %5307 = vmatpush1.msra.mxu0 %v5156
        %5308 = vmatprep.subr.mxu0 %v5159
        %5309 = vmatpush1.msra.mxu0 %v5158
        %5310 = vmatprep.subr.mxu0 %v5161
        %5311 = vmatpush1.msra.mxu0 %v5160
        %5312 = vmatprep.subr.mxu0 %v5163
        %5313 = vmatpush1.msra.mxu0 %v5162
        %5314 = vmatprep.subr.mxu0 %v5165
        %5315 = vmatpush1.msra.mxu0 %v5164
        %5316 = vmatprep.subr.mxu0 %v5167
        %5317 = vmatpush1.msra.mxu0 %v5166
        %5318 = vmatprep.subr.mxu0 %v5169
        %5319 = vmatpush1.msra.mxu0 %v5168
        %5320 = vmatprep.subr.mxu0 %v5171
        %5321 = vmatpush1.msra.mxu0 %v5170
        %5322 = vmatprep.subr.mxu0 %v5173
        %5323 = vmatpush1.msra.mxu0 %v5172
        %5324 = vmatprep.subr.mxu0 %v5175
        %5325 = vmatpush1.msra.mxu0 %v5174
        %5326 = vmatprep.subr.mxu0 %v5177
        %5327 = vmatpush1.msra.mxu0 %v5176
        %5328 = vmatprep.subr.mxu0 %v5179
        %5329 = vmatpush1.msra.mxu0 %v5178
        %5330 = vmatprep.subr.mxu0 %v5181
        %5331 = vmatpush1.msra.mxu0 %v5180
        %5332 = vmatprep.subr.mxu0 %v5183
        %5333 = vmatpush1.msra.mxu0 %v5182
        %5334 = vmatprep.subr.mxu0 %v5185
        %5335 = vmatpush1.msra.mxu0 %v5184
        %5336 = vmatprep.subr.mxu0 %v5187
        %5337 = vmatpush1.msra.mxu0 %v5186
        %5338 = vmatprep.subr.mxu0 %v5189
        %5339 = vmatpush1.msra.mxu0 %v5188
        %5340 = vmatprep.subr.mxu0 %v5191
        %5341 = vmatpush1.msra.mxu0 %v5190
        %5342 = vmatprep.subr.mxu0 %v5193
        %5343 = vmatpush1.msra.mxu0 %v5192
        %5344 = vmatprep.subr.mxu0 %v5195
        %5345 = vmatpush1.msra.mxu0 %v5194
        %5346 = vmatprep.mubr.f32.mxu0 %v5257
        %5347 = vmatmul.mubr.f32.gmra.mrb[0].mxu0 %v5254
        %v5348 = vpop.f32.mrb[0].mxu0
        %v5349 = vadd.f32 0.0, %v5348
        %v5350 = vpop.f32.mrb[0].mxu0
        %v5351 = vadd.f32 0.0, %v5350
        %5352 = vmatprep.mubr.f32.mxu0 %v5267
        %5353 = vmatmul.mubr.f32.gmra.mrb[0].mxu0 %v5265
        %v5354 = vpop.f32.mrb[0].mxu0
        %v5355 = vadd.f32 0.0, %v5354
        %v5356 = vpop.f32.mrb[0].mxu0
        %v5357 = vadd.f32 0.0, %v5356
        %5358 = vdwg.mxu0
        %5359 = vmatprep.subr.mxu0 %v5197
        %5360 = vmatpush1.msra.mxu0 %v5196
        %5361 = vmatprep.subr.mxu0 %v5199
        %5362 = vmatpush1.msra.mxu0 %v5198
        %5363 = vmatprep.subr.mxu0 %v5201
        %5364 = vmatpush1.msra.mxu0 %v5200
        %5365 = vmatprep.subr.mxu0 %v5203
        %5366 = vmatpush1.msra.mxu0 %v5202
        %5367 = vmatprep.subr.mxu0 %v5205
        %5368 = vmatpush1.msra.mxu0 %v5204
        %5369 = vmatprep.subr.mxu0 %v5207
        %5370 = vmatpush1.msra.mxu0 %v5206
        %5371 = vmatprep.subr.mxu0 %v5209
        %5372 = vmatpush1.msra.mxu0 %v5208
        %5373 = vmatprep.subr.mxu0 %v5211
        %5374 = vmatpush1.msra.mxu0 %v5210
        %5375 = vmatprep.subr.mxu0 %v5213
        %5376 = vmatpush1.msra.mxu0 %v5212
        %5377 = vmatprep.subr.mxu0 %v5215
        %5378 = vmatpush1.msra.mxu0 %v5214
        %5379 = vmatprep.subr.mxu0 %v5217
        %5380 = vmatpush1.msra.mxu0 %v5216
        %5381 = vmatprep.subr.mxu0 %v5219
        %5382 = vmatpush1.msra.mxu0 %v5218
        %5383 = vmatprep.subr.mxu0 %v5221
        %5384 = vmatpush1.msra.mxu0 %v5220
        %5385 = vmatprep.subr.mxu0 %v5223
        %5386 = vmatpush1.msra.mxu0 %v5222
        %5387 = vmatprep.subr.mxu0 %v5225
        %5388 = vmatpush1.msra.mxu0 %v5224
        %5389 = vmatprep.subr.mxu0 %v5227
        %5390 = vmatpush1.msra.mxu0 %v5226
        %5391 = vmatprep.subr.mxu0 %v5229
        %5392 = vmatpush1.msra.mxu0 %v5228
        %5393 = vmatprep.subr.mxu0 %v5231
        %5394 = vmatpush1.msra.mxu0 %v5230
        %5395 = vmatprep.subr.mxu0 %v5233
        %5396 = vmatpush1.msra.mxu0 %v5232
        %5397 = vmatprep.subr.mxu0 %v5235
        %5398 = vmatpush1.msra.mxu0 %v5234
        %5399 = vmatprep.subr.mxu0 %v5237
        %5400 = vmatpush1.msra.mxu0 %v5236
        %5401 = vmatprep.subr.mxu0 %v5239
        %5402 = vmatpush1.msra.mxu0 %v5238
        %5403 = vmatprep.subr.mxu0 0.0
        %5404 = vmatpush1.msra.mxu0 0.0
        %5405 = vmatprep.subr.mxu0 0.0
        %5406 = vmatpush1.msra.mxu0 0.0
        %5407 = vmatprep.subr.mxu0 0.0
        %5408 = vmatpush1.msra.mxu0 0.0
        %5409 = vmatprep.subr.mxu0 0.0
        %5410 = vmatpush1.msra.mxu0 0.0
        %5411 = vmatprep.subr.mxu0 0.0
        %5412 = vmatpush1.msra.mxu0 0.0
        %5413 = vmatprep.subr.mxu0 0.0
        %5414 = vmatpush1.msra.mxu0 0.0
        %5415 = vmatprep.subr.mxu0 0.0
        %5416 = vmatpush1.msra.mxu0 0.0
        %5417 = vmatprep.subr.mxu0 0.0
        %5418 = vmatpush1.msra.mxu0 0.0
        %5419 = vmatprep.subr.mxu0 0.0
        %5420 = vmatpush1.msra.mxu0 0.0
        %5421 = vmatprep.subr.mxu0 0.0
        %5422 = vmatpush1.msra.mxu0 0.0
        %5423 = vmatprep.mubr.f32.mxu0 %v5278
        %5424 = vmatmul.mubr.f32.gmra.mrb[0].mxu0 %v5260
        %v5425 = vpop.f32.mrb[0].mxu0
        %v5426 = vadd.f32 %v5349, %v5425
        %v5427 = vpop.f32.mrb[0].mxu0
        %v5428 = vadd.f32 %v5351, %v5427
        %5429 = vmatprep.mubr.f32.mxu0 %v5280
        %5430 = vmatmul.mubr.f32.gmra.mrb[0].mxu0 %v5269
        %v5431 = vpop.f32.mrb[0].mxu0
        %v5432 = vadd.f32 %v5355, %v5431
        %v5433 = vpop.f32.mrb[0].mxu0
        %v5434 = vadd.f32 %v5357, %v5433
        %5435 = vdwg.mxu0
        %v5436 = vadd.f32 %v5109, %v5426
        %v5437 = vadd.f32 %v5111, %v5428
        %v5438 = vadd.f32 %v5115, %v5432
        %v5439 = vadd.f32 %v5117, %v5434
        %v5440 = vmax.f32 %v5436, 0.0
        %v5441 = vmax.f32 %v5437, 0.0
        %v5442 = vmax.f32 %v5438, 0.0
        %v5443 = vmax.f32 %v5439, 0.0
        %5444 = vst [vmem:[#allocation2 + $0x28] sm:$0xff] %v5440
        %5445 = vst [vmem:[#allocation2 + $0x30] sm:$0xff] %v5441
        %5446 = vst [vmem:[#allocation2 + $0x48] sm:$0xff] %v5442
        %5447 = vst [vmem:[#allocation2 + $0x50] sm:$0xff] %v5443
        %v5448 = vld [vmem:[#allocation2] sm:$0xe0]
        %v5449 = vld [vmem:[#allocation2 + $0x8] sm:$0xe0]
        %v5450 = vld [vmem:[#allocation2 + $0x10] sm:$0xe0]
        %v5451 = vld [vmem:[#allocation2 + $0x18] sm:$0xe0]
        %v5452 = vld [vmem:[#allocation2 + $0x20] sm:$0xff]
        %v5453 = vld [vmem:[#allocation2 + $0x28] sm:$0xff]
        %v5454 = vld [vmem:[#allocation2 + $0x30] sm:$0xff]
        %v5455 = vld [vmem:[#allocation2 + $0x38] sm:$0xff]
        %v5456 = vld [vmem:[#allocation2 + $0x40] sm:$0x1f]
        %v5457 = vld [vmem:[#allocation2 + $0x48] sm:$0x1f]
        %v5458 = vld [vmem:[#allocation2 + $0x50] sm:$0x1f]
        %v5459 = vld [vmem:[#allocation2 + $0x58] sm:$0x1f]
        %s5460 = scalar_lea.vmem [#allocation3], 14688
        %v5461 = vld [vmem:[%s5460] sm:$0xff]
        %v5462 = vld [vmem:[%s5460 + $0x8] sm:$0xff]
        %v5463 = vld [vmem:[%s5460 + $0x10] sm:$0xff]
        %v5464 = vld [vmem:[%s5460 + $0x18] sm:$0xff]
        %v5465 = vld [vmem:[%s5460 + $0x20] sm:$0xff]
        %v5466 = vld [vmem:[%s5460 + $0x28] sm:$0xff]
        %v5467 = vld [vmem:[%s5460 + $0x30] sm:$0xff]
        %v5468 = vld [vmem:[%s5460 + $0x38] sm:$0xff]
        %v5469 = vld [vmem:[%s5460 + $0x40] sm:$0xff]
        %v5470 = vld [vmem:[%s5460 + $0x48] sm:$0xff]
        %v5471 = vld [vmem:[%s5460 + $0x50] sm:$0xff]
        %v5472 = vld [vmem:[%s5460 + $0x58] sm:$0xff]
        %v5473 = vld [vmem:[%s5460 + $0x60] sm:$0xff]
        %v5474 = vld [vmem:[%s5460 + $0x68] sm:$0xff]
        %v5475 = vld [vmem:[%s5460 + $0x70] sm:$0xff]
        %v5476 = vld [vmem:[%s5460 + $0x78] sm:$0xff]
        %v5477 = vld [vmem:[%s5460 + $0x80] sm:$0xff]
        %v5478 = vld [vmem:[%s5460 + $0x88] sm:$0xff]
        %v5479 = vld [vmem:[%s5460 + $0x90] sm:$0xff]
        %v5480 = vld [vmem:[%s5460 + $0x98] sm:$0xff]
        %v5481 = vld [vmem:[%s5460 + $0xa0] sm:$0xff]
        %v5482 = vld [vmem:[%s5460 + $0xa8] sm:$0xff]
        %v5483 = vld [vmem:[%s5460 + $0xb0] sm:$0xff]
        %v5484 = vld [vmem:[%s5460 + $0xb8] sm:$0xff]
        %v5485 = vld [vmem:[%s5460 + $0xc0] sm:$0xff]
        %v5486 = vld [vmem:[%s5460 + $0xc8] sm:$0xff]
        %v5487 = vld [vmem:[%s5460 + $0xd0] sm:$0xff]
        %v5488 = vld [vmem:[%s5460 + $0xd8] sm:$0xff]
        %v5489 = vld [vmem:[%s5460 + $0xe0] sm:$0xff]
        %v5490 = vld [vmem:[%s5460 + $0xe8] sm:$0xff]
        %v5491 = vld [vmem:[%s5460 + $0xf0] sm:$0xff]
        %v5492 = vld [vmem:[%s5460 + $0xf8] sm:$0xff]
        %v5493 = vld [vmem:[%s5460 + $0x100] sm:$0xff]
        %v5494 = vld [vmem:[%s5460 + $0x108] sm:$0xff]
        %v5495 = vld [vmem:[%s5460 + $0x110] sm:$0xff]
        %v5496 = vld [vmem:[%s5460 + $0x118] sm:$0xff]
        %v5497 = vld [vmem:[%s5460 + $0x120] sm:$0xff]
        %v5498 = vld [vmem:[%s5460 + $0x128] sm:$0xff]
        %v5499 = vld [vmem:[%s5460 + $0x130] sm:$0xff]
        %v5500 = vld [vmem:[%s5460 + $0x138] sm:$0xff]
        %v5501 = vld [vmem:[%s5460 + $0x140] sm:$0xff]
        %v5502 = vld [vmem:[%s5460 + $0x148] sm:$0xff]
        %v5503 = vld [vmem:[%s5460 + $0x150] sm:$0xff]
        %v5504 = vld [vmem:[%s5460 + $0x158] sm:$0xff]
        %v5505 = vld [vmem:[%s5460 + $0x160] sm:$0xff]
        %v5506 = vld [vmem:[%s5460 + $0x168] sm:$0xff]
        %v5507 = vld [vmem:[%s5460 + $0x170] sm:$0xff]
        %v5508 = vld [vmem:[%s5460 + $0x178] sm:$0xff]
        %v5509 = vld [vmem:[%s5460 + $0x180] sm:$0xff]
        %v5510 = vld [vmem:[%s5460 + $0x188] sm:$0xff]
        %v5511 = vld [vmem:[%s5460 + $0x190] sm:$0xff]
        %v5512 = vld [vmem:[%s5460 + $0x198] sm:$0xff]
        %v5513 = vld [vmem:[%s5460 + $0x1a0] sm:$0xff]
        %v5514 = vld [vmem:[%s5460 + $0x1a8] sm:$0xff]
        %v5515 = vld [vmem:[%s5460 + $0x1b0] sm:$0xff]
        %v5516 = vld [vmem:[%s5460 + $0x1b8] sm:$0xff]
        %v5517 = vld [vmem:[%s5460 + $0x1c0] sm:$0xff]
        %v5518 = vld [vmem:[%s5460 + $0x1c8] sm:$0xff]
        %v5519 = vld [vmem:[%s5460 + $0x1d0] sm:$0xff]
        %v5520 = vld [vmem:[%s5460 + $0x1d8] sm:$0xff]
        %v5521 = vld [vmem:[%s5460 + $0x1e0] sm:$0xff]
        %v5522 = vld [vmem:[%s5460 + $0x1e8] sm:$0xff]
        %v5523 = vld [vmem:[%s5460 + $0x1f0] sm:$0xff]
        %v5524 = vld [vmem:[%s5460 + $0x1f8] sm:$0xff]
        %v5525 = vld [vmem:[%s5460 + $0x200] sm:$0xff]
        %v5526 = vld [vmem:[%s5460 + $0x208] sm:$0xff]
        %v5527 = vld [vmem:[%s5460 + $0x210] sm:$0xff]
        %v5528 = vld [vmem:[%s5460 + $0x218] sm:$0xff]
        %v5529 = vld [vmem:[%s5460 + $0x220] sm:$0xff]
        %v5530 = vld [vmem:[%s5460 + $0x228] sm:$0xff]
        %v5531 = vld [vmem:[%s5460 + $0x230] sm:$0xff]
        %v5532 = vld [vmem:[%s5460 + $0x238] sm:$0xff]
        %v5533 = vld [vmem:[%s5460 + $0x240] sm:$0xff]
        %v5534 = vld [vmem:[%s5460 + $0x248] sm:$0xff]
        %v5535 = vld [vmem:[%s5460 + $0x250] sm:$0xff]
        %v5536 = vld [vmem:[%s5460 + $0x258] sm:$0xff]
        %v5537 = vld [vmem:[%s5460 + $0x260] sm:$0xff]
        %v5538 = vld [vmem:[%s5460 + $0x268] sm:$0xff]
        %v5539 = vld [vmem:[%s5460 + $0x270] sm:$0xff]
        %v5540 = vld [vmem:[%s5460 + $0x278] sm:$0xff]
        %v5541 = vld [vmem:[%s5460 + $0x280] sm:$0xff]
        %v5542 = vld [vmem:[%s5460 + $0x288] sm:$0xff]
        %v5543 = vld [vmem:[%s5460 + $0x290] sm:$0xff]
        %v5544 = vld [vmem:[%s5460 + $0x298] sm:$0xff]
        %v5545 = vld [vmem:[%s5460 + $0x2a0] sm:$0xff]
        %v5546 = vld [vmem:[%s5460 + $0x2a8] sm:$0xff]
        %v5547 = vld [vmem:[%s5460 + $0x2b0] sm:$0xff]
        %v5548 = vld [vmem:[%s5460 + $0x2b8] sm:$0xff]
        %v5549 = vld [vmem:[%s5460 + $0x2c0] sm:$0xff]
        %v5550 = vld [vmem:[%s5460 + $0x2c8] sm:$0xff]
        %v5551 = vld [vmem:[%s5460 + $0x2d0] sm:$0xff]
        %v5552 = vld [vmem:[%s5460 + $0x2d8] sm:$0xff]
        %v5553 = vld [vmem:[%s5460 + $0x2e0] sm:$0xff]
        %v5554 = vld [vmem:[%s5460 + $0x2e8] sm:$0xff]
        %v5555 = vld [vmem:[%s5460 + $0x2f0] sm:$0xff]
        %v5556 = vld [vmem:[%s5460 + $0x2f8] sm:$0xff]
        %v5557 = vld [vmem:[%s5460 + $0x300] sm:$0xff]
        %v5558 = vld [vmem:[%s5460 + $0x308] sm:$0xff]
        %v5559 = vld [vmem:[%s5460 + $0x310] sm:$0xff]
        %v5560 = vld [vmem:[%s5460 + $0x318] sm:$0xff]
        %v5561 = vld [vmem:[%s5460 + $0x320] sm:$0xff]
        %v5562 = vld [vmem:[%s5460 + $0x328] sm:$0xff]
        %v5563 = vld [vmem:[%s5460 + $0x330] sm:$0xff]
        %v5564 = vld [vmem:[%s5460 + $0x338] sm:$0xff]
        %v5565 = vld [vmem:[%s5460 + $0x340] sm:$0xff]
        %v5566 = vld [vmem:[%s5460 + $0x348] sm:$0xff]
        %v5567 = vld [vmem:[%s5460 + $0x350] sm:$0xff]
        %v5568 = vld [vmem:[%s5460 + $0x358] sm:$0xff]
        %v5569 = vld [vmem:[#allocation2] sm:$0xc0]
        %v5570 = vld [vmem:[#allocation2 + $0x8] sm:$0xc0]
        %v5571 = vld [vmem:[#allocation2 + $0x10] sm:$0xc0]
        %v5572 = vld [vmem:[#allocation2 + $0x18] sm:$0xc0]
        %v5573 = vld [vmem:[#allocation2 + $0x40] sm:$0x3f]
        %v5574 = vld [vmem:[#allocation2 + $0x48] sm:$0x3f]
        %v5575 = vld [vmem:[#allocation2 + $0x50] sm:$0x3f]
        %v5576 = vld [vmem:[#allocation2 + $0x58] sm:$0x3f]
        %s5577 = scalar_lea.vmem [#allocation3], 15552
        %v5578 = vld [vmem:[%s5577] sm:$0xff]
        %v5579 = vld [vmem:[%s5577 + $0x8] sm:$0xff]
        %v5580 = vld [vmem:[%s5577 + $0x10] sm:$0xff]
        %v5581 = vld [vmem:[%s5577 + $0x18] sm:$0xff]
        %v5582 = vld [vmem:[%s5577 + $0x20] sm:$0xff]
        %v5583 = vld [vmem:[%s5577 + $0x28] sm:$0xff]
        %v5584 = vld [vmem:[%s5577 + $0x30] sm:$0xff]
        %v5585 = vld [vmem:[%s5577 + $0x38] sm:$0xff]
        %v5586 = vld [vmem:[%s5577 + $0x40] sm:$0xff]
        %v5587 = vld [vmem:[%s5577 + $0x48] sm:$0xff]
        %v5588 = vld [vmem:[%s5577 + $0x50] sm:$0xff]
        %v5589 = vld [vmem:[%s5577 + $0x58] sm:$0xff]
        %v5590 = vld [vmem:[%s5577 + $0x60] sm:$0xff]
        %v5591 = vld [vmem:[%s5577 + $0x68] sm:$0xff]
        %v5592 = vld [vmem:[%s5577 + $0x70] sm:$0xff]
        %v5593 = vld [vmem:[%s5577 + $0x78] sm:$0xff]
        %v5594 = vld [vmem:[%s5577 + $0x80] sm:$0xff]
        %v5595 = vld [vmem:[%s5577 + $0x88] sm:$0xff]
        %v5596 = vld [vmem:[%s5577 + $0x90] sm:$0xff]
        %v5597 = vld [vmem:[%s5577 + $0x98] sm:$0xff]
        %v5598 = vld [vmem:[%s5577 + $0xa0] sm:$0xff]
        %v5599 = vld [vmem:[%s5577 + $0xa8] sm:$0xff]
        %v5600 = vld [vmem:[%s5577 + $0xb0] sm:$0xff]
        %v5601 = vld [vmem:[%s5577 + $0xb8] sm:$0xff]
        %v5602 = vld [vmem:[%s5577 + $0xc0] sm:$0xff]
        %v5603 = vld [vmem:[%s5577 + $0xc8] sm:$0xff]
        %v5604 = vld [vmem:[%s5577 + $0xd0] sm:$0xff]
        %v5605 = vld [vmem:[%s5577 + $0xd8] sm:$0xff]
        %v5606 = vld [vmem:[%s5577 + $0xe0] sm:$0xff]
        %v5607 = vld [vmem:[%s5577 + $0xe8] sm:$0xff]
        %v5608 = vld [vmem:[%s5577 + $0xf0] sm:$0xff]
        %v5609 = vld [vmem:[%s5577 + $0xf8] sm:$0xff]
        %v5610 = vld [vmem:[%s5577 + $0x100] sm:$0xff]
        %v5611 = vld [vmem:[%s5577 + $0x108] sm:$0xff]
        %v5612 = vld [vmem:[%s5577 + $0x110] sm:$0xff]
        %v5613 = vld [vmem:[%s5577 + $0x118] sm:$0xff]
        %v5614 = vld [vmem:[%s5577 + $0x120] sm:$0xff]
        %v5615 = vld [vmem:[%s5577 + $0x128] sm:$0xff]
        %v5616 = vld [vmem:[%s5577 + $0x130] sm:$0xff]
        %v5617 = vld [vmem:[%s5577 + $0x138] sm:$0xff]
        %v5618 = vld [vmem:[%s5577 + $0x140] sm:$0xff]
        %v5619 = vld [vmem:[%s5577 + $0x148] sm:$0xff]
        %v5620 = vld [vmem:[%s5577 + $0x150] sm:$0xff]
        %v5621 = vld [vmem:[%s5577 + $0x158] sm:$0xff]
        %v5622 = vld [vmem:[%s5577 + $0x160] sm:$0xff]
        %v5623 = vld [vmem:[%s5577 + $0x168] sm:$0xff]
        %v5624 = vld [vmem:[%s5577 + $0x170] sm:$0xff]
        %v5625 = vld [vmem:[%s5577 + $0x178] sm:$0xff]
        %v5626 = vld [vmem:[%s5577 + $0x180] sm:$0xff]
        %v5627 = vld [vmem:[%s5577 + $0x188] sm:$0xff]
        %v5628 = vld [vmem:[%s5577 + $0x190] sm:$0xff]
        %v5629 = vld [vmem:[%s5577 + $0x198] sm:$0xff]
        %v5630 = vld [vmem:[%s5577 + $0x1a0] sm:$0xff]
        %v5631 = vld [vmem:[%s5577 + $0x1a8] sm:$0xff]
        %v5632 = vld [vmem:[%s5577 + $0x1b0] sm:$0xff]
        %v5633 = vld [vmem:[%s5577 + $0x1b8] sm:$0xff]
        %v5634 = vld [vmem:[%s5577 + $0x1c0] sm:$0xff]
        %v5635 = vld [vmem:[%s5577 + $0x1c8] sm:$0xff]
        %v5636 = vld [vmem:[%s5577 + $0x1d0] sm:$0xff]
        %v5637 = vld [vmem:[%s5577 + $0x1d8] sm:$0xff]
        %v5638 = vld [vmem:[%s5577 + $0x1e0] sm:$0xff]
        %v5639 = vld [vmem:[%s5577 + $0x1e8] sm:$0xff]
        %v5640 = vld [vmem:[%s5577 + $0x1f0] sm:$0xff]
        %v5641 = vld [vmem:[%s5577 + $0x1f8] sm:$0xff]
        %v5642 = vld [vmem:[%s5577 + $0x200] sm:$0xff]
        %v5643 = vld [vmem:[%s5577 + $0x208] sm:$0xff]
        %v5644 = vld [vmem:[%s5577 + $0x210] sm:$0xff]
        %v5645 = vld [vmem:[%s5577 + $0x218] sm:$0xff]
        %v5646 = vld [vmem:[%s5577 + $0x220] sm:$0xff]
        %v5647 = vld [vmem:[%s5577 + $0x228] sm:$0xff]
        %v5648 = vld [vmem:[%s5577 + $0x230] sm:$0xff]
        %v5649 = vld [vmem:[%s5577 + $0x238] sm:$0xff]
        %v5650 = vld [vmem:[%s5577 + $0x240] sm:$0xff]
        %v5651 = vld [vmem:[%s5577 + $0x248] sm:$0xff]
        %v5652 = vld [vmem:[%s5577 + $0x250] sm:$0xff]
        %v5653 = vld [vmem:[%s5577 + $0x258] sm:$0xff]
        %v5654 = vld [vmem:[%s5577 + $0x260] sm:$0xff]
        %v5655 = vld [vmem:[%s5577 + $0x268] sm:$0xff]
        %v5656 = vld [vmem:[%s5577 + $0x270] sm:$0xff]
        %v5657 = vld [vmem:[%s5577 + $0x278] sm:$0xff]
        %v5658 = vld [vmem:[%s5577 + $0x280] sm:$0xff]
        %v5659 = vld [vmem:[%s5577 + $0x288] sm:$0xff]
        %v5660 = vld [vmem:[%s5577 + $0x290] sm:$0xff]
        %v5661 = vld [vmem:[%s5577 + $0x298] sm:$0xff]
        %v5662 = vld [vmem:[%s5577 + $0x2a0] sm:$0xff]
        %v5663 = vld [vmem:[%s5577 + $0x2a8] sm:$0xff]
        %v5664 = vld [vmem:[%s5577 + $0x2b0] sm:$0xff]
        %v5665 = vld [vmem:[%s5577 + $0x2b8] sm:$0xff]
        %v5666 = vld [vmem:[%s5577 + $0x2c0] sm:$0xff]
        %v5667 = vld [vmem:[%s5577 + $0x2c8] sm:$0xff]
        %v5668 = vld [vmem:[%s5577 + $0x2d0] sm:$0xff]
        %v5669 = vld [vmem:[%s5577 + $0x2d8] sm:$0xff]
        %v5670 = vld [vmem:[%s5577 + $0x2e0] sm:$0xff]
        %v5671 = vld [vmem:[%s5577 + $0x2e8] sm:$0xff]
        %v5672 = vld [vmem:[%s5577 + $0x2f0] sm:$0xff]
        %v5673 = vld [vmem:[%s5577 + $0x2f8] sm:$0xff]
        %v5674 = vld [vmem:[%s5577 + $0x300] sm:$0xff]
        %v5675 = vld [vmem:[%s5577 + $0x308] sm:$0xff]
        %v5676 = vld [vmem:[%s5577 + $0x310] sm:$0xff]
        %v5677 = vld [vmem:[%s5577 + $0x318] sm:$0xff]
        %v5678 = vld [vmem:[%s5577 + $0x320] sm:$0xff]
        %v5679 = vld [vmem:[%s5577 + $0x328] sm:$0xff]
        %v5680 = vld [vmem:[%s5577 + $0x330] sm:$0xff]
        %v5681 = vld [vmem:[%s5577 + $0x338] sm:$0xff]
        %v5682 = vld [vmem:[%s5577 + $0x340] sm:$0xff]
        %v5683 = vld [vmem:[%s5577 + $0x348] sm:$0xff]
        %v5684 = vld [vmem:[%s5577 + $0x350] sm:$0xff]
        %v5685 = vld [vmem:[%s5577 + $0x358] sm:$0xff]
        %v5698 = vrot.slane %v5569, 6
        %v5699 = vrot.slane %v5452, 6
        %v5700 = vsel %vm434, %v5698, %v5699
        %v5701 = vrot.slane %v5570, 6
        %v5702 = vrot.slane %v5453, 6
        %v5703 = vsel %vm434, %v5701, %v5702
        %v5704 = vrot.slane %v5571, 6
        %v5705 = vrot.slane %v5454, 6
        %v5706 = vsel %vm434, %v5704, %v5705
        %v5707 = vrot.slane %v5572, 6
        %v5708 = vrot.slane %v5455, 6
        %v5709 = vsel %vm434, %v5707, %v5708
        %v5710 = vrot.slane %v5573, 6
        %v5711 = vsel %vm434, %v5699, %v5710
        %v5712 = vrot.slane %v5574, 6
        %v5713 = vsel %vm434, %v5702, %v5712
        %v5714 = vrot.slane %v5575, 6
        %v5715 = vsel %vm434, %v5705, %v5714
        %v5716 = vrot.slane %v5576, 6
        %v5717 = vsel %vm434, %v5708, %v5716
        %v5724 = vsel %vm162, %v5709, 0
        %v5726 = vsel %vm162, %v5717, 0
        %5728 = vmatprep.subr.mxu0 %v5579
        %5729 = vmatpush1.msra.mxu0 %v5578
        %5730 = vmatprep.subr.mxu0 %v5581
        %5731 = vmatpush1.msra.mxu0 %v5580
        %5732 = vmatprep.subr.mxu0 %v5583
        %5733 = vmatpush1.msra.mxu0 %v5582
        %5734 = vmatprep.subr.mxu0 %v5585
        %5735 = vmatpush1.msra.mxu0 %v5584
        %5736 = vmatprep.subr.mxu0 %v5587
        %5737 = vmatpush1.msra.mxu0 %v5586
        %5738 = vmatprep.subr.mxu0 %v5589
        %5739 = vmatpush1.msra.mxu0 %v5588
        %5740 = vmatprep.subr.mxu0 %v5591
        %5741 = vmatpush1.msra.mxu0 %v5590
        %5742 = vmatprep.subr.mxu0 %v5593
        %5743 = vmatpush1.msra.mxu0 %v5592
        %5744 = vmatprep.subr.mxu0 %v5595
        %5745 = vmatpush1.msra.mxu0 %v5594
        %5746 = vmatprep.subr.mxu0 %v5597
        %5747 = vmatpush1.msra.mxu0 %v5596
        %5748 = vmatprep.subr.mxu0 %v5599
        %5749 = vmatpush1.msra.mxu0 %v5598
        %5750 = vmatprep.subr.mxu0 %v5601
        %5751 = vmatpush1.msra.mxu0 %v5600
        %5752 = vmatprep.subr.mxu0 %v5603
        %5753 = vmatpush1.msra.mxu0 %v5602
        %5754 = vmatprep.subr.mxu0 %v5605
        %5755 = vmatpush1.msra.mxu0 %v5604
        %5756 = vmatprep.subr.mxu0 %v5607
        %5757 = vmatpush1.msra.mxu0 %v5606
        %5758 = vmatprep.subr.mxu0 %v5609
        %5759 = vmatpush1.msra.mxu0 %v5608
        %5760 = vmatprep.subr.mxu0 %v5611
        %5761 = vmatpush1.msra.mxu0 %v5610
        %5762 = vmatprep.subr.mxu0 %v5613
        %5763 = vmatpush1.msra.mxu0 %v5612
        %5764 = vmatprep.subr.mxu0 %v5615
        %5765 = vmatpush1.msra.mxu0 %v5614
        %5766 = vmatprep.subr.mxu0 %v5617
        %5767 = vmatpush1.msra.mxu0 %v5616
        %5768 = vmatprep.subr.mxu0 %v5619
        %5769 = vmatpush1.msra.mxu0 %v5618
        %5770 = vmatprep.subr.mxu0 %v5621
        %5771 = vmatpush1.msra.mxu0 %v5620
        %5772 = vmatprep.subr.mxu0 %v5623
        %5773 = vmatpush1.msra.mxu0 %v5622
        %5774 = vmatprep.subr.mxu0 %v5625
        %5775 = vmatpush1.msra.mxu0 %v5624
        %5776 = vmatprep.subr.mxu0 %v5627
        %5777 = vmatpush1.msra.mxu0 %v5626
        %5778 = vmatprep.subr.mxu0 %v5629
        %5779 = vmatpush1.msra.mxu0 %v5628
        %5780 = vmatprep.subr.mxu0 %v5631
        %5781 = vmatpush1.msra.mxu0 %v5630
        %5782 = vmatprep.subr.mxu0 %v5633
        %5783 = vmatpush1.msra.mxu0 %v5632
        %5784 = vmatprep.subr.mxu0 %v5635
        %5785 = vmatpush1.msra.mxu0 %v5634
        %5786 = vmatprep.subr.mxu0 %v5637
        %5787 = vmatpush1.msra.mxu0 %v5636
        %5788 = vmatprep.subr.mxu0 %v5639
        %5789 = vmatpush1.msra.mxu0 %v5638
        %5790 = vmatprep.subr.mxu0 %v5641
        %5791 = vmatpush1.msra.mxu0 %v5640
        %5792 = vmatprep.mubr.f32.mxu0 %v5703
        %5793 = vmatmul.mubr.f32.gmra.mrb[0].mxu0 %v5700
        %v5794 = vpop.f32.mrb[0].mxu0
        %v5795 = vadd.f32 0.0, %v5794
        %v5796 = vpop.f32.mrb[0].mxu0
        %v5797 = vadd.f32 0.0, %v5796
        %5798 = vmatprep.mubr.f32.mxu0 %v5713
        %5799 = vmatmul.mubr.f32.gmra.mrb[0].mxu0 %v5711
        %v5800 = vpop.f32.mrb[0].mxu0
        %v5801 = vadd.f32 0.0, %v5800
        %v5802 = vpop.f32.mrb[0].mxu0
        %v5803 = vadd.f32 0.0, %v5802
        %5804 = vdwg.mxu0
        %5805 = vmatprep.subr.mxu0 %v5643
        %5806 = vmatpush1.msra.mxu0 %v5642
        %5807 = vmatprep.subr.mxu0 %v5645
        %5808 = vmatpush1.msra.mxu0 %v5644
        %5809 = vmatprep.subr.mxu0 %v5647
        %5810 = vmatpush1.msra.mxu0 %v5646
        %5811 = vmatprep.subr.mxu0 %v5649
        %5812 = vmatpush1.msra.mxu0 %v5648
        %5813 = vmatprep.subr.mxu0 %v5651
        %5814 = vmatpush1.msra.mxu0 %v5650
        %5815 = vmatprep.subr.mxu0 %v5653
        %5816 = vmatpush1.msra.mxu0 %v5652
        %5817 = vmatprep.subr.mxu0 %v5655
        %5818 = vmatpush1.msra.mxu0 %v5654
        %5819 = vmatprep.subr.mxu0 %v5657
        %5820 = vmatpush1.msra.mxu0 %v5656
        %5821 = vmatprep.subr.mxu0 %v5659
        %5822 = vmatpush1.msra.mxu0 %v5658
        %5823 = vmatprep.subr.mxu0 %v5661
        %5824 = vmatpush1.msra.mxu0 %v5660
        %5825 = vmatprep.subr.mxu0 %v5663
        %5826 = vmatpush1.msra.mxu0 %v5662
        %5827 = vmatprep.subr.mxu0 %v5665
        %5828 = vmatpush1.msra.mxu0 %v5664
        %5829 = vmatprep.subr.mxu0 %v5667
        %5830 = vmatpush1.msra.mxu0 %v5666
        %5831 = vmatprep.subr.mxu0 %v5669
        %5832 = vmatpush1.msra.mxu0 %v5668
        %5833 = vmatprep.subr.mxu0 %v5671
        %5834 = vmatpush1.msra.mxu0 %v5670
        %5835 = vmatprep.subr.mxu0 %v5673
        %5836 = vmatpush1.msra.mxu0 %v5672
        %5837 = vmatprep.subr.mxu0 %v5675
        %5838 = vmatpush1.msra.mxu0 %v5674
        %5839 = vmatprep.subr.mxu0 %v5677
        %5840 = vmatpush1.msra.mxu0 %v5676
        %5841 = vmatprep.subr.mxu0 %v5679
        %5842 = vmatpush1.msra.mxu0 %v5678
        %5843 = vmatprep.subr.mxu0 %v5681
        %5844 = vmatpush1.msra.mxu0 %v5680
        %5845 = vmatprep.subr.mxu0 %v5683
        %5846 = vmatpush1.msra.mxu0 %v5682
        %5847 = vmatprep.subr.mxu0 %v5685
        %5848 = vmatpush1.msra.mxu0 %v5684
        %5849 = vmatprep.subr.mxu0 0.0
        %5850 = vmatpush1.msra.mxu0 0.0
        %5851 = vmatprep.subr.mxu0 0.0
        %5852 = vmatpush1.msra.mxu0 0.0
        %5853 = vmatprep.subr.mxu0 0.0
        %5854 = vmatpush1.msra.mxu0 0.0
        %5855 = vmatprep.subr.mxu0 0.0
        %5856 = vmatpush1.msra.mxu0 0.0
        %5857 = vmatprep.subr.mxu0 0.0
        %5858 = vmatpush1.msra.mxu0 0.0
        %5859 = vmatprep.subr.mxu0 0.0
        %5860 = vmatpush1.msra.mxu0 0.0
        %5861 = vmatprep.subr.mxu0 0.0
        %5862 = vmatpush1.msra.mxu0 0.0
        %5863 = vmatprep.subr.mxu0 0.0
        %5864 = vmatpush1.msra.mxu0 0.0
        %5865 = vmatprep.subr.mxu0 0.0
        %5866 = vmatpush1.msra.mxu0 0.0
        %5867 = vmatprep.subr.mxu0 0.0
        %5868 = vmatpush1.msra.mxu0 0.0
        %5869 = vmatprep.mubr.f32.mxu0 %v5724
        %5870 = vmatmul.mubr.f32.gmra.mrb[0].mxu0 %v5706
        %v5871 = vpop.f32.mrb[0].mxu0
        %v5872 = vadd.f32 %v5795, %v5871
        %v5873 = vpop.f32.mrb[0].mxu0
        %v5874 = vadd.f32 %v5797, %v5873
        %5875 = vmatprep.mubr.f32.mxu0 %v5726
        %5876 = vmatmul.mubr.f32.gmra.mrb[0].mxu0 %v5715
        %v5877 = vpop.f32.mrb[0].mxu0
        %v5878 = vadd.f32 %v5801, %v5877
        %v5879 = vpop.f32.mrb[0].mxu0
        %v5880 = vadd.f32 %v5803, %v5879
        %5881 = vdwg.mxu0
        %v5890 = vrot.slane %v5448, 5
        %v5891 = vrot.slane %v5452, 5
        %v5892 = vsel %vm627, %v5890, %v5891
        %v5893 = vrot.slane %v5449, 5
        %v5894 = vrot.slane %v5453, 5
        %v5895 = vsel %vm627, %v5893, %v5894
        %v5896 = vrot.slane %v5450, 5
        %v5897 = vrot.slane %v5454, 5
        %v5898 = vsel %vm627, %v5896, %v5897
        %v5899 = vrot.slane %v5451, 5
        %v5900 = vrot.slane %v5455, 5
        %v5901 = vsel %vm627, %v5899, %v5900
        %v5902 = vrot.slane %v5456, 5
        %v5903 = vsel %vm627, %v5891, %v5902
        %v5904 = vrot.slane %v5457, 5
        %v5905 = vsel %vm627, %v5894, %v5904
        %v5906 = vrot.slane %v5458, 5
        %v5907 = vsel %vm627, %v5897, %v5906
        %v5908 = vrot.slane %v5459, 5
        %v5909 = vsel %vm627, %v5900, %v5908
        %v5916 = vsel %vm162, %v5901, 0
        %v5918 = vsel %vm162, %v5909, 0
        %5920 = vmatprep.subr.mxu0 %v5462
        %5921 = vmatpush1.msra.mxu0 %v5461
        %5922 = vmatprep.subr.mxu0 %v5464
        %5923 = vmatpush1.msra.mxu0 %v5463
        %5924 = vmatprep.subr.mxu0 %v5466
        %5925 = vmatpush1.msra.mxu0 %v5465
        %5926 = vmatprep.subr.mxu0 %v5468
        %5927 = vmatpush1.msra.mxu0 %v5467
        %5928 = vmatprep.subr.mxu0 %v5470
        %5929 = vmatpush1.msra.mxu0 %v5469
        %5930 = vmatprep.subr.mxu0 %v5472
        %5931 = vmatpush1.msra.mxu0 %v5471
        %5932 = vmatprep.subr.mxu0 %v5474
        %5933 = vmatpush1.msra.mxu0 %v5473
        %5934 = vmatprep.subr.mxu0 %v5476
        %5935 = vmatpush1.msra.mxu0 %v5475
        %5936 = vmatprep.subr.mxu0 %v5478
        %5937 = vmatpush1.msra.mxu0 %v5477
        %5938 = vmatprep.subr.mxu0 %v5480
        %5939 = vmatpush1.msra.mxu0 %v5479
        %5940 = vmatprep.subr.mxu0 %v5482
        %5941 = vmatpush1.msra.mxu0 %v5481
        %5942 = vmatprep.subr.mxu0 %v5484
        %5943 = vmatpush1.msra.mxu0 %v5483
        %5944 = vmatprep.subr.mxu0 %v5486
        %5945 = vmatpush1.msra.mxu0 %v5485
        %5946 = vmatprep.subr.mxu0 %v5488
        %5947 = vmatpush1.msra.mxu0 %v5487
        %5948 = vmatprep.subr.mxu0 %v5490
        %5949 = vmatpush1.msra.mxu0 %v5489
        %5950 = vmatprep.subr.mxu0 %v5492
        %5951 = vmatpush1.msra.mxu0 %v5491
        %5952 = vmatprep.subr.mxu0 %v5494
        %5953 = vmatpush1.msra.mxu0 %v5493
        %5954 = vmatprep.subr.mxu0 %v5496
        %5955 = vmatpush1.msra.mxu0 %v5495
        %5956 = vmatprep.subr.mxu0 %v5498
        %5957 = vmatpush1.msra.mxu0 %v5497
        %5958 = vmatprep.subr.mxu0 %v5500
        %5959 = vmatpush1.msra.mxu0 %v5499
        %5960 = vmatprep.subr.mxu0 %v5502
        %5961 = vmatpush1.msra.mxu0 %v5501
        %5962 = vmatprep.subr.mxu0 %v5504
        %5963 = vmatpush1.msra.mxu0 %v5503
        %5964 = vmatprep.subr.mxu0 %v5506
        %5965 = vmatpush1.msra.mxu0 %v5505
        %5966 = vmatprep.subr.mxu0 %v5508
        %5967 = vmatpush1.msra.mxu0 %v5507
        %5968 = vmatprep.subr.mxu0 %v5510
        %5969 = vmatpush1.msra.mxu0 %v5509
        %5970 = vmatprep.subr.mxu0 %v5512
        %5971 = vmatpush1.msra.mxu0 %v5511
        %5972 = vmatprep.subr.mxu0 %v5514
        %5973 = vmatpush1.msra.mxu0 %v5513
        %5974 = vmatprep.subr.mxu0 %v5516
        %5975 = vmatpush1.msra.mxu0 %v5515
        %5976 = vmatprep.subr.mxu0 %v5518
        %5977 = vmatpush1.msra.mxu0 %v5517
        %5978 = vmatprep.subr.mxu0 %v5520
        %5979 = vmatpush1.msra.mxu0 %v5519
        %5980 = vmatprep.subr.mxu0 %v5522
        %5981 = vmatpush1.msra.mxu0 %v5521
        %5982 = vmatprep.subr.mxu0 %v5524
        %5983 = vmatpush1.msra.mxu0 %v5523
        %5984 = vmatprep.mubr.f32.mxu0 %v5895
        %5985 = vmatmul.mubr.f32.gmra.mrb[0].mxu0 %v5892
        %v5986 = vpop.f32.mrb[0].mxu0
        %v5987 = vadd.f32 %v5872, %v5986
        %v5988 = vpop.f32.mrb[0].mxu0
        %v5989 = vadd.f32 %v5874, %v5988
        %5990 = vmatprep.mubr.f32.mxu0 %v5905
        %5991 = vmatmul.mubr.f32.gmra.mrb[0].mxu0 %v5903
        %v5992 = vpop.f32.mrb[0].mxu0
        %v5993 = vadd.f32 %v5878, %v5992
        %v5994 = vpop.f32.mrb[0].mxu0
        %v5995 = vadd.f32 %v5880, %v5994
        %5996 = vdwg.mxu0
        %5997 = vmatprep.subr.mxu0 %v5526
        %5998 = vmatpush1.msra.mxu0 %v5525
        %5999 = vmatprep.subr.mxu0 %v5528
        %6000 = vmatpush1.msra.mxu0 %v5527
        %6001 = vmatprep.subr.mxu0 %v5530
        %6002 = vmatpush1.msra.mxu0 %v5529
        %6003 = vmatprep.subr.mxu0 %v5532
        %6004 = vmatpush1.msra.mxu0 %v5531
        %6005 = vmatprep.subr.mxu0 %v5534
        %6006 = vmatpush1.msra.mxu0 %v5533
        %6007 = vmatprep.subr.mxu0 %v5536
        %6008 = vmatpush1.msra.mxu0 %v5535
        %6009 = vmatprep.subr.mxu0 %v5538
        %6010 = vmatpush1.msra.mxu0 %v5537
        %6011 = vmatprep.subr.mxu0 %v5540
        %6012 = vmatpush1.msra.mxu0 %v5539
        %6013 = vmatprep.subr.mxu0 %v5542
        %6014 = vmatpush1.msra.mxu0 %v5541
        %6015 = vmatprep.subr.mxu0 %v5544
        %6016 = vmatpush1.msra.mxu0 %v5543
        %6017 = vmatprep.subr.mxu0 %v5546
        %6018 = vmatpush1.msra.mxu0 %v5545
        %6019 = vmatprep.subr.mxu0 %v5548
        %6020 = vmatpush1.msra.mxu0 %v5547
        %6021 = vmatprep.subr.mxu0 %v5550
        %6022 = vmatpush1.msra.mxu0 %v5549
        %6023 = vmatprep.subr.mxu0 %v5552
        %6024 = vmatpush1.msra.mxu0 %v5551
        %6025 = vmatprep.subr.mxu0 %v5554
        %6026 = vmatpush1.msra.mxu0 %v5553
        %6027 = vmatprep.subr.mxu0 %v5556
        %6028 = vmatpush1.msra.mxu0 %v5555
        %6029 = vmatprep.subr.mxu0 %v5558
        %6030 = vmatpush1.msra.mxu0 %v5557
        %6031 = vmatprep.subr.mxu0 %v5560
        %6032 = vmatpush1.msra.mxu0 %v5559
        %6033 = vmatprep.subr.mxu0 %v5562
        %6034 = vmatpush1.msra.mxu0 %v5561
        %6035 = vmatprep.subr.mxu0 %v5564
        %6036 = vmatpush1.msra.mxu0 %v5563
        %6037 = vmatprep.subr.mxu0 %v5566
        %6038 = vmatpush1.msra.mxu0 %v5565
        %6039 = vmatprep.subr.mxu0 %v5568
        %6040 = vmatpush1.msra.mxu0 %v5567
        %6041 = vmatprep.subr.mxu0 0.0
        %6042 = vmatpush1.msra.mxu0 0.0
        %6043 = vmatprep.subr.mxu0 0.0
        %6044 = vmatpush1.msra.mxu0 0.0
        %6045 = vmatprep.subr.mxu0 0.0
        %6046 = vmatpush1.msra.mxu0 0.0
        %6047 = vmatprep.subr.mxu0 0.0
        %6048 = vmatpush1.msra.mxu0 0.0
        %6049 = vmatprep.subr.mxu0 0.0
        %6050 = vmatpush1.msra.mxu0 0.0
        %6051 = vmatprep.subr.mxu0 0.0
        %6052 = vmatpush1.msra.mxu0 0.0
        %6053 = vmatprep.subr.mxu0 0.0
        %6054 = vmatpush1.msra.mxu0 0.0
        %6055 = vmatprep.subr.mxu0 0.0
        %6056 = vmatpush1.msra.mxu0 0.0
        %6057 = vmatprep.subr.mxu0 0.0
        %6058 = vmatpush1.msra.mxu0 0.0
        %6059 = vmatprep.subr.mxu0 0.0
        %6060 = vmatpush1.msra.mxu0 0.0
        %6061 = vmatprep.mubr.f32.mxu0 %v5916
        %6062 = vmatmul.mubr.f32.gmra.mrb[0].mxu0 %v5898
        %v6063 = vpop.f32.mrb[0].mxu0
        %v6064 = vadd.f32 %v5987, %v6063
        %v6065 = vpop.f32.mrb[0].mxu0
        %v6066 = vadd.f32 %v5989, %v6065
        %6067 = vmatprep.mubr.f32.mxu0 %v5918
        %6068 = vmatmul.mubr.f32.gmra.mrb[0].mxu0 %v5907
        %v6069 = vpop.f32.mrb[0].mxu0
        %v6070 = vadd.f32 %v5993, %v6069
        %v6071 = vpop.f32.mrb[0].mxu0
        %v6072 = vadd.f32 %v5995, %v6071
        %6073 = vdwg.mxu0
        %v6074 = vld [vmem:[#allocation2] sm:$0x80]
        %v6075 = vld [vmem:[#allocation2 + $0x8] sm:$0x80]
        %v6076 = vld [vmem:[#allocation2 + $0x10] sm:$0x80]
        %v6077 = vld [vmem:[#allocation2 + $0x18] sm:$0x80]
        %v6078 = vld [vmem:[#allocation2 + $0x40] sm:$0x7f]
        %v6079 = vld [vmem:[#allocation2 + $0x48] sm:$0x7f]
        %v6080 = vld [vmem:[#allocation2 + $0x50] sm:$0x7f]
        %v6081 = vld [vmem:[#allocation2 + $0x58] sm:$0x7f]
        %s6082 = scalar_lea.vmem [#allocation3], 16416
        %v6083 = vld [vmem:[%s6082] sm:$0xff]
        %v6084 = vld [vmem:[%s6082 + $0x8] sm:$0xff]
        %v6085 = vld [vmem:[%s6082 + $0x10] sm:$0xff]
        %v6086 = vld [vmem:[%s6082 + $0x18] sm:$0xff]
        %v6087 = vld [vmem:[%s6082 + $0x20] sm:$0xff]
        %v6088 = vld [vmem:[%s6082 + $0x28] sm:$0xff]
        %v6089 = vld [vmem:[%s6082 + $0x30] sm:$0xff]
        %v6090 = vld [vmem:[%s6082 + $0x38] sm:$0xff]
        %v6091 = vld [vmem:[%s6082 + $0x40] sm:$0xff]
        %v6092 = vld [vmem:[%s6082 + $0x48] sm:$0xff]
        %v6093 = vld [vmem:[%s6082 + $0x50] sm:$0xff]
        %v6094 = vld [vmem:[%s6082 + $0x58] sm:$0xff]
        %v6095 = vld [vmem:[%s6082 + $0x60] sm:$0xff]
        %v6096 = vld [vmem:[%s6082 + $0x68] sm:$0xff]
        %v6097 = vld [vmem:[%s6082 + $0x70] sm:$0xff]
        %v6098 = vld [vmem:[%s6082 + $0x78] sm:$0xff]
        %v6099 = vld [vmem:[%s6082 + $0x80] sm:$0xff]
        %v6100 = vld [vmem:[%s6082 + $0x88] sm:$0xff]
        %v6101 = vld [vmem:[%s6082 + $0x90] sm:$0xff]
        %v6102 = vld [vmem:[%s6082 + $0x98] sm:$0xff]
        %v6103 = vld [vmem:[%s6082 + $0xa0] sm:$0xff]
        %v6104 = vld [vmem:[%s6082 + $0xa8] sm:$0xff]
        %v6105 = vld [vmem:[%s6082 + $0xb0] sm:$0xff]
        %v6106 = vld [vmem:[%s6082 + $0xb8] sm:$0xff]
        %v6107 = vld [vmem:[%s6082 + $0xc0] sm:$0xff]
        %v6108 = vld [vmem:[%s6082 + $0xc8] sm:$0xff]
        %v6109 = vld [vmem:[%s6082 + $0xd0] sm:$0xff]
        %v6110 = vld [vmem:[%s6082 + $0xd8] sm:$0xff]
        %v6111 = vld [vmem:[%s6082 + $0xe0] sm:$0xff]
        %v6112 = vld [vmem:[%s6082 + $0xe8] sm:$0xff]
        %v6113 = vld [vmem:[%s6082 + $0xf0] sm:$0xff]
        %v6114 = vld [vmem:[%s6082 + $0xf8] sm:$0xff]
        %v6115 = vld [vmem:[%s6082 + $0x100] sm:$0xff]
        %v6116 = vld [vmem:[%s6082 + $0x108] sm:$0xff]
        %v6117 = vld [vmem:[%s6082 + $0x110] sm:$0xff]
        %v6118 = vld [vmem:[%s6082 + $0x118] sm:$0xff]
        %v6119 = vld [vmem:[%s6082 + $0x120] sm:$0xff]
        %v6120 = vld [vmem:[%s6082 + $0x128] sm:$0xff]
        %v6121 = vld [vmem:[%s6082 + $0x130] sm:$0xff]
        %v6122 = vld [vmem:[%s6082 + $0x138] sm:$0xff]
        %v6123 = vld [vmem:[%s6082 + $0x140] sm:$0xff]
        %v6124 = vld [vmem:[%s6082 + $0x148] sm:$0xff]
        %v6125 = vld [vmem:[%s6082 + $0x150] sm:$0xff]
        %v6126 = vld [vmem:[%s6082 + $0x158] sm:$0xff]
        %v6127 = vld [vmem:[%s6082 + $0x160] sm:$0xff]
        %v6128 = vld [vmem:[%s6082 + $0x168] sm:$0xff]
        %v6129 = vld [vmem:[%s6082 + $0x170] sm:$0xff]
        %v6130 = vld [vmem:[%s6082 + $0x178] sm:$0xff]
        %v6131 = vld [vmem:[%s6082 + $0x180] sm:$0xff]
        %v6132 = vld [vmem:[%s6082 + $0x188] sm:$0xff]
        %v6133 = vld [vmem:[%s6082 + $0x190] sm:$0xff]
        %v6134 = vld [vmem:[%s6082 + $0x198] sm:$0xff]
        %v6135 = vld [vmem:[%s6082 + $0x1a0] sm:$0xff]
        %v6136 = vld [vmem:[%s6082 + $0x1a8] sm:$0xff]
        %v6137 = vld [vmem:[%s6082 + $0x1b0] sm:$0xff]
        %v6138 = vld [vmem:[%s6082 + $0x1b8] sm:$0xff]
        %v6139 = vld [vmem:[%s6082 + $0x1c0] sm:$0xff]
        %v6140 = vld [vmem:[%s6082 + $0x1c8] sm:$0xff]
        %v6141 = vld [vmem:[%s6082 + $0x1d0] sm:$0xff]
        %v6142 = vld [vmem:[%s6082 + $0x1d8] sm:$0xff]
        %v6143 = vld [vmem:[%s6082 + $0x1e0] sm:$0xff]
        %v6144 = vld [vmem:[%s6082 + $0x1e8] sm:$0xff]
        %v6145 = vld [vmem:[%s6082 + $0x1f0] sm:$0xff]
        %v6146 = vld [vmem:[%s6082 + $0x1f8] sm:$0xff]
        %v6147 = vld [vmem:[%s6082 + $0x200] sm:$0xff]
        %v6148 = vld [vmem:[%s6082 + $0x208] sm:$0xff]
        %v6149 = vld [vmem:[%s6082 + $0x210] sm:$0xff]
        %v6150 = vld [vmem:[%s6082 + $0x218] sm:$0xff]
        %v6151 = vld [vmem:[%s6082 + $0x220] sm:$0xff]
        %v6152 = vld [vmem:[%s6082 + $0x228] sm:$0xff]
        %v6153 = vld [vmem:[%s6082 + $0x230] sm:$0xff]
        %v6154 = vld [vmem:[%s6082 + $0x238] sm:$0xff]
        %v6155 = vld [vmem:[%s6082 + $0x240] sm:$0xff]
        %v6156 = vld [vmem:[%s6082 + $0x248] sm:$0xff]
        %v6157 = vld [vmem:[%s6082 + $0x250] sm:$0xff]
        %v6158 = vld [vmem:[%s6082 + $0x258] sm:$0xff]
        %v6159 = vld [vmem:[%s6082 + $0x260] sm:$0xff]
        %v6160 = vld [vmem:[%s6082 + $0x268] sm:$0xff]
        %v6161 = vld [vmem:[%s6082 + $0x270] sm:$0xff]
        %v6162 = vld [vmem:[%s6082 + $0x278] sm:$0xff]
        %v6163 = vld [vmem:[%s6082 + $0x280] sm:$0xff]
        %v6164 = vld [vmem:[%s6082 + $0x288] sm:$0xff]
        %v6165 = vld [vmem:[%s6082 + $0x290] sm:$0xff]
        %v6166 = vld [vmem:[%s6082 + $0x298] sm:$0xff]
        %v6167 = vld [vmem:[%s6082 + $0x2a0] sm:$0xff]
        %v6168 = vld [vmem:[%s6082 + $0x2a8] sm:$0xff]
        %v6169 = vld [vmem:[%s6082 + $0x2b0] sm:$0xff]
        %v6170 = vld [vmem:[%s6082 + $0x2b8] sm:$0xff]
        %v6171 = vld [vmem:[%s6082 + $0x2c0] sm:$0xff]
        %v6172 = vld [vmem:[%s6082 + $0x2c8] sm:$0xff]
        %v6173 = vld [vmem:[%s6082 + $0x2d0] sm:$0xff]
        %v6174 = vld [vmem:[%s6082 + $0x2d8] sm:$0xff]
        %v6175 = vld [vmem:[%s6082 + $0x2e0] sm:$0xff]
        %v6176 = vld [vmem:[%s6082 + $0x2e8] sm:$0xff]
        %v6177 = vld [vmem:[%s6082 + $0x2f0] sm:$0xff]
        %v6178 = vld [vmem:[%s6082 + $0x2f8] sm:$0xff]
        %v6179 = vld [vmem:[%s6082 + $0x300] sm:$0xff]
        %v6180 = vld [vmem:[%s6082 + $0x308] sm:$0xff]
        %v6181 = vld [vmem:[%s6082 + $0x310] sm:$0xff]
        %v6182 = vld [vmem:[%s6082 + $0x318] sm:$0xff]
        %v6183 = vld [vmem:[%s6082 + $0x320] sm:$0xff]
        %v6184 = vld [vmem:[%s6082 + $0x328] sm:$0xff]
        %v6185 = vld [vmem:[%s6082 + $0x330] sm:$0xff]
        %v6186 = vld [vmem:[%s6082 + $0x338] sm:$0xff]
        %v6187 = vld [vmem:[%s6082 + $0x340] sm:$0xff]
        %v6188 = vld [vmem:[%s6082 + $0x348] sm:$0xff]
        %v6189 = vld [vmem:[%s6082 + $0x350] sm:$0xff]
        %v6190 = vld [vmem:[%s6082 + $0x358] sm:$0xff]
        %v6199 = vrot.slane %v6074, 7
        %v6200 = vrot.slane %v5452, 7
        %v6201 = vsel %vm937, %v6199, %v6200
        %v6202 = vrot.slane %v6075, 7
        %v6203 = vrot.slane %v5453, 7
        %v6204 = vsel %vm937, %v6202, %v6203
        %v6205 = vrot.slane %v6076, 7
        %v6206 = vrot.slane %v5454, 7
        %v6207 = vsel %vm937, %v6205, %v6206
        %v6208 = vrot.slane %v6077, 7
        %v6209 = vrot.slane %v5455, 7
        %v6210 = vsel %vm937, %v6208, %v6209
        %v6211 = vrot.slane %v6078, 7
        %v6212 = vsel %vm937, %v6200, %v6211
        %v6213 = vrot.slane %v6079, 7
        %v6214 = vsel %vm937, %v6203, %v6213
        %v6215 = vrot.slane %v6080, 7
        %v6216 = vsel %vm937, %v6206, %v6215
        %v6217 = vrot.slane %v6081, 7
        %v6218 = vsel %vm937, %v6209, %v6217
        %v6225 = vsel %vm162, %v6210, 0
        %v6227 = vsel %vm162, %v6218, 0
        %6229 = vmatprep.subr.mxu0 %v6084
        %6230 = vmatpush1.msra.mxu0 %v6083
        %6231 = vmatprep.subr.mxu0 %v6086
        %6232 = vmatpush1.msra.mxu0 %v6085
        %6233 = vmatprep.subr.mxu0 %v6088
        %6234 = vmatpush1.msra.mxu0 %v6087
        %6235 = vmatprep.subr.mxu0 %v6090
        %6236 = vmatpush1.msra.mxu0 %v6089
        %6237 = vmatprep.subr.mxu0 %v6092
        %6238 = vmatpush1.msra.mxu0 %v6091
        %6239 = vmatprep.subr.mxu0 %v6094
        %6240 = vmatpush1.msra.mxu0 %v6093
        %6241 = vmatprep.subr.mxu0 %v6096
        %6242 = vmatpush1.msra.mxu0 %v6095
        %6243 = vmatprep.subr.mxu0 %v6098
        %6244 = vmatpush1.msra.mxu0 %v6097
        %6245 = vmatprep.subr.mxu0 %v6100
        %6246 = vmatpush1.msra.mxu0 %v6099
        %6247 = vmatprep.subr.mxu0 %v6102
        %6248 = vmatpush1.msra.mxu0 %v6101
        %6249 = vmatprep.subr.mxu0 %v6104
        %6250 = vmatpush1.msra.mxu0 %v6103
        %6251 = vmatprep.subr.mxu0 %v6106
        %6252 = vmatpush1.msra.mxu0 %v6105
        %6253 = vmatprep.subr.mxu0 %v6108
        %6254 = vmatpush1.msra.mxu0 %v6107
        %6255 = vmatprep.subr.mxu0 %v6110
        %6256 = vmatpush1.msra.mxu0 %v6109
        %6257 = vmatprep.subr.mxu0 %v6112
        %6258 = vmatpush1.msra.mxu0 %v6111
        %6259 = vmatprep.subr.mxu0 %v6114
        %6260 = vmatpush1.msra.mxu0 %v6113
        %6261 = vmatprep.subr.mxu0 %v6116
        %6262 = vmatpush1.msra.mxu0 %v6115
        %6263 = vmatprep.subr.mxu0 %v6118
        %6264 = vmatpush1.msra.mxu0 %v6117
        %6265 = vmatprep.subr.mxu0 %v6120
        %6266 = vmatpush1.msra.mxu0 %v6119
        %6267 = vmatprep.subr.mxu0 %v6122
        %6268 = vmatpush1.msra.mxu0 %v6121
        %6269 = vmatprep.subr.mxu0 %v6124
        %6270 = vmatpush1.msra.mxu0 %v6123
        %6271 = vmatprep.subr.mxu0 %v6126
        %6272 = vmatpush1.msra.mxu0 %v6125
        %6273 = vmatprep.subr.mxu0 %v6128
        %6274 = vmatpush1.msra.mxu0 %v6127
        %6275 = vmatprep.subr.mxu0 %v6130
        %6276 = vmatpush1.msra.mxu0 %v6129
        %6277 = vmatprep.subr.mxu0 %v6132
        %6278 = vmatpush1.msra.mxu0 %v6131
        %6279 = vmatprep.subr.mxu0 %v6134
        %6280 = vmatpush1.msra.mxu0 %v6133
        %6281 = vmatprep.subr.mxu0 %v6136
        %6282 = vmatpush1.msra.mxu0 %v6135
        %6283 = vmatprep.subr.mxu0 %v6138
        %6284 = vmatpush1.msra.mxu0 %v6137
        %6285 = vmatprep.subr.mxu0 %v6140
        %6286 = vmatpush1.msra.mxu0 %v6139
        %6287 = vmatprep.subr.mxu0 %v6142
        %6288 = vmatpush1.msra.mxu0 %v6141
        %6289 = vmatprep.subr.mxu0 %v6144
        %6290 = vmatpush1.msra.mxu0 %v6143
        %6291 = vmatprep.subr.mxu0 %v6146
        %6292 = vmatpush1.msra.mxu0 %v6145
        %6293 = vmatprep.mubr.f32.mxu0 %v6204
        %6294 = vmatmul.mubr.f32.gmra.mrb[0].mxu0 %v6201
        %v6295 = vpop.f32.mrb[0].mxu0
        %v6296 = vadd.f32 0.0, %v6295
        %v6297 = vpop.f32.mrb[0].mxu0
        %v6298 = vadd.f32 0.0, %v6297
        %6299 = vmatprep.mubr.f32.mxu0 %v6214
        %6300 = vmatmul.mubr.f32.gmra.mrb[0].mxu0 %v6212
        %v6301 = vpop.f32.mrb[0].mxu0
        %v6302 = vadd.f32 0.0, %v6301
        %v6303 = vpop.f32.mrb[0].mxu0
        %v6304 = vadd.f32 0.0, %v6303
        %6305 = vdwg.mxu0
        %6306 = vmatprep.subr.mxu0 %v6148
        %6307 = vmatpush1.msra.mxu0 %v6147
        %6308 = vmatprep.subr.mxu0 %v6150
        %6309 = vmatpush1.msra.mxu0 %v6149
        %6310 = vmatprep.subr.mxu0 %v6152
        %6311 = vmatpush1.msra.mxu0 %v6151
        %6312 = vmatprep.subr.mxu0 %v6154
        %6313 = vmatpush1.msra.mxu0 %v6153
        %6314 = vmatprep.subr.mxu0 %v6156
        %6315 = vmatpush1.msra.mxu0 %v6155
        %6316 = vmatprep.subr.mxu0 %v6158
        %6317 = vmatpush1.msra.mxu0 %v6157
        %6318 = vmatprep.subr.mxu0 %v6160
        %6319 = vmatpush1.msra.mxu0 %v6159
        %6320 = vmatprep.subr.mxu0 %v6162
        %6321 = vmatpush1.msra.mxu0 %v6161
        %6322 = vmatprep.subr.mxu0 %v6164
        %6323 = vmatpush1.msra.mxu0 %v6163
        %6324 = vmatprep.subr.mxu0 %v6166
        %6325 = vmatpush1.msra.mxu0 %v6165
        %6326 = vmatprep.subr.mxu0 %v6168
        %6327 = vmatpush1.msra.mxu0 %v6167
        %6328 = vmatprep.subr.mxu0 %v6170
        %6329 = vmatpush1.msra.mxu0 %v6169
        %6330 = vmatprep.subr.mxu0 %v6172
        %6331 = vmatpush1.msra.mxu0 %v6171
        %6332 = vmatprep.subr.mxu0 %v6174
        %6333 = vmatpush1.msra.mxu0 %v6173
        %6334 = vmatprep.subr.mxu0 %v6176
        %6335 = vmatpush1.msra.mxu0 %v6175
        %6336 = vmatprep.subr.mxu0 %v6178
        %6337 = vmatpush1.msra.mxu0 %v6177
        %6338 = vmatprep.subr.mxu0 %v6180
        %6339 = vmatpush1.msra.mxu0 %v6179
        %6340 = vmatprep.subr.mxu0 %v6182
        %6341 = vmatpush1.msra.mxu0 %v6181
        %6342 = vmatprep.subr.mxu0 %v6184
        %6343 = vmatpush1.msra.mxu0 %v6183
        %6344 = vmatprep.subr.mxu0 %v6186
        %6345 = vmatpush1.msra.mxu0 %v6185
        %6346 = vmatprep.subr.mxu0 %v6188
        %6347 = vmatpush1.msra.mxu0 %v6187
        %6348 = vmatprep.subr.mxu0 %v6190
        %6349 = vmatpush1.msra.mxu0 %v6189
        %6350 = vmatprep.subr.mxu0 0.0
        %6351 = vmatpush1.msra.mxu0 0.0
        %6352 = vmatprep.subr.mxu0 0.0
        %6353 = vmatpush1.msra.mxu0 0.0
        %6354 = vmatprep.subr.mxu0 0.0
        %6355 = vmatpush1.msra.mxu0 0.0
        %6356 = vmatprep.subr.mxu0 0.0
        %6357 = vmatpush1.msra.mxu0 0.0
        %6358 = vmatprep.subr.mxu0 0.0
        %6359 = vmatpush1.msra.mxu0 0.0
        %6360 = vmatprep.subr.mxu0 0.0
        %6361 = vmatpush1.msra.mxu0 0.0
        %6362 = vmatprep.subr.mxu0 0.0
        %6363 = vmatpush1.msra.mxu0 0.0
        %6364 = vmatprep.subr.mxu0 0.0
        %6365 = vmatpush1.msra.mxu0 0.0
        %6366 = vmatprep.subr.mxu0 0.0
        %6367 = vmatpush1.msra.mxu0 0.0
        %6368 = vmatprep.subr.mxu0 0.0
        %6369 = vmatpush1.msra.mxu0 0.0
        %6370 = vmatprep.mubr.f32.mxu0 %v6225
        %6371 = vmatmul.mubr.f32.gmra.mrb[0].mxu0 %v6207
        %v6372 = vpop.f32.mrb[0].mxu0
        %v6373 = vadd.f32 %v6296, %v6372
        %v6374 = vpop.f32.mrb[0].mxu0
        %v6375 = vadd.f32 %v6298, %v6374
        %6376 = vmatprep.mubr.f32.mxu0 %v6227
        %6377 = vmatmul.mubr.f32.gmra.mrb[0].mxu0 %v6216
        %v6378 = vpop.f32.mrb[0].mxu0
        %v6379 = vadd.f32 %v6302, %v6378
        %v6380 = vpop.f32.mrb[0].mxu0
        %v6381 = vadd.f32 %v6304, %v6380
        %6382 = vdwg.mxu0
        %v6383 = vadd.f32 %v6064, %v6373
        %v6384 = vadd.f32 %v6066, %v6375
        %v6385 = vadd.f32 %v6070, %v6379
        %v6386 = vadd.f32 %v6072, %v6381
        %v6387 = vld [vmem:[#allocation2 + $0x40] sm:$0xff]
        %v6388 = vld [vmem:[#allocation2 + $0x48] sm:$0xff]
        %v6389 = vld [vmem:[#allocation2 + $0x50] sm:$0xff]
        %v6390 = vld [vmem:[#allocation2 + $0x58] sm:$0xff]
        %s6391 = scalar_lea.vmem [#allocation3], 17280
        %v6392 = vld [vmem:[%s6391] sm:$0xff]
        %v6393 = vld [vmem:[%s6391 + $0x8] sm:$0xff]
        %v6394 = vld [vmem:[%s6391 + $0x10] sm:$0xff]
        %v6395 = vld [vmem:[%s6391 + $0x18] sm:$0xff]
        %v6396 = vld [vmem:[%s6391 + $0x20] sm:$0xff]
        %v6397 = vld [vmem:[%s6391 + $0x28] sm:$0xff]
        %v6398 = vld [vmem:[%s6391 + $0x30] sm:$0xff]
        %v6399 = vld [vmem:[%s6391 + $0x38] sm:$0xff]
        %v6400 = vld [vmem:[%s6391 + $0x40] sm:$0xff]
        %v6401 = vld [vmem:[%s6391 + $0x48] sm:$0xff]
        %v6402 = vld [vmem:[%s6391 + $0x50] sm:$0xff]
        %v6403 = vld [vmem:[%s6391 + $0x58] sm:$0xff]
        %v6404 = vld [vmem:[%s6391 + $0x60] sm:$0xff]
        %v6405 = vld [vmem:[%s6391 + $0x68] sm:$0xff]
        %v6406 = vld [vmem:[%s6391 + $0x70] sm:$0xff]
        %v6407 = vld [vmem:[%s6391 + $0x78] sm:$0xff]
        %v6408 = vld [vmem:[%s6391 + $0x80] sm:$0xff]
        %v6409 = vld [vmem:[%s6391 + $0x88] sm:$0xff]
        %v6410 = vld [vmem:[%s6391 + $0x90] sm:$0xff]
        %v6411 = vld [vmem:[%s6391 + $0x98] sm:$0xff]
        %v6412 = vld [vmem:[%s6391 + $0xa0] sm:$0xff]
        %v6413 = vld [vmem:[%s6391 + $0xa8] sm:$0xff]
        %v6414 = vld [vmem:[%s6391 + $0xb0] sm:$0xff]
        %v6415 = vld [vmem:[%s6391 + $0xb8] sm:$0xff]
        %v6416 = vld [vmem:[%s6391 + $0xc0] sm:$0xff]
        %v6417 = vld [vmem:[%s6391 + $0xc8] sm:$0xff]
        %v6418 = vld [vmem:[%s6391 + $0xd0] sm:$0xff]
        %v6419 = vld [vmem:[%s6391 + $0xd8] sm:$0xff]
        %v6420 = vld [vmem:[%s6391 + $0xe0] sm:$0xff]
        %v6421 = vld [vmem:[%s6391 + $0xe8] sm:$0xff]
        %v6422 = vld [vmem:[%s6391 + $0xf0] sm:$0xff]
        %v6423 = vld [vmem:[%s6391 + $0xf8] sm:$0xff]
        %v6424 = vld [vmem:[%s6391 + $0x100] sm:$0xff]
        %v6425 = vld [vmem:[%s6391 + $0x108] sm:$0xff]
        %v6426 = vld [vmem:[%s6391 + $0x110] sm:$0xff]
        %v6427 = vld [vmem:[%s6391 + $0x118] sm:$0xff]
        %v6428 = vld [vmem:[%s6391 + $0x120] sm:$0xff]
        %v6429 = vld [vmem:[%s6391 + $0x128] sm:$0xff]
        %v6430 = vld [vmem:[%s6391 + $0x130] sm:$0xff]
        %v6431 = vld [vmem:[%s6391 + $0x138] sm:$0xff]
        %v6432 = vld [vmem:[%s6391 + $0x140] sm:$0xff]
        %v6433 = vld [vmem:[%s6391 + $0x148] sm:$0xff]
        %v6434 = vld [vmem:[%s6391 + $0x150] sm:$0xff]
        %v6435 = vld [vmem:[%s6391 + $0x158] sm:$0xff]
        %v6436 = vld [vmem:[%s6391 + $0x160] sm:$0xff]
        %v6437 = vld [vmem:[%s6391 + $0x168] sm:$0xff]
        %v6438 = vld [vmem:[%s6391 + $0x170] sm:$0xff]
        %v6439 = vld [vmem:[%s6391 + $0x178] sm:$0xff]
        %v6440 = vld [vmem:[%s6391 + $0x180] sm:$0xff]
        %v6441 = vld [vmem:[%s6391 + $0x188] sm:$0xff]
        %v6442 = vld [vmem:[%s6391 + $0x190] sm:$0xff]
        %v6443 = vld [vmem:[%s6391 + $0x198] sm:$0xff]
        %v6444 = vld [vmem:[%s6391 + $0x1a0] sm:$0xff]
        %v6445 = vld [vmem:[%s6391 + $0x1a8] sm:$0xff]
        %v6446 = vld [vmem:[%s6391 + $0x1b0] sm:$0xff]
        %v6447 = vld [vmem:[%s6391 + $0x1b8] sm:$0xff]
        %v6448 = vld [vmem:[%s6391 + $0x1c0] sm:$0xff]
        %v6449 = vld [vmem:[%s6391 + $0x1c8] sm:$0xff]
        %v6450 = vld [vmem:[%s6391 + $0x1d0] sm:$0xff]
        %v6451 = vld [vmem:[%s6391 + $0x1d8] sm:$0xff]
        %v6452 = vld [vmem:[%s6391 + $0x1e0] sm:$0xff]
        %v6453 = vld [vmem:[%s6391 + $0x1e8] sm:$0xff]
        %v6454 = vld [vmem:[%s6391 + $0x1f0] sm:$0xff]
        %v6455 = vld [vmem:[%s6391 + $0x1f8] sm:$0xff]
        %v6456 = vld [vmem:[%s6391 + $0x200] sm:$0xff]
        %v6457 = vld [vmem:[%s6391 + $0x208] sm:$0xff]
        %v6458 = vld [vmem:[%s6391 + $0x210] sm:$0xff]
        %v6459 = vld [vmem:[%s6391 + $0x218] sm:$0xff]
        %v6460 = vld [vmem:[%s6391 + $0x220] sm:$0xff]
        %v6461 = vld [vmem:[%s6391 + $0x228] sm:$0xff]
        %v6462 = vld [vmem:[%s6391 + $0x230] sm:$0xff]
        %v6463 = vld [vmem:[%s6391 + $0x238] sm:$0xff]
        %v6464 = vld [vmem:[%s6391 + $0x240] sm:$0xff]
        %v6465 = vld [vmem:[%s6391 + $0x248] sm:$0xff]
        %v6466 = vld [vmem:[%s6391 + $0x250] sm:$0xff]
        %v6467 = vld [vmem:[%s6391 + $0x258] sm:$0xff]
        %v6468 = vld [vmem:[%s6391 + $0x260] sm:$0xff]
        %v6469 = vld [vmem:[%s6391 + $0x268] sm:$0xff]
        %v6470 = vld [vmem:[%s6391 + $0x270] sm:$0xff]
        %v6471 = vld [vmem:[%s6391 + $0x278] sm:$0xff]
        %v6472 = vld [vmem:[%s6391 + $0x280] sm:$0xff]
        %v6473 = vld [vmem:[%s6391 + $0x288] sm:$0xff]
        %v6474 = vld [vmem:[%s6391 + $0x290] sm:$0xff]
        %v6475 = vld [vmem:[%s6391 + $0x298] sm:$0xff]
        %v6476 = vld [vmem:[%s6391 + $0x2a0] sm:$0xff]
        %v6477 = vld [vmem:[%s6391 + $0x2a8] sm:$0xff]
        %v6478 = vld [vmem:[%s6391 + $0x2b0] sm:$0xff]
        %v6479 = vld [vmem:[%s6391 + $0x2b8] sm:$0xff]
        %v6480 = vld [vmem:[%s6391 + $0x2c0] sm:$0xff]
        %v6481 = vld [vmem:[%s6391 + $0x2c8] sm:$0xff]
        %v6482 = vld [vmem:[%s6391 + $0x2d0] sm:$0xff]
        %v6483 = vld [vmem:[%s6391 + $0x2d8] sm:$0xff]
        %v6484 = vld [vmem:[%s6391 + $0x2e0] sm:$0xff]
        %v6485 = vld [vmem:[%s6391 + $0x2e8] sm:$0xff]
        %v6486 = vld [vmem:[%s6391 + $0x2f0] sm:$0xff]
        %v6487 = vld [vmem:[%s6391 + $0x2f8] sm:$0xff]
        %v6488 = vld [vmem:[%s6391 + $0x300] sm:$0xff]
        %v6489 = vld [vmem:[%s6391 + $0x308] sm:$0xff]
        %v6490 = vld [vmem:[%s6391 + $0x310] sm:$0xff]
        %v6491 = vld [vmem:[%s6391 + $0x318] sm:$0xff]
        %v6492 = vld [vmem:[%s6391 + $0x320] sm:$0xff]
        %v6493 = vld [vmem:[%s6391 + $0x328] sm:$0xff]
        %v6494 = vld [vmem:[%s6391 + $0x330] sm:$0xff]
        %v6495 = vld [vmem:[%s6391 + $0x338] sm:$0xff]
        %v6496 = vld [vmem:[%s6391 + $0x340] sm:$0xff]
        %v6497 = vld [vmem:[%s6391 + $0x348] sm:$0xff]
        %v6498 = vld [vmem:[%s6391 + $0x350] sm:$0xff]
        %v6499 = vld [vmem:[%s6391 + $0x358] sm:$0xff]
        %v6500 = vsel %vm162, %v5455, 0
        %v6503 = vsel %vm162, %v6390, 0
        %6505 = vmatprep.subr.mxu0 %v6393
        %6506 = vmatpush1.msra.mxu0 %v6392
        %6507 = vmatprep.subr.mxu0 %v6395
        %6508 = vmatpush1.msra.mxu0 %v6394
        %6509 = vmatprep.subr.mxu0 %v6397
        %6510 = vmatpush1.msra.mxu0 %v6396
        %6511 = vmatprep.subr.mxu0 %v6399
        %6512 = vmatpush1.msra.mxu0 %v6398
        %6513 = vmatprep.subr.mxu0 %v6401
        %6514 = vmatpush1.msra.mxu0 %v6400
        %6515 = vmatprep.subr.mxu0 %v6403
        %6516 = vmatpush1.msra.mxu0 %v6402
        %6517 = vmatprep.subr.mxu0 %v6405
        %6518 = vmatpush1.msra.mxu0 %v6404
        %6519 = vmatprep.subr.mxu0 %v6407
        %6520 = vmatpush1.msra.mxu0 %v6406
        %6521 = vmatprep.subr.mxu0 %v6409
        %6522 = vmatpush1.msra.mxu0 %v6408
        %6523 = vmatprep.subr.mxu0 %v6411
        %6524 = vmatpush1.msra.mxu0 %v6410
        %6525 = vmatprep.subr.mxu0 %v6413
        %6526 = vmatpush1.msra.mxu0 %v6412
        %6527 = vmatprep.subr.mxu0 %v6415
        %6528 = vmatpush1.msra.mxu0 %v6414
        %6529 = vmatprep.subr.mxu0 %v6417
        %6530 = vmatpush1.msra.mxu0 %v6416
        %6531 = vmatprep.subr.mxu0 %v6419
        %6532 = vmatpush1.msra.mxu0 %v6418
        %6533 = vmatprep.subr.mxu0 %v6421
        %6534 = vmatpush1.msra.mxu0 %v6420
        %6535 = vmatprep.subr.mxu0 %v6423
        %6536 = vmatpush1.msra.mxu0 %v6422
        %6537 = vmatprep.subr.mxu0 %v6425
        %6538 = vmatpush1.msra.mxu0 %v6424
        %6539 = vmatprep.subr.mxu0 %v6427
        %6540 = vmatpush1.msra.mxu0 %v6426
        %6541 = vmatprep.subr.mxu0 %v6429
        %6542 = vmatpush1.msra.mxu0 %v6428
        %6543 = vmatprep.subr.mxu0 %v6431
        %6544 = vmatpush1.msra.mxu0 %v6430
        %6545 = vmatprep.subr.mxu0 %v6433
        %6546 = vmatpush1.msra.mxu0 %v6432
        %6547 = vmatprep.subr.mxu0 %v6435
        %6548 = vmatpush1.msra.mxu0 %v6434
        %6549 = vmatprep.subr.mxu0 %v6437
        %6550 = vmatpush1.msra.mxu0 %v6436
        %6551 = vmatprep.subr.mxu0 %v6439
        %6552 = vmatpush1.msra.mxu0 %v6438
        %6553 = vmatprep.subr.mxu0 %v6441
        %6554 = vmatpush1.msra.mxu0 %v6440
        %6555 = vmatprep.subr.mxu0 %v6443
        %6556 = vmatpush1.msra.mxu0 %v6442
        %6557 = vmatprep.subr.mxu0 %v6445
        %6558 = vmatpush1.msra.mxu0 %v6444
        %6559 = vmatprep.subr.mxu0 %v6447
        %6560 = vmatpush1.msra.mxu0 %v6446
        %6561 = vmatprep.subr.mxu0 %v6449
        %6562 = vmatpush1.msra.mxu0 %v6448
        %6563 = vmatprep.subr.mxu0 %v6451
        %6564 = vmatpush1.msra.mxu0 %v6450
        %6565 = vmatprep.subr.mxu0 %v6453
        %6566 = vmatpush1.msra.mxu0 %v6452
        %6567 = vmatprep.subr.mxu0 %v6455
        %6568 = vmatpush1.msra.mxu0 %v6454
        %6569 = vmatprep.mubr.f32.mxu0 %v5453
        %6570 = vmatmul.mubr.f32.gmra.mrb[0].mxu0 %v5452
        %v6571 = vpop.f32.mrb[0].mxu0
        %v6572 = vadd.f32 0.0, %v6571
        %v6573 = vpop.f32.mrb[0].mxu0
        %v6574 = vadd.f32 0.0, %v6573
        %6575 = vmatprep.mubr.f32.mxu0 %v6388
        %6576 = vmatmul.mubr.f32.gmra.mrb[0].mxu0 %v6387
        %v6577 = vpop.f32.mrb[0].mxu0
        %v6578 = vadd.f32 0.0, %v6577
        %v6579 = vpop.f32.mrb[0].mxu0
        %v6580 = vadd.f32 0.0, %v6579
        %6581 = vdwg.mxu0
        %6582 = vmatprep.subr.mxu0 %v6457
        %6583 = vmatpush1.msra.mxu0 %v6456
        %6584 = vmatprep.subr.mxu0 %v6459
        %6585 = vmatpush1.msra.mxu0 %v6458
        %6586 = vmatprep.subr.mxu0 %v6461
        %6587 = vmatpush1.msra.mxu0 %v6460
        %6588 = vmatprep.subr.mxu0 %v6463
        %6589 = vmatpush1.msra.mxu0 %v6462
        %6590 = vmatprep.subr.mxu0 %v6465
        %6591 = vmatpush1.msra.mxu0 %v6464
        %6592 = vmatprep.subr.mxu0 %v6467
        %6593 = vmatpush1.msra.mxu0 %v6466
        %6594 = vmatprep.subr.mxu0 %v6469
        %6595 = vmatpush1.msra.mxu0 %v6468
        %6596 = vmatprep.subr.mxu0 %v6471
        %6597 = vmatpush1.msra.mxu0 %v6470
        %6598 = vmatprep.subr.mxu0 %v6473
        %6599 = vmatpush1.msra.mxu0 %v6472
        %6600 = vmatprep.subr.mxu0 %v6475
        %6601 = vmatpush1.msra.mxu0 %v6474
        %6602 = vmatprep.subr.mxu0 %v6477
        %6603 = vmatpush1.msra.mxu0 %v6476
        %6604 = vmatprep.subr.mxu0 %v6479
        %6605 = vmatpush1.msra.mxu0 %v6478
        %6606 = vmatprep.subr.mxu0 %v6481
        %6607 = vmatpush1.msra.mxu0 %v6480
        %6608 = vmatprep.subr.mxu0 %v6483
        %6609 = vmatpush1.msra.mxu0 %v6482
        %6610 = vmatprep.subr.mxu0 %v6485
        %6611 = vmatpush1.msra.mxu0 %v6484
        %6612 = vmatprep.subr.mxu0 %v6487
        %6613 = vmatpush1.msra.mxu0 %v6486
        %6614 = vmatprep.subr.mxu0 %v6489
        %6615 = vmatpush1.msra.mxu0 %v6488
        %6616 = vmatprep.subr.mxu0 %v6491
        %6617 = vmatpush1.msra.mxu0 %v6490
        %6618 = vmatprep.subr.mxu0 %v6493
        %6619 = vmatpush1.msra.mxu0 %v6492
        %6620 = vmatprep.subr.mxu0 %v6495
        %6621 = vmatpush1.msra.mxu0 %v6494
        %6622 = vmatprep.subr.mxu0 %v6497
        %6623 = vmatpush1.msra.mxu0 %v6496
        %6624 = vmatprep.subr.mxu0 %v6499
        %6625 = vmatpush1.msra.mxu0 %v6498
        %6626 = vmatprep.subr.mxu0 0.0
        %6627 = vmatpush1.msra.mxu0 0.0
        %6628 = vmatprep.subr.mxu0 0.0
        %6629 = vmatpush1.msra.mxu0 0.0
        %6630 = vmatprep.subr.mxu0 0.0
        %6631 = vmatpush1.msra.mxu0 0.0
        %6632 = vmatprep.subr.mxu0 0.0
        %6633 = vmatpush1.msra.mxu0 0.0
        %6634 = vmatprep.subr.mxu0 0.0
        %6635 = vmatpush1.msra.mxu0 0.0
        %6636 = vmatprep.subr.mxu0 0.0
        %6637 = vmatpush1.msra.mxu0 0.0
        %6638 = vmatprep.subr.mxu0 0.0
        %6639 = vmatpush1.msra.mxu0 0.0
        %6640 = vmatprep.subr.mxu0 0.0
        %6641 = vmatpush1.msra.mxu0 0.0
        %6642 = vmatprep.subr.mxu0 0.0
        %6643 = vmatpush1.msra.mxu0 0.0
        %6644 = vmatprep.subr.mxu0 0.0
        %6645 = vmatpush1.msra.mxu0 0.0
        %6646 = vmatprep.mubr.f32.mxu0 %v6500
        %6647 = vmatmul.mubr.f32.gmra.mrb[0].mxu0 %v5454
        %v6648 = vpop.f32.mrb[0].mxu0
        %v6649 = vadd.f32 %v6572, %v6648
        %v6650 = vpop.f32.mrb[0].mxu0
        %v6651 = vadd.f32 %v6574, %v6650
        %6652 = vmatprep.mubr.f32.mxu0 %v6503
        %6653 = vmatmul.mubr.f32.gmra.mrb[0].mxu0 %v6389
        %v6654 = vpop.f32.mrb[0].mxu0
        %v6655 = vadd.f32 %v6578, %v6654
        %v6656 = vpop.f32.mrb[0].mxu0
        %v6657 = vadd.f32 %v6580, %v6656
        %6658 = vdwg.mxu0
        %v6659 = vadd.f32 %v6383, %v6649
        %v6660 = vadd.f32 %v6384, %v6651
        %v6661 = vadd.f32 %v6385, %v6655
        %v6662 = vadd.f32 %v6386, %v6657
        %v6663 = vld [vmem:[#allocation2 + $0x20] sm:$0xfe]
        %v6664 = vld [vmem:[#allocation2 + $0x28] sm:$0xfe]
        %v6665 = vld [vmem:[#allocation2 + $0x30] sm:$0xfe]
        %v6666 = vld [vmem:[#allocation2 + $0x38] sm:$0xfe]
        %v6667 = vld [vmem:[#allocation2 + $0x40] sm:$0xff]
        %v6668 = vld [vmem:[#allocation2 + $0x48] sm:$0xff]
        %v6669 = vld [vmem:[#allocation2 + $0x50] sm:$0xff]
        %v6670 = vld [vmem:[#allocation2 + $0x58] sm:$0xff]
        %v6671 = vld [vmem:[#allocation2 + $0x60] sm:$0x1]
        %v6672 = vld [vmem:[#allocation2 + $0x68] sm:$0x1]
        %v6673 = vld [vmem:[#allocation2 + $0x70] sm:$0x1]
        %v6674 = vld [vmem:[#allocation2 + $0x78] sm:$0x1]
        %s6675 = scalar_lea.vmem [#allocation3], 18144
        %v6676 = vld [vmem:[%s6675] sm:$0xff]
        %v6677 = vld [vmem:[%s6675 + $0x8] sm:$0xff]
        %v6678 = vld [vmem:[%s6675 + $0x10] sm:$0xff]
        %v6679 = vld [vmem:[%s6675 + $0x18] sm:$0xff]
        %v6680 = vld [vmem:[%s6675 + $0x20] sm:$0xff]
        %v6681 = vld [vmem:[%s6675 + $0x28] sm:$0xff]
        %v6682 = vld [vmem:[%s6675 + $0x30] sm:$0xff]
        %v6683 = vld [vmem:[%s6675 + $0x38] sm:$0xff]
        %v6684 = vld [vmem:[%s6675 + $0x40] sm:$0xff]
        %v6685 = vld [vmem:[%s6675 + $0x48] sm:$0xff]
        %v6686 = vld [vmem:[%s6675 + $0x50] sm:$0xff]
        %v6687 = vld [vmem:[%s6675 + $0x58] sm:$0xff]
        %v6688 = vld [vmem:[%s6675 + $0x60] sm:$0xff]
        %v6689 = vld [vmem:[%s6675 + $0x68] sm:$0xff]
        %v6690 = vld [vmem:[%s6675 + $0x70] sm:$0xff]
        %v6691 = vld [vmem:[%s6675 + $0x78] sm:$0xff]
        %v6692 = vld [vmem:[%s6675 + $0x80] sm:$0xff]
        %v6693 = vld [vmem:[%s6675 + $0x88] sm:$0xff]
        %v6694 = vld [vmem:[%s6675 + $0x90] sm:$0xff]
        %v6695 = vld [vmem:[%s6675 + $0x98] sm:$0xff]
        %v6696 = vld [vmem:[%s6675 + $0xa0] sm:$0xff]
        %v6697 = vld [vmem:[%s6675 + $0xa8] sm:$0xff]
        %v6698 = vld [vmem:[%s6675 + $0xb0] sm:$0xff]
        %v6699 = vld [vmem:[%s6675 + $0xb8] sm:$0xff]
        %v6700 = vld [vmem:[%s6675 + $0xc0] sm:$0xff]
        %v6701 = vld [vmem:[%s6675 + $0xc8] sm:$0xff]
        %v6702 = vld [vmem:[%s6675 + $0xd0] sm:$0xff]
        %v6703 = vld [vmem:[%s6675 + $0xd8] sm:$0xff]
        %v6704 = vld [vmem:[%s6675 + $0xe0] sm:$0xff]
        %v6705 = vld [vmem:[%s6675 + $0xe8] sm:$0xff]
        %v6706 = vld [vmem:[%s6675 + $0xf0] sm:$0xff]
        %v6707 = vld [vmem:[%s6675 + $0xf8] sm:$0xff]
        %v6708 = vld [vmem:[%s6675 + $0x100] sm:$0xff]
        %v6709 = vld [vmem:[%s6675 + $0x108] sm:$0xff]
        %v6710 = vld [vmem:[%s6675 + $0x110] sm:$0xff]
        %v6711 = vld [vmem:[%s6675 + $0x118] sm:$0xff]
        %v6712 = vld [vmem:[%s6675 + $0x120] sm:$0xff]
        %v6713 = vld [vmem:[%s6675 + $0x128] sm:$0xff]
        %v6714 = vld [vmem:[%s6675 + $0x130] sm:$0xff]
        %v6715 = vld [vmem:[%s6675 + $0x138] sm:$0xff]
        %v6716 = vld [vmem:[%s6675 + $0x140] sm:$0xff]
        %v6717 = vld [vmem:[%s6675 + $0x148] sm:$0xff]
        %v6718 = vld [vmem:[%s6675 + $0x150] sm:$0xff]
        %v6719 = vld [vmem:[%s6675 + $0x158] sm:$0xff]
        %v6720 = vld [vmem:[%s6675 + $0x160] sm:$0xff]
        %v6721 = vld [vmem:[%s6675 + $0x168] sm:$0xff]
        %v6722 = vld [vmem:[%s6675 + $0x170] sm:$0xff]
        %v6723 = vld [vmem:[%s6675 + $0x178] sm:$0xff]
        %v6724 = vld [vmem:[%s6675 + $0x180] sm:$0xff]
        %v6725 = vld [vmem:[%s6675 + $0x188] sm:$0xff]
        %v6726 = vld [vmem:[%s6675 + $0x190] sm:$0xff]
        %v6727 = vld [vmem:[%s6675 + $0x198] sm:$0xff]
        %v6728 = vld [vmem:[%s6675 + $0x1a0] sm:$0xff]
        %v6729 = vld [vmem:[%s6675 + $0x1a8] sm:$0xff]
        %v6730 = vld [vmem:[%s6675 + $0x1b0] sm:$0xff]
        %v6731 = vld [vmem:[%s6675 + $0x1b8] sm:$0xff]
        %v6732 = vld [vmem:[%s6675 + $0x1c0] sm:$0xff]
        %v6733 = vld [vmem:[%s6675 + $0x1c8] sm:$0xff]
        %v6734 = vld [vmem:[%s6675 + $0x1d0] sm:$0xff]
        %v6735 = vld [vmem:[%s6675 + $0x1d8] sm:$0xff]
        %v6736 = vld [vmem:[%s6675 + $0x1e0] sm:$0xff]
        %v6737 = vld [vmem:[%s6675 + $0x1e8] sm:$0xff]
        %v6738 = vld [vmem:[%s6675 + $0x1f0] sm:$0xff]
        %v6739 = vld [vmem:[%s6675 + $0x1f8] sm:$0xff]
        %v6740 = vld [vmem:[%s6675 + $0x200] sm:$0xff]
        %v6741 = vld [vmem:[%s6675 + $0x208] sm:$0xff]
        %v6742 = vld [vmem:[%s6675 + $0x210] sm:$0xff]
        %v6743 = vld [vmem:[%s6675 + $0x218] sm:$0xff]
        %v6744 = vld [vmem:[%s6675 + $0x220] sm:$0xff]
        %v6745 = vld [vmem:[%s6675 + $0x228] sm:$0xff]
        %v6746 = vld [vmem:[%s6675 + $0x230] sm:$0xff]
        %v6747 = vld [vmem:[%s6675 + $0x238] sm:$0xff]
        %v6748 = vld [vmem:[%s6675 + $0x240] sm:$0xff]
        %v6749 = vld [vmem:[%s6675 + $0x248] sm:$0xff]
        %v6750 = vld [vmem:[%s6675 + $0x250] sm:$0xff]
        %v6751 = vld [vmem:[%s6675 + $0x258] sm:$0xff]
        %v6752 = vld [vmem:[%s6675 + $0x260] sm:$0xff]
        %v6753 = vld [vmem:[%s6675 + $0x268] sm:$0xff]
        %v6754 = vld [vmem:[%s6675 + $0x270] sm:$0xff]
        %v6755 = vld [vmem:[%s6675 + $0x278] sm:$0xff]
        %v6756 = vld [vmem:[%s6675 + $0x280] sm:$0xff]
        %v6757 = vld [vmem:[%s6675 + $0x288] sm:$0xff]
        %v6758 = vld [vmem:[%s6675 + $0x290] sm:$0xff]
        %v6759 = vld [vmem:[%s6675 + $0x298] sm:$0xff]
        %v6760 = vld [vmem:[%s6675 + $0x2a0] sm:$0xff]
        %v6761 = vld [vmem:[%s6675 + $0x2a8] sm:$0xff]
        %v6762 = vld [vmem:[%s6675 + $0x2b0] sm:$0xff]
        %v6763 = vld [vmem:[%s6675 + $0x2b8] sm:$0xff]
        %v6764 = vld [vmem:[%s6675 + $0x2c0] sm:$0xff]
        %v6765 = vld [vmem:[%s6675 + $0x2c8] sm:$0xff]
        %v6766 = vld [vmem:[%s6675 + $0x2d0] sm:$0xff]
        %v6767 = vld [vmem:[%s6675 + $0x2d8] sm:$0xff]
        %v6768 = vld [vmem:[%s6675 + $0x2e0] sm:$0xff]
        %v6769 = vld [vmem:[%s6675 + $0x2e8] sm:$0xff]
        %v6770 = vld [vmem:[%s6675 + $0x2f0] sm:$0xff]
        %v6771 = vld [vmem:[%s6675 + $0x2f8] sm:$0xff]
        %v6772 = vld [vmem:[%s6675 + $0x300] sm:$0xff]
        %v6773 = vld [vmem:[%s6675 + $0x308] sm:$0xff]
        %v6774 = vld [vmem:[%s6675 + $0x310] sm:$0xff]
        %v6775 = vld [vmem:[%s6675 + $0x318] sm:$0xff]
        %v6776 = vld [vmem:[%s6675 + $0x320] sm:$0xff]
        %v6777 = vld [vmem:[%s6675 + $0x328] sm:$0xff]
        %v6778 = vld [vmem:[%s6675 + $0x330] sm:$0xff]
        %v6779 = vld [vmem:[%s6675 + $0x338] sm:$0xff]
        %v6780 = vld [vmem:[%s6675 + $0x340] sm:$0xff]
        %v6781 = vld [vmem:[%s6675 + $0x348] sm:$0xff]
        %v6782 = vld [vmem:[%s6675 + $0x350] sm:$0xff]
        %v6783 = vld [vmem:[%s6675 + $0x358] sm:$0xff]
        %v6796 = vrot.slane %v6663, 1
        %v6797 = vrot.slane %v6667, 1
        %v6798 = vsel %vm1535, %v6796, %v6797
        %v6799 = vrot.slane %v6664, 1
        %v6800 = vrot.slane %v6668, 1
        %v6801 = vsel %vm1535, %v6799, %v6800
        %v6802 = vrot.slane %v6665, 1
        %v6803 = vrot.slane %v6669, 1
        %v6804 = vsel %vm1535, %v6802, %v6803
        %v6805 = vrot.slane %v6666, 1
        %v6806 = vrot.slane %v6670, 1
        %v6807 = vsel %vm1535, %v6805, %v6806
        %v6808 = vrot.slane %v6671, 1
        %v6809 = vsel %vm1535, %v6797, %v6808
        %v6810 = vrot.slane %v6672, 1
        %v6811 = vsel %vm1535, %v6800, %v6810
        %v6812 = vrot.slane %v6673, 1
        %v6813 = vsel %vm1535, %v6803, %v6812
        %v6814 = vrot.slane %v6674, 1
        %v6815 = vsel %vm1535, %v6806, %v6814
        %v6822 = vsel %vm162, %v6807, 0
        %v6824 = vsel %vm162, %v6815, 0
        %6826 = vmatprep.subr.mxu0 %v6677
        %6827 = vmatpush1.msra.mxu0 %v6676
        %6828 = vmatprep.subr.mxu0 %v6679
        %6829 = vmatpush1.msra.mxu0 %v6678
        %6830 = vmatprep.subr.mxu0 %v6681
        %6831 = vmatpush1.msra.mxu0 %v6680
        %6832 = vmatprep.subr.mxu0 %v6683
        %6833 = vmatpush1.msra.mxu0 %v6682
        %6834 = vmatprep.subr.mxu0 %v6685
        %6835 = vmatpush1.msra.mxu0 %v6684
        %6836 = vmatprep.subr.mxu0 %v6687
        %6837 = vmatpush1.msra.mxu0 %v6686
        %6838 = vmatprep.subr.mxu0 %v6689
        %6839 = vmatpush1.msra.mxu0 %v6688
        %6840 = vmatprep.subr.mxu0 %v6691
        %6841 = vmatpush1.msra.mxu0 %v6690
        %6842 = vmatprep.subr.mxu0 %v6693
        %6843 = vmatpush1.msra.mxu0 %v6692
        %6844 = vmatprep.subr.mxu0 %v6695
        %6845 = vmatpush1.msra.mxu0 %v6694
        %6846 = vmatprep.subr.mxu0 %v6697
        %6847 = vmatpush1.msra.mxu0 %v6696
        %6848 = vmatprep.subr.mxu0 %v6699
        %6849 = vmatpush1.msra.mxu0 %v6698
        %6850 = vmatprep.subr.mxu0 %v6701
        %6851 = vmatpush1.msra.mxu0 %v6700
        %6852 = vmatprep.subr.mxu0 %v6703
        %6853 = vmatpush1.msra.mxu0 %v6702
        %6854 = vmatprep.subr.mxu0 %v6705
        %6855 = vmatpush1.msra.mxu0 %v6704
        %6856 = vmatprep.subr.mxu0 %v6707
        %6857 = vmatpush1.msra.mxu0 %v6706
        %6858 = vmatprep.subr.mxu0 %v6709
        %6859 = vmatpush1.msra.mxu0 %v6708
        %6860 = vmatprep.subr.mxu0 %v6711
        %6861 = vmatpush1.msra.mxu0 %v6710
        %6862 = vmatprep.subr.mxu0 %v6713
        %6863 = vmatpush1.msra.mxu0 %v6712
        %6864 = vmatprep.subr.mxu0 %v6715
        %6865 = vmatpush1.msra.mxu0 %v6714
        %6866 = vmatprep.subr.mxu0 %v6717
        %6867 = vmatpush1.msra.mxu0 %v6716
        %6868 = vmatprep.subr.mxu0 %v6719
        %6869 = vmatpush1.msra.mxu0 %v6718
        %6870 = vmatprep.subr.mxu0 %v6721
        %6871 = vmatpush1.msra.mxu0 %v6720
        %6872 = vmatprep.subr.mxu0 %v6723
        %6873 = vmatpush1.msra.mxu0 %v6722
        %6874 = vmatprep.subr.mxu0 %v6725
        %6875 = vmatpush1.msra.mxu0 %v6724
        %6876 = vmatprep.subr.mxu0 %v6727
        %6877 = vmatpush1.msra.mxu0 %v6726
        %6878 = vmatprep.subr.mxu0 %v6729
        %6879 = vmatpush1.msra.mxu0 %v6728
        %6880 = vmatprep.subr.mxu0 %v6731
        %6881 = vmatpush1.msra.mxu0 %v6730
        %6882 = vmatprep.subr.mxu0 %v6733
        %6883 = vmatpush1.msra.mxu0 %v6732
        %6884 = vmatprep.subr.mxu0 %v6735
        %6885 = vmatpush1.msra.mxu0 %v6734
        %6886 = vmatprep.subr.mxu0 %v6737
        %6887 = vmatpush1.msra.mxu0 %v6736
        %6888 = vmatprep.subr.mxu0 %v6739
        %6889 = vmatpush1.msra.mxu0 %v6738
        %6890 = vmatprep.mubr.f32.mxu0 %v6801
        %6891 = vmatmul.mubr.f32.gmra.mrb[0].mxu0 %v6798
        %v6892 = vpop.f32.mrb[0].mxu0
        %v6893 = vadd.f32 0.0, %v6892
        %v6894 = vpop.f32.mrb[0].mxu0
        %v6895 = vadd.f32 0.0, %v6894
        %6896 = vmatprep.mubr.f32.mxu0 %v6811
        %6897 = vmatmul.mubr.f32.gmra.mrb[0].mxu0 %v6809
        %v6898 = vpop.f32.mrb[0].mxu0
        %v6899 = vadd.f32 0.0, %v6898
        %v6900 = vpop.f32.mrb[0].mxu0
        %v6901 = vadd.f32 0.0, %v6900
        %6902 = vdwg.mxu0
        %6903 = vmatprep.subr.mxu0 %v6741
        %6904 = vmatpush1.msra.mxu0 %v6740
        %6905 = vmatprep.subr.mxu0 %v6743
        %6906 = vmatpush1.msra.mxu0 %v6742
        %6907 = vmatprep.subr.mxu0 %v6745
        %6908 = vmatpush1.msra.mxu0 %v6744
        %6909 = vmatprep.subr.mxu0 %v6747
        %6910 = vmatpush1.msra.mxu0 %v6746
        %6911 = vmatprep.subr.mxu0 %v6749
        %6912 = vmatpush1.msra.mxu0 %v6748
        %6913 = vmatprep.subr.mxu0 %v6751
        %6914 = vmatpush1.msra.mxu0 %v6750
        %6915 = vmatprep.subr.mxu0 %v6753
        %6916 = vmatpush1.msra.mxu0 %v6752
        %6917 = vmatprep.subr.mxu0 %v6755
        %6918 = vmatpush1.msra.mxu0 %v6754
        %6919 = vmatprep.subr.mxu0 %v6757
        %6920 = vmatpush1.msra.mxu0 %v6756
        %6921 = vmatprep.subr.mxu0 %v6759
        %6922 = vmatpush1.msra.mxu0 %v6758
        %6923 = vmatprep.subr.mxu0 %v6761
        %6924 = vmatpush1.msra.mxu0 %v6760
        %6925 = vmatprep.subr.mxu0 %v6763
        %6926 = vmatpush1.msra.mxu0 %v6762
        %6927 = vmatprep.subr.mxu0 %v6765
        %6928 = vmatpush1.msra.mxu0 %v6764
        %6929 = vmatprep.subr.mxu0 %v6767
        %6930 = vmatpush1.msra.mxu0 %v6766
        %6931 = vmatprep.subr.mxu0 %v6769
        %6932 = vmatpush1.msra.mxu0 %v6768
        %6933 = vmatprep.subr.mxu0 %v6771
        %6934 = vmatpush1.msra.mxu0 %v6770
        %6935 = vmatprep.subr.mxu0 %v6773
        %6936 = vmatpush1.msra.mxu0 %v6772
        %6937 = vmatprep.subr.mxu0 %v6775
        %6938 = vmatpush1.msra.mxu0 %v6774
        %6939 = vmatprep.subr.mxu0 %v6777
        %6940 = vmatpush1.msra.mxu0 %v6776
        %6941 = vmatprep.subr.mxu0 %v6779
        %6942 = vmatpush1.msra.mxu0 %v6778
        %6943 = vmatprep.subr.mxu0 %v6781
        %6944 = vmatpush1.msra.mxu0 %v6780
        %6945 = vmatprep.subr.mxu0 %v6783
        %6946 = vmatpush1.msra.mxu0 %v6782
        %6947 = vmatprep.subr.mxu0 0.0
        %6948 = vmatpush1.msra.mxu0 0.0
        %6949 = vmatprep.subr.mxu0 0.0
        %6950 = vmatpush1.msra.mxu0 0.0
        %6951 = vmatprep.subr.mxu0 0.0
        %6952 = vmatpush1.msra.mxu0 0.0
        %6953 = vmatprep.subr.mxu0 0.0
        %6954 = vmatpush1.msra.mxu0 0.0
        %6955 = vmatprep.subr.mxu0 0.0
        %6956 = vmatpush1.msra.mxu0 0.0
        %6957 = vmatprep.subr.mxu0 0.0
        %6958 = vmatpush1.msra.mxu0 0.0
        %6959 = vmatprep.subr.mxu0 0.0
        %6960 = vmatpush1.msra.mxu0 0.0
        %6961 = vmatprep.subr.mxu0 0.0
        %6962 = vmatpush1.msra.mxu0 0.0
        %6963 = vmatprep.subr.mxu0 0.0
        %6964 = vmatpush1.msra.mxu0 0.0
        %6965 = vmatprep.subr.mxu0 0.0
        %6966 = vmatpush1.msra.mxu0 0.0
        %6967 = vmatprep.mubr.f32.mxu0 %v6822
        %6968 = vmatmul.mubr.f32.gmra.mrb[0].mxu0 %v6804
        %v6969 = vpop.f32.mrb[0].mxu0
        %v6970 = vadd.f32 %v6893, %v6969
        %v6971 = vpop.f32.mrb[0].mxu0
        %v6972 = vadd.f32 %v6895, %v6971
        %6973 = vmatprep.mubr.f32.mxu0 %v6824
        %6974 = vmatmul.mubr.f32.gmra.mrb[0].mxu0 %v6813
        %v6975 = vpop.f32.mrb[0].mxu0
        %v6976 = vadd.f32 %v6899, %v6975
        %v6977 = vpop.f32.mrb[0].mxu0
        %v6978 = vadd.f32 %v6901, %v6977
        %6979 = vdwg.mxu0
        %v6980 = vadd.f32 %v6659, %v6970
        %v6981 = vadd.f32 %v6660, %v6972
        %v6982 = vadd.f32 %v6661, %v6976
        %v6983 = vadd.f32 %v6662, %v6978
        %v6984 = vld [vmem:[#allocation2 + $0x20] sm:$0xfc]
        %v6985 = vld [vmem:[#allocation2 + $0x28] sm:$0xfc]
        %v6986 = vld [vmem:[#allocation2 + $0x30] sm:$0xfc]
        %v6987 = vld [vmem:[#allocation2 + $0x38] sm:$0xfc]
        %v6988 = vld [vmem:[#allocation2 + $0x60] sm:$0x3]
        %v6989 = vld [vmem:[#allocation2 + $0x68] sm:$0x3]
        %v6990 = vld [vmem:[#allocation2 + $0x70] sm:$0x3]
        %v6991 = vld [vmem:[#allocation2 + $0x78] sm:$0x3]
        %s6992 = scalar_lea.vmem [#allocation3], 19008
        %v6993 = vld [vmem:[%s6992] sm:$0xff]
        %v6994 = vld [vmem:[%s6992 + $0x8] sm:$0xff]
        %v6995 = vld [vmem:[%s6992 + $0x10] sm:$0xff]
        %v6996 = vld [vmem:[%s6992 + $0x18] sm:$0xff]
        %v6997 = vld [vmem:[%s6992 + $0x20] sm:$0xff]
        %v6998 = vld [vmem:[%s6992 + $0x28] sm:$0xff]
        %v6999 = vld [vmem:[%s6992 + $0x30] sm:$0xff]
        %v7000 = vld [vmem:[%s6992 + $0x38] sm:$0xff]
        %v7001 = vld [vmem:[%s6992 + $0x40] sm:$0xff]
        %v7002 = vld [vmem:[%s6992 + $0x48] sm:$0xff]
        %v7003 = vld [vmem:[%s6992 + $0x50] sm:$0xff]
        %v7004 = vld [vmem:[%s6992 + $0x58] sm:$0xff]
        %v7005 = vld [vmem:[%s6992 + $0x60] sm:$0xff]
        %v7006 = vld [vmem:[%s6992 + $0x68] sm:$0xff]
        %v7007 = vld [vmem:[%s6992 + $0x70] sm:$0xff]
        %v7008 = vld [vmem:[%s6992 + $0x78] sm:$0xff]
        %v7009 = vld [vmem:[%s6992 + $0x80] sm:$0xff]
        %v7010 = vld [vmem:[%s6992 + $0x88] sm:$0xff]
        %v7011 = vld [vmem:[%s6992 + $0x90] sm:$0xff]
        %v7012 = vld [vmem:[%s6992 + $0x98] sm:$0xff]
        %v7013 = vld [vmem:[%s6992 + $0xa0] sm:$0xff]
        %v7014 = vld [vmem:[%s6992 + $0xa8] sm:$0xff]
        %v7015 = vld [vmem:[%s6992 + $0xb0] sm:$0xff]
        %v7016 = vld [vmem:[%s6992 + $0xb8] sm:$0xff]
        %v7017 = vld [vmem:[%s6992 + $0xc0] sm:$0xff]
        %v7018 = vld [vmem:[%s6992 + $0xc8] sm:$0xff]
        %v7019 = vld [vmem:[%s6992 + $0xd0] sm:$0xff]
        %v7020 = vld [vmem:[%s6992 + $0xd8] sm:$0xff]
        %v7021 = vld [vmem:[%s6992 + $0xe0] sm:$0xff]
        %v7022 = vld [vmem:[%s6992 + $0xe8] sm:$0xff]
        %v7023 = vld [vmem:[%s6992 + $0xf0] sm:$0xff]
        %v7024 = vld [vmem:[%s6992 + $0xf8] sm:$0xff]
        %v7025 = vld [vmem:[%s6992 + $0x100] sm:$0xff]
        %v7026 = vld [vmem:[%s6992 + $0x108] sm:$0xff]
        %v7027 = vld [vmem:[%s6992 + $0x110] sm:$0xff]
        %v7028 = vld [vmem:[%s6992 + $0x118] sm:$0xff]
        %v7029 = vld [vmem:[%s6992 + $0x120] sm:$0xff]
        %v7030 = vld [vmem:[%s6992 + $0x128] sm:$0xff]
        %v7031 = vld [vmem:[%s6992 + $0x130] sm:$0xff]
        %v7032 = vld [vmem:[%s6992 + $0x138] sm:$0xff]
        %v7033 = vld [vmem:[%s6992 + $0x140] sm:$0xff]
        %v7034 = vld [vmem:[%s6992 + $0x148] sm:$0xff]
        %v7035 = vld [vmem:[%s6992 + $0x150] sm:$0xff]
        %v7036 = vld [vmem:[%s6992 + $0x158] sm:$0xff]
        %v7037 = vld [vmem:[%s6992 + $0x160] sm:$0xff]
        %v7038 = vld [vmem:[%s6992 + $0x168] sm:$0xff]
        %v7039 = vld [vmem:[%s6992 + $0x170] sm:$0xff]
        %v7040 = vld [vmem:[%s6992 + $0x178] sm:$0xff]
        %v7041 = vld [vmem:[%s6992 + $0x180] sm:$0xff]
        %v7042 = vld [vmem:[%s6992 + $0x188] sm:$0xff]
        %v7043 = vld [vmem:[%s6992 + $0x190] sm:$0xff]
        %v7044 = vld [vmem:[%s6992 + $0x198] sm:$0xff]
        %v7045 = vld [vmem:[%s6992 + $0x1a0] sm:$0xff]
        %v7046 = vld [vmem:[%s6992 + $0x1a8] sm:$0xff]
        %v7047 = vld [vmem:[%s6992 + $0x1b0] sm:$0xff]
        %v7048 = vld [vmem:[%s6992 + $0x1b8] sm:$0xff]
        %v7049 = vld [vmem:[%s6992 + $0x1c0] sm:$0xff]
        %v7050 = vld [vmem:[%s6992 + $0x1c8] sm:$0xff]
        %v7051 = vld [vmem:[%s6992 + $0x1d0] sm:$0xff]
        %v7052 = vld [vmem:[%s6992 + $0x1d8] sm:$0xff]
        %v7053 = vld [vmem:[%s6992 + $0x1e0] sm:$0xff]
        %v7054 = vld [vmem:[%s6992 + $0x1e8] sm:$0xff]
        %v7055 = vld [vmem:[%s6992 + $0x1f0] sm:$0xff]
        %v7056 = vld [vmem:[%s6992 + $0x1f8] sm:$0xff]
        %v7057 = vld [vmem:[%s6992 + $0x200] sm:$0xff]
        %v7058 = vld [vmem:[%s6992 + $0x208] sm:$0xff]
        %v7059 = vld [vmem:[%s6992 + $0x210] sm:$0xff]
        %v7060 = vld [vmem:[%s6992 + $0x218] sm:$0xff]
        %v7061 = vld [vmem:[%s6992 + $0x220] sm:$0xff]
        %v7062 = vld [vmem:[%s6992 + $0x228] sm:$0xff]
        %v7063 = vld [vmem:[%s6992 + $0x230] sm:$0xff]
        %v7064 = vld [vmem:[%s6992 + $0x238] sm:$0xff]
        %v7065 = vld [vmem:[%s6992 + $0x240] sm:$0xff]
        %v7066 = vld [vmem:[%s6992 + $0x248] sm:$0xff]
        %v7067 = vld [vmem:[%s6992 + $0x250] sm:$0xff]
        %v7068 = vld [vmem:[%s6992 + $0x258] sm:$0xff]
        %v7069 = vld [vmem:[%s6992 + $0x260] sm:$0xff]
        %v7070 = vld [vmem:[%s6992 + $0x268] sm:$0xff]
        %v7071 = vld [vmem:[%s6992 + $0x270] sm:$0xff]
        %v7072 = vld [vmem:[%s6992 + $0x278] sm:$0xff]
        %v7073 = vld [vmem:[%s6992 + $0x280] sm:$0xff]
        %v7074 = vld [vmem:[%s6992 + $0x288] sm:$0xff]
        %v7075 = vld [vmem:[%s6992 + $0x290] sm:$0xff]
        %v7076 = vld [vmem:[%s6992 + $0x298] sm:$0xff]
        %v7077 = vld [vmem:[%s6992 + $0x2a0] sm:$0xff]
        %v7078 = vld [vmem:[%s6992 + $0x2a8] sm:$0xff]
        %v7079 = vld [vmem:[%s6992 + $0x2b0] sm:$0xff]
        %v7080 = vld [vmem:[%s6992 + $0x2b8] sm:$0xff]
        %v7081 = vld [vmem:[%s6992 + $0x2c0] sm:$0xff]
        %v7082 = vld [vmem:[%s6992 + $0x2c8] sm:$0xff]
        %v7083 = vld [vmem:[%s6992 + $0x2d0] sm:$0xff]
        %v7084 = vld [vmem:[%s6992 + $0x2d8] sm:$0xff]
        %v7085 = vld [vmem:[%s6992 + $0x2e0] sm:$0xff]
        %v7086 = vld [vmem:[%s6992 + $0x2e8] sm:$0xff]
        %v7087 = vld [vmem:[%s6992 + $0x2f0] sm:$0xff]
        %v7088 = vld [vmem:[%s6992 + $0x2f8] sm:$0xff]
        %v7089 = vld [vmem:[%s6992 + $0x300] sm:$0xff]
        %v7090 = vld [vmem:[%s6992 + $0x308] sm:$0xff]
        %v7091 = vld [vmem:[%s6992 + $0x310] sm:$0xff]
        %v7092 = vld [vmem:[%s6992 + $0x318] sm:$0xff]
        %v7093 = vld [vmem:[%s6992 + $0x320] sm:$0xff]
        %v7094 = vld [vmem:[%s6992 + $0x328] sm:$0xff]
        %v7095 = vld [vmem:[%s6992 + $0x330] sm:$0xff]
        %v7096 = vld [vmem:[%s6992 + $0x338] sm:$0xff]
        %v7097 = vld [vmem:[%s6992 + $0x340] sm:$0xff]
        %v7098 = vld [vmem:[%s6992 + $0x348] sm:$0xff]
        %v7099 = vld [vmem:[%s6992 + $0x350] sm:$0xff]
        %v7100 = vld [vmem:[%s6992 + $0x358] sm:$0xff]
        %v7109 = vrot.slane %v6984, 2
        %v7110 = vrot.slane %v6667, 2
        %v7111 = vsel %vm1849, %v7109, %v7110
        %v7112 = vrot.slane %v6985, 2
        %v7113 = vrot.slane %v6668, 2
        %v7114 = vsel %vm1849, %v7112, %v7113
        %v7115 = vrot.slane %v6986, 2
        %v7116 = vrot.slane %v6669, 2
        %v7117 = vsel %vm1849, %v7115, %v7116
        %v7118 = vrot.slane %v6987, 2
        %v7119 = vrot.slane %v6670, 2
        %v7120 = vsel %vm1849, %v7118, %v7119
        %v7121 = vrot.slane %v6988, 2
        %v7122 = vsel %vm1849, %v7110, %v7121
        %v7123 = vrot.slane %v6989, 2
        %v7124 = vsel %vm1849, %v7113, %v7123
        %v7125 = vrot.slane %v6990, 2
        %v7126 = vsel %vm1849, %v7116, %v7125
        %v7127 = vrot.slane %v6991, 2
        %v7128 = vsel %vm1849, %v7119, %v7127
        %v7135 = vsel %vm162, %v7120, 0
        %v7137 = vsel %vm162, %v7128, 0
        %7139 = vmatprep.subr.mxu0 %v6994
        %7140 = vmatpush1.msra.mxu0 %v6993
        %7141 = vmatprep.subr.mxu0 %v6996
        %7142 = vmatpush1.msra.mxu0 %v6995
        %7143 = vmatprep.subr.mxu0 %v6998
        %7144 = vmatpush1.msra.mxu0 %v6997
        %7145 = vmatprep.subr.mxu0 %v7000
        %7146 = vmatpush1.msra.mxu0 %v6999
        %7147 = vmatprep.subr.mxu0 %v7002
        %7148 = vmatpush1.msra.mxu0 %v7001
        %7149 = vmatprep.subr.mxu0 %v7004
        %7150 = vmatpush1.msra.mxu0 %v7003
        %7151 = vmatprep.subr.mxu0 %v7006
        %7152 = vmatpush1.msra.mxu0 %v7005
        %7153 = vmatprep.subr.mxu0 %v7008
        %7154 = vmatpush1.msra.mxu0 %v7007
        %7155 = vmatprep.subr.mxu0 %v7010
        %7156 = vmatpush1.msra.mxu0 %v7009
        %7157 = vmatprep.subr.mxu0 %v7012
        %7158 = vmatpush1.msra.mxu0 %v7011
        %7159 = vmatprep.subr.mxu0 %v7014
        %7160 = vmatpush1.msra.mxu0 %v7013
        %7161 = vmatprep.subr.mxu0 %v7016
        %7162 = vmatpush1.msra.mxu0 %v7015
        %7163 = vmatprep.subr.mxu0 %v7018
        %7164 = vmatpush1.msra.mxu0 %v7017
        %7165 = vmatprep.subr.mxu0 %v7020
        %7166 = vmatpush1.msra.mxu0 %v7019
        %7167 = vmatprep.subr.mxu0 %v7022
        %7168 = vmatpush1.msra.mxu0 %v7021
        %7169 = vmatprep.subr.mxu0 %v7024
        %7170 = vmatpush1.msra.mxu0 %v7023
        %7171 = vmatprep.subr.mxu0 %v7026
        %7172 = vmatpush1.msra.mxu0 %v7025
        %7173 = vmatprep.subr.mxu0 %v7028
        %7174 = vmatpush1.msra.mxu0 %v7027
        %7175 = vmatprep.subr.mxu0 %v7030
        %7176 = vmatpush1.msra.mxu0 %v7029
        %7177 = vmatprep.subr.mxu0 %v7032
        %7178 = vmatpush1.msra.mxu0 %v7031
        %7179 = vmatprep.subr.mxu0 %v7034
        %7180 = vmatpush1.msra.mxu0 %v7033
        %7181 = vmatprep.subr.mxu0 %v7036
        %7182 = vmatpush1.msra.mxu0 %v7035
        %7183 = vmatprep.subr.mxu0 %v7038
        %7184 = vmatpush1.msra.mxu0 %v7037
        %7185 = vmatprep.subr.mxu0 %v7040
        %7186 = vmatpush1.msra.mxu0 %v7039
        %7187 = vmatprep.subr.mxu0 %v7042
        %7188 = vmatpush1.msra.mxu0 %v7041
        %7189 = vmatprep.subr.mxu0 %v7044
        %7190 = vmatpush1.msra.mxu0 %v7043
        %7191 = vmatprep.subr.mxu0 %v7046
        %7192 = vmatpush1.msra.mxu0 %v7045
        %7193 = vmatprep.subr.mxu0 %v7048
        %7194 = vmatpush1.msra.mxu0 %v7047
        %7195 = vmatprep.subr.mxu0 %v7050
        %7196 = vmatpush1.msra.mxu0 %v7049
        %7197 = vmatprep.subr.mxu0 %v7052
        %7198 = vmatpush1.msra.mxu0 %v7051
        %7199 = vmatprep.subr.mxu0 %v7054
        %7200 = vmatpush1.msra.mxu0 %v7053
        %7201 = vmatprep.subr.mxu0 %v7056
        %7202 = vmatpush1.msra.mxu0 %v7055
        %7203 = vmatprep.mubr.f32.mxu0 %v7114
        %7204 = vmatmul.mubr.f32.gmra.mrb[0].mxu0 %v7111
        %v7205 = vpop.f32.mrb[0].mxu0
        %v7206 = vadd.f32 0.0, %v7205
        %v7207 = vpop.f32.mrb[0].mxu0
        %v7208 = vadd.f32 0.0, %v7207
        %7209 = vmatprep.mubr.f32.mxu0 %v7124
        %7210 = vmatmul.mubr.f32.gmra.mrb[0].mxu0 %v7122
        %v7211 = vpop.f32.mrb[0].mxu0
        %v7212 = vadd.f32 0.0, %v7211
        %v7213 = vpop.f32.mrb[0].mxu0
        %v7214 = vadd.f32 0.0, %v7213
        %7215 = vdwg.mxu0
        %7216 = vmatprep.subr.mxu0 %v7058
        %7217 = vmatpush1.msra.mxu0 %v7057
        %7218 = vmatprep.subr.mxu0 %v7060
        %7219 = vmatpush1.msra.mxu0 %v7059
        %7220 = vmatprep.subr.mxu0 %v7062
        %7221 = vmatpush1.msra.mxu0 %v7061
        %7222 = vmatprep.subr.mxu0 %v7064
        %7223 = vmatpush1.msra.mxu0 %v7063
        %7224 = vmatprep.subr.mxu0 %v7066
        %7225 = vmatpush1.msra.mxu0 %v7065
        %7226 = vmatprep.subr.mxu0 %v7068
        %7227 = vmatpush1.msra.mxu0 %v7067
        %7228 = vmatprep.subr.mxu0 %v7070
        %7229 = vmatpush1.msra.mxu0 %v7069
        %7230 = vmatprep.subr.mxu0 %v7072
        %7231 = vmatpush1.msra.mxu0 %v7071
        %7232 = vmatprep.subr.mxu0 %v7074
        %7233 = vmatpush1.msra.mxu0 %v7073
        %7234 = vmatprep.subr.mxu0 %v7076
        %7235 = vmatpush1.msra.mxu0 %v7075
        %7236 = vmatprep.subr.mxu0 %v7078
        %7237 = vmatpush1.msra.mxu0 %v7077
        %7238 = vmatprep.subr.mxu0 %v7080
        %7239 = vmatpush1.msra.mxu0 %v7079
        %7240 = vmatprep.subr.mxu0 %v7082
        %7241 = vmatpush1.msra.mxu0 %v7081
        %7242 = vmatprep.subr.mxu0 %v7084
        %7243 = vmatpush1.msra.mxu0 %v7083
        %7244 = vmatprep.subr.mxu0 %v7086
        %7245 = vmatpush1.msra.mxu0 %v7085
        %7246 = vmatprep.subr.mxu0 %v7088
        %7247 = vmatpush1.msra.mxu0 %v7087
        %7248 = vmatprep.subr.mxu0 %v7090
        %7249 = vmatpush1.msra.mxu0 %v7089
        %7250 = vmatprep.subr.mxu0 %v7092
        %7251 = vmatpush1.msra.mxu0 %v7091
        %7252 = vmatprep.subr.mxu0 %v7094
        %7253 = vmatpush1.msra.mxu0 %v7093
        %7254 = vmatprep.subr.mxu0 %v7096
        %7255 = vmatpush1.msra.mxu0 %v7095
        %7256 = vmatprep.subr.mxu0 %v7098
        %7257 = vmatpush1.msra.mxu0 %v7097
        %7258 = vmatprep.subr.mxu0 %v7100
        %7259 = vmatpush1.msra.mxu0 %v7099
        %7260 = vmatprep.subr.mxu0 0.0
        %7261 = vmatpush1.msra.mxu0 0.0
        %7262 = vmatprep.subr.mxu0 0.0
        %7263 = vmatpush1.msra.mxu0 0.0
        %7264 = vmatprep.subr.mxu0 0.0
        %7265 = vmatpush1.msra.mxu0 0.0
        %7266 = vmatprep.subr.mxu0 0.0
        %7267 = vmatpush1.msra.mxu0 0.0
        %7268 = vmatprep.subr.mxu0 0.0
        %7269 = vmatpush1.msra.mxu0 0.0
        %7270 = vmatprep.subr.mxu0 0.0
        %7271 = vmatpush1.msra.mxu0 0.0
        %7272 = vmatprep.subr.mxu0 0.0
        %7273 = vmatpush1.msra.mxu0 0.0
        %7274 = vmatprep.subr.mxu0 0.0
        %7275 = vmatpush1.msra.mxu0 0.0
        %7276 = vmatprep.subr.mxu0 0.0
        %7277 = vmatpush1.msra.mxu0 0.0
        %7278 = vmatprep.subr.mxu0 0.0
        %7279 = vmatpush1.msra.mxu0 0.0
        %7280 = vmatprep.mubr.f32.mxu0 %v7135
        %7281 = vmatmul.mubr.f32.gmra.mrb[0].mxu0 %v7117
        %v7282 = vpop.f32.mrb[0].mxu0
        %v7283 = vadd.f32 %v7206, %v7282
        %v7284 = vpop.f32.mrb[0].mxu0
        %v7285 = vadd.f32 %v7208, %v7284
        %7286 = vmatprep.mubr.f32.mxu0 %v7137
        %7287 = vmatmul.mubr.f32.gmra.mrb[0].mxu0 %v7126
        %v7288 = vpop.f32.mrb[0].mxu0
        %v7289 = vadd.f32 %v7212, %v7288
        %v7290 = vpop.f32.mrb[0].mxu0
        %v7291 = vadd.f32 %v7214, %v7290
        %7292 = vdwg.mxu0
        %v7293 = vadd.f32 %v6980, %v7283
        %v7294 = vadd.f32 %v6981, %v7285
        %v7295 = vadd.f32 %v6982, %v7289
        %v7296 = vadd.f32 %v6983, %v7291
        %v7297 = vld [vmem:[#allocation2 + $0x20] sm:$0xf8]
        %v7298 = vld [vmem:[#allocation2 + $0x28] sm:$0xf8]
        %v7299 = vld [vmem:[#allocation2 + $0x30] sm:$0xf8]
        %v7300 = vld [vmem:[#allocation2 + $0x38] sm:$0xf8]
        %v7301 = vld [vmem:[#allocation2 + $0x60] sm:$0x7]
        %v7302 = vld [vmem:[#allocation2 + $0x68] sm:$0x7]
        %v7303 = vld [vmem:[#allocation2 + $0x70] sm:$0x7]
        %v7304 = vld [vmem:[#allocation2 + $0x78] sm:$0x7]
        %s7305 = scalar_lea.vmem [#allocation3], 19872
        %v7306 = vld [vmem:[%s7305] sm:$0xff]
        %v7307 = vld [vmem:[%s7305 + $0x8] sm:$0xff]
        %v7308 = vld [vmem:[%s7305 + $0x10] sm:$0xff]
        %v7309 = vld [vmem:[%s7305 + $0x18] sm:$0xff]
        %v7310 = vld [vmem:[%s7305 + $0x20] sm:$0xff]
        %v7311 = vld [vmem:[%s7305 + $0x28] sm:$0xff]
        %v7312 = vld [vmem:[%s7305 + $0x30] sm:$0xff]
        %v7313 = vld [vmem:[%s7305 + $0x38] sm:$0xff]
        %v7314 = vld [vmem:[%s7305 + $0x40] sm:$0xff]
        %v7315 = vld [vmem:[%s7305 + $0x48] sm:$0xff]
        %v7316 = vld [vmem:[%s7305 + $0x50] sm:$0xff]
        %v7317 = vld [vmem:[%s7305 + $0x58] sm:$0xff]
        %v7318 = vld [vmem:[%s7305 + $0x60] sm:$0xff]
        %v7319 = vld [vmem:[%s7305 + $0x68] sm:$0xff]
        %v7320 = vld [vmem:[%s7305 + $0x70] sm:$0xff]
        %v7321 = vld [vmem:[%s7305 + $0x78] sm:$0xff]
        %v7322 = vld [vmem:[%s7305 + $0x80] sm:$0xff]
        %v7323 = vld [vmem:[%s7305 + $0x88] sm:$0xff]
        %v7324 = vld [vmem:[%s7305 + $0x90] sm:$0xff]
        %v7325 = vld [vmem:[%s7305 + $0x98] sm:$0xff]
        %v7326 = vld [vmem:[%s7305 + $0xa0] sm:$0xff]
        %v7327 = vld [vmem:[%s7305 + $0xa8] sm:$0xff]
        %v7328 = vld [vmem:[%s7305 + $0xb0] sm:$0xff]
        %v7329 = vld [vmem:[%s7305 + $0xb8] sm:$0xff]
        %v7330 = vld [vmem:[%s7305 + $0xc0] sm:$0xff]
        %v7331 = vld [vmem:[%s7305 + $0xc8] sm:$0xff]
        %v7332 = vld [vmem:[%s7305 + $0xd0] sm:$0xff]
        %v7333 = vld [vmem:[%s7305 + $0xd8] sm:$0xff]
        %v7334 = vld [vmem:[%s7305 + $0xe0] sm:$0xff]
        %v7335 = vld [vmem:[%s7305 + $0xe8] sm:$0xff]
        %v7336 = vld [vmem:[%s7305 + $0xf0] sm:$0xff]
        %v7337 = vld [vmem:[%s7305 + $0xf8] sm:$0xff]
        %v7338 = vld [vmem:[%s7305 + $0x100] sm:$0xff]
        %v7339 = vld [vmem:[%s7305 + $0x108] sm:$0xff]
        %v7340 = vld [vmem:[%s7305 + $0x110] sm:$0xff]
        %v7341 = vld [vmem:[%s7305 + $0x118] sm:$0xff]
        %v7342 = vld [vmem:[%s7305 + $0x120] sm:$0xff]
        %v7343 = vld [vmem:[%s7305 + $0x128] sm:$0xff]
        %v7344 = vld [vmem:[%s7305 + $0x130] sm:$0xff]
        %v7345 = vld [vmem:[%s7305 + $0x138] sm:$0xff]
        %v7346 = vld [vmem:[%s7305 + $0x140] sm:$0xff]
        %v7347 = vld [vmem:[%s7305 + $0x148] sm:$0xff]
        %v7348 = vld [vmem:[%s7305 + $0x150] sm:$0xff]
        %v7349 = vld [vmem:[%s7305 + $0x158] sm:$0xff]
        %v7350 = vld [vmem:[%s7305 + $0x160] sm:$0xff]
        %v7351 = vld [vmem:[%s7305 + $0x168] sm:$0xff]
        %v7352 = vld [vmem:[%s7305 + $0x170] sm:$0xff]
        %v7353 = vld [vmem:[%s7305 + $0x178] sm:$0xff]
        %v7354 = vld [vmem:[%s7305 + $0x180] sm:$0xff]
        %v7355 = vld [vmem:[%s7305 + $0x188] sm:$0xff]
        %v7356 = vld [vmem:[%s7305 + $0x190] sm:$0xff]
        %v7357 = vld [vmem:[%s7305 + $0x198] sm:$0xff]
        %v7358 = vld [vmem:[%s7305 + $0x1a0] sm:$0xff]
        %v7359 = vld [vmem:[%s7305 + $0x1a8] sm:$0xff]
        %v7360 = vld [vmem:[%s7305 + $0x1b0] sm:$0xff]
        %v7361 = vld [vmem:[%s7305 + $0x1b8] sm:$0xff]
        %v7362 = vld [vmem:[%s7305 + $0x1c0] sm:$0xff]
        %v7363 = vld [vmem:[%s7305 + $0x1c8] sm:$0xff]
        %v7364 = vld [vmem:[%s7305 + $0x1d0] sm:$0xff]
        %v7365 = vld [vmem:[%s7305 + $0x1d8] sm:$0xff]
        %v7366 = vld [vmem:[%s7305 + $0x1e0] sm:$0xff]
        %v7367 = vld [vmem:[%s7305 + $0x1e8] sm:$0xff]
        %v7368 = vld [vmem:[%s7305 + $0x1f0] sm:$0xff]
        %v7369 = vld [vmem:[%s7305 + $0x1f8] sm:$0xff]
        %v7370 = vld [vmem:[%s7305 + $0x200] sm:$0xff]
        %v7371 = vld [vmem:[%s7305 + $0x208] sm:$0xff]
        %v7372 = vld [vmem:[%s7305 + $0x210] sm:$0xff]
        %v7373 = vld [vmem:[%s7305 + $0x218] sm:$0xff]
        %v7374 = vld [vmem:[%s7305 + $0x220] sm:$0xff]
        %v7375 = vld [vmem:[%s7305 + $0x228] sm:$0xff]
        %v7376 = vld [vmem:[%s7305 + $0x230] sm:$0xff]
        %v7377 = vld [vmem:[%s7305 + $0x238] sm:$0xff]
        %v7378 = vld [vmem:[%s7305 + $0x240] sm:$0xff]
        %v7379 = vld [vmem:[%s7305 + $0x248] sm:$0xff]
        %v7380 = vld [vmem:[%s7305 + $0x250] sm:$0xff]
        %v7381 = vld [vmem:[%s7305 + $0x258] sm:$0xff]
        %v7382 = vld [vmem:[%s7305 + $0x260] sm:$0xff]
        %v7383 = vld [vmem:[%s7305 + $0x268] sm:$0xff]
        %v7384 = vld [vmem:[%s7305 + $0x270] sm:$0xff]
        %v7385 = vld [vmem:[%s7305 + $0x278] sm:$0xff]
        %v7386 = vld [vmem:[%s7305 + $0x280] sm:$0xff]
        %v7387 = vld [vmem:[%s7305 + $0x288] sm:$0xff]
        %v7388 = vld [vmem:[%s7305 + $0x290] sm:$0xff]
        %v7389 = vld [vmem:[%s7305 + $0x298] sm:$0xff]
        %v7390 = vld [vmem:[%s7305 + $0x2a0] sm:$0xff]
        %v7391 = vld [vmem:[%s7305 + $0x2a8] sm:$0xff]
        %v7392 = vld [vmem:[%s7305 + $0x2b0] sm:$0xff]
        %v7393 = vld [vmem:[%s7305 + $0x2b8] sm:$0xff]
        %v7394 = vld [vmem:[%s7305 + $0x2c0] sm:$0xff]
        %v7395 = vld [vmem:[%s7305 + $0x2c8] sm:$0xff]
        %v7396 = vld [vmem:[%s7305 + $0x2d0] sm:$0xff]
        %v7397 = vld [vmem:[%s7305 + $0x2d8] sm:$0xff]
        %v7398 = vld [vmem:[%s7305 + $0x2e0] sm:$0xff]
        %v7399 = vld [vmem:[%s7305 + $0x2e8] sm:$0xff]
        %v7400 = vld [vmem:[%s7305 + $0x2f0] sm:$0xff]
        %v7401 = vld [vmem:[%s7305 + $0x2f8] sm:$0xff]
        %v7402 = vld [vmem:[%s7305 + $0x300] sm:$0xff]
        %v7403 = vld [vmem:[%s7305 + $0x308] sm:$0xff]
        %v7404 = vld [vmem:[%s7305 + $0x310] sm:$0xff]
        %v7405 = vld [vmem:[%s7305 + $0x318] sm:$0xff]
        %v7406 = vld [vmem:[%s7305 + $0x320] sm:$0xff]
        %v7407 = vld [vmem:[%s7305 + $0x328] sm:$0xff]
        %v7408 = vld [vmem:[%s7305 + $0x330] sm:$0xff]
        %v7409 = vld [vmem:[%s7305 + $0x338] sm:$0xff]
        %v7410 = vld [vmem:[%s7305 + $0x340] sm:$0xff]
        %v7411 = vld [vmem:[%s7305 + $0x348] sm:$0xff]
        %v7412 = vld [vmem:[%s7305 + $0x350] sm:$0xff]
        %v7413 = vld [vmem:[%s7305 + $0x358] sm:$0xff]
        %v7422 = vrot.slane %v7297, 3
        %v7423 = vrot.slane %v6667, 3
        %v7424 = vsel %vm2163, %v7422, %v7423
        %v7425 = vrot.slane %v7298, 3
        %v7426 = vrot.slane %v6668, 3
        %v7427 = vsel %vm2163, %v7425, %v7426
        %v7428 = vrot.slane %v7299, 3
        %v7429 = vrot.slane %v6669, 3
        %v7430 = vsel %vm2163, %v7428, %v7429
        %v7431 = vrot.slane %v7300, 3
        %v7432 = vrot.slane %v6670, 3
        %v7433 = vsel %vm2163, %v7431, %v7432
        %v7434 = vrot.slane %v7301, 3
        %v7435 = vsel %vm2163, %v7423, %v7434
        %v7436 = vrot.slane %v7302, 3
        %v7437 = vsel %vm2163, %v7426, %v7436
        %v7438 = vrot.slane %v7303, 3
        %v7439 = vsel %vm2163, %v7429, %v7438
        %v7440 = vrot.slane %v7304, 3
        %v7441 = vsel %vm2163, %v7432, %v7440
        %v7448 = vsel %vm162, %v7433, 0
        %v7450 = vsel %vm162, %v7441, 0
        %7452 = vmatprep.subr.mxu0 %v7307
        %7453 = vmatpush1.msra.mxu0 %v7306
        %7454 = vmatprep.subr.mxu0 %v7309
        %7455 = vmatpush1.msra.mxu0 %v7308
        %7456 = vmatprep.subr.mxu0 %v7311
        %7457 = vmatpush1.msra.mxu0 %v7310
        %7458 = vmatprep.subr.mxu0 %v7313
        %7459 = vmatpush1.msra.mxu0 %v7312
        %7460 = vmatprep.subr.mxu0 %v7315
        %7461 = vmatpush1.msra.mxu0 %v7314
        %7462 = vmatprep.subr.mxu0 %v7317
        %7463 = vmatpush1.msra.mxu0 %v7316
        %7464 = vmatprep.subr.mxu0 %v7319
        %7465 = vmatpush1.msra.mxu0 %v7318
        %7466 = vmatprep.subr.mxu0 %v7321
        %7467 = vmatpush1.msra.mxu0 %v7320
        %7468 = vmatprep.subr.mxu0 %v7323
        %7469 = vmatpush1.msra.mxu0 %v7322
        %7470 = vmatprep.subr.mxu0 %v7325
        %7471 = vmatpush1.msra.mxu0 %v7324
        %7472 = vmatprep.subr.mxu0 %v7327
        %7473 = vmatpush1.msra.mxu0 %v7326
        %7474 = vmatprep.subr.mxu0 %v7329
        %7475 = vmatpush1.msra.mxu0 %v7328
        %7476 = vmatprep.subr.mxu0 %v7331
        %7477 = vmatpush1.msra.mxu0 %v7330
        %7478 = vmatprep.subr.mxu0 %v7333
        %7479 = vmatpush1.msra.mxu0 %v7332
        %7480 = vmatprep.subr.mxu0 %v7335
        %7481 = vmatpush1.msra.mxu0 %v7334
        %7482 = vmatprep.subr.mxu0 %v7337
        %7483 = vmatpush1.msra.mxu0 %v7336
        %7484 = vmatprep.subr.mxu0 %v7339
        %7485 = vmatpush1.msra.mxu0 %v7338
        %7486 = vmatprep.subr.mxu0 %v7341
        %7487 = vmatpush1.msra.mxu0 %v7340
        %7488 = vmatprep.subr.mxu0 %v7343
        %7489 = vmatpush1.msra.mxu0 %v7342
        %7490 = vmatprep.subr.mxu0 %v7345
        %7491 = vmatpush1.msra.mxu0 %v7344
        %7492 = vmatprep.subr.mxu0 %v7347
        %7493 = vmatpush1.msra.mxu0 %v7346
        %7494 = vmatprep.subr.mxu0 %v7349
        %7495 = vmatpush1.msra.mxu0 %v7348
        %7496 = vmatprep.subr.mxu0 %v7351
        %7497 = vmatpush1.msra.mxu0 %v7350
        %7498 = vmatprep.subr.mxu0 %v7353
        %7499 = vmatpush1.msra.mxu0 %v7352
        %7500 = vmatprep.subr.mxu0 %v7355
        %7501 = vmatpush1.msra.mxu0 %v7354
        %7502 = vmatprep.subr.mxu0 %v7357
        %7503 = vmatpush1.msra.mxu0 %v7356
        %7504 = vmatprep.subr.mxu0 %v7359
        %7505 = vmatpush1.msra.mxu0 %v7358
        %7506 = vmatprep.subr.mxu0 %v7361
        %7507 = vmatpush1.msra.mxu0 %v7360
        %7508 = vmatprep.subr.mxu0 %v7363
        %7509 = vmatpush1.msra.mxu0 %v7362
        %7510 = vmatprep.subr.mxu0 %v7365
        %7511 = vmatpush1.msra.mxu0 %v7364
        %7512 = vmatprep.subr.mxu0 %v7367
        %7513 = vmatpush1.msra.mxu0 %v7366
        %7514 = vmatprep.subr.mxu0 %v7369
        %7515 = vmatpush1.msra.mxu0 %v7368
        %7516 = vmatprep.mubr.f32.mxu0 %v7427
        %7517 = vmatmul.mubr.f32.gmra.mrb[0].mxu0 %v7424
        %v7518 = vpop.f32.mrb[0].mxu0
        %v7519 = vadd.f32 0.0, %v7518
        %v7520 = vpop.f32.mrb[0].mxu0
        %v7521 = vadd.f32 0.0, %v7520
        %7522 = vmatprep.mubr.f32.mxu0 %v7437
        %7523 = vmatmul.mubr.f32.gmra.mrb[0].mxu0 %v7435
        %v7524 = vpop.f32.mrb[0].mxu0
        %v7525 = vadd.f32 0.0, %v7524
        %v7526 = vpop.f32.mrb[0].mxu0
        %v7527 = vadd.f32 0.0, %v7526
        %7528 = vdwg.mxu0
        %7529 = vmatprep.subr.mxu0 %v7371
        %7530 = vmatpush1.msra.mxu0 %v7370
        %7531 = vmatprep.subr.mxu0 %v7373
        %7532 = vmatpush1.msra.mxu0 %v7372
        %7533 = vmatprep.subr.mxu0 %v7375
        %7534 = vmatpush1.msra.mxu0 %v7374
        %7535 = vmatprep.subr.mxu0 %v7377
        %7536 = vmatpush1.msra.mxu0 %v7376
        %7537 = vmatprep.subr.mxu0 %v7379
        %7538 = vmatpush1.msra.mxu0 %v7378
        %7539 = vmatprep.subr.mxu0 %v7381
        %7540 = vmatpush1.msra.mxu0 %v7380
        %7541 = vmatprep.subr.mxu0 %v7383
        %7542 = vmatpush1.msra.mxu0 %v7382
        %7543 = vmatprep.subr.mxu0 %v7385
        %7544 = vmatpush1.msra.mxu0 %v7384
        %7545 = vmatprep.subr.mxu0 %v7387
        %7546 = vmatpush1.msra.mxu0 %v7386
        %7547 = vmatprep.subr.mxu0 %v7389
        %7548 = vmatpush1.msra.mxu0 %v7388
        %7549 = vmatprep.subr.mxu0 %v7391
        %7550 = vmatpush1.msra.mxu0 %v7390
        %7551 = vmatprep.subr.mxu0 %v7393
        %7552 = vmatpush1.msra.mxu0 %v7392
        %7553 = vmatprep.subr.mxu0 %v7395
        %7554 = vmatpush1.msra.mxu0 %v7394
        %7555 = vmatprep.subr.mxu0 %v7397
        %7556 = vmatpush1.msra.mxu0 %v7396
        %7557 = vmatprep.subr.mxu0 %v7399
        %7558 = vmatpush1.msra.mxu0 %v7398
        %7559 = vmatprep.subr.mxu0 %v7401
        %7560 = vmatpush1.msra.mxu0 %v7400
        %7561 = vmatprep.subr.mxu0 %v7403
        %7562 = vmatpush1.msra.mxu0 %v7402
        %7563 = vmatprep.subr.mxu0 %v7405
        %7564 = vmatpush1.msra.mxu0 %v7404
        %7565 = vmatprep.subr.mxu0 %v7407
        %7566 = vmatpush1.msra.mxu0 %v7406
        %7567 = vmatprep.subr.mxu0 %v7409
        %7568 = vmatpush1.msra.mxu0 %v7408
        %7569 = vmatprep.subr.mxu0 %v7411
        %7570 = vmatpush1.msra.mxu0 %v7410
        %7571 = vmatprep.subr.mxu0 %v7413
        %7572 = vmatpush1.msra.mxu0 %v7412
        %7573 = vmatprep.subr.mxu0 0.0
        %7574 = vmatpush1.msra.mxu0 0.0
        %7575 = vmatprep.subr.mxu0 0.0
        %7576 = vmatpush1.msra.mxu0 0.0
        %7577 = vmatprep.subr.mxu0 0.0
        %7578 = vmatpush1.msra.mxu0 0.0
        %7579 = vmatprep.subr.mxu0 0.0
        %7580 = vmatpush1.msra.mxu0 0.0
        %7581 = vmatprep.subr.mxu0 0.0
        %7582 = vmatpush1.msra.mxu0 0.0
        %7583 = vmatprep.subr.mxu0 0.0
        %7584 = vmatpush1.msra.mxu0 0.0
        %7585 = vmatprep.subr.mxu0 0.0
        %7586 = vmatpush1.msra.mxu0 0.0
        %7587 = vmatprep.subr.mxu0 0.0
        %7588 = vmatpush1.msra.mxu0 0.0
        %7589 = vmatprep.subr.mxu0 0.0
        %7590 = vmatpush1.msra.mxu0 0.0
        %7591 = vmatprep.subr.mxu0 0.0
        %7592 = vmatpush1.msra.mxu0 0.0
        %7593 = vmatprep.mubr.f32.mxu0 %v7448
        %7594 = vmatmul.mubr.f32.gmra.mrb[0].mxu0 %v7430
        %v7595 = vpop.f32.mrb[0].mxu0
        %v7596 = vadd.f32 %v7519, %v7595
        %v7597 = vpop.f32.mrb[0].mxu0
        %v7598 = vadd.f32 %v7521, %v7597
        %7599 = vmatprep.mubr.f32.mxu0 %v7450
        %7600 = vmatmul.mubr.f32.gmra.mrb[0].mxu0 %v7439
        %v7601 = vpop.f32.mrb[0].mxu0
        %v7602 = vadd.f32 %v7525, %v7601
        %v7603 = vpop.f32.mrb[0].mxu0
        %v7604 = vadd.f32 %v7527, %v7603
        %7605 = vdwg.mxu0
        %v7606 = vadd.f32 %v7293, %v7596
        %v7607 = vadd.f32 %v7294, %v7598
        %v7608 = vadd.f32 %v7295, %v7602
        %v7609 = vadd.f32 %v7296, %v7604
        %v7610 = vmax.f32 %v7606, 0.0
        %v7611 = vmax.f32 %v7607, 0.0
        %v7612 = vmax.f32 %v7608, 0.0
        %v7613 = vmax.f32 %v7609, 0.0
        %7614 = vst [vmem:[#allocation2 + $0x28] sm:$0xff] %v7610
        %7615 = vst [vmem:[#allocation2 + $0x30] sm:$0xff] %v7611
        %7616 = vst [vmem:[#allocation2 + $0x48] sm:$0xff] %v7612
        %7617 = vst [vmem:[#allocation2 + $0x50] sm:$0xff] %v7613
        %v7618 = vld [vmem:[#allocation2] sm:$0x80]
        %v7619 = vld [vmem:[#allocation2 + $0x8] sm:$0x80]
        %v7620 = vld [vmem:[#allocation2 + $0x10] sm:$0x80]
        %v7621 = vld [vmem:[#allocation2 + $0x18] sm:$0x80]
        %v7622 = vld [vmem:[#allocation2 + $0x20] sm:$0xff]
        %v7623 = vld [vmem:[#allocation2 + $0x28] sm:$0xff]
        %v7624 = vld [vmem:[#allocation2 + $0x30] sm:$0xff]
        %v7625 = vld [vmem:[#allocation2 + $0x38] sm:$0xff]
        %v7626 = vld [vmem:[#allocation2 + $0x40] sm:$0x7f]
        %v7627 = vld [vmem:[#allocation2 + $0x48] sm:$0x7f]
        %v7628 = vld [vmem:[#allocation2 + $0x50] sm:$0x7f]
        %v7629 = vld [vmem:[#allocation2 + $0x58] sm:$0x7f]
        %s7630 = scalar_lea.vmem [#allocation3], 20736
        %v7631 = vld [vmem:[%s7630] sm:$0xff]
        %v7632 = vld [vmem:[%s7630 + $0x8] sm:$0xff]
        %v7633 = vld [vmem:[%s7630 + $0x10] sm:$0xff]
        %v7634 = vld [vmem:[%s7630 + $0x18] sm:$0xff]
        %v7635 = vld [vmem:[%s7630 + $0x20] sm:$0xff]
        %v7636 = vld [vmem:[%s7630 + $0x28] sm:$0xff]
        %v7637 = vld [vmem:[%s7630 + $0x30] sm:$0xff]
        %v7638 = vld [vmem:[%s7630 + $0x38] sm:$0xff]
        %v7639 = vld [vmem:[%s7630 + $0x40] sm:$0xff]
        %v7640 = vld [vmem:[%s7630 + $0x48] sm:$0xff]
        %v7641 = vld [vmem:[%s7630 + $0x50] sm:$0xff]
        %v7642 = vld [vmem:[%s7630 + $0x58] sm:$0xff]
        %v7643 = vld [vmem:[%s7630 + $0x60] sm:$0xff]
        %v7644 = vld [vmem:[%s7630 + $0x68] sm:$0xff]
        %v7645 = vld [vmem:[%s7630 + $0x70] sm:$0xff]
        %v7646 = vld [vmem:[%s7630 + $0x78] sm:$0xff]
        %v7647 = vld [vmem:[%s7630 + $0x80] sm:$0xff]
        %v7648 = vld [vmem:[%s7630 + $0x88] sm:$0xff]
        %v7649 = vld [vmem:[%s7630 + $0x90] sm:$0xff]
        %v7650 = vld [vmem:[%s7630 + $0x98] sm:$0xff]
        %v7651 = vld [vmem:[%s7630 + $0xa0] sm:$0xff]
        %v7652 = vld [vmem:[%s7630 + $0xa8] sm:$0xff]
        %v7653 = vld [vmem:[%s7630 + $0xb0] sm:$0xff]
        %v7654 = vld [vmem:[%s7630 + $0xb8] sm:$0xff]
        %v7655 = vld [vmem:[%s7630 + $0xc0] sm:$0xff]
        %v7656 = vld [vmem:[%s7630 + $0xc8] sm:$0xff]
        %v7657 = vld [vmem:[%s7630 + $0xd0] sm:$0xff]
        %v7658 = vld [vmem:[%s7630 + $0xd8] sm:$0xff]
        %v7659 = vld [vmem:[%s7630 + $0xe0] sm:$0xff]
        %v7660 = vld [vmem:[%s7630 + $0xe8] sm:$0xff]
        %v7661 = vld [vmem:[%s7630 + $0xf0] sm:$0xff]
        %v7662 = vld [vmem:[%s7630 + $0xf8] sm:$0xff]
        %v7663 = vld [vmem:[%s7630 + $0x100] sm:$0xff]
        %v7664 = vld [vmem:[%s7630 + $0x108] sm:$0xff]
        %v7665 = vld [vmem:[%s7630 + $0x110] sm:$0xff]
        %v7666 = vld [vmem:[%s7630 + $0x118] sm:$0xff]
        %v7667 = vld [vmem:[%s7630 + $0x120] sm:$0xff]
        %v7668 = vld [vmem:[%s7630 + $0x128] sm:$0xff]
        %v7669 = vld [vmem:[%s7630 + $0x130] sm:$0xff]
        %v7670 = vld [vmem:[%s7630 + $0x138] sm:$0xff]
        %v7671 = vld [vmem:[%s7630 + $0x140] sm:$0xff]
        %v7672 = vld [vmem:[%s7630 + $0x148] sm:$0xff]
        %v7673 = vld [vmem:[%s7630 + $0x150] sm:$0xff]
        %v7674 = vld [vmem:[%s7630 + $0x158] sm:$0xff]
        %v7675 = vld [vmem:[%s7630 + $0x160] sm:$0xff]
        %v7676 = vld [vmem:[%s7630 + $0x168] sm:$0xff]
        %v7677 = vld [vmem:[%s7630 + $0x170] sm:$0xff]
        %v7678 = vld [vmem:[%s7630 + $0x178] sm:$0xff]
        %v7679 = vld [vmem:[%s7630 + $0x180] sm:$0xff]
        %v7680 = vld [vmem:[%s7630 + $0x188] sm:$0xff]
        %v7681 = vld [vmem:[%s7630 + $0x190] sm:$0xff]
        %v7682 = vld [vmem:[%s7630 + $0x198] sm:$0xff]
        %v7683 = vld [vmem:[%s7630 + $0x1a0] sm:$0xff]
        %v7684 = vld [vmem:[%s7630 + $0x1a8] sm:$0xff]
        %v7685 = vld [vmem:[%s7630 + $0x1b0] sm:$0xff]
        %v7686 = vld [vmem:[%s7630 + $0x1b8] sm:$0xff]
        %v7687 = vld [vmem:[%s7630 + $0x1c0] sm:$0xff]
        %v7688 = vld [vmem:[%s7630 + $0x1c8] sm:$0xff]
        %v7689 = vld [vmem:[%s7630 + $0x1d0] sm:$0xff]
        %v7690 = vld [vmem:[%s7630 + $0x1d8] sm:$0xff]
        %v7691 = vld [vmem:[%s7630 + $0x1e0] sm:$0xff]
        %v7692 = vld [vmem:[%s7630 + $0x1e8] sm:$0xff]
        %v7693 = vld [vmem:[%s7630 + $0x1f0] sm:$0xff]
        %v7694 = vld [vmem:[%s7630 + $0x1f8] sm:$0xff]
        %v7695 = vld [vmem:[%s7630 + $0x200] sm:$0xff]
        %v7696 = vld [vmem:[%s7630 + $0x208] sm:$0xff]
        %v7697 = vld [vmem:[%s7630 + $0x210] sm:$0xff]
        %v7698 = vld [vmem:[%s7630 + $0x218] sm:$0xff]
        %v7699 = vld [vmem:[%s7630 + $0x220] sm:$0xff]
        %v7700 = vld [vmem:[%s7630 + $0x228] sm:$0xff]
        %v7701 = vld [vmem:[%s7630 + $0x230] sm:$0xff]
        %v7702 = vld [vmem:[%s7630 + $0x238] sm:$0xff]
        %v7703 = vld [vmem:[%s7630 + $0x240] sm:$0xff]
        %v7704 = vld [vmem:[%s7630 + $0x248] sm:$0xff]
        %v7705 = vld [vmem:[%s7630 + $0x250] sm:$0xff]
        %v7706 = vld [vmem:[%s7630 + $0x258] sm:$0xff]
        %v7707 = vld [vmem:[%s7630 + $0x260] sm:$0xff]
        %v7708 = vld [vmem:[%s7630 + $0x268] sm:$0xff]
        %v7709 = vld [vmem:[%s7630 + $0x270] sm:$0xff]
        %v7710 = vld [vmem:[%s7630 + $0x278] sm:$0xff]
        %v7711 = vld [vmem:[%s7630 + $0x280] sm:$0xff]
        %v7712 = vld [vmem:[%s7630 + $0x288] sm:$0xff]
        %v7713 = vld [vmem:[%s7630 + $0x290] sm:$0xff]
        %v7714 = vld [vmem:[%s7630 + $0x298] sm:$0xff]
        %v7715 = vld [vmem:[%s7630 + $0x2a0] sm:$0xff]
        %v7716 = vld [vmem:[%s7630 + $0x2a8] sm:$0xff]
        %v7717 = vld [vmem:[%s7630 + $0x2b0] sm:$0xff]
        %v7718 = vld [vmem:[%s7630 + $0x2b8] sm:$0xff]
        %v7719 = vld [vmem:[%s7630 + $0x2c0] sm:$0xff]
        %v7720 = vld [vmem:[%s7630 + $0x2c8] sm:$0xff]
        %v7721 = vld [vmem:[%s7630 + $0x2d0] sm:$0xff]
        %v7722 = vld [vmem:[%s7630 + $0x2d8] sm:$0xff]
        %v7723 = vld [vmem:[%s7630 + $0x2e0] sm:$0xff]
        %v7724 = vld [vmem:[%s7630 + $0x2e8] sm:$0xff]
        %v7725 = vld [vmem:[%s7630 + $0x2f0] sm:$0xff]
        %v7726 = vld [vmem:[%s7630 + $0x2f8] sm:$0xff]
        %v7727 = vld [vmem:[%s7630 + $0x300] sm:$0xff]
        %v7728 = vld [vmem:[%s7630 + $0x308] sm:$0xff]
        %v7729 = vld [vmem:[%s7630 + $0x310] sm:$0xff]
        %v7730 = vld [vmem:[%s7630 + $0x318] sm:$0xff]
        %v7731 = vld [vmem:[%s7630 + $0x320] sm:$0xff]
        %v7732 = vld [vmem:[%s7630 + $0x328] sm:$0xff]
        %v7733 = vld [vmem:[%s7630 + $0x330] sm:$0xff]
        %v7734 = vld [vmem:[%s7630 + $0x338] sm:$0xff]
        %v7735 = vld [vmem:[%s7630 + $0x340] sm:$0xff]
        %v7736 = vld [vmem:[%s7630 + $0x348] sm:$0xff]
        %v7737 = vld [vmem:[%s7630 + $0x350] sm:$0xff]
        %v7738 = vld [vmem:[%s7630 + $0x358] sm:$0xff]
        %v7739 = vld [vmem:[#allocation2 + $0x40] sm:$0xff]
        %v7740 = vld [vmem:[#allocation2 + $0x48] sm:$0xff]
        %v7741 = vld [vmem:[#allocation2 + $0x50] sm:$0xff]
        %v7742 = vld [vmem:[#allocation2 + $0x58] sm:$0xff]
        %s7743 = scalar_lea.vmem [#allocation3], 21600
        %v7744 = vld [vmem:[%s7743] sm:$0xff]
        %v7745 = vld [vmem:[%s7743 + $0x8] sm:$0xff]
        %v7746 = vld [vmem:[%s7743 + $0x10] sm:$0xff]
        %v7747 = vld [vmem:[%s7743 + $0x18] sm:$0xff]
        %v7748 = vld [vmem:[%s7743 + $0x20] sm:$0xff]
        %v7749 = vld [vmem:[%s7743 + $0x28] sm:$0xff]
        %v7750 = vld [vmem:[%s7743 + $0x30] sm:$0xff]
        %v7751 = vld [vmem:[%s7743 + $0x38] sm:$0xff]
        %v7752 = vld [vmem:[%s7743 + $0x40] sm:$0xff]
        %v7753 = vld [vmem:[%s7743 + $0x48] sm:$0xff]
        %v7754 = vld [vmem:[%s7743 + $0x50] sm:$0xff]
        %v7755 = vld [vmem:[%s7743 + $0x58] sm:$0xff]
        %v7756 = vld [vmem:[%s7743 + $0x60] sm:$0xff]
        %v7757 = vld [vmem:[%s7743 + $0x68] sm:$0xff]
        %v7758 = vld [vmem:[%s7743 + $0x70] sm:$0xff]
        %v7759 = vld [vmem:[%s7743 + $0x78] sm:$0xff]
        %v7760 = vld [vmem:[%s7743 + $0x80] sm:$0xff]
        %v7761 = vld [vmem:[%s7743 + $0x88] sm:$0xff]
        %v7762 = vld [vmem:[%s7743 + $0x90] sm:$0xff]
        %v7763 = vld [vmem:[%s7743 + $0x98] sm:$0xff]
        %v7764 = vld [vmem:[%s7743 + $0xa0] sm:$0xff]
        %v7765 = vld [vmem:[%s7743 + $0xa8] sm:$0xff]
        %v7766 = vld [vmem:[%s7743 + $0xb0] sm:$0xff]
        %v7767 = vld [vmem:[%s7743 + $0xb8] sm:$0xff]
        %v7768 = vld [vmem:[%s7743 + $0xc0] sm:$0xff]
        %v7769 = vld [vmem:[%s7743 + $0xc8] sm:$0xff]
        %v7770 = vld [vmem:[%s7743 + $0xd0] sm:$0xff]
        %v7771 = vld [vmem:[%s7743 + $0xd8] sm:$0xff]
        %v7772 = vld [vmem:[%s7743 + $0xe0] sm:$0xff]
        %v7773 = vld [vmem:[%s7743 + $0xe8] sm:$0xff]
        %v7774 = vld [vmem:[%s7743 + $0xf0] sm:$0xff]
        %v7775 = vld [vmem:[%s7743 + $0xf8] sm:$0xff]
        %v7776 = vld [vmem:[%s7743 + $0x100] sm:$0xff]
        %v7777 = vld [vmem:[%s7743 + $0x108] sm:$0xff]
        %v7778 = vld [vmem:[%s7743 + $0x110] sm:$0xff]
        %v7779 = vld [vmem:[%s7743 + $0x118] sm:$0xff]
        %v7780 = vld [vmem:[%s7743 + $0x120] sm:$0xff]
        %v7781 = vld [vmem:[%s7743 + $0x128] sm:$0xff]
        %v7782 = vld [vmem:[%s7743 + $0x130] sm:$0xff]
        %v7783 = vld [vmem:[%s7743 + $0x138] sm:$0xff]
        %v7784 = vld [vmem:[%s7743 + $0x140] sm:$0xff]
        %v7785 = vld [vmem:[%s7743 + $0x148] sm:$0xff]
        %v7786 = vld [vmem:[%s7743 + $0x150] sm:$0xff]
        %v7787 = vld [vmem:[%s7743 + $0x158] sm:$0xff]
        %v7788 = vld [vmem:[%s7743 + $0x160] sm:$0xff]
        %v7789 = vld [vmem:[%s7743 + $0x168] sm:$0xff]
        %v7790 = vld [vmem:[%s7743 + $0x170] sm:$0xff]
        %v7791 = vld [vmem:[%s7743 + $0x178] sm:$0xff]
        %v7792 = vld [vmem:[%s7743 + $0x180] sm:$0xff]
        %v7793 = vld [vmem:[%s7743 + $0x188] sm:$0xff]
        %v7794 = vld [vmem:[%s7743 + $0x190] sm:$0xff]
        %v7795 = vld [vmem:[%s7743 + $0x198] sm:$0xff]
        %v7796 = vld [vmem:[%s7743 + $0x1a0] sm:$0xff]
        %v7797 = vld [vmem:[%s7743 + $0x1a8] sm:$0xff]
        %v7798 = vld [vmem:[%s7743 + $0x1b0] sm:$0xff]
        %v7799 = vld [vmem:[%s7743 + $0x1b8] sm:$0xff]
        %v7800 = vld [vmem:[%s7743 + $0x1c0] sm:$0xff]
        %v7801 = vld [vmem:[%s7743 + $0x1c8] sm:$0xff]
        %v7802 = vld [vmem:[%s7743 + $0x1d0] sm:$0xff]
        %v7803 = vld [vmem:[%s7743 + $0x1d8] sm:$0xff]
        %v7804 = vld [vmem:[%s7743 + $0x1e0] sm:$0xff]
        %v7805 = vld [vmem:[%s7743 + $0x1e8] sm:$0xff]
        %v7806 = vld [vmem:[%s7743 + $0x1f0] sm:$0xff]
        %v7807 = vld [vmem:[%s7743 + $0x1f8] sm:$0xff]
        %v7808 = vld [vmem:[%s7743 + $0x200] sm:$0xff]
        %v7809 = vld [vmem:[%s7743 + $0x208] sm:$0xff]
        %v7810 = vld [vmem:[%s7743 + $0x210] sm:$0xff]
        %v7811 = vld [vmem:[%s7743 + $0x218] sm:$0xff]
        %v7812 = vld [vmem:[%s7743 + $0x220] sm:$0xff]
        %v7813 = vld [vmem:[%s7743 + $0x228] sm:$0xff]
        %v7814 = vld [vmem:[%s7743 + $0x230] sm:$0xff]
        %v7815 = vld [vmem:[%s7743 + $0x238] sm:$0xff]
        %v7816 = vld [vmem:[%s7743 + $0x240] sm:$0xff]
        %v7817 = vld [vmem:[%s7743 + $0x248] sm:$0xff]
        %v7818 = vld [vmem:[%s7743 + $0x250] sm:$0xff]
        %v7819 = vld [vmem:[%s7743 + $0x258] sm:$0xff]
        %v7820 = vld [vmem:[%s7743 + $0x260] sm:$0xff]
        %v7821 = vld [vmem:[%s7743 + $0x268] sm:$0xff]
        %v7822 = vld [vmem:[%s7743 + $0x270] sm:$0xff]
        %v7823 = vld [vmem:[%s7743 + $0x278] sm:$0xff]
        %v7824 = vld [vmem:[%s7743 + $0x280] sm:$0xff]
        %v7825 = vld [vmem:[%s7743 + $0x288] sm:$0xff]
        %v7826 = vld [vmem:[%s7743 + $0x290] sm:$0xff]
        %v7827 = vld [vmem:[%s7743 + $0x298] sm:$0xff]
        %v7828 = vld [vmem:[%s7743 + $0x2a0] sm:$0xff]
        %v7829 = vld [vmem:[%s7743 + $0x2a8] sm:$0xff]
        %v7830 = vld [vmem:[%s7743 + $0x2b0] sm:$0xff]
        %v7831 = vld [vmem:[%s7743 + $0x2b8] sm:$0xff]
        %v7832 = vld [vmem:[%s7743 + $0x2c0] sm:$0xff]
        %v7833 = vld [vmem:[%s7743 + $0x2c8] sm:$0xff]
        %v7834 = vld [vmem:[%s7743 + $0x2d0] sm:$0xff]
        %v7835 = vld [vmem:[%s7743 + $0x2d8] sm:$0xff]
        %v7836 = vld [vmem:[%s7743 + $0x2e0] sm:$0xff]
        %v7837 = vld [vmem:[%s7743 + $0x2e8] sm:$0xff]
        %v7838 = vld [vmem:[%s7743 + $0x2f0] sm:$0xff]
        %v7839 = vld [vmem:[%s7743 + $0x2f8] sm:$0xff]
        %v7840 = vld [vmem:[%s7743 + $0x300] sm:$0xff]
        %v7841 = vld [vmem:[%s7743 + $0x308] sm:$0xff]
        %v7842 = vld [vmem:[%s7743 + $0x310] sm:$0xff]
        %v7843 = vld [vmem:[%s7743 + $0x318] sm:$0xff]
        %v7844 = vld [vmem:[%s7743 + $0x320] sm:$0xff]
        %v7845 = vld [vmem:[%s7743 + $0x328] sm:$0xff]
        %v7846 = vld [vmem:[%s7743 + $0x330] sm:$0xff]
        %v7847 = vld [vmem:[%s7743 + $0x338] sm:$0xff]
        %v7848 = vld [vmem:[%s7743 + $0x340] sm:$0xff]
        %v7849 = vld [vmem:[%s7743 + $0x348] sm:$0xff]
        %v7850 = vld [vmem:[%s7743 + $0x350] sm:$0xff]
        %v7851 = vld [vmem:[%s7743 + $0x358] sm:$0xff]
        %v7853 = vsel %vm162, %v7625, 0
        %v7856 = vsel %vm162, %v7742, 0
        %7858 = vmatprep.subr.mxu0 %v7745
        %7859 = vmatpush1.msra.mxu0 %v7744
        %7860 = vmatprep.subr.mxu0 %v7747
        %7861 = vmatpush1.msra.mxu0 %v7746
        %7862 = vmatprep.subr.mxu0 %v7749
        %7863 = vmatpush1.msra.mxu0 %v7748
        %7864 = vmatprep.subr.mxu0 %v7751
        %7865 = vmatpush1.msra.mxu0 %v7750
        %7866 = vmatprep.subr.mxu0 %v7753
        %7867 = vmatpush1.msra.mxu0 %v7752
        %7868 = vmatprep.subr.mxu0 %v7755
        %7869 = vmatpush1.msra.mxu0 %v7754
        %7870 = vmatprep.subr.mxu0 %v7757
        %7871 = vmatpush1.msra.mxu0 %v7756
        %7872 = vmatprep.subr.mxu0 %v7759
        %7873 = vmatpush1.msra.mxu0 %v7758
        %7874 = vmatprep.subr.mxu0 %v7761
        %7875 = vmatpush1.msra.mxu0 %v7760
        %7876 = vmatprep.subr.mxu0 %v7763
        %7877 = vmatpush1.msra.mxu0 %v7762
        %7878 = vmatprep.subr.mxu0 %v7765
        %7879 = vmatpush1.msra.mxu0 %v7764
        %7880 = vmatprep.subr.mxu0 %v7767
        %7881 = vmatpush1.msra.mxu0 %v7766
        %7882 = vmatprep.subr.mxu0 %v7769
        %7883 = vmatpush1.msra.mxu0 %v7768
        %7884 = vmatprep.subr.mxu0 %v7771
        %7885 = vmatpush1.msra.mxu0 %v7770
        %7886 = vmatprep.subr.mxu0 %v7773
        %7887 = vmatpush1.msra.mxu0 %v7772
        %7888 = vmatprep.subr.mxu0 %v7775
        %7889 = vmatpush1.msra.mxu0 %v7774
        %7890 = vmatprep.subr.mxu0 %v7777
        %7891 = vmatpush1.msra.mxu0 %v7776
        %7892 = vmatprep.subr.mxu0 %v7779
        %7893 = vmatpush1.msra.mxu0 %v7778
        %7894 = vmatprep.subr.mxu0 %v7781
        %7895 = vmatpush1.msra.mxu0 %v7780
        %7896 = vmatprep.subr.mxu0 %v7783
        %7897 = vmatpush1.msra.mxu0 %v7782
        %7898 = vmatprep.subr.mxu0 %v7785
        %7899 = vmatpush1.msra.mxu0 %v7784
        %7900 = vmatprep.subr.mxu0 %v7787
        %7901 = vmatpush1.msra.mxu0 %v7786
        %7902 = vmatprep.subr.mxu0 %v7789
        %7903 = vmatpush1.msra.mxu0 %v7788
        %7904 = vmatprep.subr.mxu0 %v7791
        %7905 = vmatpush1.msra.mxu0 %v7790
        %7906 = vmatprep.subr.mxu0 %v7793
        %7907 = vmatpush1.msra.mxu0 %v7792
        %7908 = vmatprep.subr.mxu0 %v7795
        %7909 = vmatpush1.msra.mxu0 %v7794
        %7910 = vmatprep.subr.mxu0 %v7797
        %7911 = vmatpush1.msra.mxu0 %v7796
        %7912 = vmatprep.subr.mxu0 %v7799
        %7913 = vmatpush1.msra.mxu0 %v7798
        %7914 = vmatprep.subr.mxu0 %v7801
        %7915 = vmatpush1.msra.mxu0 %v7800
        %7916 = vmatprep.subr.mxu0 %v7803
        %7917 = vmatpush1.msra.mxu0 %v7802
        %7918 = vmatprep.subr.mxu0 %v7805
        %7919 = vmatpush1.msra.mxu0 %v7804
        %7920 = vmatprep.subr.mxu0 %v7807
        %7921 = vmatpush1.msra.mxu0 %v7806
        %7922 = vmatprep.mubr.f32.mxu0 %v7623
        %7923 = vmatmul.mubr.f32.gmra.mrb[0].mxu0 %v7622
        %v7924 = vpop.f32.mrb[0].mxu0
        %v7925 = vadd.f32 0.0, %v7924
        %v7926 = vpop.f32.mrb[0].mxu0
        %v7927 = vadd.f32 0.0, %v7926
        %7928 = vmatprep.mubr.f32.mxu0 %v7740
        %7929 = vmatmul.mubr.f32.gmra.mrb[0].mxu0 %v7739
        %v7930 = vpop.f32.mrb[0].mxu0
        %v7931 = vadd.f32 0.0, %v7930
        %v7932 = vpop.f32.mrb[0].mxu0
        %v7933 = vadd.f32 0.0, %v7932
        %7934 = vdwg.mxu0
        %7935 = vmatprep.subr.mxu0 %v7809
        %7936 = vmatpush1.msra.mxu0 %v7808
        %7937 = vmatprep.subr.mxu0 %v7811
        %7938 = vmatpush1.msra.mxu0 %v7810
        %7939 = vmatprep.subr.mxu0 %v7813
        %7940 = vmatpush1.msra.mxu0 %v7812
        %7941 = vmatprep.subr.mxu0 %v7815
        %7942 = vmatpush1.msra.mxu0 %v7814
        %7943 = vmatprep.subr.mxu0 %v7817
        %7944 = vmatpush1.msra.mxu0 %v7816
        %7945 = vmatprep.subr.mxu0 %v7819
        %7946 = vmatpush1.msra.mxu0 %v7818
        %7947 = vmatprep.subr.mxu0 %v7821
        %7948 = vmatpush1.msra.mxu0 %v7820
        %7949 = vmatprep.subr.mxu0 %v7823
        %7950 = vmatpush1.msra.mxu0 %v7822
        %7951 = vmatprep.subr.mxu0 %v7825
        %7952 = vmatpush1.msra.mxu0 %v7824
        %7953 = vmatprep.subr.mxu0 %v7827
        %7954 = vmatpush1.msra.mxu0 %v7826
        %7955 = vmatprep.subr.mxu0 %v7829
        %7956 = vmatpush1.msra.mxu0 %v7828
        %7957 = vmatprep.subr.mxu0 %v7831
        %7958 = vmatpush1.msra.mxu0 %v7830
        %7959 = vmatprep.subr.mxu0 %v7833
        %7960 = vmatpush1.msra.mxu0 %v7832
        %7961 = vmatprep.subr.mxu0 %v7835
        %7962 = vmatpush1.msra.mxu0 %v7834
        %7963 = vmatprep.subr.mxu0 %v7837
        %7964 = vmatpush1.msra.mxu0 %v7836
        %7965 = vmatprep.subr.mxu0 %v7839
        %7966 = vmatpush1.msra.mxu0 %v7838
        %7967 = vmatprep.subr.mxu0 %v7841
        %7968 = vmatpush1.msra.mxu0 %v7840
        %7969 = vmatprep.subr.mxu0 %v7843
        %7970 = vmatpush1.msra.mxu0 %v7842
        %7971 = vmatprep.subr.mxu0 %v7845
        %7972 = vmatpush1.msra.mxu0 %v7844
        %7973 = vmatprep.subr.mxu0 %v7847
        %7974 = vmatpush1.msra.mxu0 %v7846
        %7975 = vmatprep.subr.mxu0 %v7849
        %7976 = vmatpush1.msra.mxu0 %v7848
        %7977 = vmatprep.subr.mxu0 %v7851
        %7978 = vmatpush1.msra.mxu0 %v7850
        %7979 = vmatprep.subr.mxu0 0.0
        %7980 = vmatpush1.msra.mxu0 0.0
        %7981 = vmatprep.subr.mxu0 0.0
        %7982 = vmatpush1.msra.mxu0 0.0
        %7983 = vmatprep.subr.mxu0 0.0
        %7984 = vmatpush1.msra.mxu0 0.0
        %7985 = vmatprep.subr.mxu0 0.0
        %7986 = vmatpush1.msra.mxu0 0.0
        %7987 = vmatprep.subr.mxu0 0.0
        %7988 = vmatpush1.msra.mxu0 0.0
        %7989 = vmatprep.subr.mxu0 0.0
        %7990 = vmatpush1.msra.mxu0 0.0
        %7991 = vmatprep.subr.mxu0 0.0
        %7992 = vmatpush1.msra.mxu0 0.0
        %7993 = vmatprep.subr.mxu0 0.0
        %7994 = vmatpush1.msra.mxu0 0.0
        %7995 = vmatprep.subr.mxu0 0.0
        %7996 = vmatpush1.msra.mxu0 0.0
        %7997 = vmatprep.subr.mxu0 0.0
        %7998 = vmatpush1.msra.mxu0 0.0
        %7999 = vmatprep.mubr.f32.mxu0 %v7853
        %8000 = vmatmul.mubr.f32.gmra.mrb[0].mxu0 %v7624
        %v8001 = vpop.f32.mrb[0].mxu0
        %v8002 = vadd.f32 %v7925, %v8001
        %v8003 = vpop.f32.mrb[0].mxu0
        %v8004 = vadd.f32 %v7927, %v8003
        %8005 = vmatprep.mubr.f32.mxu0 %v7856
        %8006 = vmatmul.mubr.f32.gmra.mrb[0].mxu0 %v7741
        %v8007 = vpop.f32.mrb[0].mxu0
        %v8008 = vadd.f32 %v7931, %v8007
        %v8009 = vpop.f32.mrb[0].mxu0
        %v8010 = vadd.f32 %v7933, %v8009
        %8011 = vdwg.mxu0
        %v8023 = vrot.slane %v7618, 7
        %v8024 = vrot.slane %v7622, 7
        %v8025 = vsel %vm937, %v8023, %v8024
        %v8026 = vrot.slane %v7619, 7
        %v8027 = vrot.slane %v7623, 7
        %v8028 = vsel %vm937, %v8026, %v8027
        %v8029 = vrot.slane %v7620, 7
        %v8030 = vrot.slane %v7624, 7
        %v8031 = vsel %vm937, %v8029, %v8030
        %v8032 = vrot.slane %v7621, 7
        %v8033 = vrot.slane %v7625, 7
        %v8034 = vsel %vm937, %v8032, %v8033
        %v8035 = vrot.slane %v7626, 7
        %v8036 = vsel %vm937, %v8024, %v8035
        %v8037 = vrot.slane %v7627, 7
        %v8038 = vsel %vm937, %v8027, %v8037
        %v8039 = vrot.slane %v7628, 7
        %v8040 = vsel %vm937, %v8030, %v8039
        %v8041 = vrot.slane %v7629, 7
        %v8042 = vsel %vm937, %v8033, %v8041
        %v8049 = vsel %vm162, %v8034, 0
        %v8051 = vsel %vm162, %v8042, 0
        %8053 = vmatprep.subr.mxu0 %v7632
        %8054 = vmatpush1.msra.mxu0 %v7631
        %8055 = vmatprep.subr.mxu0 %v7634
        %8056 = vmatpush1.msra.mxu0 %v7633
        %8057 = vmatprep.subr.mxu0 %v7636
        %8058 = vmatpush1.msra.mxu0 %v7635
        %8059 = vmatprep.subr.mxu0 %v7638
        %8060 = vmatpush1.msra.mxu0 %v7637
        %8061 = vmatprep.subr.mxu0 %v7640
        %8062 = vmatpush1.msra.mxu0 %v7639
        %8063 = vmatprep.subr.mxu0 %v7642
        %8064 = vmatpush1.msra.mxu0 %v7641
        %8065 = vmatprep.subr.mxu0 %v7644
        %8066 = vmatpush1.msra.mxu0 %v7643
        %8067 = vmatprep.subr.mxu0 %v7646
        %8068 = vmatpush1.msra.mxu0 %v7645
        %8069 = vmatprep.subr.mxu0 %v7648
        %8070 = vmatpush1.msra.mxu0 %v7647
        %8071 = vmatprep.subr.mxu0 %v7650
        %8072 = vmatpush1.msra.mxu0 %v7649
        %8073 = vmatprep.subr.mxu0 %v7652
        %8074 = vmatpush1.msra.mxu0 %v7651
        %8075 = vmatprep.subr.mxu0 %v7654
        %8076 = vmatpush1.msra.mxu0 %v7653
        %8077 = vmatprep.subr.mxu0 %v7656
        %8078 = vmatpush1.msra.mxu0 %v7655
        %8079 = vmatprep.subr.mxu0 %v7658
        %8080 = vmatpush1.msra.mxu0 %v7657
        %8081 = vmatprep.subr.mxu0 %v7660
        %8082 = vmatpush1.msra.mxu0 %v7659
        %8083 = vmatprep.subr.mxu0 %v7662
        %8084 = vmatpush1.msra.mxu0 %v7661
        %8085 = vmatprep.subr.mxu0 %v7664
        %8086 = vmatpush1.msra.mxu0 %v7663
        %8087 = vmatprep.subr.mxu0 %v7666
        %8088 = vmatpush1.msra.mxu0 %v7665
        %8089 = vmatprep.subr.mxu0 %v7668
        %8090 = vmatpush1.msra.mxu0 %v7667
        %8091 = vmatprep.subr.mxu0 %v7670
        %8092 = vmatpush1.msra.mxu0 %v7669
        %8093 = vmatprep.subr.mxu0 %v7672
        %8094 = vmatpush1.msra.mxu0 %v7671
        %8095 = vmatprep.subr.mxu0 %v7674
        %8096 = vmatpush1.msra.mxu0 %v7673
        %8097 = vmatprep.subr.mxu0 %v7676
        %8098 = vmatpush1.msra.mxu0 %v7675
        %8099 = vmatprep.subr.mxu0 %v7678
        %8100 = vmatpush1.msra.mxu0 %v7677
        %8101 = vmatprep.subr.mxu0 %v7680
        %8102 = vmatpush1.msra.mxu0 %v7679
        %8103 = vmatprep.subr.mxu0 %v7682
        %8104 = vmatpush1.msra.mxu0 %v7681
        %8105 = vmatprep.subr.mxu0 %v7684
        %8106 = vmatpush1.msra.mxu0 %v7683
        %8107 = vmatprep.subr.mxu0 %v7686
        %8108 = vmatpush1.msra.mxu0 %v7685
        %8109 = vmatprep.subr.mxu0 %v7688
        %8110 = vmatpush1.msra.mxu0 %v7687
        %8111 = vmatprep.subr.mxu0 %v7690
        %8112 = vmatpush1.msra.mxu0 %v7689
        %8113 = vmatprep.subr.mxu0 %v7692
        %8114 = vmatpush1.msra.mxu0 %v7691
        %8115 = vmatprep.subr.mxu0 %v7694
        %8116 = vmatpush1.msra.mxu0 %v7693
        %8117 = vmatprep.mubr.f32.mxu0 %v8028
        %8118 = vmatmul.mubr.f32.gmra.mrb[0].mxu0 %v8025
        %v8119 = vpop.f32.mrb[0].mxu0
        %v8120 = vadd.f32 %v8002, %v8119
        %v8121 = vpop.f32.mrb[0].mxu0
        %v8122 = vadd.f32 %v8004, %v8121
        %8123 = vmatprep.mubr.f32.mxu0 %v8038
        %8124 = vmatmul.mubr.f32.gmra.mrb[0].mxu0 %v8036
        %v8125 = vpop.f32.mrb[0].mxu0
        %v8126 = vadd.f32 %v8008, %v8125
        %v8127 = vpop.f32.mrb[0].mxu0
        %v8128 = vadd.f32 %v8010, %v8127
        %8129 = vdwg.mxu0
        %8130 = vmatprep.subr.mxu0 %v7696
        %8131 = vmatpush1.msra.mxu0 %v7695
        %8132 = vmatprep.subr.mxu0 %v7698
        %8133 = vmatpush1.msra.mxu0 %v7697
        %8134 = vmatprep.subr.mxu0 %v7700
        %8135 = vmatpush1.msra.mxu0 %v7699
        %8136 = vmatprep.subr.mxu0 %v7702
        %8137 = vmatpush1.msra.mxu0 %v7701
        %8138 = vmatprep.subr.mxu0 %v7704
        %8139 = vmatpush1.msra.mxu0 %v7703
        %8140 = vmatprep.subr.mxu0 %v7706
        %8141 = vmatpush1.msra.mxu0 %v7705
        %8142 = vmatprep.subr.mxu0 %v7708
        %8143 = vmatpush1.msra.mxu0 %v7707
        %8144 = vmatprep.subr.mxu0 %v7710
        %8145 = vmatpush1.msra.mxu0 %v7709
        %8146 = vmatprep.subr.mxu0 %v7712
        %8147 = vmatpush1.msra.mxu0 %v7711
        %8148 = vmatprep.subr.mxu0 %v7714
        %8149 = vmatpush1.msra.mxu0 %v7713
        %8150 = vmatprep.subr.mxu0 %v7716
        %8151 = vmatpush1.msra.mxu0 %v7715
        %8152 = vmatprep.subr.mxu0 %v7718
        %8153 = vmatpush1.msra.mxu0 %v7717
        %8154 = vmatprep.subr.mxu0 %v7720
        %8155 = vmatpush1.msra.mxu0 %v7719
        %8156 = vmatprep.subr.mxu0 %v7722
        %8157 = vmatpush1.msra.mxu0 %v7721
        %8158 = vmatprep.subr.mxu0 %v7724
        %8159 = vmatpush1.msra.mxu0 %v7723
        %8160 = vmatprep.subr.mxu0 %v7726
        %8161 = vmatpush1.msra.mxu0 %v7725
        %8162 = vmatprep.subr.mxu0 %v7728
        %8163 = vmatpush1.msra.mxu0 %v7727
        %8164 = vmatprep.subr.mxu0 %v7730
        %8165 = vmatpush1.msra.mxu0 %v7729
        %8166 = vmatprep.subr.mxu0 %v7732
        %8167 = vmatpush1.msra.mxu0 %v7731
        %8168 = vmatprep.subr.mxu0 %v7734
        %8169 = vmatpush1.msra.mxu0 %v7733
        %8170 = vmatprep.subr.mxu0 %v7736
        %8171 = vmatpush1.msra.mxu0 %v7735
        %8172 = vmatprep.subr.mxu0 %v7738
        %8173 = vmatpush1.msra.mxu0 %v7737
        %8174 = vmatprep.subr.mxu0 0.0
        %8175 = vmatpush1.msra.mxu0 0.0
        %8176 = vmatprep.subr.mxu0 0.0
        %8177 = vmatpush1.msra.mxu0 0.0
        %8178 = vmatprep.subr.mxu0 0.0
        %8179 = vmatpush1.msra.mxu0 0.0
        %8180 = vmatprep.subr.mxu0 0.0
        %8181 = vmatpush1.msra.mxu0 0.0
        %8182 = vmatprep.subr.mxu0 0.0
        %8183 = vmatpush1.msra.mxu0 0.0
        %8184 = vmatprep.subr.mxu0 0.0
        %8185 = vmatpush1.msra.mxu0 0.0
        %8186 = vmatprep.subr.mxu0 0.0
        %8187 = vmatpush1.msra.mxu0 0.0
        %8188 = vmatprep.subr.mxu0 0.0
        %8189 = vmatpush1.msra.mxu0 0.0
        %8190 = vmatprep.subr.mxu0 0.0
        %8191 = vmatpush1.msra.mxu0 0.0
        %8192 = vmatprep.subr.mxu0 0.0
        %8193 = vmatpush1.msra.mxu0 0.0
        %8194 = vmatprep.mubr.f32.mxu0 %v8049
        %8195 = vmatmul.mubr.f32.gmra.mrb[0].mxu0 %v8031
        %v8196 = vpop.f32.mrb[0].mxu0
        %v8197 = vadd.f32 %v8120, %v8196
        %v8198 = vpop.f32.mrb[0].mxu0
        %v8199 = vadd.f32 %v8122, %v8198
        %8200 = vmatprep.mubr.f32.mxu0 %v8051
        %8201 = vmatmul.mubr.f32.gmra.mrb[0].mxu0 %v8040
        %v8202 = vpop.f32.mrb[0].mxu0
        %v8203 = vadd.f32 %v8126, %v8202
        %v8204 = vpop.f32.mrb[0].mxu0
        %v8205 = vadd.f32 %v8128, %v8204
        %8206 = vdwg.mxu0
        %v8207 = vld [vmem:[#allocation2 + $0x20] sm:$0xfe]
        %v8208 = vld [vmem:[#allocation2 + $0x28] sm:$0xfe]
        %v8209 = vld [vmem:[#allocation2 + $0x30] sm:$0xfe]
        %v8210 = vld [vmem:[#allocation2 + $0x38] sm:$0xfe]
        %v8211 = vld [vmem:[#allocation2 + $0x40] sm:$0xff]
        %v8212 = vld [vmem:[#allocation2 + $0x48] sm:$0xff]
        %v8213 = vld [vmem:[#allocation2 + $0x50] sm:$0xff]
        %v8214 = vld [vmem:[#allocation2 + $0x58] sm:$0xff]
        %v8215 = vld [vmem:[#allocation2 + $0x60] sm:$0x1]
        %v8216 = vld [vmem:[#allocation2 + $0x68] sm:$0x1]
        %v8217 = vld [vmem:[#allocation2 + $0x70] sm:$0x1]
        %v8218 = vld [vmem:[#allocation2 + $0x78] sm:$0x1]
        %s8219 = scalar_lea.vmem [#allocation3], 22464
        %v8220 = vld [vmem:[%s8219] sm:$0xff]
        %v8221 = vld [vmem:[%s8219 + $0x8] sm:$0xff]
        %v8222 = vld [vmem:[%s8219 + $0x10] sm:$0xff]
        %v8223 = vld [vmem:[%s8219 + $0x18] sm:$0xff]
        %v8224 = vld [vmem:[%s8219 + $0x20] sm:$0xff]
        %v8225 = vld [vmem:[%s8219 + $0x28] sm:$0xff]
        %v8226 = vld [vmem:[%s8219 + $0x30] sm:$0xff]
        %v8227 = vld [vmem:[%s8219 + $0x38] sm:$0xff]
        %v8228 = vld [vmem:[%s8219 + $0x40] sm:$0xff]
        %v8229 = vld [vmem:[%s8219 + $0x48] sm:$0xff]
        %v8230 = vld [vmem:[%s8219 + $0x50] sm:$0xff]
        %v8231 = vld [vmem:[%s8219 + $0x58] sm:$0xff]
        %v8232 = vld [vmem:[%s8219 + $0x60] sm:$0xff]
        %v8233 = vld [vmem:[%s8219 + $0x68] sm:$0xff]
        %v8234 = vld [vmem:[%s8219 + $0x70] sm:$0xff]
        %v8235 = vld [vmem:[%s8219 + $0x78] sm:$0xff]
        %v8236 = vld [vmem:[%s8219 + $0x80] sm:$0xff]
        %v8237 = vld [vmem:[%s8219 + $0x88] sm:$0xff]
        %v8238 = vld [vmem:[%s8219 + $0x90] sm:$0xff]
        %v8239 = vld [vmem:[%s8219 + $0x98] sm:$0xff]
        %v8240 = vld [vmem:[%s8219 + $0xa0] sm:$0xff]
        %v8241 = vld [vmem:[%s8219 + $0xa8] sm:$0xff]
        %v8242 = vld [vmem:[%s8219 + $0xb0] sm:$0xff]
        %v8243 = vld [vmem:[%s8219 + $0xb8] sm:$0xff]
        %v8244 = vld [vmem:[%s8219 + $0xc0] sm:$0xff]
        %v8245 = vld [vmem:[%s8219 + $0xc8] sm:$0xff]
        %v8246 = vld [vmem:[%s8219 + $0xd0] sm:$0xff]
        %v8247 = vld [vmem:[%s8219 + $0xd8] sm:$0xff]
        %v8248 = vld [vmem:[%s8219 + $0xe0] sm:$0xff]
        %v8249 = vld [vmem:[%s8219 + $0xe8] sm:$0xff]
        %v8250 = vld [vmem:[%s8219 + $0xf0] sm:$0xff]
        %v8251 = vld [vmem:[%s8219 + $0xf8] sm:$0xff]
        %v8252 = vld [vmem:[%s8219 + $0x100] sm:$0xff]
        %v8253 = vld [vmem:[%s8219 + $0x108] sm:$0xff]
        %v8254 = vld [vmem:[%s8219 + $0x110] sm:$0xff]
        %v8255 = vld [vmem:[%s8219 + $0x118] sm:$0xff]
        %v8256 = vld [vmem:[%s8219 + $0x120] sm:$0xff]
        %v8257 = vld [vmem:[%s8219 + $0x128] sm:$0xff]
        %v8258 = vld [vmem:[%s8219 + $0x130] sm:$0xff]
        %v8259 = vld [vmem:[%s8219 + $0x138] sm:$0xff]
        %v8260 = vld [vmem:[%s8219 + $0x140] sm:$0xff]
        %v8261 = vld [vmem:[%s8219 + $0x148] sm:$0xff]
        %v8262 = vld [vmem:[%s8219 + $0x150] sm:$0xff]
        %v8263 = vld [vmem:[%s8219 + $0x158] sm:$0xff]
        %v8264 = vld [vmem:[%s8219 + $0x160] sm:$0xff]
        %v8265 = vld [vmem:[%s8219 + $0x168] sm:$0xff]
        %v8266 = vld [vmem:[%s8219 + $0x170] sm:$0xff]
        %v8267 = vld [vmem:[%s8219 + $0x178] sm:$0xff]
        %v8268 = vld [vmem:[%s8219 + $0x180] sm:$0xff]
        %v8269 = vld [vmem:[%s8219 + $0x188] sm:$0xff]
        %v8270 = vld [vmem:[%s8219 + $0x190] sm:$0xff]
        %v8271 = vld [vmem:[%s8219 + $0x198] sm:$0xff]
        %v8272 = vld [vmem:[%s8219 + $0x1a0] sm:$0xff]
        %v8273 = vld [vmem:[%s8219 + $0x1a8] sm:$0xff]
        %v8274 = vld [vmem:[%s8219 + $0x1b0] sm:$0xff]
        %v8275 = vld [vmem:[%s8219 + $0x1b8] sm:$0xff]
        %v8276 = vld [vmem:[%s8219 + $0x1c0] sm:$0xff]
        %v8277 = vld [vmem:[%s8219 + $0x1c8] sm:$0xff]
        %v8278 = vld [vmem:[%s8219 + $0x1d0] sm:$0xff]
        %v8279 = vld [vmem:[%s8219 + $0x1d8] sm:$0xff]
        %v8280 = vld [vmem:[%s8219 + $0x1e0] sm:$0xff]
        %v8281 = vld [vmem:[%s8219 + $0x1e8] sm:$0xff]
        %v8282 = vld [vmem:[%s8219 + $0x1f0] sm:$0xff]
        %v8283 = vld [vmem:[%s8219 + $0x1f8] sm:$0xff]
        %v8284 = vld [vmem:[%s8219 + $0x200] sm:$0xff]
        %v8285 = vld [vmem:[%s8219 + $0x208] sm:$0xff]
        %v8286 = vld [vmem:[%s8219 + $0x210] sm:$0xff]
        %v8287 = vld [vmem:[%s8219 + $0x218] sm:$0xff]
        %v8288 = vld [vmem:[%s8219 + $0x220] sm:$0xff]
        %v8289 = vld [vmem:[%s8219 + $0x228] sm:$0xff]
        %v8290 = vld [vmem:[%s8219 + $0x230] sm:$0xff]
        %v8291 = vld [vmem:[%s8219 + $0x238] sm:$0xff]
        %v8292 = vld [vmem:[%s8219 + $0x240] sm:$0xff]
        %v8293 = vld [vmem:[%s8219 + $0x248] sm:$0xff]
        %v8294 = vld [vmem:[%s8219 + $0x250] sm:$0xff]
        %v8295 = vld [vmem:[%s8219 + $0x258] sm:$0xff]
        %v8296 = vld [vmem:[%s8219 + $0x260] sm:$0xff]
        %v8297 = vld [vmem:[%s8219 + $0x268] sm:$0xff]
        %v8298 = vld [vmem:[%s8219 + $0x270] sm:$0xff]
        %v8299 = vld [vmem:[%s8219 + $0x278] sm:$0xff]
        %v8300 = vld [vmem:[%s8219 + $0x280] sm:$0xff]
        %v8301 = vld [vmem:[%s8219 + $0x288] sm:$0xff]
        %v8302 = vld [vmem:[%s8219 + $0x290] sm:$0xff]
        %v8303 = vld [vmem:[%s8219 + $0x298] sm:$0xff]
        %v8304 = vld [vmem:[%s8219 + $0x2a0] sm:$0xff]
        %v8305 = vld [vmem:[%s8219 + $0x2a8] sm:$0xff]
        %v8306 = vld [vmem:[%s8219 + $0x2b0] sm:$0xff]
        %v8307 = vld [vmem:[%s8219 + $0x2b8] sm:$0xff]
        %v8308 = vld [vmem:[%s8219 + $0x2c0] sm:$0xff]
        %v8309 = vld [vmem:[%s8219 + $0x2c8] sm:$0xff]
        %v8310 = vld [vmem:[%s8219 + $0x2d0] sm:$0xff]
        %v8311 = vld [vmem:[%s8219 + $0x2d8] sm:$0xff]
        %v8312 = vld [vmem:[%s8219 + $0x2e0] sm:$0xff]
        %v8313 = vld [vmem:[%s8219 + $0x2e8] sm:$0xff]
        %v8314 = vld [vmem:[%s8219 + $0x2f0] sm:$0xff]
        %v8315 = vld [vmem:[%s8219 + $0x2f8] sm:$0xff]
        %v8316 = vld [vmem:[%s8219 + $0x300] sm:$0xff]
        %v8317 = vld [vmem:[%s8219 + $0x308] sm:$0xff]
        %v8318 = vld [vmem:[%s8219 + $0x310] sm:$0xff]
        %v8319 = vld [vmem:[%s8219 + $0x318] sm:$0xff]
        %v8320 = vld [vmem:[%s8219 + $0x320] sm:$0xff]
        %v8321 = vld [vmem:[%s8219 + $0x328] sm:$0xff]
        %v8322 = vld [vmem:[%s8219 + $0x330] sm:$0xff]
        %v8323 = vld [vmem:[%s8219 + $0x338] sm:$0xff]
        %v8324 = vld [vmem:[%s8219 + $0x340] sm:$0xff]
        %v8325 = vld [vmem:[%s8219 + $0x348] sm:$0xff]
        %v8326 = vld [vmem:[%s8219 + $0x350] sm:$0xff]
        %v8327 = vld [vmem:[%s8219 + $0x358] sm:$0xff]
        %v8340 = vrot.slane %v8207, 1
        %v8341 = vrot.slane %v8211, 1
        %v8342 = vsel %vm1535, %v8340, %v8341
        %v8343 = vrot.slane %v8208, 1
        %v8344 = vrot.slane %v8212, 1
        %v8345 = vsel %vm1535, %v8343, %v8344
        %v8346 = vrot.slane %v8209, 1
        %v8347 = vrot.slane %v8213, 1
        %v8348 = vsel %vm1535, %v8346, %v8347
        %v8349 = vrot.slane %v8210, 1
        %v8350 = vrot.slane %v8214, 1
        %v8351 = vsel %vm1535, %v8349, %v8350
        %v8352 = vrot.slane %v8215, 1
        %v8353 = vsel %vm1535, %v8341, %v8352
        %v8354 = vrot.slane %v8216, 1
        %v8355 = vsel %vm1535, %v8344, %v8354
        %v8356 = vrot.slane %v8217, 1
        %v8357 = vsel %vm1535, %v8347, %v8356
        %v8358 = vrot.slane %v8218, 1
        %v8359 = vsel %vm1535, %v8350, %v8358
        %v8366 = vsel %vm162, %v8351, 0
        %v8368 = vsel %vm162, %v8359, 0
        %8370 = vmatprep.subr.mxu0 %v8221
        %8371 = vmatpush1.msra.mxu0 %v8220
        %8372 = vmatprep.subr.mxu0 %v8223
        %8373 = vmatpush1.msra.mxu0 %v8222
        %8374 = vmatprep.subr.mxu0 %v8225
        %8375 = vmatpush1.msra.mxu0 %v8224
        %8376 = vmatprep.subr.mxu0 %v8227
        %8377 = vmatpush1.msra.mxu0 %v8226
        %8378 = vmatprep.subr.mxu0 %v8229
        %8379 = vmatpush1.msra.mxu0 %v8228
        %8380 = vmatprep.subr.mxu0 %v8231
        %8381 = vmatpush1.msra.mxu0 %v8230
        %8382 = vmatprep.subr.mxu0 %v8233
        %8383 = vmatpush1.msra.mxu0 %v8232
        %8384 = vmatprep.subr.mxu0 %v8235
        %8385 = vmatpush1.msra.mxu0 %v8234
        %8386 = vmatprep.subr.mxu0 %v8237
        %8387 = vmatpush1.msra.mxu0 %v8236
        %8388 = vmatprep.subr.mxu0 %v8239
        %8389 = vmatpush1.msra.mxu0 %v8238
        %8390 = vmatprep.subr.mxu0 %v8241
        %8391 = vmatpush1.msra.mxu0 %v8240
        %8392 = vmatprep.subr.mxu0 %v8243
        %8393 = vmatpush1.msra.mxu0 %v8242
        %8394 = vmatprep.subr.mxu0 %v8245
        %8395 = vmatpush1.msra.mxu0 %v8244
        %8396 = vmatprep.subr.mxu0 %v8247
        %8397 = vmatpush1.msra.mxu0 %v8246
        %8398 = vmatprep.subr.mxu0 %v8249
        %8399 = vmatpush1.msra.mxu0 %v8248
        %8400 = vmatprep.subr.mxu0 %v8251
        %8401 = vmatpush1.msra.mxu0 %v8250
        %8402 = vmatprep.subr.mxu0 %v8253
        %8403 = vmatpush1.msra.mxu0 %v8252
        %8404 = vmatprep.subr.mxu0 %v8255
        %8405 = vmatpush1.msra.mxu0 %v8254
        %8406 = vmatprep.subr.mxu0 %v8257
        %8407 = vmatpush1.msra.mxu0 %v8256
        %8408 = vmatprep.subr.mxu0 %v8259
        %8409 = vmatpush1.msra.mxu0 %v8258
        %8410 = vmatprep.subr.mxu0 %v8261
        %8411 = vmatpush1.msra.mxu0 %v8260
        %8412 = vmatprep.subr.mxu0 %v8263
        %8413 = vmatpush1.msra.mxu0 %v8262
        %8414 = vmatprep.subr.mxu0 %v8265
        %8415 = vmatpush1.msra.mxu0 %v8264
        %8416 = vmatprep.subr.mxu0 %v8267
        %8417 = vmatpush1.msra.mxu0 %v8266
        %8418 = vmatprep.subr.mxu0 %v8269
        %8419 = vmatpush1.msra.mxu0 %v8268
        %8420 = vmatprep.subr.mxu0 %v8271
        %8421 = vmatpush1.msra.mxu0 %v8270
        %8422 = vmatprep.subr.mxu0 %v8273
        %8423 = vmatpush1.msra.mxu0 %v8272
        %8424 = vmatprep.subr.mxu0 %v8275
        %8425 = vmatpush1.msra.mxu0 %v8274
        %8426 = vmatprep.subr.mxu0 %v8277
        %8427 = vmatpush1.msra.mxu0 %v8276
        %8428 = vmatprep.subr.mxu0 %v8279
        %8429 = vmatpush1.msra.mxu0 %v8278
        %8430 = vmatprep.subr.mxu0 %v8281
        %8431 = vmatpush1.msra.mxu0 %v8280
        %8432 = vmatprep.subr.mxu0 %v8283
        %8433 = vmatpush1.msra.mxu0 %v8282
        %8434 = vmatprep.mubr.f32.mxu0 %v8345
        %8435 = vmatmul.mubr.f32.gmra.mrb[0].mxu0 %v8342
        %v8436 = vpop.f32.mrb[0].mxu0
        %v8437 = vadd.f32 0.0, %v8436
        %v8438 = vpop.f32.mrb[0].mxu0
        %v8439 = vadd.f32 0.0, %v8438
        %8440 = vmatprep.mubr.f32.mxu0 %v8355
        %8441 = vmatmul.mubr.f32.gmra.mrb[0].mxu0 %v8353
        %v8442 = vpop.f32.mrb[0].mxu0
        %v8443 = vadd.f32 0.0, %v8442
        %v8444 = vpop.f32.mrb[0].mxu0
        %v8445 = vadd.f32 0.0, %v8444
        %8446 = vdwg.mxu0
        %8447 = vmatprep.subr.mxu0 %v8285
        %8448 = vmatpush1.msra.mxu0 %v8284
        %8449 = vmatprep.subr.mxu0 %v8287
        %8450 = vmatpush1.msra.mxu0 %v8286
        %8451 = vmatprep.subr.mxu0 %v8289
        %8452 = vmatpush1.msra.mxu0 %v8288
        %8453 = vmatprep.subr.mxu0 %v8291
        %8454 = vmatpush1.msra.mxu0 %v8290
        %8455 = vmatprep.subr.mxu0 %v8293
        %8456 = vmatpush1.msra.mxu0 %v8292
        %8457 = vmatprep.subr.mxu0 %v8295
        %8458 = vmatpush1.msra.mxu0 %v8294
        %8459 = vmatprep.subr.mxu0 %v8297
        %8460 = vmatpush1.msra.mxu0 %v8296
        %8461 = vmatprep.subr.mxu0 %v8299
        %8462 = vmatpush1.msra.mxu0 %v8298
        %8463 = vmatprep.subr.mxu0 %v8301
        %8464 = vmatpush1.msra.mxu0 %v8300
        %8465 = vmatprep.subr.mxu0 %v8303
        %8466 = vmatpush1.msra.mxu0 %v8302
        %8467 = vmatprep.subr.mxu0 %v8305
        %8468 = vmatpush1.msra.mxu0 %v8304
        %8469 = vmatprep.subr.mxu0 %v8307
        %8470 = vmatpush1.msra.mxu0 %v8306
        %8471 = vmatprep.subr.mxu0 %v8309
        %8472 = vmatpush1.msra.mxu0 %v8308
        %8473 = vmatprep.subr.mxu0 %v8311
        %8474 = vmatpush1.msra.mxu0 %v8310
        %8475 = vmatprep.subr.mxu0 %v8313
        %8476 = vmatpush1.msra.mxu0 %v8312
        %8477 = vmatprep.subr.mxu0 %v8315
        %8478 = vmatpush1.msra.mxu0 %v8314
        %8479 = vmatprep.subr.mxu0 %v8317
        %8480 = vmatpush1.msra.mxu0 %v8316
        %8481 = vmatprep.subr.mxu0 %v8319
        %8482 = vmatpush1.msra.mxu0 %v8318
        %8483 = vmatprep.subr.mxu0 %v8321
        %8484 = vmatpush1.msra.mxu0 %v8320
        %8485 = vmatprep.subr.mxu0 %v8323
        %8486 = vmatpush1.msra.mxu0 %v8322
        %8487 = vmatprep.subr.mxu0 %v8325
        %8488 = vmatpush1.msra.mxu0 %v8324
        %8489 = vmatprep.subr.mxu0 %v8327
        %8490 = vmatpush1.msra.mxu0 %v8326
        %8491 = vmatprep.subr.mxu0 0.0
        %8492 = vmatpush1.msra.mxu0 0.0
        %8493 = vmatprep.subr.mxu0 0.0
        %8494 = vmatpush1.msra.mxu0 0.0
        %8495 = vmatprep.subr.mxu0 0.0
        %8496 = vmatpush1.msra.mxu0 0.0
        %8497 = vmatprep.subr.mxu0 0.0
        %8498 = vmatpush1.msra.mxu0 0.0
        %8499 = vmatprep.subr.mxu0 0.0
        %8500 = vmatpush1.msra.mxu0 0.0
        %8501 = vmatprep.subr.mxu0 0.0
        %8502 = vmatpush1.msra.mxu0 0.0
        %8503 = vmatprep.subr.mxu0 0.0
        %8504 = vmatpush1.msra.mxu0 0.0
        %8505 = vmatprep.subr.mxu0 0.0
        %8506 = vmatpush1.msra.mxu0 0.0
        %8507 = vmatprep.subr.mxu0 0.0
        %8508 = vmatpush1.msra.mxu0 0.0
        %8509 = vmatprep.subr.mxu0 0.0
        %8510 = vmatpush1.msra.mxu0 0.0
        %8511 = vmatprep.mubr.f32.mxu0 %v8366
        %8512 = vmatmul.mubr.f32.gmra.mrb[0].mxu0 %v8348
        %v8513 = vpop.f32.mrb[0].mxu0
        %v8514 = vadd.f32 %v8437, %v8513
        %v8515 = vpop.f32.mrb[0].mxu0
        %v8516 = vadd.f32 %v8439, %v8515
        %8517 = vmatprep.mubr.f32.mxu0 %v8368
        %8518 = vmatmul.mubr.f32.gmra.mrb[0].mxu0 %v8357
        %v8519 = vpop.f32.mrb[0].mxu0
        %v8520 = vadd.f32 %v8443, %v8519
        %v8521 = vpop.f32.mrb[0].mxu0
        %v8522 = vadd.f32 %v8445, %v8521
        %8523 = vdwg.mxu0
        %v8524 = vadd.f32 %v8197, %v8514
        %v8525 = vadd.f32 %v8199, %v8516
        %v8526 = vadd.f32 %v8203, %v8520
        %v8527 = vadd.f32 %v8205, %v8522
        %v8528 = vmax.f32 %v8524, 0.0
        %v8529 = vmax.f32 %v8525, 0.0
        %v8530 = vmax.f32 %v8526, 0.0
        %v8531 = vmax.f32 %v8527, 0.0
        %8532 = vst [vmem:[#allocation2 + $0x28] sm:$0xff] %v8528
        %8533 = vst [vmem:[#allocation2 + $0x30] sm:$0xff] %v8529
        %8534 = vst [vmem:[#allocation2 + $0x48] sm:$0xff] %v8530
        %8535 = vst [vmem:[#allocation2 + $0x50] sm:$0xff] %v8531
        %v8536 = vld [vmem:[#allocation2] sm:$0x80]
        %v8537 = vld [vmem:[#allocation2 + $0x8] sm:$0x80]
        %v8538 = vld [vmem:[#allocation2 + $0x10] sm:$0x80]
        %v8539 = vld [vmem:[#allocation2 + $0x18] sm:$0x80]
        %v8540 = vld [vmem:[#allocation2 + $0x20] sm:$0xff]
        %v8541 = vld [vmem:[#allocation2 + $0x28] sm:$0xff]
        %v8542 = vld [vmem:[#allocation2 + $0x30] sm:$0xff]
        %v8543 = vld [vmem:[#allocation2 + $0x38] sm:$0xff]
        %v8544 = vld [vmem:[#allocation2 + $0x40] sm:$0x7f]
        %v8545 = vld [vmem:[#allocation2 + $0x48] sm:$0x7f]
        %v8546 = vld [vmem:[#allocation2 + $0x50] sm:$0x7f]
        %v8547 = vld [vmem:[#allocation2 + $0x58] sm:$0x7f]
        %s8548 = scalar_lea.vmem [#allocation3], 23328
        %v8549 = vld [vmem:[%s8548] sm:$0xff]
        %v8550 = vld [vmem:[%s8548 + $0x8] sm:$0xff]
        %v8551 = vld [vmem:[%s8548 + $0x10] sm:$0xff]
        %v8552 = vld [vmem:[%s8548 + $0x18] sm:$0xff]
        %v8553 = vld [vmem:[%s8548 + $0x20] sm:$0xff]
        %v8554 = vld [vmem:[%s8548 + $0x28] sm:$0xff]
        %v8555 = vld [vmem:[%s8548 + $0x30] sm:$0xff]
        %v8556 = vld [vmem:[%s8548 + $0x38] sm:$0xff]
        %v8557 = vld [vmem:[%s8548 + $0x40] sm:$0xff]
        %v8558 = vld [vmem:[%s8548 + $0x48] sm:$0xff]
        %v8559 = vld [vmem:[%s8548 + $0x50] sm:$0xff]
        %v8560 = vld [vmem:[%s8548 + $0x58] sm:$0xff]
        %v8561 = vld [vmem:[%s8548 + $0x60] sm:$0xff]
        %v8562 = vld [vmem:[%s8548 + $0x68] sm:$0xff]
        %v8563 = vld [vmem:[%s8548 + $0x70] sm:$0xff]
        %v8564 = vld [vmem:[%s8548 + $0x78] sm:$0xff]
        %v8565 = vld [vmem:[%s8548 + $0x80] sm:$0xff]
        %v8566 = vld [vmem:[%s8548 + $0x88] sm:$0xff]
        %v8567 = vld [vmem:[%s8548 + $0x90] sm:$0xff]
        %v8568 = vld [vmem:[%s8548 + $0x98] sm:$0xff]
        %v8569 = vld [vmem:[%s8548 + $0xa0] sm:$0xff]
        %v8570 = vld [vmem:[%s8548 + $0xa8] sm:$0xff]
        %v8571 = vld [vmem:[%s8548 + $0xb0] sm:$0xff]
        %v8572 = vld [vmem:[%s8548 + $0xb8] sm:$0xff]
        %v8573 = vld [vmem:[%s8548 + $0xc0] sm:$0xff]
        %v8574 = vld [vmem:[%s8548 + $0xc8] sm:$0xff]
        %v8575 = vld [vmem:[%s8548 + $0xd0] sm:$0xff]
        %v8576 = vld [vmem:[%s8548 + $0xd8] sm:$0xff]
        %v8577 = vld [vmem:[%s8548 + $0xe0] sm:$0xff]
        %v8578 = vld [vmem:[%s8548 + $0xe8] sm:$0xff]
        %v8579 = vld [vmem:[%s8548 + $0xf0] sm:$0xff]
        %v8580 = vld [vmem:[%s8548 + $0xf8] sm:$0xff]
        %v8581 = vld [vmem:[%s8548 + $0x100] sm:$0xff]
        %v8582 = vld [vmem:[%s8548 + $0x108] sm:$0xff]
        %v8583 = vld [vmem:[%s8548 + $0x110] sm:$0xff]
        %v8584 = vld [vmem:[%s8548 + $0x118] sm:$0xff]
        %v8585 = vld [vmem:[%s8548 + $0x120] sm:$0xff]
        %v8586 = vld [vmem:[%s8548 + $0x128] sm:$0xff]
        %v8587 = vld [vmem:[%s8548 + $0x130] sm:$0xff]
        %v8588 = vld [vmem:[%s8548 + $0x138] sm:$0xff]
        %v8589 = vld [vmem:[%s8548 + $0x140] sm:$0xff]
        %v8590 = vld [vmem:[%s8548 + $0x148] sm:$0xff]
        %v8591 = vld [vmem:[%s8548 + $0x150] sm:$0xff]
        %v8592 = vld [vmem:[%s8548 + $0x158] sm:$0xff]
        %v8593 = vld [vmem:[%s8548 + $0x160] sm:$0xff]
        %v8594 = vld [vmem:[%s8548 + $0x168] sm:$0xff]
        %v8595 = vld [vmem:[%s8548 + $0x170] sm:$0xff]
        %v8596 = vld [vmem:[%s8548 + $0x178] sm:$0xff]
        %v8597 = vld [vmem:[%s8548 + $0x180] sm:$0xff]
        %v8598 = vld [vmem:[%s8548 + $0x188] sm:$0xff]
        %v8599 = vld [vmem:[%s8548 + $0x190] sm:$0xff]
        %v8600 = vld [vmem:[%s8548 + $0x198] sm:$0xff]
        %v8601 = vld [vmem:[%s8548 + $0x1a0] sm:$0xff]
        %v8602 = vld [vmem:[%s8548 + $0x1a8] sm:$0xff]
        %v8603 = vld [vmem:[%s8548 + $0x1b0] sm:$0xff]
        %v8604 = vld [vmem:[%s8548 + $0x1b8] sm:$0xff]
        %v8605 = vld [vmem:[%s8548 + $0x1c0] sm:$0xff]
        %v8606 = vld [vmem:[%s8548 + $0x1c8] sm:$0xff]
        %v8607 = vld [vmem:[%s8548 + $0x1d0] sm:$0xff]
        %v8608 = vld [vmem:[%s8548 + $0x1d8] sm:$0xff]
        %v8609 = vld [vmem:[%s8548 + $0x1e0] sm:$0xff]
        %v8610 = vld [vmem:[%s8548 + $0x1e8] sm:$0xff]
        %v8611 = vld [vmem:[%s8548 + $0x1f0] sm:$0xff]
        %v8612 = vld [vmem:[%s8548 + $0x1f8] sm:$0xff]
        %v8613 = vld [vmem:[%s8548 + $0x200] sm:$0xff]
        %v8614 = vld [vmem:[%s8548 + $0x208] sm:$0xff]
        %v8615 = vld [vmem:[%s8548 + $0x210] sm:$0xff]
        %v8616 = vld [vmem:[%s8548 + $0x218] sm:$0xff]
        %v8617 = vld [vmem:[%s8548 + $0x220] sm:$0xff]
        %v8618 = vld [vmem:[%s8548 + $0x228] sm:$0xff]
        %v8619 = vld [vmem:[%s8548 + $0x230] sm:$0xff]
        %v8620 = vld [vmem:[%s8548 + $0x238] sm:$0xff]
        %v8621 = vld [vmem:[%s8548 + $0x240] sm:$0xff]
        %v8622 = vld [vmem:[%s8548 + $0x248] sm:$0xff]
        %v8623 = vld [vmem:[%s8548 + $0x250] sm:$0xff]
        %v8624 = vld [vmem:[%s8548 + $0x258] sm:$0xff]
        %v8625 = vld [vmem:[%s8548 + $0x260] sm:$0xff]
        %v8626 = vld [vmem:[%s8548 + $0x268] sm:$0xff]
        %v8627 = vld [vmem:[%s8548 + $0x270] sm:$0xff]
        %v8628 = vld [vmem:[%s8548 + $0x278] sm:$0xff]
        %v8629 = vld [vmem:[%s8548 + $0x280] sm:$0xff]
        %v8630 = vld [vmem:[%s8548 + $0x288] sm:$0xff]
        %v8631 = vld [vmem:[%s8548 + $0x290] sm:$0xff]
        %v8632 = vld [vmem:[%s8548 + $0x298] sm:$0xff]
        %v8633 = vld [vmem:[%s8548 + $0x2a0] sm:$0xff]
        %v8634 = vld [vmem:[%s8548 + $0x2a8] sm:$0xff]
        %v8635 = vld [vmem:[%s8548 + $0x2b0] sm:$0xff]
        %v8636 = vld [vmem:[%s8548 + $0x2b8] sm:$0xff]
        %v8637 = vld [vmem:[%s8548 + $0x2c0] sm:$0xff]
        %v8638 = vld [vmem:[%s8548 + $0x2c8] sm:$0xff]
        %v8639 = vld [vmem:[%s8548 + $0x2d0] sm:$0xff]
        %v8640 = vld [vmem:[%s8548 + $0x2d8] sm:$0xff]
        %v8641 = vld [vmem:[%s8548 + $0x2e0] sm:$0xff]
        %v8642 = vld [vmem:[%s8548 + $0x2e8] sm:$0xff]
        %v8643 = vld [vmem:[%s8548 + $0x2f0] sm:$0xff]
        %v8644 = vld [vmem:[%s8548 + $0x2f8] sm:$0xff]
        %v8645 = vld [vmem:[%s8548 + $0x300] sm:$0xff]
        %v8646 = vld [vmem:[%s8548 + $0x308] sm:$0xff]
        %v8647 = vld [vmem:[%s8548 + $0x310] sm:$0xff]
        %v8648 = vld [vmem:[%s8548 + $0x318] sm:$0xff]
        %v8649 = vld [vmem:[%s8548 + $0x320] sm:$0xff]
        %v8650 = vld [vmem:[%s8548 + $0x328] sm:$0xff]
        %v8651 = vld [vmem:[%s8548 + $0x330] sm:$0xff]
        %v8652 = vld [vmem:[%s8548 + $0x338] sm:$0xff]
        %v8653 = vld [vmem:[%s8548 + $0x340] sm:$0xff]
        %v8654 = vld [vmem:[%s8548 + $0x348] sm:$0xff]
        %v8655 = vld [vmem:[%s8548 + $0x350] sm:$0xff]
        %v8656 = vld [vmem:[%s8548 + $0x358] sm:$0xff]
        %v8657 = vld [vmem:[#allocation2 + $0x40] sm:$0xff]
        %v8658 = vld [vmem:[#allocation2 + $0x48] sm:$0xff]
        %v8659 = vld [vmem:[#allocation2 + $0x50] sm:$0xff]
        %v8660 = vld [vmem:[#allocation2 + $0x58] sm:$0xff]
        %s8661 = scalar_lea.vmem [#allocation3], 24192
        %v8662 = vld [vmem:[%s8661] sm:$0xff]
        %v8663 = vld [vmem:[%s8661 + $0x8] sm:$0xff]
        %v8664 = vld [vmem:[%s8661 + $0x10] sm:$0xff]
        %v8665 = vld [vmem:[%s8661 + $0x18] sm:$0xff]
        %v8666 = vld [vmem:[%s8661 + $0x20] sm:$0xff]
        %v8667 = vld [vmem:[%s8661 + $0x28] sm:$0xff]
        %v8668 = vld [vmem:[%s8661 + $0x30] sm:$0xff]
        %v8669 = vld [vmem:[%s8661 + $0x38] sm:$0xff]
        %v8670 = vld [vmem:[%s8661 + $0x40] sm:$0xff]
        %v8671 = vld [vmem:[%s8661 + $0x48] sm:$0xff]
        %v8672 = vld [vmem:[%s8661 + $0x50] sm:$0xff]
        %v8673 = vld [vmem:[%s8661 + $0x58] sm:$0xff]
        %v8674 = vld [vmem:[%s8661 + $0x60] sm:$0xff]
        %v8675 = vld [vmem:[%s8661 + $0x68] sm:$0xff]
        %v8676 = vld [vmem:[%s8661 + $0x70] sm:$0xff]
        %v8677 = vld [vmem:[%s8661 + $0x78] sm:$0xff]
        %v8678 = vld [vmem:[%s8661 + $0x80] sm:$0xff]
        %v8679 = vld [vmem:[%s8661 + $0x88] sm:$0xff]
        %v8680 = vld [vmem:[%s8661 + $0x90] sm:$0xff]
        %v8681 = vld [vmem:[%s8661 + $0x98] sm:$0xff]
        %v8682 = vld [vmem:[%s8661 + $0xa0] sm:$0xff]
        %v8683 = vld [vmem:[%s8661 + $0xa8] sm:$0xff]
        %v8684 = vld [vmem:[%s8661 + $0xb0] sm:$0xff]
        %v8685 = vld [vmem:[%s8661 + $0xb8] sm:$0xff]
        %v8686 = vld [vmem:[%s8661 + $0xc0] sm:$0xff]
        %v8687 = vld [vmem:[%s8661 + $0xc8] sm:$0xff]
        %v8688 = vld [vmem:[%s8661 + $0xd0] sm:$0xff]
        %v8689 = vld [vmem:[%s8661 + $0xd8] sm:$0xff]
        %v8690 = vld [vmem:[%s8661 + $0xe0] sm:$0xff]
        %v8691 = vld [vmem:[%s8661 + $0xe8] sm:$0xff]
        %v8692 = vld [vmem:[%s8661 + $0xf0] sm:$0xff]
        %v8693 = vld [vmem:[%s8661 + $0xf8] sm:$0xff]
        %v8694 = vld [vmem:[%s8661 + $0x100] sm:$0xff]
        %v8695 = vld [vmem:[%s8661 + $0x108] sm:$0xff]
        %v8696 = vld [vmem:[%s8661 + $0x110] sm:$0xff]
        %v8697 = vld [vmem:[%s8661 + $0x118] sm:$0xff]
        %v8698 = vld [vmem:[%s8661 + $0x120] sm:$0xff]
        %v8699 = vld [vmem:[%s8661 + $0x128] sm:$0xff]
        %v8700 = vld [vmem:[%s8661 + $0x130] sm:$0xff]
        %v8701 = vld [vmem:[%s8661 + $0x138] sm:$0xff]
        %v8702 = vld [vmem:[%s8661 + $0x140] sm:$0xff]
        %v8703 = vld [vmem:[%s8661 + $0x148] sm:$0xff]
        %v8704 = vld [vmem:[%s8661 + $0x150] sm:$0xff]
        %v8705 = vld [vmem:[%s8661 + $0x158] sm:$0xff]
        %v8706 = vld [vmem:[%s8661 + $0x160] sm:$0xff]
        %v8707 = vld [vmem:[%s8661 + $0x168] sm:$0xff]
        %v8708 = vld [vmem:[%s8661 + $0x170] sm:$0xff]
        %v8709 = vld [vmem:[%s8661 + $0x178] sm:$0xff]
        %v8710 = vld [vmem:[%s8661 + $0x180] sm:$0xff]
        %v8711 = vld [vmem:[%s8661 + $0x188] sm:$0xff]
        %v8712 = vld [vmem:[%s8661 + $0x190] sm:$0xff]
        %v8713 = vld [vmem:[%s8661 + $0x198] sm:$0xff]
        %v8714 = vld [vmem:[%s8661 + $0x1a0] sm:$0xff]
        %v8715 = vld [vmem:[%s8661 + $0x1a8] sm:$0xff]
        %v8716 = vld [vmem:[%s8661 + $0x1b0] sm:$0xff]
        %v8717 = vld [vmem:[%s8661 + $0x1b8] sm:$0xff]
        %v8718 = vld [vmem:[%s8661 + $0x1c0] sm:$0xff]
        %v8719 = vld [vmem:[%s8661 + $0x1c8] sm:$0xff]
        %v8720 = vld [vmem:[%s8661 + $0x1d0] sm:$0xff]
        %v8721 = vld [vmem:[%s8661 + $0x1d8] sm:$0xff]
        %v8722 = vld [vmem:[%s8661 + $0x1e0] sm:$0xff]
        %v8723 = vld [vmem:[%s8661 + $0x1e8] sm:$0xff]
        %v8724 = vld [vmem:[%s8661 + $0x1f0] sm:$0xff]
        %v8725 = vld [vmem:[%s8661 + $0x1f8] sm:$0xff]
        %v8726 = vld [vmem:[%s8661 + $0x200] sm:$0xff]
        %v8727 = vld [vmem:[%s8661 + $0x208] sm:$0xff]
        %v8728 = vld [vmem:[%s8661 + $0x210] sm:$0xff]
        %v8729 = vld [vmem:[%s8661 + $0x218] sm:$0xff]
        %v8730 = vld [vmem:[%s8661 + $0x220] sm:$0xff]
        %v8731 = vld [vmem:[%s8661 + $0x228] sm:$0xff]
        %v8732 = vld [vmem:[%s8661 + $0x230] sm:$0xff]
        %v8733 = vld [vmem:[%s8661 + $0x238] sm:$0xff]
        %v8734 = vld [vmem:[%s8661 + $0x240] sm:$0xff]
        %v8735 = vld [vmem:[%s8661 + $0x248] sm:$0xff]
        %v8736 = vld [vmem:[%s8661 + $0x250] sm:$0xff]
        %v8737 = vld [vmem:[%s8661 + $0x258] sm:$0xff]
        %v8738 = vld [vmem:[%s8661 + $0x260] sm:$0xff]
        %v8739 = vld [vmem:[%s8661 + $0x268] sm:$0xff]
        %v8740 = vld [vmem:[%s8661 + $0x270] sm:$0xff]
        %v8741 = vld [vmem:[%s8661 + $0x278] sm:$0xff]
        %v8742 = vld [vmem:[%s8661 + $0x280] sm:$0xff]
        %v8743 = vld [vmem:[%s8661 + $0x288] sm:$0xff]
        %v8744 = vld [vmem:[%s8661 + $0x290] sm:$0xff]
        %v8745 = vld [vmem:[%s8661 + $0x298] sm:$0xff]
        %v8746 = vld [vmem:[%s8661 + $0x2a0] sm:$0xff]
        %v8747 = vld [vmem:[%s8661 + $0x2a8] sm:$0xff]
        %v8748 = vld [vmem:[%s8661 + $0x2b0] sm:$0xff]
        %v8749 = vld [vmem:[%s8661 + $0x2b8] sm:$0xff]
        %v8750 = vld [vmem:[%s8661 + $0x2c0] sm:$0xff]
        %v8751 = vld [vmem:[%s8661 + $0x2c8] sm:$0xff]
        %v8752 = vld [vmem:[%s8661 + $0x2d0] sm:$0xff]
        %v8753 = vld [vmem:[%s8661 + $0x2d8] sm:$0xff]
        %v8754 = vld [vmem:[%s8661 + $0x2e0] sm:$0xff]
        %v8755 = vld [vmem:[%s8661 + $0x2e8] sm:$0xff]
        %v8756 = vld [vmem:[%s8661 + $0x2f0] sm:$0xff]
        %v8757 = vld [vmem:[%s8661 + $0x2f8] sm:$0xff]
        %v8758 = vld [vmem:[%s8661 + $0x300] sm:$0xff]
        %v8759 = vld [vmem:[%s8661 + $0x308] sm:$0xff]
        %v8760 = vld [vmem:[%s8661 + $0x310] sm:$0xff]
        %v8761 = vld [vmem:[%s8661 + $0x318] sm:$0xff]
        %v8762 = vld [vmem:[%s8661 + $0x320] sm:$0xff]
        %v8763 = vld [vmem:[%s8661 + $0x328] sm:$0xff]
        %v8764 = vld [vmem:[%s8661 + $0x330] sm:$0xff]
        %v8765 = vld [vmem:[%s8661 + $0x338] sm:$0xff]
        %v8766 = vld [vmem:[%s8661 + $0x340] sm:$0xff]
        %v8767 = vld [vmem:[%s8661 + $0x348] sm:$0xff]
        %v8768 = vld [vmem:[%s8661 + $0x350] sm:$0xff]
        %v8769 = vld [vmem:[%s8661 + $0x358] sm:$0xff]
        %v8771 = vsel %vm162, %v8543, 0
        %v8774 = vsel %vm162, %v8660, 0
        %8776 = vmatprep.subr.mxu0 %v8663
        %8777 = vmatpush1.msra.mxu0 %v8662
        %8778 = vmatprep.subr.mxu0 %v8665
        %8779 = vmatpush1.msra.mxu0 %v8664
        %8780 = vmatprep.subr.mxu0 %v8667
        %8781 = vmatpush1.msra.mxu0 %v8666
        %8782 = vmatprep.subr.mxu0 %v8669
        %8783 = vmatpush1.msra.mxu0 %v8668
        %8784 = vmatprep.subr.mxu0 %v8671
        %8785 = vmatpush1.msra.mxu0 %v8670
        %8786 = vmatprep.subr.mxu0 %v8673
        %8787 = vmatpush1.msra.mxu0 %v8672
        %8788 = vmatprep.subr.mxu0 %v8675
        %8789 = vmatpush1.msra.mxu0 %v8674
        %8790 = vmatprep.subr.mxu0 %v8677
        %8791 = vmatpush1.msra.mxu0 %v8676
        %8792 = vmatprep.subr.mxu0 %v8679
        %8793 = vmatpush1.msra.mxu0 %v8678
        %8794 = vmatprep.subr.mxu0 %v8681
        %8795 = vmatpush1.msra.mxu0 %v8680
        %8796 = vmatprep.subr.mxu0 %v8683
        %8797 = vmatpush1.msra.mxu0 %v8682
        %8798 = vmatprep.subr.mxu0 %v8685
        %8799 = vmatpush1.msra.mxu0 %v8684
        %8800 = vmatprep.subr.mxu0 %v8687
        %8801 = vmatpush1.msra.mxu0 %v8686
        %8802 = vmatprep.subr.mxu0 %v8689
        %8803 = vmatpush1.msra.mxu0 %v8688
        %8804 = vmatprep.subr.mxu0 %v8691
        %8805 = vmatpush1.msra.mxu0 %v8690
        %8806 = vmatprep.subr.mxu0 %v8693
        %8807 = vmatpush1.msra.mxu0 %v8692
        %8808 = vmatprep.subr.mxu0 %v8695
        %8809 = vmatpush1.msra.mxu0 %v8694
        %8810 = vmatprep.subr.mxu0 %v8697
        %8811 = vmatpush1.msra.mxu0 %v8696
        %8812 = vmatprep.subr.mxu0 %v8699
        %8813 = vmatpush1.msra.mxu0 %v8698
        %8814 = vmatprep.subr.mxu0 %v8701
        %8815 = vmatpush1.msra.mxu0 %v8700
        %8816 = vmatprep.subr.mxu0 %v8703
        %8817 = vmatpush1.msra.mxu0 %v8702
        %8818 = vmatprep.subr.mxu0 %v8705
        %8819 = vmatpush1.msra.mxu0 %v8704
        %8820 = vmatprep.subr.mxu0 %v8707
        %8821 = vmatpush1.msra.mxu0 %v8706
        %8822 = vmatprep.subr.mxu0 %v8709
        %8823 = vmatpush1.msra.mxu0 %v8708
        %8824 = vmatprep.subr.mxu0 %v8711
        %8825 = vmatpush1.msra.mxu0 %v8710
        %8826 = vmatprep.subr.mxu0 %v8713
        %8827 = vmatpush1.msra.mxu0 %v8712
        %8828 = vmatprep.subr.mxu0 %v8715
        %8829 = vmatpush1.msra.mxu0 %v8714
        %8830 = vmatprep.subr.mxu0 %v8717
        %8831 = vmatpush1.msra.mxu0 %v8716
        %8832 = vmatprep.subr.mxu0 %v8719
        %8833 = vmatpush1.msra.mxu0 %v8718
        %8834 = vmatprep.subr.mxu0 %v8721
        %8835 = vmatpush1.msra.mxu0 %v8720
        %8836 = vmatprep.subr.mxu0 %v8723
        %8837 = vmatpush1.msra.mxu0 %v8722
        %8838 = vmatprep.subr.mxu0 %v8725
        %8839 = vmatpush1.msra.mxu0 %v8724
        %8840 = vmatprep.mubr.f32.mxu0 %v8541
        %8841 = vmatmul.mubr.f32.gmra.mrb[0].mxu0 %v8540
        %v8842 = vpop.f32.mrb[0].mxu0
        %v8843 = vadd.f32 0.0, %v8842
        %v8844 = vpop.f32.mrb[0].mxu0
        %v8845 = vadd.f32 0.0, %v8844
        %8846 = vmatprep.mubr.f32.mxu0 %v8658
        %8847 = vmatmul.mubr.f32.gmra.mrb[0].mxu0 %v8657
        %v8848 = vpop.f32.mrb[0].mxu0
        %v8849 = vadd.f32 0.0, %v8848
        %v8850 = vpop.f32.mrb[0].mxu0
        %v8851 = vadd.f32 0.0, %v8850
        %8852 = vdwg.mxu0
        %8853 = vmatprep.subr.mxu0 %v8727
        %8854 = vmatpush1.msra.mxu0 %v8726
        %8855 = vmatprep.subr.mxu0 %v8729
        %8856 = vmatpush1.msra.mxu0 %v8728
        %8857 = vmatprep.subr.mxu0 %v8731
        %8858 = vmatpush1.msra.mxu0 %v8730
        %8859 = vmatprep.subr.mxu0 %v8733
        %8860 = vmatpush1.msra.mxu0 %v8732
        %8861 = vmatprep.subr.mxu0 %v8735
        %8862 = vmatpush1.msra.mxu0 %v8734
        %8863 = vmatprep.subr.mxu0 %v8737
        %8864 = vmatpush1.msra.mxu0 %v8736
        %8865 = vmatprep.subr.mxu0 %v8739
        %8866 = vmatpush1.msra.mxu0 %v8738
        %8867 = vmatprep.subr.mxu0 %v8741
        %8868 = vmatpush1.msra.mxu0 %v8740
        %8869 = vmatprep.subr.mxu0 %v8743
        %8870 = vmatpush1.msra.mxu0 %v8742
        %8871 = vmatprep.subr.mxu0 %v8745
        %8872 = vmatpush1.msra.mxu0 %v8744
        %8873 = vmatprep.subr.mxu0 %v8747
        %8874 = vmatpush1.msra.mxu0 %v8746
        %8875 = vmatprep.subr.mxu0 %v8749
        %8876 = vmatpush1.msra.mxu0 %v8748
        %8877 = vmatprep.subr.mxu0 %v8751
        %8878 = vmatpush1.msra.mxu0 %v8750
        %8879 = vmatprep.subr.mxu0 %v8753
        %8880 = vmatpush1.msra.mxu0 %v8752
        %8881 = vmatprep.subr.mxu0 %v8755
        %8882 = vmatpush1.msra.mxu0 %v8754
        %8883 = vmatprep.subr.mxu0 %v8757
        %8884 = vmatpush1.msra.mxu0 %v8756
        %8885 = vmatprep.subr.mxu0 %v8759
        %8886 = vmatpush1.msra.mxu0 %v8758
        %8887 = vmatprep.subr.mxu0 %v8761
        %8888 = vmatpush1.msra.mxu0 %v8760
        %8889 = vmatprep.subr.mxu0 %v8763
        %8890 = vmatpush1.msra.mxu0 %v8762
        %8891 = vmatprep.subr.mxu0 %v8765
        %8892 = vmatpush1.msra.mxu0 %v8764
        %8893 = vmatprep.subr.mxu0 %v8767
        %8894 = vmatpush1.msra.mxu0 %v8766
        %8895 = vmatprep.subr.mxu0 %v8769
        %8896 = vmatpush1.msra.mxu0 %v8768
        %8897 = vmatprep.subr.mxu0 0.0
        %8898 = vmatpush1.msra.mxu0 0.0
        %8899 = vmatprep.subr.mxu0 0.0
        %8900 = vmatpush1.msra.mxu0 0.0
        %8901 = vmatprep.subr.mxu0 0.0
        %8902 = vmatpush1.msra.mxu0 0.0
        %8903 = vmatprep.subr.mxu0 0.0
        %8904 = vmatpush1.msra.mxu0 0.0
        %8905 = vmatprep.subr.mxu0 0.0
        %8906 = vmatpush1.msra.mxu0 0.0
        %8907 = vmatprep.subr.mxu0 0.0
        %8908 = vmatpush1.msra.mxu0 0.0
        %8909 = vmatprep.subr.mxu0 0.0
        %8910 = vmatpush1.msra.mxu0 0.0
        %8911 = vmatprep.subr.mxu0 0.0
        %8912 = vmatpush1.msra.mxu0 0.0
        %8913 = vmatprep.subr.mxu0 0.0
        %8914 = vmatpush1.msra.mxu0 0.0
        %8915 = vmatprep.subr.mxu0 0.0
        %8916 = vmatpush1.msra.mxu0 0.0
        %8917 = vmatprep.mubr.f32.mxu0 %v8771
        %8918 = vmatmul.mubr.f32.gmra.mrb[0].mxu0 %v8542
        %v8919 = vpop.f32.mrb[0].mxu0
        %v8920 = vadd.f32 %v8843, %v8919
        %v8921 = vpop.f32.mrb[0].mxu0
        %v8922 = vadd.f32 %v8845, %v8921
        %8923 = vmatprep.mubr.f32.mxu0 %v8774
        %8924 = vmatmul.mubr.f32.gmra.mrb[0].mxu0 %v8659
        %v8925 = vpop.f32.mrb[0].mxu0
        %v8926 = vadd.f32 %v8849, %v8925
        %v8927 = vpop.f32.mrb[0].mxu0
        %v8928 = vadd.f32 %v8851, %v8927
        %8929 = vdwg.mxu0
        %v8941 = vrot.slane %v8536, 7
        %v8942 = vrot.slane %v8540, 7
        %v8943 = vsel %vm937, %v8941, %v8942
        %v8944 = vrot.slane %v8537, 7
        %v8945 = vrot.slane %v8541, 7
        %v8946 = vsel %vm937, %v8944, %v8945
        %v8947 = vrot.slane %v8538, 7
        %v8948 = vrot.slane %v8542, 7
        %v8949 = vsel %vm937, %v8947, %v8948
        %v8950 = vrot.slane %v8539, 7
        %v8951 = vrot.slane %v8543, 7
        %v8952 = vsel %vm937, %v8950, %v8951
        %v8953 = vrot.slane %v8544, 7
        %v8954 = vsel %vm937, %v8942, %v8953
        %v8955 = vrot.slane %v8545, 7
        %v8956 = vsel %vm937, %v8945, %v8955
        %v8957 = vrot.slane %v8546, 7
        %v8958 = vsel %vm937, %v8948, %v8957
        %v8959 = vrot.slane %v8547, 7
        %v8960 = vsel %vm937, %v8951, %v8959
        %v8967 = vsel %vm162, %v8952, 0
        %v8969 = vsel %vm162, %v8960, 0
        %8971 = vmatprep.subr.mxu0 %v8550
        %8972 = vmatpush1.msra.mxu0 %v8549
        %8973 = vmatprep.subr.mxu0 %v8552
        %8974 = vmatpush1.msra.mxu0 %v8551
        %8975 = vmatprep.subr.mxu0 %v8554
        %8976 = vmatpush1.msra.mxu0 %v8553
        %8977 = vmatprep.subr.mxu0 %v8556
        %8978 = vmatpush1.msra.mxu0 %v8555
        %8979 = vmatprep.subr.mxu0 %v8558
        %8980 = vmatpush1.msra.mxu0 %v8557
        %8981 = vmatprep.subr.mxu0 %v8560
        %8982 = vmatpush1.msra.mxu0 %v8559
        %8983 = vmatprep.subr.mxu0 %v8562
        %8984 = vmatpush1.msra.mxu0 %v8561
        %8985 = vmatprep.subr.mxu0 %v8564
        %8986 = vmatpush1.msra.mxu0 %v8563
        %8987 = vmatprep.subr.mxu0 %v8566
        %8988 = vmatpush1.msra.mxu0 %v8565
        %8989 = vmatprep.subr.mxu0 %v8568
        %8990 = vmatpush1.msra.mxu0 %v8567
        %8991 = vmatprep.subr.mxu0 %v8570
        %8992 = vmatpush1.msra.mxu0 %v8569
        %8993 = vmatprep.subr.mxu0 %v8572
        %8994 = vmatpush1.msra.mxu0 %v8571
        %8995 = vmatprep.subr.mxu0 %v8574
        %8996 = vmatpush1.msra.mxu0 %v8573
        %8997 = vmatprep.subr.mxu0 %v8576
        %8998 = vmatpush1.msra.mxu0 %v8575
        %8999 = vmatprep.subr.mxu0 %v8578
        %9000 = vmatpush1.msra.mxu0 %v8577
        %9001 = vmatprep.subr.mxu0 %v8580
        %9002 = vmatpush1.msra.mxu0 %v8579
        %9003 = vmatprep.subr.mxu0 %v8582
        %9004 = vmatpush1.msra.mxu0 %v8581
        %9005 = vmatprep.subr.mxu0 %v8584
        %9006 = vmatpush1.msra.mxu0 %v8583
        %9007 = vmatprep.subr.mxu0 %v8586
        %9008 = vmatpush1.msra.mxu0 %v8585
        %9009 = vmatprep.subr.mxu0 %v8588
        %9010 = vmatpush1.msra.mxu0 %v8587
        %9011 = vmatprep.subr.mxu0 %v8590
        %9012 = vmatpush1.msra.mxu0 %v8589
        %9013 = vmatprep.subr.mxu0 %v8592
        %9014 = vmatpush1.msra.mxu0 %v8591
        %9015 = vmatprep.subr.mxu0 %v8594
        %9016 = vmatpush1.msra.mxu0 %v8593
        %9017 = vmatprep.subr.mxu0 %v8596
        %9018 = vmatpush1.msra.mxu0 %v8595
        %9019 = vmatprep.subr.mxu0 %v8598
        %9020 = vmatpush1.msra.mxu0 %v8597
        %9021 = vmatprep.subr.mxu0 %v8600
        %9022 = vmatpush1.msra.mxu0 %v8599
        %9023 = vmatprep.subr.mxu0 %v8602
        %9024 = vmatpush1.msra.mxu0 %v8601
        %9025 = vmatprep.subr.mxu0 %v8604
        %9026 = vmatpush1.msra.mxu0 %v8603
        %9027 = vmatprep.subr.mxu0 %v8606
        %9028 = vmatpush1.msra.mxu0 %v8605
        %9029 = vmatprep.subr.mxu0 %v8608
        %9030 = vmatpush1.msra.mxu0 %v8607
        %9031 = vmatprep.subr.mxu0 %v8610
        %9032 = vmatpush1.msra.mxu0 %v8609
        %9033 = vmatprep.subr.mxu0 %v8612
        %9034 = vmatpush1.msra.mxu0 %v8611
        %9035 = vmatprep.mubr.f32.mxu0 %v8946
        %9036 = vmatmul.mubr.f32.gmra.mrb[0].mxu0 %v8943
        %v9037 = vpop.f32.mrb[0].mxu0
        %v9038 = vadd.f32 %v8920, %v9037
        %v9039 = vpop.f32.mrb[0].mxu0
        %v9040 = vadd.f32 %v8922, %v9039
        %9041 = vmatprep.mubr.f32.mxu0 %v8956
        %9042 = vmatmul.mubr.f32.gmra.mrb[0].mxu0 %v8954
        %v9043 = vpop.f32.mrb[0].mxu0
        %v9044 = vadd.f32 %v8926, %v9043
        %v9045 = vpop.f32.mrb[0].mxu0
        %v9046 = vadd.f32 %v8928, %v9045
        %9047 = vdwg.mxu0
        %9048 = vmatprep.subr.mxu0 %v8614
        %9049 = vmatpush1.msra.mxu0 %v8613
        %9050 = vmatprep.subr.mxu0 %v8616
        %9051 = vmatpush1.msra.mxu0 %v8615
        %9052 = vmatprep.subr.mxu0 %v8618
        %9053 = vmatpush1.msra.mxu0 %v8617
        %9054 = vmatprep.subr.mxu0 %v8620
        %9055 = vmatpush1.msra.mxu0 %v8619
        %9056 = vmatprep.subr.mxu0 %v8622
        %9057 = vmatpush1.msra.mxu0 %v8621
        %9058 = vmatprep.subr.mxu0 %v8624
        %9059 = vmatpush1.msra.mxu0 %v8623
        %9060 = vmatprep.subr.mxu0 %v8626
        %9061 = vmatpush1.msra.mxu0 %v8625
        %9062 = vmatprep.subr.mxu0 %v8628
        %9063 = vmatpush1.msra.mxu0 %v8627
        %9064 = vmatprep.subr.mxu0 %v8630
        %9065 = vmatpush1.msra.mxu0 %v8629
        %9066 = vmatprep.subr.mxu0 %v8632
        %9067 = vmatpush1.msra.mxu0 %v8631
        %9068 = vmatprep.subr.mxu0 %v8634
        %9069 = vmatpush1.msra.mxu0 %v8633
        %9070 = vmatprep.subr.mxu0 %v8636
        %9071 = vmatpush1.msra.mxu0 %v8635
        %9072 = vmatprep.subr.mxu0 %v8638
        %9073 = vmatpush1.msra.mxu0 %v8637
        %9074 = vmatprep.subr.mxu0 %v8640
        %9075 = vmatpush1.msra.mxu0 %v8639
        %9076 = vmatprep.subr.mxu0 %v8642
        %9077 = vmatpush1.msra.mxu0 %v8641
        %9078 = vmatprep.subr.mxu0 %v8644
        %9079 = vmatpush1.msra.mxu0 %v8643
        %9080 = vmatprep.subr.mxu0 %v8646
        %9081 = vmatpush1.msra.mxu0 %v8645
        %9082 = vmatprep.subr.mxu0 %v8648
        %9083 = vmatpush1.msra.mxu0 %v8647
        %9084 = vmatprep.subr.mxu0 %v8650
        %9085 = vmatpush1.msra.mxu0 %v8649
        %9086 = vmatprep.subr.mxu0 %v8652
        %9087 = vmatpush1.msra.mxu0 %v8651
        %9088 = vmatprep.subr.mxu0 %v8654
        %9089 = vmatpush1.msra.mxu0 %v8653
        %9090 = vmatprep.subr.mxu0 %v8656
        %9091 = vmatpush1.msra.mxu0 %v8655
        %9092 = vmatprep.subr.mxu0 0.0
        %9093 = vmatpush1.msra.mxu0 0.0
        %9094 = vmatprep.subr.mxu0 0.0
        %9095 = vmatpush1.msra.mxu0 0.0
        %9096 = vmatprep.subr.mxu0 0.0
        %9097 = vmatpush1.msra.mxu0 0.0
        %9098 = vmatprep.subr.mxu0 0.0
        %9099 = vmatpush1.msra.mxu0 0.0
        %9100 = vmatprep.subr.mxu0 0.0
        %9101 = vmatpush1.msra.mxu0 0.0
        %9102 = vmatprep.subr.mxu0 0.0
        %9103 = vmatpush1.msra.mxu0 0.0
        %9104 = vmatprep.subr.mxu0 0.0
        %9105 = vmatpush1.msra.mxu0 0.0
        %9106 = vmatprep.subr.mxu0 0.0
        %9107 = vmatpush1.msra.mxu0 0.0
        %9108 = vmatprep.subr.mxu0 0.0
        %9109 = vmatpush1.msra.mxu0 0.0
        %9110 = vmatprep.subr.mxu0 0.0
        %9111 = vmatpush1.msra.mxu0 0.0
        %9112 = vmatprep.mubr.f32.mxu0 %v8967
        %9113 = vmatmul.mubr.f32.gmra.mrb[0].mxu0 %v8949
        %v9114 = vpop.f32.mrb[0].mxu0
        %v9115 = vadd.f32 %v9038, %v9114
        %v9116 = vpop.f32.mrb[0].mxu0
        %v9117 = vadd.f32 %v9040, %v9116
        %9118 = vmatprep.mubr.f32.mxu0 %v8969
        %9119 = vmatmul.mubr.f32.gmra.mrb[0].mxu0 %v8958
        %v9120 = vpop.f32.mrb[0].mxu0
        %v9121 = vadd.f32 %v9044, %v9120
        %v9122 = vpop.f32.mrb[0].mxu0
        %v9123 = vadd.f32 %v9046, %v9122
        %9124 = vdwg.mxu0
        %v9125 = vld [vmem:[#allocation2 + $0x20] sm:$0xfe]
        %v9126 = vld [vmem:[#allocation2 + $0x28] sm:$0xfe]
        %v9127 = vld [vmem:[#allocation2 + $0x30] sm:$0xfe]
        %v9128 = vld [vmem:[#allocation2 + $0x38] sm:$0xfe]
        %v9129 = vld [vmem:[#allocation2 + $0x40] sm:$0xff]
        %v9130 = vld [vmem:[#allocation2 + $0x48] sm:$0xff]
        %v9131 = vld [vmem:[#allocation2 + $0x50] sm:$0xff]
        %v9132 = vld [vmem:[#allocation2 + $0x58] sm:$0xff]
        %v9133 = vld [vmem:[#allocation2 + $0x60] sm:$0x1]
        %v9134 = vld [vmem:[#allocation2 + $0x68] sm:$0x1]
        %v9135 = vld [vmem:[#allocation2 + $0x70] sm:$0x1]
        %v9136 = vld [vmem:[#allocation2 + $0x78] sm:$0x1]
        %s9137 = scalar_lea.vmem [#allocation3], 25056
        %v9138 = vld [vmem:[%s9137] sm:$0xff]
        %v9139 = vld [vmem:[%s9137 + $0x8] sm:$0xff]
        %v9140 = vld [vmem:[%s9137 + $0x10] sm:$0xff]
        %v9141 = vld [vmem:[%s9137 + $0x18] sm:$0xff]
        %v9142 = vld [vmem:[%s9137 + $0x20] sm:$0xff]
        %v9143 = vld [vmem:[%s9137 + $0x28] sm:$0xff]
        %v9144 = vld [vmem:[%s9137 + $0x30] sm:$0xff]
        %v9145 = vld [vmem:[%s9137 + $0x38] sm:$0xff]
        %v9146 = vld [vmem:[%s9137 + $0x40] sm:$0xff]
        %v9147 = vld [vmem:[%s9137 + $0x48] sm:$0xff]
        %v9148 = vld [vmem:[%s9137 + $0x50] sm:$0xff]
        %v9149 = vld [vmem:[%s9137 + $0x58] sm:$0xff]
        %v9150 = vld [vmem:[%s9137 + $0x60] sm:$0xff]
        %v9151 = vld [vmem:[%s9137 + $0x68] sm:$0xff]
        %v9152 = vld [vmem:[%s9137 + $0x70] sm:$0xff]
        %v9153 = vld [vmem:[%s9137 + $0x78] sm:$0xff]
        %v9154 = vld [vmem:[%s9137 + $0x80] sm:$0xff]
        %v9155 = vld [vmem:[%s9137 + $0x88] sm:$0xff]
        %v9156 = vld [vmem:[%s9137 + $0x90] sm:$0xff]
        %v9157 = vld [vmem:[%s9137 + $0x98] sm:$0xff]
        %v9158 = vld [vmem:[%s9137 + $0xa0] sm:$0xff]
        %v9159 = vld [vmem:[%s9137 + $0xa8] sm:$0xff]
        %v9160 = vld [vmem:[%s9137 + $0xb0] sm:$0xff]
        %v9161 = vld [vmem:[%s9137 + $0xb8] sm:$0xff]
        %v9162 = vld [vmem:[%s9137 + $0xc0] sm:$0xff]
        %v9163 = vld [vmem:[%s9137 + $0xc8] sm:$0xff]
        %v9164 = vld [vmem:[%s9137 + $0xd0] sm:$0xff]
        %v9165 = vld [vmem:[%s9137 + $0xd8] sm:$0xff]
        %v9166 = vld [vmem:[%s9137 + $0xe0] sm:$0xff]
        %v9167 = vld [vmem:[%s9137 + $0xe8] sm:$0xff]
        %v9168 = vld [vmem:[%s9137 + $0xf0] sm:$0xff]
        %v9169 = vld [vmem:[%s9137 + $0xf8] sm:$0xff]
        %v9170 = vld [vmem:[%s9137 + $0x100] sm:$0xff]
        %v9171 = vld [vmem:[%s9137 + $0x108] sm:$0xff]
        %v9172 = vld [vmem:[%s9137 + $0x110] sm:$0xff]
        %v9173 = vld [vmem:[%s9137 + $0x118] sm:$0xff]
        %v9174 = vld [vmem:[%s9137 + $0x120] sm:$0xff]
        %v9175 = vld [vmem:[%s9137 + $0x128] sm:$0xff]
        %v9176 = vld [vmem:[%s9137 + $0x130] sm:$0xff]
        %v9177 = vld [vmem:[%s9137 + $0x138] sm:$0xff]
        %v9178 = vld [vmem:[%s9137 + $0x140] sm:$0xff]
        %v9179 = vld [vmem:[%s9137 + $0x148] sm:$0xff]
        %v9180 = vld [vmem:[%s9137 + $0x150] sm:$0xff]
        %v9181 = vld [vmem:[%s9137 + $0x158] sm:$0xff]
        %v9182 = vld [vmem:[%s9137 + $0x160] sm:$0xff]
        %v9183 = vld [vmem:[%s9137 + $0x168] sm:$0xff]
        %v9184 = vld [vmem:[%s9137 + $0x170] sm:$0xff]
        %v9185 = vld [vmem:[%s9137 + $0x178] sm:$0xff]
        %v9186 = vld [vmem:[%s9137 + $0x180] sm:$0xff]
        %v9187 = vld [vmem:[%s9137 + $0x188] sm:$0xff]
        %v9188 = vld [vmem:[%s9137 + $0x190] sm:$0xff]
        %v9189 = vld [vmem:[%s9137 + $0x198] sm:$0xff]
        %v9190 = vld [vmem:[%s9137 + $0x1a0] sm:$0xff]
        %v9191 = vld [vmem:[%s9137 + $0x1a8] sm:$0xff]
        %v9192 = vld [vmem:[%s9137 + $0x1b0] sm:$0xff]
        %v9193 = vld [vmem:[%s9137 + $0x1b8] sm:$0xff]
        %v9194 = vld [vmem:[%s9137 + $0x1c0] sm:$0xff]
        %v9195 = vld [vmem:[%s9137 + $0x1c8] sm:$0xff]
        %v9196 = vld [vmem:[%s9137 + $0x1d0] sm:$0xff]
        %v9197 = vld [vmem:[%s9137 + $0x1d8] sm:$0xff]
        %v9198 = vld [vmem:[%s9137 + $0x1e0] sm:$0xff]
        %v9199 = vld [vmem:[%s9137 + $0x1e8] sm:$0xff]
        %v9200 = vld [vmem:[%s9137 + $0x1f0] sm:$0xff]
        %v9201 = vld [vmem:[%s9137 + $0x1f8] sm:$0xff]
        %v9202 = vld [vmem:[%s9137 + $0x200] sm:$0xff]
        %v9203 = vld [vmem:[%s9137 + $0x208] sm:$0xff]
        %v9204 = vld [vmem:[%s9137 + $0x210] sm:$0xff]
        %v9205 = vld [vmem:[%s9137 + $0x218] sm:$0xff]
        %v9206 = vld [vmem:[%s9137 + $0x220] sm:$0xff]
        %v9207 = vld [vmem:[%s9137 + $0x228] sm:$0xff]
        %v9208 = vld [vmem:[%s9137 + $0x230] sm:$0xff]
        %v9209 = vld [vmem:[%s9137 + $0x238] sm:$0xff]
        %v9210 = vld [vmem:[%s9137 + $0x240] sm:$0xff]
        %v9211 = vld [vmem:[%s9137 + $0x248] sm:$0xff]
        %v9212 = vld [vmem:[%s9137 + $0x250] sm:$0xff]
        %v9213 = vld [vmem:[%s9137 + $0x258] sm:$0xff]
        %v9214 = vld [vmem:[%s9137 + $0x260] sm:$0xff]
        %v9215 = vld [vmem:[%s9137 + $0x268] sm:$0xff]
        %v9216 = vld [vmem:[%s9137 + $0x270] sm:$0xff]
        %v9217 = vld [vmem:[%s9137 + $0x278] sm:$0xff]
        %v9218 = vld [vmem:[%s9137 + $0x280] sm:$0xff]
        %v9219 = vld [vmem:[%s9137 + $0x288] sm:$0xff]
        %v9220 = vld [vmem:[%s9137 + $0x290] sm:$0xff]
        %v9221 = vld [vmem:[%s9137 + $0x298] sm:$0xff]
        %v9222 = vld [vmem:[%s9137 + $0x2a0] sm:$0xff]
        %v9223 = vld [vmem:[%s9137 + $0x2a8] sm:$0xff]
        %v9224 = vld [vmem:[%s9137 + $0x2b0] sm:$0xff]
        %v9225 = vld [vmem:[%s9137 + $0x2b8] sm:$0xff]
        %v9226 = vld [vmem:[%s9137 + $0x2c0] sm:$0xff]
        %v9227 = vld [vmem:[%s9137 + $0x2c8] sm:$0xff]
        %v9228 = vld [vmem:[%s9137 + $0x2d0] sm:$0xff]
        %v9229 = vld [vmem:[%s9137 + $0x2d8] sm:$0xff]
        %v9230 = vld [vmem:[%s9137 + $0x2e0] sm:$0xff]
        %v9231 = vld [vmem:[%s9137 + $0x2e8] sm:$0xff]
        %v9232 = vld [vmem:[%s9137 + $0x2f0] sm:$0xff]
        %v9233 = vld [vmem:[%s9137 + $0x2f8] sm:$0xff]
        %v9234 = vld [vmem:[%s9137 + $0x300] sm:$0xff]
        %v9235 = vld [vmem:[%s9137 + $0x308] sm:$0xff]
        %v9236 = vld [vmem:[%s9137 + $0x310] sm:$0xff]
        %v9237 = vld [vmem:[%s9137 + $0x318] sm:$0xff]
        %v9238 = vld [vmem:[%s9137 + $0x320] sm:$0xff]
        %v9239 = vld [vmem:[%s9137 + $0x328] sm:$0xff]
        %v9240 = vld [vmem:[%s9137 + $0x330] sm:$0xff]
        %v9241 = vld [vmem:[%s9137 + $0x338] sm:$0xff]
        %v9242 = vld [vmem:[%s9137 + $0x340] sm:$0xff]
        %v9243 = vld [vmem:[%s9137 + $0x348] sm:$0xff]
        %v9244 = vld [vmem:[%s9137 + $0x350] sm:$0xff]
        %v9245 = vld [vmem:[%s9137 + $0x358] sm:$0xff]
        %v9258 = vrot.slane %v9125, 1
        %v9259 = vrot.slane %v9129, 1
        %v9260 = vsel %vm1535, %v9258, %v9259
        %v9261 = vrot.slane %v9126, 1
        %v9262 = vrot.slane %v9130, 1
        %v9263 = vsel %vm1535, %v9261, %v9262
        %v9264 = vrot.slane %v9127, 1
        %v9265 = vrot.slane %v9131, 1
        %v9266 = vsel %vm1535, %v9264, %v9265
        %v9267 = vrot.slane %v9128, 1
        %v9268 = vrot.slane %v9132, 1
        %v9269 = vsel %vm1535, %v9267, %v9268
        %v9270 = vrot.slane %v9133, 1
        %v9271 = vsel %vm1535, %v9259, %v9270
        %v9272 = vrot.slane %v9134, 1
        %v9273 = vsel %vm1535, %v9262, %v9272
        %v9274 = vrot.slane %v9135, 1
        %v9275 = vsel %vm1535, %v9265, %v9274
        %v9276 = vrot.slane %v9136, 1
        %v9277 = vsel %vm1535, %v9268, %v9276
        %v9284 = vsel %vm162, %v9269, 0
        %v9286 = vsel %vm162, %v9277, 0
        %9288 = vmatprep.subr.mxu0 %v9139
        %9289 = vmatpush1.msra.mxu0 %v9138
        %9290 = vmatprep.subr.mxu0 %v9141
        %9291 = vmatpush1.msra.mxu0 %v9140
        %9292 = vmatprep.subr.mxu0 %v9143
        %9293 = vmatpush1.msra.mxu0 %v9142
        %9294 = vmatprep.subr.mxu0 %v9145
        %9295 = vmatpush1.msra.mxu0 %v9144
        %9296 = vmatprep.subr.mxu0 %v9147
        %9297 = vmatpush1.msra.mxu0 %v9146
        %9298 = vmatprep.subr.mxu0 %v9149
        %9299 = vmatpush1.msra.mxu0 %v9148
        %9300 = vmatprep.subr.mxu0 %v9151
        %9301 = vmatpush1.msra.mxu0 %v9150
        %9302 = vmatprep.subr.mxu0 %v9153
        %9303 = vmatpush1.msra.mxu0 %v9152
        %9304 = vmatprep.subr.mxu0 %v9155
        %9305 = vmatpush1.msra.mxu0 %v9154
        %9306 = vmatprep.subr.mxu0 %v9157
        %9307 = vmatpush1.msra.mxu0 %v9156
        %9308 = vmatprep.subr.mxu0 %v9159
        %9309 = vmatpush1.msra.mxu0 %v9158
        %9310 = vmatprep.subr.mxu0 %v9161
        %9311 = vmatpush1.msra.mxu0 %v9160
        %9312 = vmatprep.subr.mxu0 %v9163
        %9313 = vmatpush1.msra.mxu0 %v9162
        %9314 = vmatprep.subr.mxu0 %v9165
        %9315 = vmatpush1.msra.mxu0 %v9164
        %9316 = vmatprep.subr.mxu0 %v9167
        %9317 = vmatpush1.msra.mxu0 %v9166
        %9318 = vmatprep.subr.mxu0 %v9169
        %9319 = vmatpush1.msra.mxu0 %v9168
        %9320 = vmatprep.subr.mxu0 %v9171
        %9321 = vmatpush1.msra.mxu0 %v9170
        %9322 = vmatprep.subr.mxu0 %v9173
        %9323 = vmatpush1.msra.mxu0 %v9172
        %9324 = vmatprep.subr.mxu0 %v9175
        %9325 = vmatpush1.msra.mxu0 %v9174
        %9326 = vmatprep.subr.mxu0 %v9177
        %9327 = vmatpush1.msra.mxu0 %v9176
        %9328 = vmatprep.subr.mxu0 %v9179
        %9329 = vmatpush1.msra.mxu0 %v9178
        %9330 = vmatprep.subr.mxu0 %v9181
        %9331 = vmatpush1.msra.mxu0 %v9180
        %9332 = vmatprep.subr.mxu0 %v9183
        %9333 = vmatpush1.msra.mxu0 %v9182
        %9334 = vmatprep.subr.mxu0 %v9185
        %9335 = vmatpush1.msra.mxu0 %v9184
        %9336 = vmatprep.subr.mxu0 %v9187
        %9337 = vmatpush1.msra.mxu0 %v9186
        %9338 = vmatprep.subr.mxu0 %v9189
        %9339 = vmatpush1.msra.mxu0 %v9188
        %9340 = vmatprep.subr.mxu0 %v9191
        %9341 = vmatpush1.msra.mxu0 %v9190
        %9342 = vmatprep.subr.mxu0 %v9193
        %9343 = vmatpush1.msra.mxu0 %v9192
        %9344 = vmatprep.subr.mxu0 %v9195
        %9345 = vmatpush1.msra.mxu0 %v9194
        %9346 = vmatprep.subr.mxu0 %v9197
        %9347 = vmatpush1.msra.mxu0 %v9196
        %9348 = vmatprep.subr.mxu0 %v9199
        %9349 = vmatpush1.msra.mxu0 %v9198
        %9350 = vmatprep.subr.mxu0 %v9201
        %9351 = vmatpush1.msra.mxu0 %v9200
        %9352 = vmatprep.mubr.f32.mxu0 %v9263
        %9353 = vmatmul.mubr.f32.gmra.mrb[0].mxu0 %v9260
        %v9354 = vpop.f32.mrb[0].mxu0
        %v9355 = vadd.f32 0.0, %v9354
        %v9356 = vpop.f32.mrb[0].mxu0
        %v9357 = vadd.f32 0.0, %v9356
        %9358 = vmatprep.mubr.f32.mxu0 %v9273
        %9359 = vmatmul.mubr.f32.gmra.mrb[0].mxu0 %v9271
        %v9360 = vpop.f32.mrb[0].mxu0
        %v9361 = vadd.f32 0.0, %v9360
        %v9362 = vpop.f32.mrb[0].mxu0
        %v9363 = vadd.f32 0.0, %v9362
        %9364 = vdwg.mxu0
        %9365 = vmatprep.subr.mxu0 %v9203
        %9366 = vmatpush1.msra.mxu0 %v9202
        %9367 = vmatprep.subr.mxu0 %v9205
        %9368 = vmatpush1.msra.mxu0 %v9204
        %9369 = vmatprep.subr.mxu0 %v9207
        %9370 = vmatpush1.msra.mxu0 %v9206
        %9371 = vmatprep.subr.mxu0 %v9209
        %9372 = vmatpush1.msra.mxu0 %v9208
        %9373 = vmatprep.subr.mxu0 %v9211
        %9374 = vmatpush1.msra.mxu0 %v9210
        %9375 = vmatprep.subr.mxu0 %v9213
        %9376 = vmatpush1.msra.mxu0 %v9212
        %9377 = vmatprep.subr.mxu0 %v9215
        %9378 = vmatpush1.msra.mxu0 %v9214
        %9379 = vmatprep.subr.mxu0 %v9217
        %9380 = vmatpush1.msra.mxu0 %v9216
        %9381 = vmatprep.subr.mxu0 %v9219
        %9382 = vmatpush1.msra.mxu0 %v9218
        %9383 = vmatprep.subr.mxu0 %v9221
        %9384 = vmatpush1.msra.mxu0 %v9220
        %9385 = vmatprep.subr.mxu0 %v9223
        %9386 = vmatpush1.msra.mxu0 %v9222
        %9387 = vmatprep.subr.mxu0 %v9225
        %9388 = vmatpush1.msra.mxu0 %v9224
        %9389 = vmatprep.subr.mxu0 %v9227
        %9390 = vmatpush1.msra.mxu0 %v9226
        %9391 = vmatprep.subr.mxu0 %v9229
        %9392 = vmatpush1.msra.mxu0 %v9228
        %9393 = vmatprep.subr.mxu0 %v9231
        %9394 = vmatpush1.msra.mxu0 %v9230
        %9395 = vmatprep.subr.mxu0 %v9233
        %9396 = vmatpush1.msra.mxu0 %v9232
        %9397 = vmatprep.subr.mxu0 %v9235
        %9398 = vmatpush1.msra.mxu0 %v9234
        %9399 = vmatprep.subr.mxu0 %v9237
        %9400 = vmatpush1.msra.mxu0 %v9236
        %9401 = vmatprep.subr.mxu0 %v9239
        %9402 = vmatpush1.msra.mxu0 %v9238
        %9403 = vmatprep.subr.mxu0 %v9241
        %9404 = vmatpush1.msra.mxu0 %v9240
        %9405 = vmatprep.subr.mxu0 %v9243
        %9406 = vmatpush1.msra.mxu0 %v9242
        %9407 = vmatprep.subr.mxu0 %v9245
        %9408 = vmatpush1.msra.mxu0 %v9244
        %9409 = vmatprep.subr.mxu0 0.0
        %9410 = vmatpush1.msra.mxu0 0.0
        %9411 = vmatprep.subr.mxu0 0.0
        %9412 = vmatpush1.msra.mxu0 0.0
        %9413 = vmatprep.subr.mxu0 0.0
        %9414 = vmatpush1.msra.mxu0 0.0
        %9415 = vmatprep.subr.mxu0 0.0
        %9416 = vmatpush1.msra.mxu0 0.0
        %9417 = vmatprep.subr.mxu0 0.0
        %9418 = vmatpush1.msra.mxu0 0.0
        %9419 = vmatprep.subr.mxu0 0.0
        %9420 = vmatpush1.msra.mxu0 0.0
        %9421 = vmatprep.subr.mxu0 0.0
        %9422 = vmatpush1.msra.mxu0 0.0
        %9423 = vmatprep.subr.mxu0 0.0
        %9424 = vmatpush1.msra.mxu0 0.0
        %9425 = vmatprep.subr.mxu0 0.0
        %9426 = vmatpush1.msra.mxu0 0.0
        %9427 = vmatprep.subr.mxu0 0.0
        %9428 = vmatpush1.msra.mxu0 0.0
        %9429 = vmatprep.mubr.f32.mxu0 %v9284
        %9430 = vmatmul.mubr.f32.gmra.mrb[0].mxu0 %v9266
        %v9431 = vpop.f32.mrb[0].mxu0
        %v9432 = vadd.f32 %v9355, %v9431
        %v9433 = vpop.f32.mrb[0].mxu0
        %v9434 = vadd.f32 %v9357, %v9433
        %9435 = vmatprep.mubr.f32.mxu0 %v9286
        %9436 = vmatmul.mubr.f32.gmra.mrb[0].mxu0 %v9275
        %v9437 = vpop.f32.mrb[0].mxu0
        %v9438 = vadd.f32 %v9361, %v9437
        %v9439 = vpop.f32.mrb[0].mxu0
        %v9440 = vadd.f32 %v9363, %v9439
        %9441 = vdwg.mxu0
        %v9442 = vadd.f32 %v9115, %v9432
        %v9443 = vadd.f32 %v9117, %v9434
        %v9444 = vadd.f32 %v9121, %v9438
        %v9445 = vadd.f32 %v9123, %v9440
        %v9446 = vxor.u32 %v9442, 2147483648
        %v9447 = vxor.u32 %v9443, 2147483648
        %v9448 = vxor.u32 %v9444, 2147483648
        %v9449 = vxor.u32 %v9445, 2147483648
        %v9450 = vmul.f32 %v9446, 1.442695
        %v9451 = vpow.pop %v9450
        %v9452 = vmul.f32 %v9447, 1.442695
        %v9453 = vpow.pop %v9452
        %v9454 = vmul.f32 %v9448, 1.442695
        %v9455 = vpow.pop %v9454
        %v9456 = vmul.f32 %v9449, 1.442695
        %v9457 = vpow.pop %v9456
        %v9458 = vadd.f32 %v9451, 1.0
        %v9459 = vadd.f32 %v9453, 1.0
        %v9460 = vadd.f32 %v9455, 1.0
        %v9461 = vadd.f32 %v9457, 1.0
        %v9462 = vrcp.pop %v9458
        %v9463 = vmul.f32 1.0, %v9462
        %v9464 = vrcp.pop %v9459
        %v9465 = vmul.f32 1.0, %v9464
        %v9466 = vrcp.pop %v9460
        %v9467 = vmul.f32 1.0, %v9466
        %v9468 = vrcp.pop %v9461
        %v9469 = vmul.f32 1.0, %v9468
        %9470 = vst [vmem:[%s158] sm:$0xff] %v9463
        %9471 = vst [vmem:[%s158 + $0x8] sm:$0xff] %v9465
        %9472 = vst [vmem:[%s158 + $0x10] sm:$0xff] %v9467
        %9473 = vst [vmem:[%s158 + $0x18] sm:$0xff] %v9469
        %p9474 = scmp.lt.s32.totalorder %s14, 1
        %s9475 = scalar_select %p9474, %s14, 1
        %s9476 = smul.addr %s9475, 4
        %s9477 = smul.addr %s9476, 8
        %s9478 = scalar_lea.vmem %s2, %s9477
        // Predicated region
        $region33: #{mnet_forward.1} parent=27 // pred_check
          %p9479 = pneg %p79
        $region34: #{mnet_forward.1} parent=27 // pred_check_branch
          %9481 = sbr.rel (%p9479) target = $region36
        $region35: #{mnet_forward.1} parent=27 // pred_region
          _
        $region36: #{mnet_forward.1} parent=27 // pred_fallthru
          _
      $region28: #{mnet_forward.1} parent=5 // pred_fallthru
        _
      %p9482 = scmp.le.s32.totalorder 2, %s9
      // Predicated region
      $region37: #{mnet_forward.1} parent=5 // pred_check
        %p9483 = pneg %p9482
      $region38: #{mnet_forward.1} parent=5 // pred_check_branch
        %9485 = sbr.rel (%p9483) target = $region40
      $region39: #{mnet_forward.1} parent=5 // pred_region
        %s9486 = ssub.s32 %s9, 2
        // Predicated region
        $region41: #{mnet_forward.1} parent=39 // pred_check
          %p9487 = pneg %p85
        $region42: #{mnet_forward.1} parent=39 // pred_check_branch
          %9489 = sbr.rel (%p9487) target = $region44
        $region43: #{mnet_forward.1} parent=39 // pred_region
          %p9490 = scmp.lt.s32.totalorder %s15, 1
          %s9491 = scalar_select %p9490, %s15, 1
          %s9492 = smul.addr %s9491, 4
          %s9493 = smul.addr %s9492, 8
          %s9494 = scalar_lea.vmem %s2, %s9493
        $region44: #{mnet_forward.1} parent=39 // pred_fallthru
          _
      $region40: #{mnet_forward.1} parent=5 // pred_fallthru
        _
    $region6: #{mnet_forward.1} parent=1 // loop_footer
      %s13 = sadd.s32 1, %s9
    $region7: #{mnet_forward.1} parent=1 // loop_footer_branch
      %8 = sbr.rel target = $region3
    $region8: #{mnet_forward.1} parent=1 // loop_exit
      _
    %9495 = vsyncpa [#allocation4], 1
    %s9496 = scalar_lea.sflag [#allocation4], 1
    %9497 = vsyncpa %s9496, 1

</llo_original>
